<compile_context>
chip_gen: v6e
topology: v6e:2x2x1
jax: 0.10.0
libtpu: 0.0.40
codegen_flags: <defaults>
</compile_context>

<pallas_src>
import functools

import jax
import jax.numpy as jnp
from jax import lax
from jax.experimental import pallas as pl
from jax.experimental.pallas import tpu as pltpu

# ----- hyperparameters (hp.*), small but consistent with the module -----------
NUM_MELS = 8          # hp.dsp.num_mels
NUM_AUDIO_FEAT = 4    # hp.dsp.num_audio_features
IN_CH = 3             # hp.model.encoder.input_channels (split size along dim=1)
EXPAND = 16           # hp.model.encoder.expand_channels -> GroupNorm groups = 1
LSTM_H = 32           # hp.model.encoder.lstm_hidden_dims
LSTM_LAYERS = 2       # hp.model.encoder.lstm_num_layers
ENC_DIM = 16          # hp.model.encoder.encoding_dims
T = 8                 # time frames (spatial W of conv input)
GN_EPS = 1e-5

assert EXPAND // 16 == 1, "kernel implements GroupNorm for groups == 1 (EXPAND == 16)"

H = LSTM_H
M = NUM_MELS
C = EXPAND
A2 = 2 * NUM_AUDIO_FEAT          # 8 audio feature channels
XCOLS = IN_CH * M * T            # 192 input columns per branch (ci, m, t)
YCOLS = T * M * C                # 1024 conv1 output columns (t, m, co)
SCOLS = T * M                    # 64 conv2 output columns (t, m)
SEQ_F = 2 * M + A2               # 24 natural LSTM-0 input features
GIN_COLS = T * 8 * H             # 2048 packed gate-preactivation columns
OUT0_COLS = T * 2 * H            # 512 packed layer-0 output columns

GN_ROW_CHUNK = 16                # conv/GN rows per chunk (bounds vreg pressure)
GIN_COL_CHUNK = 2 * 8 * H        # 512 gate columns (2 timesteps) per matmul chunk


# --------------------------- fused Pallas kernel -------------------------------

def encoder_kernel(xf_ref, af_ref,
                   w1b_ref, gam_ref, bet_ref, w2b_ref,
                   gi0_ref, b0_ref, wh0_ref,
                   gi1_ref, b1_ref, wh1_ref,
                   fcw_ref, fcb_ref,
                   o_ref, gin_scr):
    """One batch tile of the whole encoder forward.

    xf_ref : (BT, 2*XCOLS) f32   x flattened per sample: [L(ci,m,t) | R(ci,m,t)]
    af_ref : (BT, 2A*T)    f32   audio features flattened (a, t)
    w1b    : (XCOLS, YCOLS) bf16 conv1 as kron (input (ci,m,t) -> output (t,m,co))
    gam/bet: (1, YCOLS)    f32   GN affine tiled over (t, m)
    w2b    : (YCOLS, SCOLS) bf16 conv2 as kron ((t,m,co) -> (t,m))
    gi0    : (3*SCOLS, GIN_COLS) bf16  LSTM-0 input proj, time-paired/joint-gate packed
    gi1    : (OUT0_COLS, GIN_COLS) bf16  LSTM-1 input proj, same packing
    b0/b1  : (1, GIN_COLS) f32   (b_ih + b_hh) tiled over steps
    wh0/1  : (2H, 8H)      bf16  block-diag recurrent weights, joint-gate columns
    fcw/fcb: (4H, E) bf16, (1, E) f32
    o_ref  : (BT, E) f32
    gin_scr: (BT, GIN_COLS) f32 VMEM scratch (reused by both LSTM layers)
    """
    bt = xf_ref.shape[0]
    H2, H4, H6, H8 = 2 * H, 4 * H, 6 * H, 8 * H

    x_bf = xf_ref[...].astype(jnp.bfloat16)

    # ---------------- in_conv (conv1 -> GroupNorm(1) -> ReLU -> conv2) ----------
    # L and R branches are separate GroupNorm samples (as in the PyTorch module);
    # each row of y holds ALL T*M*C elements of one (sample, branch) group, so the
    # GN statistics are an exact single-axis reduction per row.
    s_parts = []
    for br in range(2):
        xb = x_bf[:, br * XCOLS:(br + 1) * XCOLS]                        # (bt, 192)
        chunks = []
        for r0 in range(0, bt, GN_ROW_CHUNK):
            xc = xb[r0:r0 + GN_ROW_CHUNK]
            y = jnp.dot(xc, w1b_ref[...], preferred_element_type=jnp.float32)  # (rc, 1024) f32
            mu = jnp.mean(y, axis=1, keepdims=True)
            d = y - mu
            var = jnp.mean(d * d, axis=1, keepdims=True)
            yn = jnp.maximum(
                d * lax.rsqrt(var + GN_EPS) * gam_ref[...] + bet_ref[...], 0.0)
            chunks.append(jnp.dot(yn.astype(jnp.bfloat16), w2b_ref[...],
                                  preferred_element_type=jnp.float32))   # (rc, 64) f32
        s_parts.append(chunks[0] if len(chunks) == 1
                       else jnp.concatenate(chunks, axis=0))             # (bt, 64)

    # The (time, mel) transpose, the L/R/audio concat and the audio transpose are
    # all folded into the gi0 weight packing -> just concatenate raw column blocks.
    seq = jnp.concatenate([s_parts[0], s_parts[1], af_ref[...]],
                          axis=1).astype(jnp.bfloat16)                   # (bt, 192)

    # ---------------- hoisted, time-parallel LSTM input projections -------------
    def input_proj(lhs_bf, gi_ref, b_ref):
        for c0 in range(0, GIN_COLS, GIN_COL_CHUNK):
            gin_scr[:, c0:c0 + GIN_COL_CHUNK] = (
                jnp.dot(lhs_bf, gi_ref[:, c0:c0 + GIN_COL_CHUNK],
                        preferred_element_type=jnp.float32)
                + b_ref[:, c0:c0 + GIN_COL_CHUNK])

    # ---------------- bidirectional LSTM recurrence (joint fwd/bwd cells) -------
    # h / c lanes: [0:H] forward, [H:2H] backward.  Gate columns (per step block):
    # [i_f i_b | f_f f_b | o_f o_b | g_f g_b].  The packed gi* weights already pair
    # forward gates with time t=step and backward gates with time t=T-1-step, so a
    # single contiguous 8H column slice of gin feeds both directions each step.
    def recurrence(wh_ref):
        c = jnp.zeros((bt, H2), jnp.float32)
        h = jnp.zeros((bt, H2), jnp.float32)
        hs = []
        for st in range(T):                              # fully unrolled (T static)
            gh = jnp.dot(h.astype(jnp.bfloat16), wh_ref[...],
                         preferred_element_type=jnp.float32)             # (bt, 8H)
            g = gin_scr[:, st * H8:(st + 1) * H8] + gh
            sg = jax.nn.sigmoid(g[:, :H6])               # i|f|o joint, one EUP pass
            tg = jnp.tanh(g[:, H6:H8])                   # g joint, one EUP pass
            c = sg[:, H2:H4] * c + sg[:, :H2] * tg
            h = sg[:, H4:H6] * jnp.tanh(c)
            hs.append(h.astype(jnp.bfloat16))            # layer output at (t, T-1-t)
        # final step's h == [h_fwd(T-1) | h_bwd(0)] == this layer's h_n slice
        return h, jnp.concatenate(hs, axis=1)            # (bt, 2H) f32, (bt, T*2H) bf16

    # layer 0
    input_proj(seq, gi0_ref, b0_ref)
    h0, out0 = recurrence(wh0_ref)
    # layer 1 (gi1 row packing matches out0's (step, fwd/bwd) column layout)
    input_proj(out0, gi1_ref, b1_ref)
    h1, _ = recurrence(wh1_ref)

    # ---------------- fc on h_n = [l0_fwd, l0_bwd, l1_fwd, l1_bwd] ---------------
    hn = jnp.concatenate([h0, h1], axis=1).astype(jnp.bfloat16)          # (bt, 4H)
    o_ref[...] = jnp.dot(hn, fcw_ref[...],
                         preferred_element_type=jnp.float32) + fcb_ref[...]


# --------------------------- pallas_call wrapper --------------------------------

def encoder_forward(x, audio_features, params, *, batch_tile=16):
    """x: (B, 2*IN_CH, M, T) NCHW; audio_features: (B, 2*A, T). Returns (B, ENC_DIM).

    Only layout-preserving (free) reshapes happen here; all packing is baked into
    the weights.  batch_tile can be raised to 128 (v5e) / 256 (v6e, v7x) rows per
    program essentially for free; the grid axis over batch chunks is "parallel" so
    v7x's two TensorCores each take half the chunks.
    """
    B = x.shape[0]
    bt = min(batch_tile, B)
    assert B % bt == 0 and bt % 8 == 0

    xf = x.reshape(B, 2 * XCOLS)                       # free reshape (row-major)
    af = audio_features.reshape(B, A2 * T)             # free reshape (row-major)

    args = (xf, af, params['w1b'], params['gam'], params['bet'], params['w2b'],
            params['gi0'], params['b0'], params['wh0'],
            params['gi1'], params['b1'], params['wh1'],
            params['fcw'], params['fcb'])

    def bspec(shape, batch_tiled):
        if batch_tiled:
            return pl.BlockSpec((bt,) + shape[1:],
                                lambda i: (i,) + (0,) * (len(shape) - 1))
        return pl.BlockSpec(shape, lambda i: (0,) * len(shape))

    in_specs = ([bspec(xf.shape, True), bspec(af.shape, True)]
                + [bspec(a.shape, False) for a in args[2:]])

    return pl.pallas_call(
        encoder_kernel,
        grid=(B // bt,),
        in_specs=in_specs,
        out_specs=pl.BlockSpec((bt, ENC_DIM), lambda i: (i, 0)),
        out_shape=jax.ShapeDtypeStruct((B, ENC_DIM), jnp.float32),
        scratch_shapes=[pltpu.VMEM((bt, GIN_COLS), jnp.float32)],
        compiler_params=pltpu.CompilerParams(dimension_semantics=("parallel",)),
    )(*args)


# ------------------------------- parameter init ---------------------------------

def init_params(key):
    """Random 'natural' (PyTorch-layout) weights, packed once into kernel layout."""
    ks = jax.random.split(key, 18)

    def n(k, shape, s=0.1):
        return s * jax.random.normal(k, shape, jnp.float32)

    H4 = 4 * H
    I0, I1 = SEQ_F, 2 * H

    # natural weights
    w1 = n(ks[0], (IN_CH, C))                 # conv1 weight (O,I,1,1) -> (I,O)
    gamma = 1.0 + n(ks[1], (C,))
    beta = n(ks[2], (C,))
    w2 = n(ks[3], (C,))                       # conv2 weight (1,C,1,1) -> (C,)
    l0 = dict(wif=n(ks[4], (I0, H4)), whf=n(ks[5], (H, H4)), bf=n(ks[6], (1, H4)),
              wib=n(ks[7], (I0, H4)), whb=n(ks[8], (H, H4)), bb=n(ks[9], (1, H4)))
    l1 = dict(wif=n(ks[10], (I1, H4)), whf=n(ks[11], (H, H4)), bf=n(ks[12], (1, H4)),
              wib=n(ks[13], (I1, H4)), whb=n(ks[14], (H, H4)), bb=n(ks[15], (1, H4)))
    fc_w = n(ks[16], (2 * LSTM_LAYERS * H, ENC_DIM))
    fc_b = n(ks[17], (1, ENC_DIM))

    bf16 = jnp.bfloat16
    eye_m = jnp.eye(M, dtype=jnp.float32)
    eye_t = jnp.eye(T, dtype=jnp.float32)
    flip_t = eye_t[::-1]                      # flip_t[t, s] = 1  iff  t == T-1-s

    def joint_cols(wf, wb):
        # per-direction PyTorch gate order [i f g o] -> joint columns
        # [i_f i_b | f_f f_b | o_f o_b | g_f g_b]  (sigmoid on first 6H, tanh last 2H)
        return jnp.concatenate([wf[..., 0:H], wb[..., 0:H],
                                wf[..., H:2 * H], wb[..., H:2 * H],
                                wf[..., 3 * H:4 * H], wb[..., 3 * H:4 * H],
                                wf[..., 2 * H:3 * H], wb[..., 2 * H:3 * H]], axis=-1)

    dir_f = jnp.tile(jnp.concatenate([jnp.ones((H,)), jnp.zeros((H,))]), 4)  # (8H,)

    def wh_joint(whf, whb):
        z = jnp.zeros_like(whf)
        return jnp.concatenate([joint_cols(whf, z), joint_cols(z, whb)], axis=0)

    def gi_layer0(wif, wib):
        wj = joint_cols(wif, wib)                              # (24, 8H)
        wjf, wjb = wj * dir_f, wj * (1.0 - dir_f)

        def blk(rf, rb, sub):
            return (jnp.einsum(sub, rf, eye_t)
                    + jnp.einsum(sub, rb, flip_t)).reshape(-1, GIN_COLS)

        b_l = blk(wjf[0:M], wjb[0:M], 'mj,ts->tmsj')           # sL rows (t, m)
        b_r = blk(wjf[M:2 * M], wjb[M:2 * M], 'mj,ts->tmsj')   # sR rows (t, m)
        b_a = blk(wjf[2 * M:], wjb[2 * M:], 'aj,ts->atsj')     # audio rows (a, t)
        return jnp.concatenate([b_l, b_r, b_a], axis=0)        # (192, 2048)

    def gi_layer1(wif, wib):
        wj = joint_cols(wif, wib)                              # (2H, 8H)
        wjf, wjb = wj * dir_f, wj * (1.0 - dir_f)
        rows_f = (jnp.einsum('lj,ts->tlsj', wjf[0:H], eye_t)
                  + jnp.einsum('lj,ts->tlsj', wjb[0:H], flip_t))
        rows_b = (jnp.einsum('lj,ts->tlsj', wjf[H:2 * H], flip_t)
                  + jnp.einsum('lj,ts->tlsj', wjb[H:2 * H], eye_t))
        return jnp.concatenate([rows_f, rows_b], axis=1).reshape(OUT0_COLS, GIN_COLS)

    return {
        # conv stack: kron-with-identity weights map native (ci,m,t) columns
        # directly to (t,m,co) / (t,m) columns -> no transposes anywhere.
        'w1b': jnp.einsum('ic,mn,ts->imtsnc', w1, eye_m, eye_t)
                  .reshape(XCOLS, YCOLS).astype(bf16),
        'gam': jnp.tile(gamma, T * M)[None, :],
        'bet': jnp.tile(beta, T * M)[None, :],
        'w2b': jnp.einsum('c,ts,mn->tmcsn', w2, eye_t, eye_m)
                  .reshape(YCOLS, SCOLS).astype(bf16),
        # LSTM input projections: time-paired (fwd step t / bwd step T-1-t),
        # joint-gate-ordered, bias (b_ih + b_hh) folded and tiled over steps.
        'gi0': gi_layer0(l0['wif'], l0['wib']).astype(bf16),
        'b0': jnp.tile(joint_cols(l0['bf'], l0['bb']), (1, T)),
        'wh0': wh_joint(l0['whf'], l0['whb']).astype(bf16),
        'gi1': gi_layer1(l1['wif'], l1['wib']).astype(bf16),
        'b1': jnp.tile(joint_cols(l1['bf'], l1['bb']), (1, T)),
        'wh1': wh_joint(l1['whf'], l1['whb']).astype(bf16),
        'fcw': fc_w.astype(bf16),
        'fcb': fc_b,
    }


if __name__ == "__main__":
    B = 32                                   # total batch; 2 parallel grid programs
    key = jax.random.PRNGKey(0)
    k1, k2, k3 = jax.random.split(key, 3)
    x = jax.random.normal(k1, (B, 2 * IN_CH, NUM_MELS, T), jnp.float32)
    audio_features = jax.random.normal(k2, (B, 2 * NUM_AUDIO_FEAT, T), jnp.float32)
    params = init_params(k3)

    fwd = jax.jit(functools.partial(encoder_forward, batch_tile=16))
    out = jax.block_until_ready(fwd(x, audio_features, params))

    assert out.shape == (B, ENC_DIM), out.shape
    assert bool(jnp.all(jnp.isfinite(out)))
    print("KERNEL_OK")
</pallas_src>

<mosaic_0001>
module attributes {stable_mosaic.version = 11 : i64} {
  func.func @encoder_kernel(%arg0: i32, %arg1: memref<16x384xf32, #tpu.memory_space<vmem>>, %arg2: memref<16x64xf32, #tpu.memory_space<vmem>>, %arg3: memref<192x1024xbf16, #tpu.memory_space<vmem>>, %arg4: memref<1x1024xf32, #tpu.memory_space<vmem>>, %arg5: memref<1x1024xf32, #tpu.memory_space<vmem>>, %arg6: memref<1024x64xbf16, #tpu.memory_space<vmem>>, %arg7: memref<192x2048xbf16, #tpu.memory_space<vmem>>, %arg8: memref<1x2048xf32, #tpu.memory_space<vmem>>, %arg9: memref<64x256xbf16, #tpu.memory_space<vmem>>, %arg10: memref<512x2048xbf16, #tpu.memory_space<vmem>>, %arg11: memref<1x2048xf32, #tpu.memory_space<vmem>>, %arg12: memref<64x256xbf16, #tpu.memory_space<vmem>>, %arg13: memref<128x16xbf16, #tpu.memory_space<vmem>>, %arg14: memref<1x16xf32, #tpu.memory_space<vmem>>, %arg15: memref<16x16xf32, #tpu.memory_space<vmem>>, %arg16: memref<16x2048xf32, #tpu.memory_space<vmem>>) attributes {dimension_semantics = [#tpu.dimension_semantics<parallel>], iteration_bounds = array<i64: 2>, scalar_prefetch = 0 : i64, scratch_operands = 1 : i64, tpu.core_type = #tpu.core_type<tc>, window_params = [{transform_indices = @transform_0, window_bounds = array<i64: 16, 384>}, {transform_indices = @transform_1, window_bounds = array<i64: 16, 64>}, {pipeline_mode = #tpu.pipeline_mode<synchronous>, transform_indices = @transform_2, window_bounds = array<i64: 192, 1024>}, {pipeline_mode = #tpu.pipeline_mode<synchronous>, transform_indices = @transform_3, window_bounds = array<i64: 1, 1024>}, {pipeline_mode = #tpu.pipeline_mode<synchronous>, transform_indices = @transform_4, window_bounds = array<i64: 1, 1024>}, {pipeline_mode = #tpu.pipeline_mode<synchronous>, transform_indices = @transform_5, window_bounds = array<i64: 1024, 64>}, {pipeline_mode = #tpu.pipeline_mode<synchronous>, transform_indices = @transform_6, window_bounds = array<i64: 192, 2048>}, {pipeline_mode = #tpu.pipeline_mode<synchronous>, transform_indices = @transform_7, window_bounds = array<i64: 1, 2048>}, {pipeline_mode = #tpu.pipeline_mode<synchronous>, transform_indices = @transform_8, window_bounds = array<i64: 64, 256>}, {pipeline_mode = #tpu.pipeline_mode<synchronous>, transform_indices = @transform_9, window_bounds = array<i64: 512, 2048>}, {pipeline_mode = #tpu.pipeline_mode<synchronous>, transform_indices = @transform_10, window_bounds = array<i64: 1, 2048>}, {pipeline_mode = #tpu.pipeline_mode<synchronous>, transform_indices = @transform_11, window_bounds = array<i64: 64, 256>}, {pipeline_mode = #tpu.pipeline_mode<synchronous>, transform_indices = @transform_12, window_bounds = array<i64: 128, 16>}, {pipeline_mode = #tpu.pipeline_mode<synchronous>, transform_indices = @transform_13, window_bounds = array<i64: 1, 16>}, {transform_indices = @transform_14, window_bounds = array<i64: 16, 16>}]} {
    %c0 = arith.constant 0 : index
    %c0_0 = arith.constant 0 : index
    %0 = vector.load %arg1[%c0, %c0_0] : memref<16x384xf32, #tpu.memory_space<vmem>>, vector<16x384xf32>
    %1 = arith.truncf %0 : vector<16x384xf32> to vector<16x384xbf16>
    %2 = vector.extract_strided_slice %1 {offsets = [0, 0], sizes = [16, 192], strides = [1, 1]} : vector<16x384xbf16> to vector<16x192xbf16>
    %c0_1 = arith.constant 0 : index
    %c0_2 = arith.constant 0 : index
    %3 = vector.load %arg3[%c0_1, %c0_2] : memref<192x1024xbf16, #tpu.memory_space<vmem>>, vector<192x1024xbf16>
    %cst = arith.constant dense<0.000000e+00> : vector<16x1024xf32>
    %4 = tpu.matmul %2, %3, %cst {dimension_numbers = #tpu.dot_dimension_numbers<[1], [0], [0], [1], [0, 0, 1, 1], [], []>} : vector<16x192xbf16>, vector<192x1024xbf16>, vector<16x1024xf32> -> vector<16x1024xf32>
    %cst_3 = arith.constant dense<0.000000e+00> : vector<16xf32>
    %5 = vector.multi_reduction <add>, %4, %cst_3 [1] : vector<16x1024xf32> to vector<16xf32>
    %6 = vector.shape_cast %5 : vector<16xf32> to vector<16x1xf32>
    %cst_4 = arith.constant 1.024000e+03 : f32
    %7 = vector.broadcast %cst_4 : f32 to vector<16x1xf32>
    %8 = arith.divf %6, %7 : vector<16x1xf32>
    %9 = vector.broadcast %8 : vector<16x1xf32> to vector<16x1024xf32>
    %10 = arith.subf %4, %9 : vector<16x1024xf32>
    %11 = arith.mulf %10, %10 : vector<16x1024xf32>
    %cst_5 = arith.constant dense<0.000000e+00> : vector<16xf32>
    %12 = vector.multi_reduction <add>, %11, %cst_5 [1] : vector<16x1024xf32> to vector<16xf32>
    %13 = vector.shape_cast %12 : vector<16xf32> to vector<16x1xf32>
    %cst_6 = arith.constant 1.024000e+03 : f32
    %14 = vector.broadcast %cst_6 : f32 to vector<16x1xf32>
    %15 = arith.divf %13, %14 : vector<16x1xf32>
    %cst_7 = arith.constant 9.99999974E-6 : f32
    %16 = vector.broadcast %cst_7 : f32 to vector<16x1xf32>
    %17 = arith.addf %15, %16 : vector<16x1xf32>
    %18 = math.rsqrt %17 : vector<16x1xf32>
    %19 = vector.broadcast %18 : vector<16x1xf32> to vector<16x1024xf32>
    %20 = arith.mulf %10, %19 : vector<16x1024xf32>
    %c0_8 = arith.constant 0 : index
    %c0_9 = arith.constant 0 : index
    %21 = vector.load %arg4[%c0_8, %c0_9] : memref<1x1024xf32, #tpu.memory_space<vmem>>, vector<1x1024xf32>
    %22 = vector.broadcast %21 : vector<1x1024xf32> to vector<16x1024xf32>
    %23 = arith.mulf %20, %22 : vector<16x1024xf32>
    %c0_10 = arith.constant 0 : index
    %c0_11 = arith.constant 0 : index
    %24 = vector.load %arg5[%c0_10, %c0_11] : memref<1x1024xf32, #tpu.memory_space<vmem>>, vector<1x1024xf32>
    %25 = vector.broadcast %24 : vector<1x1024xf32> to vector<16x1024xf32>
    %26 = arith.addf %23, %25 : vector<16x1024xf32>
    %cst_12 = arith.constant 0.000000e+00 : f32
    %27 = vector.broadcast %cst_12 : f32 to vector<16x1024xf32>
    %28 = arith.maximumf %26, %27 : vector<16x1024xf32>
    %29 = arith.truncf %28 : vector<16x1024xf32> to vector<16x1024xbf16>
    %c0_13 = arith.constant 0 : index
    %c0_14 = arith.constant 0 : index
    %30 = vector.load %arg6[%c0_13, %c0_14] : memref<1024x64xbf16, #tpu.memory_space<vmem>>, vector<1024x64xbf16>
    %cst_15 = arith.constant dense<0.000000e+00> : vector<16x64xf32>
    %31 = tpu.matmul %29, %30, %cst_15 {dimension_numbers = #tpu.dot_dimension_numbers<[1], [0], [0], [1], [0, 0, 1, 1], [], []>} : vector<16x1024xbf16>, vector<1024x64xbf16>, vector<16x64xf32> -> vector<16x64xf32>
    %32 = vector.extract_strided_slice %1 {offsets = [0, 192], sizes = [16, 192], strides = [1, 1]} : vector<16x384xbf16> to vector<16x192xbf16>
    %c0_16 = arith.constant 0 : index
    %c0_17 = arith.constant 0 : index
    %33 = vector.load %arg3[%c0_16, %c0_17] : memref<192x1024xbf16, #tpu.memory_space<vmem>>, vector<192x1024xbf16>
    %cst_18 = arith.constant dense<0.000000e+00> : vector<16x1024xf32>
    %34 = tpu.matmul %32, %33, %cst_18 {dimension_numbers = #tpu.dot_dimension_numbers<[1], [0], [0], [1], [0, 0, 1, 1], [], []>} : vector<16x192xbf16>, vector<192x1024xbf16>, vector<16x1024xf32> -> vector<16x1024xf32>
    %cst_19 = arith.constant dense<0.000000e+00> : vector<16xf32>
    %35 = vector.multi_reduction <add>, %34, %cst_19 [1] : vector<16x1024xf32> to vector<16xf32>
    %36 = vector.shape_cast %35 : vector<16xf32> to vector<16x1xf32>
    %cst_20 = arith.constant 1.024000e+03 : f32
    %37 = vector.broadcast %cst_20 : f32 to vector<16x1xf32>
    %38 = arith.divf %36, %37 : vector<16x1xf32>
    %39 = vector.broadcast %38 : vector<16x1xf32> to vector<16x1024xf32>
    %40 = arith.subf %34, %39 : vector<16x1024xf32>
    %41 = arith.mulf %40, %40 : vector<16x1024xf32>
    %cst_21 = arith.constant dense<0.000000e+00> : vector<16xf32>
    %42 = vector.multi_reduction <add>, %41, %cst_21 [1] : vector<16x1024xf32> to vector<16xf32>
    %43 = vector.shape_cast %42 : vector<16xf32> to vector<16x1xf32>
    %cst_22 = arith.constant 1.024000e+03 : f32
    %44 = vector.broadcast %cst_22 : f32 to vector<16x1xf32>
    %45 = arith.divf %43, %44 : vector<16x1xf32>
    %cst_23 = arith.constant 9.99999974E-6 : f32
    %46 = vector.broadcast %cst_23 : f32 to vector<16x1xf32>
    %47 = arith.addf %45, %46 : vector<16x1xf32>
    %48 = math.rsqrt %47 : vector<16x1xf32>
    %49 = vector.broadcast %48 : vector<16x1xf32> to vector<16x1024xf32>
    %50 = arith.mulf %40, %49 : vector<16x1024xf32>
    %c0_24 = arith.constant 0 : index
    %c0_25 = arith.constant 0 : index
    %51 = vector.load %arg4[%c0_24, %c0_25] : memref<1x1024xf32, #tpu.memory_space<vmem>>, vector<1x1024xf32>
    %52 = vector.broadcast %51 : vector<1x1024xf32> to vector<16x1024xf32>
    %53 = arith.mulf %50, %52 : vector<16x1024xf32>
    %c0_26 = arith.constant 0 : index
    %c0_27 = arith.constant 0 : index
    %54 = vector.load %arg5[%c0_26, %c0_27] : memref<1x1024xf32, #tpu.memory_space<vmem>>, vector<1x1024xf32>
    %55 = vector.broadcast %54 : vector<1x1024xf32> to vector<16x1024xf32>
    %56 = arith.addf %53, %55 : vector<16x1024xf32>
    %cst_28 = arith.constant 0.000000e+00 : f32
    %57 = vector.broadcast %cst_28 : f32 to vector<16x1024xf32>
    %58 = arith.maximumf %56, %57 : vector<16x1024xf32>
    %59 = arith.truncf %58 : vector<16x1024xf32> to vector<16x1024xbf16>
    %c0_29 = arith.constant 0 : index
    %c0_30 = arith.constant 0 : index
    %60 = vector.load %arg6[%c0_29, %c0_30] : memref<1024x64xbf16, #tpu.memory_space<vmem>>, vector<1024x64xbf16>
    %cst_31 = arith.constant dense<0.000000e+00> : vector<16x64xf32>
    %61 = tpu.matmul %59, %60, %cst_31 {dimension_numbers = #tpu.dot_dimension_numbers<[1], [0], [0], [1], [0, 0, 1, 1], [], []>} : vector<16x1024xbf16>, vector<1024x64xbf16>, vector<16x64xf32> -> vector<16x64xf32>
    %c0_32 = arith.constant 0 : index
    %c0_33 = arith.constant 0 : index
    %62 = vector.load %arg2[%c0_32, %c0_33] : memref<16x64xf32, #tpu.memory_space<vmem>>, vector<16x64xf32>
    %63 = tpu.concatenate %31, %61, %62 in 1 : vector<16x64xf32>, vector<16x64xf32>, vector<16x64xf32> -> vector<16x192xf32>
    %64 = arith.truncf %63 : vector<16x192xf32> to vector<16x192xbf16>
    %c0_34 = arith.constant 0 : index
    %c0_35 = arith.constant 0 : index
    %65 = vector.load %arg7[%c0_34, %c0_35] : memref<192x2048xbf16, #tpu.memory_space<vmem>>, vector<192x512xbf16>
    %cst_36 = arith.constant dense<0.000000e+00> : vector<16x512xf32>
    %66 = tpu.matmul %64, %65, %cst_36 {dimension_numbers = #tpu.dot_dimension_numbers<[1], [0], [0], [1], [0, 0, 1, 1], [], []>} : vector<16x192xbf16>, vector<192x512xbf16>, vector<16x512xf32> -> vector<16x512xf32>
    %c0_37 = arith.constant 0 : index
    %c0_38 = arith.constant 0 : index
    %67 = vector.load %arg8[%c0_37, %c0_38] : memref<1x2048xf32, #tpu.memory_space<vmem>>, vector<1x512xf32>
    %68 = vector.broadcast %67 : vector<1x512xf32> to vector<16x512xf32>
    %69 = arith.addf %66, %68 : vector<16x512xf32>
    %c0_39 = arith.constant 0 : index
    %c0_40 = arith.constant 0 : index
    %70 = vector.load %arg16[%c0_39, %c0_40] : memref<16x2048xf32, #tpu.memory_space<vmem>>, vector<16x512xf32>
    tpu.vector_store %arg16[%c0_39, %c0_40], %69 {strides = array<i32>} : memref<16x2048xf32, #tpu.memory_space<vmem>>, vector<16x512xf32>,
    %c0_41 = arith.constant 0 : index
    %c512 = arith.constant 512 : index
    %71 = vector.load %arg7[%c0_41, %c512] : memref<192x2048xbf16, #tpu.memory_space<vmem>>, vector<192x512xbf16>
    %cst_42 = arith.constant dense<0.000000e+00> : vector<16x512xf32>
    %72 = tpu.matmul %64, %71, %cst_42 {dimension_numbers = #tpu.dot_dimension_numbers<[1], [0], [0], [1], [0, 0, 1, 1], [], []>} : vector<16x192xbf16>, vector<192x512xbf16>, vector<16x512xf32> -> vector<16x512xf32>
    %c0_43 = arith.constant 0 : index
    %c512_44 = arith.constant 512 : index
    %73 = vector.load %arg8[%c0_43, %c512_44] : memref<1x2048xf32, #tpu.memory_space<vmem>>, vector<1x512xf32>
    %74 = vector.broadcast %73 : vector<1x512xf32> to vector<16x512xf32>
    %75 = arith.addf %72, %74 : vector<16x512xf32>
    %c0_45 = arith.constant 0 : index
    %c512_46 = arith.constant 512 : index
    %76 = vector.load %arg16[%c0_45, %c512_46] : memref<16x2048xf32, #tpu.memory_space<vmem>>, vector<16x512xf32>
    tpu.vector_store %arg16[%c0_45, %c512_46], %75 {strides = array<i32>} : memref<16x2048xf32, #tpu.memory_space<vmem>>, vector<16x512xf32>,
    %c0_47 = arith.constant 0 : index
    %c1024 = arith.constant 1024 : index
    %77 = vector.load %arg7[%c0_47, %c1024] : memref<192x2048xbf16, #tpu.memory_space<vmem>>, vector<192x512xbf16>
    %cst_48 = arith.constant dense<0.000000e+00> : vector<16x512xf32>
    %78 = tpu.matmul %64, %77, %cst_48 {dimension_numbers = #tpu.dot_dimension_numbers<[1], [0], [0], [1], [0, 0, 1, 1], [], []>} : vector<16x192xbf16>, vector<192x512xbf16>, vector<16x512xf32> -> vector<16x512xf32>
    %c0_49 = arith.constant 0 : index
    %c1024_50 = arith.constant 1024 : index
    %79 = vector.load %arg8[%c0_49, %c1024_50] : memref<1x2048xf32, #tpu.memory_space<vmem>>, vector<1x512xf32>
    %80 = vector.broadcast %79 : vector<1x512xf32> to vector<16x512xf32>
    %81 = arith.addf %78, %80 : vector<16x512xf32>
    %c0_51 = arith.constant 0 : index
    %c1024_52 = arith.constant 1024 : index
    %82 = vector.load %arg16[%c0_51, %c1024_52] : memref<16x2048xf32, #tpu.memory_space<vmem>>, vector<16x512xf32>
    tpu.vector_store %arg16[%c0_51, %c1024_52], %81 {strides = array<i32>} : memref<16x2048xf32, #tpu.memory_space<vmem>>, vector<16x512xf32>,
    %c0_53 = arith.constant 0 : index
    %c1536 = arith.constant 1536 : index
    %83 = vector.load %arg7[%c0_53, %c1536] : memref<192x2048xbf16, #tpu.memory_space<vmem>>, vector<192x512xbf16>
    %cst_54 = arith.constant dense<0.000000e+00> : vector<16x512xf32>
    %84 = tpu.matmul %64, %83, %cst_54 {dimension_numbers = #tpu.dot_dimension_numbers<[1], [0], [0], [1], [0, 0, 1, 1], [], []>} : vector<16x192xbf16>, vector<192x512xbf16>, vector<16x512xf32> -> vector<16x512xf32>
    %c0_55 = arith.constant 0 : index
    %c1536_56 = arith.constant 1536 : index
    %85 = vector.load %arg8[%c0_55, %c1536_56] : memref<1x2048xf32, #tpu.memory_space<vmem>>, vector<1x512xf32>
    %86 = vector.broadcast %85 : vector<1x512xf32> to vector<16x512xf32>
    %87 = arith.addf %84, %86 : vector<16x512xf32>
    %c0_57 = arith.constant 0 : index
    %c1536_58 = arith.constant 1536 : index
    %88 = vector.load %arg16[%c0_57, %c1536_58] : memref<16x2048xf32, #tpu.memory_space<vmem>>, vector<16x512xf32>
    tpu.vector_store %arg16[%c0_57, %c1536_58], %87 {strides = array<i32>} : memref<16x2048xf32, #tpu.memory_space<vmem>>, vector<16x512xf32>,
    %cst_59 = arith.constant 0.000000e+00 : f32
    %89 = vector.broadcast %cst_59 : f32 to vector<16x64xf32>
    %cst_60 = arith.constant 0.000000e+00 : f32
    %90 = vector.broadcast %cst_60 : f32 to vector<16x64xf32>
    %91 = arith.truncf %90 : vector<16x64xf32> to vector<16x64xbf16>
    %c0_61 = arith.constant 0 : index
    %c0_62 = arith.constant 0 : index
    %92 = vector.load %arg9[%c0_61, %c0_62] : memref<64x256xbf16, #tpu.memory_space<vmem>>, vector<64x256xbf16>
    %cst_63 = arith.constant dense<0.000000e+00> : vector<16x256xf32>
    %93 = tpu.matmul %91, %92, %cst_63 {dimension_numbers = #tpu.dot_dimension_numbers<[1], [0], [0], [1], [0, 0, 1, 1], [], []>} : vector<16x64xbf16>, vector<64x256xbf16>, vector<16x256xf32> -> vector<16x256xf32>
    %c0_64 = arith.constant 0 : index
    %c0_65 = arith.constant 0 : index
    %94 = vector.load %arg16[%c0_64, %c0_65] : memref<16x2048xf32, #tpu.memory_space<vmem>>, vector<16x256xf32>
    %95 = arith.addf %94, %93 : vector<16x256xf32>
    %96 = vector.extract_strided_slice %95 {offsets = [0, 0], sizes = [16, 192], strides = [1, 1]} : vector<16x256xf32> to vector<16x192xf32>
    %97 = arith.negf %96 : vector<16x192xf32>
    %98 = math.exp %97 : vector<16x192xf32>
    %cst_66 = arith.constant 1.000000e+00 : f32
    %99 = vector.broadcast %cst_66 : f32 to vector<16x192xf32>
    %100 = arith.addf %99, %98 : vector<16x192xf32>
    %101 = arith.divf %99, %100 : vector<16x192xf32>
    %102 = vector.extract_strided_slice %95 {offsets = [0, 192], sizes = [16, 64], strides = [1, 1]} : vector<16x256xf32> to vector<16x64xf32>
    %103 = math.tanh %102 : vector<16x64xf32>
    %104 = vector.extract_strided_slice %101 {offsets = [0, 64], sizes = [16, 64], strides = [1, 1]} : vector<16x192xf32> to vector<16x64xf32>
    %105 = arith.mulf %104, %89 : vector<16x64xf32>
    %106 = vector.extract_strided_slice %101 {offsets = [0, 0], sizes = [16, 64], strides = [1, 1]} : vector<16x192xf32> to vector<16x64xf32>
    %107 = arith.mulf %106, %103 : vector<16x64xf32>
    %108 = arith.addf %105, %107 : vector<16x64xf32>
    %109 = vector.extract_strided_slice %101 {offsets = [0, 128], sizes = [16, 64], strides = [1, 1]} : vector<16x192xf32> to vector<16x64xf32>
    %110 = math.tanh %108 : vector<16x64xf32>
    %111 = arith.mulf %109, %110 : vector<16x64xf32>
    %112 = arith.truncf %111 : vector<16x64xf32> to vector<16x64xbf16>
    %113 = arith.truncf %111 : vector<16x64xf32> to vector<16x64xbf16>
    %c0_67 = arith.constant 0 : index
    %c0_68 = arith.constant 0 : index
    %114 = vector.load %arg9[%c0_67, %c0_68] : memref<64x256xbf16, #tpu.memory_space<vmem>>, vector<64x256xbf16>
    %cst_69 = arith.constant dense<0.000000e+00> : vector<16x256xf32>
    %115 = tpu.matmul %113, %114, %cst_69 {dimension_numbers = #tpu.dot_dimension_numbers<[1], [0], [0], [1], [0, 0, 1, 1], [], []>} : vector<16x64xbf16>, vector<64x256xbf16>, vector<16x256xf32> -> vector<16x256xf32>
    %c0_70 = arith.constant 0 : index
    %c256 = arith.constant 256 : index
    %116 = vector.load %arg16[%c0_70, %c256] : memref<16x2048xf32, #tpu.memory_space<vmem>>, vector<16x256xf32>
    %117 = arith.addf %116, %115 : vector<16x256xf32>
    %118 = vector.extract_strided_slice %117 {offsets = [0, 0], sizes = [16, 192], strides = [1, 1]} : vector<16x256xf32> to vector<16x192xf32>
    %119 = arith.negf %118 : vector<16x192xf32>
    %120 = math.exp %119 : vector<16x192xf32>
    %cst_71 = arith.constant 1.000000e+00 : f32
    %121 = vector.broadcast %cst_71 : f32 to vector<16x192xf32>
    %122 = arith.addf %121, %120 : vector<16x192xf32>
    %123 = arith.divf %121, %122 : vector<16x192xf32>
    %124 = vector.extract_strided_slice %117 {offsets = [0, 192], sizes = [16, 64], strides = [1, 1]} : vector<16x256xf32> to vector<16x64xf32>
    %125 = math.tanh %124 : vector<16x64xf32>
    %126 = vector.extract_strided_slice %123 {offsets = [0, 64], sizes = [16, 64], strides = [1, 1]} : vector<16x192xf32> to vector<16x64xf32>
    %127 = arith.mulf %126, %108 : vector<16x64xf32>
    %128 = vector.extract_strided_slice %123 {offsets = [0, 0], sizes = [16, 64], strides = [1, 1]} : vector<16x192xf32> to vector<16x64xf32>
    %129 = arith.mulf %128, %125 : vector<16x64xf32>
    %130 = arith.addf %127, %129 : vector<16x64xf32>
    %131 = vector.extract_strided_slice %123 {offsets = [0, 128], sizes = [16, 64], strides = [1, 1]} : vector<16x192xf32> to vector<16x64xf32>
    %132 = math.tanh %130 : vector<16x64xf32>
    %133 = arith.mulf %131, %132 : vector<16x64xf32>
    %134 = arith.truncf %133 : vector<16x64xf32> to vector<16x64xbf16>
    %135 = arith.truncf %133 : vector<16x64xf32> to vector<16x64xbf16>
    %c0_72 = arith.constant 0 : index
    %c0_73 = arith.constant 0 : index
    %136 = vector.load %arg9[%c0_72, %c0_73] : memref<64x256xbf16, #tpu.memory_space<vmem>>, vector<64x256xbf16>
    %cst_74 = arith.constant dense<0.000000e+00> : vector<16x256xf32>
    %137 = tpu.matmul %135, %136, %cst_74 {dimension_numbers = #tpu.dot_dimension_numbers<[1], [0], [0], [1], [0, 0, 1, 1], [], []>} : vector<16x64xbf16>, vector<64x256xbf16>, vector<16x256xf32> -> vector<16x256xf32>
    %c0_75 = arith.constant 0 : index
    %c512_76 = arith.constant 512 : index
    %138 = vector.load %arg16[%c0_75, %c512_76] : memref<16x2048xf32, #tpu.memory_space<vmem>>, vector<16x256xf32>
    %139 = arith.addf %138, %137 : vector<16x256xf32>
    %140 = vector.extract_strided_slice %139 {offsets = [0, 0], sizes = [16, 192], strides = [1, 1]} : vector<16x256xf32> to vector<16x192xf32>
    %141 = arith.negf %140 : vector<16x192xf32>
    %142 = math.exp %141 : vector<16x192xf32>
    %cst_77 = arith.constant 1.000000e+00 : f32
    %143 = vector.broadcast %cst_77 : f32 to vector<16x192xf32>
    %144 = arith.addf %143, %142 : vector<16x192xf32>
    %145 = arith.divf %143, %144 : vector<16x192xf32>
    %146 = vector.extract_strided_slice %139 {offsets = [0, 192], sizes = [16, 64], strides = [1, 1]} : vector<16x256xf32> to vector<16x64xf32>
    %147 = math.tanh %146 : vector<16x64xf32>
    %148 = vector.extract_strided_slice %145 {offsets = [0, 64], sizes = [16, 64], strides = [1, 1]} : vector<16x192xf32> to vector<16x64xf32>
    %149 = arith.mulf %148, %130 : vector<16x64xf32>
    %150 = vector.extract_strided_slice %145 {offsets = [0, 0], sizes = [16, 64], strides = [1, 1]} : vector<16x192xf32> to vector<16x64xf32>
    %151 = arith.mulf %150, %147 : vector<16x64xf32>
    %152 = arith.addf %149, %151 : vector<16x64xf32>
    %153 = vector.extract_strided_slice %145 {offsets = [0, 128], sizes = [16, 64], strides = [1, 1]} : vector<16x192xf32> to vector<16x64xf32>
    %154 = math.tanh %152 : vector<16x64xf32>
    %155 = arith.mulf %153, %154 : vector<16x64xf32>
    %156 = arith.truncf %155 : vector<16x64xf32> to vector<16x64xbf16>
    %157 = arith.truncf %155 : vector<16x64xf32> to vector<16x64xbf16>
    %c0_78 = arith.constant 0 : index
    %c0_79 = arith.constant 0 : index
    %158 = vector.load %arg9[%c0_78, %c0_79] : memref<64x256xbf16, #tpu.memory_space<vmem>>, vector<64x256xbf16>
    %cst_80 = arith.constant dense<0.000000e+00> : vector<16x256xf32>
    %159 = tpu.matmul %157, %158, %cst_80 {dimension_numbers = #tpu.dot_dimension_numbers<[1], [0], [0], [1], [0, 0, 1, 1], [], []>} : vector<16x64xbf16>, vector<64x256xbf16>, vector<16x256xf32> -> vector<16x256xf32>
    %c0_81 = arith.constant 0 : index
    %c768 = arith.constant 768 : index
    %160 = vector.load %arg16[%c0_81, %c768] : memref<16x2048xf32, #tpu.memory_space<vmem>>, vector<16x256xf32>
    %161 = arith.addf %160, %159 : vector<16x256xf32>
    %162 = vector.extract_strided_slice %161 {offsets = [0, 0], sizes = [16, 192], strides = [1, 1]} : vector<16x256xf32> to vector<16x192xf32>
    %163 = arith.negf %162 : vector<16x192xf32>
    %164 = math.exp %163 : vector<16x192xf32>
    %cst_82 = arith.constant 1.000000e+00 : f32
    %165 = vector.broadcast %cst_82 : f32 to vector<16x192xf32>
    %166 = arith.addf %165, %164 : vector<16x192xf32>
    %167 = arith.divf %165, %166 : vector<16x192xf32>
    %168 = vector.extract_strided_slice %161 {offsets = [0, 192], sizes = [16, 64], strides = [1, 1]} : vector<16x256xf32> to vector<16x64xf32>
    %169 = math.tanh %168 : vector<16x64xf32>
    %170 = vector.extract_strided_slice %167 {offsets = [0, 64], sizes = [16, 64], strides = [1, 1]} : vector<16x192xf32> to vector<16x64xf32>
    %171 = arith.mulf %170, %152 : vector<16x64xf32>
    %172 = vector.extract_strided_slice %167 {offsets = [0, 0], sizes = [16, 64], strides = [1, 1]} : vector<16x192xf32> to vector<16x64xf32>
    %173 = arith.mulf %172, %169 : vector<16x64xf32>
    %174 = arith.addf %171, %173 : vector<16x64xf32>
    %175 = vector.extract_strided_slice %167 {offsets = [0, 128], sizes = [16, 64], strides = [1, 1]} : vector<16x192xf32> to vector<16x64xf32>
    %176 = math.tanh %174 : vector<16x64xf32>
    %177 = arith.mulf %175, %176 : vector<16x64xf32>
    %178 = arith.truncf %177 : vector<16x64xf32> to vector<16x64xbf16>
    %179 = arith.truncf %177 : vector<16x64xf32> to vector<16x64xbf16>
    %c0_83 = arith.constant 0 : index
    %c0_84 = arith.constant 0 : index
    %180 = vector.load %arg9[%c0_83, %c0_84] : memref<64x256xbf16, #tpu.memory_space<vmem>>, vector<64x256xbf16>
    %cst_85 = arith.constant dense<0.000000e+00> : vector<16x256xf32>
    %181 = tpu.matmul %179, %180, %cst_85 {dimension_numbers = #tpu.dot_dimension_numbers<[1], [0], [0], [1], [0, 0, 1, 1], [], []>} : vector<16x64xbf16>, vector<64x256xbf16>, vector<16x256xf32> -> vector<16x256xf32>
    %c0_86 = arith.constant 0 : index
    %c1024_87 = arith.constant 1024 : index
    %182 = vector.load %arg16[%c0_86, %c1024_87] : memref<16x2048xf32, #tpu.memory_space<vmem>>, vector<16x256xf32>
    %183 = arith.addf %182, %181 : vector<16x256xf32>
    %184 = vector.extract_strided_slice %183 {offsets = [0, 0], sizes = [16, 192], strides = [1, 1]} : vector<16x256xf32> to vector<16x192xf32>
    %185 = arith.negf %184 : vector<16x192xf32>
    %186 = math.exp %185 : vector<16x192xf32>
    %cst_88 = arith.constant 1.000000e+00 : f32
    %187 = vector.broadcast %cst_88 : f32 to vector<16x192xf32>
    %188 = arith.addf %187, %186 : vector<16x192xf32>
    %189 = arith.divf %187, %188 : vector<16x192xf32>
    %190 = vector.extract_strided_slice %183 {offsets = [0, 192], sizes = [16, 64], strides = [1, 1]} : vector<16x256xf32> to vector<16x64xf32>
    %191 = math.tanh %190 : vector<16x64xf32>
    %192 = vector.extract_strided_slice %189 {offsets = [0, 64], sizes = [16, 64], strides = [1, 1]} : vector<16x192xf32> to vector<16x64xf32>
    %193 = arith.mulf %192, %174 : vector<16x64xf32>
    %194 = vector.extract_strided_slice %189 {offsets = [0, 0], sizes = [16, 64], strides = [1, 1]} : vector<16x192xf32> to vector<16x64xf32>
    %195 = arith.mulf %194, %191 : vector<16x64xf32>
    %196 = arith.addf %193, %195 : vector<16x64xf32>
    %197 = vector.extract_strided_slice %189 {offsets = [0, 128], sizes = [16, 64], strides = [1, 1]} : vector<16x192xf32> to vector<16x64xf32>
    %198 = math.tanh %196 : vector<16x64xf32>
    %199 = arith.mulf %197, %198 : vector<16x64xf32>
    %200 = arith.truncf %199 : vector<16x64xf32> to vector<16x64xbf16>
    %201 = arith.truncf %199 : vector<16x64xf32> to vector<16x64xbf16>
    %c0_89 = arith.constant 0 : index
    %c0_90 = arith.constant 0 : index
    %202 = vector.load %arg9[%c0_89, %c0_90] : memref<64x256xbf16, #tpu.memory_space<vmem>>, vector<64x256xbf16>
    %cst_91 = arith.constant dense<0.000000e+00> : vector<16x256xf32>
    %203 = tpu.matmul %201, %202, %cst_91 {dimension_numbers = #tpu.dot_dimension_numbers<[1], [0], [0], [1], [0, 0, 1, 1], [], []>} : vector<16x64xbf16>, vector<64x256xbf16>, vector<16x256xf32> -> vector<16x256xf32>
    %c0_92 = arith.constant 0 : index
    %c1280 = arith.constant 1280 : index
    %204 = vector.load %arg16[%c0_92, %c1280] : memref<16x2048xf32, #tpu.memory_space<vmem>>, vector<16x256xf32>
    %205 = arith.addf %204, %203 : vector<16x256xf32>
    %206 = vector.extract_strided_slice %205 {offsets = [0, 0], sizes = [16, 192], strides = [1, 1]} : vector<16x256xf32> to vector<16x192xf32>
    %207 = arith.negf %206 : vector<16x192xf32>
    %208 = math.exp %207 : vector<16x192xf32>
    %cst_93 = arith.constant 1.000000e+00 : f32
    %209 = vector.broadcast %cst_93 : f32 to vector<16x192xf32>
    %210 = arith.addf %209, %208 : vector<16x192xf32>
    %211 = arith.divf %209, %210 : vector<16x192xf32>
    %212 = vector.extract_strided_slice %205 {offsets = [0, 192], sizes = [16, 64], strides = [1, 1]} : vector<16x256xf32> to vector<16x64xf32>
    %213 = math.tanh %212 : vector<16x64xf32>
    %214 = vector.extract_strided_slice %211 {offsets = [0, 64], sizes = [16, 64], strides = [1, 1]} : vector<16x192xf32> to vector<16x64xf32>
    %215 = arith.mulf %214, %196 : vector<16x64xf32>
    %216 = vector.extract_strided_slice %211 {offsets = [0, 0], sizes = [16, 64], strides = [1, 1]} : vector<16x192xf32> to vector<16x64xf32>
    %217 = arith.mulf %216, %213 : vector<16x64xf32>
    %218 = arith.addf %215, %217 : vector<16x64xf32>
    %219 = vector.extract_strided_slice %211 {offsets = [0, 128], sizes = [16, 64], strides = [1, 1]} : vector<16x192xf32> to vector<16x64xf32>
    %220 = math.tanh %218 : vector<16x64xf32>
    %221 = arith.mulf %219, %220 : vector<16x64xf32>
    %222 = arith.truncf %221 : vector<16x64xf32> to vector<16x64xbf16>
    %223 = arith.truncf %221 : vector<16x64xf32> to vector<16x64xbf16>
    %c0_94 = arith.constant 0 : index
    %c0_95 = arith.constant 0 : index
    %224 = vector.load %arg9[%c0_94, %c0_95] : memref<64x256xbf16, #tpu.memory_space<vmem>>, vector<64x256xbf16>
    %cst_96 = arith.constant dense<0.000000e+00> : vector<16x256xf32>
    %225 = tpu.matmul %223, %224, %cst_96 {dimension_numbers = #tpu.dot_dimension_numbers<[1], [0], [0], [1], [0, 0, 1, 1], [], []>} : vector<16x64xbf16>, vector<64x256xbf16>, vector<16x256xf32> -> vector<16x256xf32>
    %c0_97 = arith.constant 0 : index
    %c1536_98 = arith.constant 1536 : index
    %226 = vector.load %arg16[%c0_97, %c1536_98] : memref<16x2048xf32, #tpu.memory_space<vmem>>, vector<16x256xf32>
    %227 = arith.addf %226, %225 : vector<16x256xf32>
    %228 = vector.extract_strided_slice %227 {offsets = [0, 0], sizes = [16, 192], strides = [1, 1]} : vector<16x256xf32> to vector<16x192xf32>
    %229 = arith.negf %228 : vector<16x192xf32>
    %230 = math.exp %229 : vector<16x192xf32>
    %cst_99 = arith.constant 1.000000e+00 : f32
    %231 = vector.broadcast %cst_99 : f32 to vector<16x192xf32>
    %232 = arith.addf %231, %230 : vector<16x192xf32>
    %233 = arith.divf %231, %232 : vector<16x192xf32>
    %234 = vector.extract_strided_slice %227 {offsets = [0, 192], sizes = [16, 64], strides = [1, 1]} : vector<16x256xf32> to vector<16x64xf32>
    %235 = math.tanh %234 : vector<16x64xf32>
    %236 = vector.extract_strided_slice %233 {offsets = [0, 64], sizes = [16, 64], strides = [1, 1]} : vector<16x192xf32> to vector<16x64xf32>
    %237 = arith.mulf %236, %218 : vector<16x64xf32>
    %238 = vector.extract_strided_slice %233 {offsets = [0, 0], sizes = [16, 64], strides = [1, 1]} : vector<16x192xf32> to vector<16x64xf32>
    %239 = arith.mulf %238, %235 : vector<16x64xf32>
    %240 = arith.addf %237, %239 : vector<16x64xf32>
    %241 = vector.extract_strided_slice %233 {offsets = [0, 128], sizes = [16, 64], strides = [1, 1]} : vector<16x192xf32> to vector<16x64xf32>
    %242 = math.tanh %240 : vector<16x64xf32>
    %243 = arith.mulf %241, %242 : vector<16x64xf32>
    %244 = arith.truncf %243 : vector<16x64xf32> to vector<16x64xbf16>
    %245 = arith.truncf %243 : vector<16x64xf32> to vector<16x64xbf16>
    %c0_100 = arith.constant 0 : index
    %c0_101 = arith.constant 0 : index
    %246 = vector.load %arg9[%c0_100, %c0_101] : memref<64x256xbf16, #tpu.memory_space<vmem>>, vector<64x256xbf16>
    %cst_102 = arith.constant dense<0.000000e+00> : vector<16x256xf32>
    %247 = tpu.matmul %245, %246, %cst_102 {dimension_numbers = #tpu.dot_dimension_numbers<[1], [0], [0], [1], [0, 0, 1, 1], [], []>} : vector<16x64xbf16>, vector<64x256xbf16>, vector<16x256xf32> -> vector<16x256xf32>
    %c0_103 = arith.constant 0 : index
    %c1792 = arith.constant 1792 : index
    %248 = vector.load %arg16[%c0_103, %c1792] : memref<16x2048xf32, #tpu.memory_space<vmem>>, vector<16x256xf32>
    %249 = arith.addf %248, %247 : vector<16x256xf32>
    %250 = vector.extract_strided_slice %249 {offsets = [0, 0], sizes = [16, 192], strides = [1, 1]} : vector<16x256xf32> to vector<16x192xf32>
    %251 = arith.negf %250 : vector<16x192xf32>
    %252 = math.exp %251 : vector<16x192xf32>
    %cst_104 = arith.constant 1.000000e+00 : f32
    %253 = vector.broadcast %cst_104 : f32 to vector<16x192xf32>
    %254 = arith.addf %253, %252 : vector<16x192xf32>
    %255 = arith.divf %253, %254 : vector<16x192xf32>
    %256 = vector.extract_strided_slice %249 {offsets = [0, 192], sizes = [16, 64], strides = [1, 1]} : vector<16x256xf32> to vector<16x64xf32>
    %257 = math.tanh %256 : vector<16x64xf32>
    %258 = vector.extract_strided_slice %255 {offsets = [0, 64], sizes = [16, 64], strides = [1, 1]} : vector<16x192xf32> to vector<16x64xf32>
    %259 = arith.mulf %258, %240 : vector<16x64xf32>
    %260 = vector.extract_strided_slice %255 {offsets = [0, 0], sizes = [16, 64], strides = [1, 1]} : vector<16x192xf32> to vector<16x64xf32>
    %261 = arith.mulf %260, %257 : vector<16x64xf32>
    %262 = arith.addf %259, %261 : vector<16x64xf32>
    %263 = vector.extract_strided_slice %255 {offsets = [0, 128], sizes = [16, 64], strides = [1, 1]} : vector<16x192xf32> to vector<16x64xf32>
    %264 = math.tanh %262 : vector<16x64xf32>
    %265 = arith.mulf %263, %264 : vector<16x64xf32>
    %266 = arith.truncf %265 : vector<16x64xf32> to vector<16x64xbf16>
    %267 = tpu.concatenate %112, %134, %156, %178, %200, %222, %244, %266 in 1 : vector<16x64xbf16>, vector<16x64xbf16>, vector<16x64xbf16>, vector<16x64xbf16>, vector<16x64xbf16>, vector<16x64xbf16>, vector<16x64xbf16>, vector<16x64xbf16> -> vector<16x512xbf16>
    %c0_105 = arith.constant 0 : index
    %c0_106 = arith.constant 0 : index
    %268 = vector.load %arg10[%c0_105, %c0_106] : memref<512x2048xbf16, #tpu.memory_space<vmem>>, vector<512x512xbf16>
    %cst_107 = arith.constant dense<0.000000e+00> : vector<16x512xf32>
    %269 = tpu.matmul %267, %268, %cst_107 {dimension_numbers = #tpu.dot_dimension_numbers<[1], [0], [0], [1], [0, 0, 1, 1], [], []>} : vector<16x512xbf16>, vector<512x512xbf16>, vector<16x512xf32> -> vector<16x512xf32>
    %c0_108 = arith.constant 0 : index
    %c0_109 = arith.constant 0 : index
    %270 = vector.load %arg11[%c0_108, %c0_109] : memref<1x2048xf32, #tpu.memory_space<vmem>>, vector<1x512xf32>
    %271 = vector.broadcast %270 : vector<1x512xf32> to vector<16x512xf32>
    %272 = arith.addf %269, %271 : vector<16x512xf32>
    %c0_110 = arith.constant 0 : index
    %c0_111 = arith.constant 0 : index
    %273 = vector.load %arg16[%c0_110, %c0_111] : memref<16x2048xf32, #tpu.memory_space<vmem>>, vector<16x512xf32>
    tpu.vector_store %arg16[%c0_110, %c0_111], %272 {strides = array<i32>} : memref<16x2048xf32, #tpu.memory_space<vmem>>, vector<16x512xf32>,
    %c0_112 = arith.constant 0 : index
    %c512_113 = arith.constant 512 : index
    %274 = vector.load %arg10[%c0_112, %c512_113] : memref<512x2048xbf16, #tpu.memory_space<vmem>>, vector<512x512xbf16>
    %cst_114 = arith.constant dense<0.000000e+00> : vector<16x512xf32>
    %275 = tpu.matmul %267, %274, %cst_114 {dimension_numbers = #tpu.dot_dimension_numbers<[1], [0], [0], [1], [0, 0, 1, 1], [], []>} : vector<16x512xbf16>, vector<512x512xbf16>, vector<16x512xf32> -> vector<16x512xf32>
    %c0_115 = arith.constant 0 : index
    %c512_116 = arith.constant 512 : index
    %276 = vector.load %arg11[%c0_115, %c512_116] : memref<1x2048xf32, #tpu.memory_space<vmem>>, vector<1x512xf32>
    %277 = vector.broadcast %276 : vector<1x512xf32> to vector<16x512xf32>
    %278 = arith.addf %275, %277 : vector<16x512xf32>
    %c0_117 = arith.constant 0 : index
    %c512_118 = arith.constant 512 : index
    %279 = vector.load %arg16[%c0_117, %c512_118] : memref<16x2048xf32, #tpu.memory_space<vmem>>, vector<16x512xf32>
    tpu.vector_store %arg16[%c0_117, %c512_118], %278 {strides = array<i32>} : memref<16x2048xf32, #tpu.memory_space<vmem>>, vector<16x512xf32>,
    %c0_119 = arith.constant 0 : index
    %c1024_120 = arith.constant 1024 : index
    %280 = vector.load %arg10[%c0_119, %c1024_120] : memref<512x2048xbf16, #tpu.memory_space<vmem>>, vector<512x512xbf16>
    %cst_121 = arith.constant dense<0.000000e+00> : vector<16x512xf32>
    %281 = tpu.matmul %267, %280, %cst_121 {dimension_numbers = #tpu.dot_dimension_numbers<[1], [0], [0], [1], [0, 0, 1, 1], [], []>} : vector<16x512xbf16>, vector<512x512xbf16>, vector<16x512xf32> -> vector<16x512xf32>
    %c0_122 = arith.constant 0 : index
    %c1024_123 = arith.constant 1024 : index
    %282 = vector.load %arg11[%c0_122, %c1024_123] : memref<1x2048xf32, #tpu.memory_space<vmem>>, vector<1x512xf32>
    %283 = vector.broadcast %282 : vector<1x512xf32> to vector<16x512xf32>
    %284 = arith.addf %281, %283 : vector<16x512xf32>
    %c0_124 = arith.constant 0 : index
    %c1024_125 = arith.constant 1024 : index
    %285 = vector.load %arg16[%c0_124, %c1024_125] : memref<16x2048xf32, #tpu.memory_space<vmem>>, vector<16x512xf32>
    tpu.vector_store %arg16[%c0_124, %c1024_125], %284 {strides = array<i32>} : memref<16x2048xf32, #tpu.memory_space<vmem>>, vector<16x512xf32>,
    %c0_126 = arith.constant 0 : index
    %c1536_127 = arith.constant 1536 : index
    %286 = vector.load %arg10[%c0_126, %c1536_127] : memref<512x2048xbf16, #tpu.memory_space<vmem>>, vector<512x512xbf16>
    %cst_128 = arith.constant dense<0.000000e+00> : vector<16x512xf32>
    %287 = tpu.matmul %267, %286, %cst_128 {dimension_numbers = #tpu.dot_dimension_numbers<[1], [0], [0], [1], [0, 0, 1, 1], [], []>} : vector<16x512xbf16>, vector<512x512xbf16>, vector<16x512xf32> -> vector<16x512xf32>
    %c0_129 = arith.constant 0 : index
    %c1536_130 = arith.constant 1536 : index
    %288 = vector.load %arg11[%c0_129, %c1536_130] : memref<1x2048xf32, #tpu.memory_space<vmem>>, vector<1x512xf32>
    %289 = vector.broadcast %288 : vector<1x512xf32> to vector<16x512xf32>
    %290 = arith.addf %287, %289 : vector<16x512xf32>
    %c0_131 = arith.constant 0 : index
    %c1536_132 = arith.constant 1536 : index
    %291 = vector.load %arg16[%c0_131, %c1536_132] : memref<16x2048xf32, #tpu.memory_space<vmem>>, vector<16x512xf32>
    tpu.vector_store %arg16[%c0_131, %c1536_132], %290 {strides = array<i32>} : memref<16x2048xf32, #tpu.memory_space<vmem>>, vector<16x512xf32>,
    %cst_133 = arith.constant 0.000000e+00 : f32
    %292 = vector.broadcast %cst_133 : f32 to vector<16x64xf32>
    %cst_134 = arith.constant 0.000000e+00 : f32
    %293 = vector.broadcast %cst_134 : f32 to vector<16x64xf32>
    %294 = arith.truncf %293 : vector<16x64xf32> to vector<16x64xbf16>
    %c0_135 = arith.constant 0 : index
    %c0_136 = arith.constant 0 : index
    %295 = vector.load %arg12[%c0_135, %c0_136] : memref<64x256xbf16, #tpu.memory_space<vmem>>, vector<64x256xbf16>
    %cst_137 = arith.constant dense<0.000000e+00> : vector<16x256xf32>
    %296 = tpu.matmul %294, %295, %cst_137 {dimension_numbers = #tpu.dot_dimension_numbers<[1], [0], [0], [1], [0, 0, 1, 1], [], []>} : vector<16x64xbf16>, vector<64x256xbf16>, vector<16x256xf32> -> vector<16x256xf32>
    %c0_138 = arith.constant 0 : index
    %c0_139 = arith.constant 0 : index
    %297 = vector.load %arg16[%c0_138, %c0_139] : memref<16x2048xf32, #tpu.memory_space<vmem>>, vector<16x256xf32>
    %298 = arith.addf %297, %296 : vector<16x256xf32>
    %299 = vector.extract_strided_slice %298 {offsets = [0, 0], sizes = [16, 192], strides = [1, 1]} : vector<16x256xf32> to vector<16x192xf32>
    %300 = arith.negf %299 : vector<16x192xf32>
    %301 = math.exp %300 : vector<16x192xf32>
    %cst_140 = arith.constant 1.000000e+00 : f32
    %302 = vector.broadcast %cst_140 : f32 to vector<16x192xf32>
    %303 = arith.addf %302, %301 : vector<16x192xf32>
    %304 = arith.divf %302, %303 : vector<16x192xf32>
    %305 = vector.extract_strided_slice %298 {offsets = [0, 192], sizes = [16, 64], strides = [1, 1]} : vector<16x256xf32> to vector<16x64xf32>
    %306 = math.tanh %305 : vector<16x64xf32>
    %307 = vector.extract_strided_slice %304 {offsets = [0, 64], sizes = [16, 64], strides = [1, 1]} : vector<16x192xf32> to vector<16x64xf32>
    %308 = arith.mulf %307, %292 : vector<16x64xf32>
    %309 = vector.extract_strided_slice %304 {offsets = [0, 0], sizes = [16, 64], strides = [1, 1]} : vector<16x192xf32> to vector<16x64xf32>
    %310 = arith.mulf %309, %306 : vector<16x64xf32>
    %311 = arith.addf %308, %310 : vector<16x64xf32>
    %312 = vector.extract_strided_slice %304 {offsets = [0, 128], sizes = [16, 64], strides = [1, 1]} : vector<16x192xf32> to vector<16x64xf32>
    %313 = math.tanh %311 : vector<16x64xf32>
    %314 = arith.mulf %312, %313 : vector<16x64xf32>
    %315 = arith.truncf %314 : vector<16x64xf32> to vector<16x64xbf16>
    %c0_141 = arith.constant 0 : index
    %c0_142 = arith.constant 0 : index
    %316 = vector.load %arg12[%c0_141, %c0_142] : memref<64x256xbf16, #tpu.memory_space<vmem>>, vector<64x256xbf16>
    %cst_143 = arith.constant dense<0.000000e+00> : vector<16x256xf32>
    %317 = tpu.matmul %315, %316, %cst_143 {dimension_numbers = #tpu.dot_dimension_numbers<[1], [0], [0], [1], [0, 0, 1, 1], [], []>} : vector<16x64xbf16>, vector<64x256xbf16>, vector<16x256xf32> -> vector<16x256xf32>
    %c0_144 = arith.constant 0 : index
    %c256_145 = arith.constant 256 : index
    %318 = vector.load %arg16[%c0_144, %c256_145] : memref<16x2048xf32, #tpu.memory_space<vmem>>, vector<16x256xf32>
    %319 = arith.addf %318, %317 : vector<16x256xf32>
    %320 = vector.extract_strided_slice %319 {offsets = [0, 0], sizes = [16, 192], strides = [1, 1]} : vector<16x256xf32> to vector<16x192xf32>
    %321 = arith.negf %320 : vector<16x192xf32>
    %322 = math.exp %321 : vector<16x192xf32>
    %cst_146 = arith.constant 1.000000e+00 : f32
    %323 = vector.broadcast %cst_146 : f32 to vector<16x192xf32>
    %324 = arith.addf %323, %322 : vector<16x192xf32>
    %325 = arith.divf %323, %324 : vector<16x192xf32>
    %326 = vector.extract_strided_slice %319 {offsets = [0, 192], sizes = [16, 64], strides = [1, 1]} : vector<16x256xf32> to vector<16x64xf32>
    %327 = math.tanh %326 : vector<16x64xf32>
    %328 = vector.extract_strided_slice %325 {offsets = [0, 64], sizes = [16, 64], strides = [1, 1]} : vector<16x192xf32> to vector<16x64xf32>
    %329 = arith.mulf %328, %311 : vector<16x64xf32>
    %330 = vector.extract_strided_slice %325 {offsets = [0, 0], sizes = [16, 64], strides = [1, 1]} : vector<16x192xf32> to vector<16x64xf32>
    %331 = arith.mulf %330, %327 : vector<16x64xf32>
    %332 = arith.addf %329, %331 : vector<16x64xf32>
    %333 = vector.extract_strided_slice %325 {offsets = [0, 128], sizes = [16, 64], strides = [1, 1]} : vector<16x192xf32> to vector<16x64xf32>
    %334 = math.tanh %332 : vector<16x64xf32>
    %335 = arith.mulf %333, %334 : vector<16x64xf32>
    %336 = arith.truncf %335 : vector<16x64xf32> to vector<16x64xbf16>
    %c0_147 = arith.constant 0 : index
    %c0_148 = arith.constant 0 : index
    %337 = vector.load %arg12[%c0_147, %c0_148] : memref<64x256xbf16, #tpu.memory_space<vmem>>, vector<64x256xbf16>
    %cst_149 = arith.constant dense<0.000000e+00> : vector<16x256xf32>
    %338 = tpu.matmul %336, %337, %cst_149 {dimension_numbers = #tpu.dot_dimension_numbers<[1], [0], [0], [1], [0, 0, 1, 1], [], []>} : vector<16x64xbf16>, vector<64x256xbf16>, vector<16x256xf32> -> vector<16x256xf32>
    %c0_150 = arith.constant 0 : index
    %c512_151 = arith.constant 512 : index
    %339 = vector.load %arg16[%c0_150, %c512_151] : memref<16x2048xf32, #tpu.memory_space<vmem>>, vector<16x256xf32>
    %340 = arith.addf %339, %338 : vector<16x256xf32>
    %341 = vector.extract_strided_slice %340 {offsets = [0, 0], sizes = [16, 192], strides = [1, 1]} : vector<16x256xf32> to vector<16x192xf32>
    %342 = arith.negf %341 : vector<16x192xf32>
    %343 = math.exp %342 : vector<16x192xf32>
    %cst_152 = arith.constant 1.000000e+00 : f32
    %344 = vector.broadcast %cst_152 : f32 to vector<16x192xf32>
    %345 = arith.addf %344, %343 : vector<16x192xf32>
    %346 = arith.divf %344, %345 : vector<16x192xf32>
    %347 = vector.extract_strided_slice %340 {offsets = [0, 192], sizes = [16, 64], strides = [1, 1]} : vector<16x256xf32> to vector<16x64xf32>
    %348 = math.tanh %347 : vector<16x64xf32>
    %349 = vector.extract_strided_slice %346 {offsets = [0, 64], sizes = [16, 64], strides = [1, 1]} : vector<16x192xf32> to vector<16x64xf32>
    %350 = arith.mulf %349, %332 : vector<16x64xf32>
    %351 = vector.extract_strided_slice %346 {offsets = [0, 0], sizes = [16, 64], strides = [1, 1]} : vector<16x192xf32> to vector<16x64xf32>
    %352 = arith.mulf %351, %348 : vector<16x64xf32>
    %353 = arith.addf %350, %352 : vector<16x64xf32>
    %354 = vector.extract_strided_slice %346 {offsets = [0, 128], sizes = [16, 64], strides = [1, 1]} : vector<16x192xf32> to vector<16x64xf32>
    %355 = math.tanh %353 : vector<16x64xf32>
    %356 = arith.mulf %354, %355 : vector<16x64xf32>
    %357 = arith.truncf %356 : vector<16x64xf32> to vector<16x64xbf16>
    %c0_153 = arith.constant 0 : index
    %c0_154 = arith.constant 0 : index
    %358 = vector.load %arg12[%c0_153, %c0_154] : memref<64x256xbf16, #tpu.memory_space<vmem>>, vector<64x256xbf16>
    %cst_155 = arith.constant dense<0.000000e+00> : vector<16x256xf32>
    %359 = tpu.matmul %357, %358, %cst_155 {dimension_numbers = #tpu.dot_dimension_numbers<[1], [0], [0], [1], [0, 0, 1, 1], [], []>} : vector<16x64xbf16>, vector<64x256xbf16>, vector<16x256xf32> -> vector<16x256xf32>
    %c0_156 = arith.constant 0 : index
    %c768_157 = arith.constant 768 : index
    %360 = vector.load %arg16[%c0_156, %c768_157] : memref<16x2048xf32, #tpu.memory_space<vmem>>, vector<16x256xf32>
    %361 = arith.addf %360, %359 : vector<16x256xf32>
    %362 = vector.extract_strided_slice %361 {offsets = [0, 0], sizes = [16, 192], strides = [1, 1]} : vector<16x256xf32> to vector<16x192xf32>
    %363 = arith.negf %362 : vector<16x192xf32>
    %364 = math.exp %363 : vector<16x192xf32>
    %cst_158 = arith.constant 1.000000e+00 : f32
    %365 = vector.broadcast %cst_158 : f32 to vector<16x192xf32>
    %366 = arith.addf %365, %364 : vector<16x192xf32>
    %367 = arith.divf %365, %366 : vector<16x192xf32>
    %368 = vector.extract_strided_slice %361 {offsets = [0, 192], sizes = [16, 64], strides = [1, 1]} : vector<16x256xf32> to vector<16x64xf32>
    %369 = math.tanh %368 : vector<16x64xf32>
    %370 = vector.extract_strided_slice %367 {offsets = [0, 64], sizes = [16, 64], strides = [1, 1]} : vector<16x192xf32> to vector<16x64xf32>
    %371 = arith.mulf %370, %353 : vector<16x64xf32>
    %372 = vector.extract_strided_slice %367 {offsets = [0, 0], sizes = [16, 64], strides = [1, 1]} : vector<16x192xf32> to vector<16x64xf32>
    %373 = arith.mulf %372, %369 : vector<16x64xf32>
    %374 = arith.addf %371, %373 : vector<16x64xf32>
    %375 = vector.extract_strided_slice %367 {offsets = [0, 128], sizes = [16, 64], strides = [1, 1]} : vector<16x192xf32> to vector<16x64xf32>
    %376 = math.tanh %374 : vector<16x64xf32>
    %377 = arith.mulf %375, %376 : vector<16x64xf32>
    %378 = arith.truncf %377 : vector<16x64xf32> to vector<16x64xbf16>
    %c0_159 = arith.constant 0 : index
    %c0_160 = arith.constant 0 : index
    %379 = vector.load %arg12[%c0_159, %c0_160] : memref<64x256xbf16, #tpu.memory_space<vmem>>, vector<64x256xbf16>
    %cst_161 = arith.constant dense<0.000000e+00> : vector<16x256xf32>
    %380 = tpu.matmul %378, %379, %cst_161 {dimension_numbers = #tpu.dot_dimension_numbers<[1], [0], [0], [1], [0, 0, 1, 1], [], []>} : vector<16x64xbf16>, vector<64x256xbf16>, vector<16x256xf32> -> vector<16x256xf32>
    %c0_162 = arith.constant 0 : index
    %c1024_163 = arith.constant 1024 : index
    %381 = vector.load %arg16[%c0_162, %c1024_163] : memref<16x2048xf32, #tpu.memory_space<vmem>>, vector<16x256xf32>
    %382 = arith.addf %381, %380 : vector<16x256xf32>
    %383 = vector.extract_strided_slice %382 {offsets = [0, 0], sizes = [16, 192], strides = [1, 1]} : vector<16x256xf32> to vector<16x192xf32>
    %384 = arith.negf %383 : vector<16x192xf32>
    %385 = math.exp %384 : vector<16x192xf32>
    %cst_164 = arith.constant 1.000000e+00 : f32
    %386 = vector.broadcast %cst_164 : f32 to vector<16x192xf32>
    %387 = arith.addf %386, %385 : vector<16x192xf32>
    %388 = arith.divf %386, %387 : vector<16x192xf32>
    %389 = vector.extract_strided_slice %382 {offsets = [0, 192], sizes = [16, 64], strides = [1, 1]} : vector<16x256xf32> to vector<16x64xf32>
    %390 = math.tanh %389 : vector<16x64xf32>
    %391 = vector.extract_strided_slice %388 {offsets = [0, 64], sizes = [16, 64], strides = [1, 1]} : vector<16x192xf32> to vector<16x64xf32>
    %392 = arith.mulf %391, %374 : vector<16x64xf32>
    %393 = vector.extract_strided_slice %388 {offsets = [0, 0], sizes = [16, 64], strides = [1, 1]} : vector<16x192xf32> to vector<16x64xf32>
    %394 = arith.mulf %393, %390 : vector<16x64xf32>
    %395 = arith.addf %392, %394 : vector<16x64xf32>
    %396 = vector.extract_strided_slice %388 {offsets = [0, 128], sizes = [16, 64], strides = [1, 1]} : vector<16x192xf32> to vector<16x64xf32>
    %397 = math.tanh %395 : vector<16x64xf32>
    %398 = arith.mulf %396, %397 : vector<16x64xf32>
    %399 = arith.truncf %398 : vector<16x64xf32> to vector<16x64xbf16>
    %c0_165 = arith.constant 0 : index
    %c0_166 = arith.constant 0 : index
    %400 = vector.load %arg12[%c0_165, %c0_166] : memref<64x256xbf16, #tpu.memory_space<vmem>>, vector<64x256xbf16>
    %cst_167 = arith.constant dense<0.000000e+00> : vector<16x256xf32>
    %401 = tpu.matmul %399, %400, %cst_167 {dimension_numbers = #tpu.dot_dimension_numbers<[1], [0], [0], [1], [0, 0, 1, 1], [], []>} : vector<16x64xbf16>, vector<64x256xbf16>, vector<16x256xf32> -> vector<16x256xf32>
    %c0_168 = arith.constant 0 : index
    %c1280_169 = arith.constant 1280 : index
    %402 = vector.load %arg16[%c0_168, %c1280_169] : memref<16x2048xf32, #tpu.memory_space<vmem>>, vector<16x256xf32>
    %403 = arith.addf %402, %401 : vector<16x256xf32>
    %404 = vector.extract_strided_slice %403 {offsets = [0, 0], sizes = [16, 192], strides = [1, 1]} : vector<16x256xf32> to vector<16x192xf32>
    %405 = arith.negf %404 : vector<16x192xf32>
    %406 = math.exp %405 : vector<16x192xf32>
    %cst_170 = arith.constant 1.000000e+00 : f32
    %407 = vector.broadcast %cst_170 : f32 to vector<16x192xf32>
    %408 = arith.addf %407, %406 : vector<16x192xf32>
    %409 = arith.divf %407, %408 : vector<16x192xf32>
    %410 = vector.extract_strided_slice %403 {offsets = [0, 192], sizes = [16, 64], strides = [1, 1]} : vector<16x256xf32> to vector<16x64xf32>
    %411 = math.tanh %410 : vector<16x64xf32>
    %412 = vector.extract_strided_slice %409 {offsets = [0, 64], sizes = [16, 64], strides = [1, 1]} : vector<16x192xf32> to vector<16x64xf32>
    %413 = arith.mulf %412, %395 : vector<16x64xf32>
    %414 = vector.extract_strided_slice %409 {offsets = [0, 0], sizes = [16, 64], strides = [1, 1]} : vector<16x192xf32> to vector<16x64xf32>
    %415 = arith.mulf %414, %411 : vector<16x64xf32>
    %416 = arith.addf %413, %415 : vector<16x64xf32>
    %417 = vector.extract_strided_slice %409 {offsets = [0, 128], sizes = [16, 64], strides = [1, 1]} : vector<16x192xf32> to vector<16x64xf32>
    %418 = math.tanh %416 : vector<16x64xf32>
    %419 = arith.mulf %417, %418 : vector<16x64xf32>
    %420 = arith.truncf %419 : vector<16x64xf32> to vector<16x64xbf16>
    %c0_171 = arith.constant 0 : index
    %c0_172 = arith.constant 0 : index
    %421 = vector.load %arg12[%c0_171, %c0_172] : memref<64x256xbf16, #tpu.memory_space<vmem>>, vector<64x256xbf16>
    %cst_173 = arith.constant dense<0.000000e+00> : vector<16x256xf32>
    %422 = tpu.matmul %420, %421, %cst_173 {dimension_numbers = #tpu.dot_dimension_numbers<[1], [0], [0], [1], [0, 0, 1, 1], [], []>} : vector<16x64xbf16>, vector<64x256xbf16>, vector<16x256xf32> -> vector<16x256xf32>
    %c0_174 = arith.constant 0 : index
    %c1536_175 = arith.constant 1536 : index
    %423 = vector.load %arg16[%c0_174, %c1536_175] : memref<16x2048xf32, #tpu.memory_space<vmem>>, vector<16x256xf32>
    %424 = arith.addf %423, %422 : vector<16x256xf32>
    %425 = vector.extract_strided_slice %424 {offsets = [0, 0], sizes = [16, 192], strides = [1, 1]} : vector<16x256xf32> to vector<16x192xf32>
    %426 = arith.negf %425 : vector<16x192xf32>
    %427 = math.exp %426 : vector<16x192xf32>
    %cst_176 = arith.constant 1.000000e+00 : f32
    %428 = vector.broadcast %cst_176 : f32 to vector<16x192xf32>
    %429 = arith.addf %428, %427 : vector<16x192xf32>
    %430 = arith.divf %428, %429 : vector<16x192xf32>
    %431 = vector.extract_strided_slice %424 {offsets = [0, 192], sizes = [16, 64], strides = [1, 1]} : vector<16x256xf32> to vector<16x64xf32>
    %432 = math.tanh %431 : vector<16x64xf32>
    %433 = vector.extract_strided_slice %430 {offsets = [0, 64], sizes = [16, 64], strides = [1, 1]} : vector<16x192xf32> to vector<16x64xf32>
    %434 = arith.mulf %433, %416 : vector<16x64xf32>
    %435 = vector.extract_strided_slice %430 {offsets = [0, 0], sizes = [16, 64], strides = [1, 1]} : vector<16x192xf32> to vector<16x64xf32>
    %436 = arith.mulf %435, %432 : vector<16x64xf32>
    %437 = arith.addf %434, %436 : vector<16x64xf32>
    %438 = vector.extract_strided_slice %430 {offsets = [0, 128], sizes = [16, 64], strides = [1, 1]} : vector<16x192xf32> to vector<16x64xf32>
    %439 = math.tanh %437 : vector<16x64xf32>
    %440 = arith.mulf %438, %439 : vector<16x64xf32>
    %441 = arith.truncf %440 : vector<16x64xf32> to vector<16x64xbf16>
    %c0_177 = arith.constant 0 : index
    %c0_178 = arith.constant 0 : index
    %442 = vector.load %arg12[%c0_177, %c0_178] : memref<64x256xbf16, #tpu.memory_space<vmem>>, vector<64x256xbf16>
    %cst_179 = arith.constant dense<0.000000e+00> : vector<16x256xf32>
    %443 = tpu.matmul %441, %442, %cst_179 {dimension_numbers = #tpu.dot_dimension_numbers<[1], [0], [0], [1], [0, 0, 1, 1], [], []>} : vector<16x64xbf16>, vector<64x256xbf16>, vector<16x256xf32> -> vector<16x256xf32>
    %c0_180 = arith.constant 0 : index
    %c1792_181 = arith.constant 1792 : index
    %444 = vector.load %arg16[%c0_180, %c1792_181] : memref<16x2048xf32, #tpu.memory_space<vmem>>, vector<16x256xf32>
    %445 = arith.addf %444, %443 : vector<16x256xf32>
    %446 = vector.extract_strided_slice %445 {offsets = [0, 0], sizes = [16, 192], strides = [1, 1]} : vector<16x256xf32> to vector<16x192xf32>
    %447 = arith.negf %446 : vector<16x192xf32>
    %448 = math.exp %447 : vector<16x192xf32>
    %cst_182 = arith.constant 1.000000e+00 : f32
    %449 = vector.broadcast %cst_182 : f32 to vector<16x192xf32>
    %450 = arith.addf %449, %448 : vector<16x192xf32>
    %451 = arith.divf %449, %450 : vector<16x192xf32>
    %452 = vector.extract_strided_slice %445 {offsets = [0, 192], sizes = [16, 64], strides = [1, 1]} : vector<16x256xf32> to vector<16x64xf32>
    %453 = math.tanh %452 : vector<16x64xf32>
    %454 = vector.extract_strided_slice %451 {offsets = [0, 64], sizes = [16, 64], strides = [1, 1]} : vector<16x192xf32> to vector<16x64xf32>
    %455 = arith.mulf %454, %437 : vector<16x64xf32>
    %456 = vector.extract_strided_slice %451 {offsets = [0, 0], sizes = [16, 64], strides = [1, 1]} : vector<16x192xf32> to vector<16x64xf32>
    %457 = arith.mulf %456, %453 : vector<16x64xf32>
    %458 = arith.addf %455, %457 : vector<16x64xf32>
    %459 = vector.extract_strided_slice %451 {offsets = [0, 128], sizes = [16, 64], strides = [1, 1]} : vector<16x192xf32> to vector<16x64xf32>
    %460 = math.tanh %458 : vector<16x64xf32>
    %461 = arith.mulf %459, %460 : vector<16x64xf32>
    %462 = tpu.concatenate %265, %461 in 1 : vector<16x64xf32>, vector<16x64xf32> -> vector<16x128xf32>
    %463 = arith.truncf %462 : vector<16x128xf32> to vector<16x128xbf16>
    %c0_183 = arith.constant 0 : index
    %c0_184 = arith.constant 0 : index
    %464 = vector.load %arg13[%c0_183, %c0_184] : memref<128x16xbf16, #tpu.memory_space<vmem>>, vector<128x16xbf16>
    %cst_185 = arith.constant dense<0.000000e+00> : vector<16x16xf32>
    %465 = tpu.matmul %463, %464, %cst_185 {dimension_numbers = #tpu.dot_dimension_numbers<[1], [0], [0], [1], [0, 0, 1, 1], [], []>} : vector<16x128xbf16>, vector<128x16xbf16>, vector<16x16xf32> -> vector<16x16xf32>
    %c0_186 = arith.constant 0 : index
    %c0_187 = arith.constant 0 : index
    %466 = vector.load %arg14[%c0_186, %c0_187] : memref<1x16xf32, #tpu.memory_space<vmem>>, vector<1x16xf32>
    %467 = vector.broadcast %466 : vector<1x16xf32> to vector<16x16xf32>
    %468 = arith.addf %465, %467 : vector<16x16xf32>
    %c0_188 = arith.constant 0 : index
    %c0_189 = arith.constant 0 : index
    %469 = vector.load %arg15[%c0_188, %c0_189] : memref<16x16xf32, #tpu.memory_space<vmem>>, vector<16x16xf32>
    tpu.vector_store %arg15[%c0_188, %c0_189], %468 {strides = array<i32>} : memref<16x16xf32, #tpu.memory_space<vmem>>, vector<16x16xf32>,
    return
  }
  func.func @transform_0(%arg0: i32) -> (i32, i32) {
    %c0_i32 = arith.constant 0 : i32
    %c0_i32_0 = arith.constant 0 : i32
    return %arg0, %c0_i32 : i32, i32
  }
  func.func @transform_1(%arg0: i32) -> (i32, i32) {
    %c0_i32 = arith.constant 0 : i32
    %c0_i32_0 = arith.constant 0 : i32
    return %arg0, %c0_i32 : i32, i32
  }
  func.func @transform_2(%arg0: i32) -> (i32, i32) {
    %c0_i32 = arith.constant 0 : i32
    %c0_i32_0 = arith.constant 0 : i32
    %c0_i32_1 = arith.constant 0 : i32
    return %c0_i32, %c0_i32_0 : i32, i32
  }
  func.func @transform_3(%arg0: i32) -> (i32, i32) {
    %c0_i32 = arith.constant 0 : i32
    %c0_i32_0 = arith.constant 0 : i32
    %c0_i32_1 = arith.constant 0 : i32
    return %c0_i32, %c0_i32_0 : i32, i32
  }
  func.func @transform_4(%arg0: i32) -> (i32, i32) {
    %c0_i32 = arith.constant 0 : i32
    %c0_i32_0 = arith.constant 0 : i32
    %c0_i32_1 = arith.constant 0 : i32
    return %c0_i32, %c0_i32_0 : i32, i32
  }
  func.func @transform_5(%arg0: i32) -> (i32, i32) {
    %c0_i32 = arith.constant 0 : i32
    %c0_i32_0 = arith.constant 0 : i32
    %c0_i32_1 = arith.constant 0 : i32
    return %c0_i32, %c0_i32_0 : i32, i32
  }
  func.func @transform_6(%arg0: i32) -> (i32, i32) {
    %c0_i32 = arith.constant 0 : i32
    %c0_i32_0 = arith.constant 0 : i32
    %c0_i32_1 = arith.constant 0 : i32
    return %c0_i32, %c0_i32_0 : i32, i32
  }
  func.func @transform_7(%arg0: i32) -> (i32, i32) {
    %c0_i32 = arith.constant 0 : i32
    %c0_i32_0 = arith.constant 0 : i32
    %c0_i32_1 = arith.constant 0 : i32
    return %c0_i32, %c0_i32_0 : i32, i32
  }
  func.func @transform_8(%arg0: i32) -> (i32, i32) {
    %c0_i32 = arith.constant 0 : i32
    %c0_i32_0 = arith.constant 0 : i32
    %c0_i32_1 = arith.constant 0 : i32
    return %c0_i32, %c0_i32_0 : i32, i32
  }
  func.func @transform_9(%arg0: i32) -> (i32, i32) {
    %c0_i32 = arith.constant 0 : i32
    %c0_i32_0 = arith.constant 0 : i32
    %c0_i32_1 = arith.constant 0 : i32
    return %c0_i32, %c0_i32_0 : i32, i32
  }
  func.func @transform_10(%arg0: i32) -> (i32, i32) {
    %c0_i32 = arith.constant 0 : i32
    %c0_i32_0 = arith.constant 0 : i32
    %c0_i32_1 = arith.constant 0 : i32
    return %c0_i32, %c0_i32_0 : i32, i32
  }
  func.func @transform_11(%arg0: i32) -> (i32, i32) {
    %c0_i32 = arith.constant 0 : i32
    %c0_i32_0 = arith.constant 0 : i32
    %c0_i32_1 = arith.constant 0 : i32
    return %c0_i32, %c0_i32_0 : i32, i32
  }
  func.func @transform_12(%arg0: i32) -> (i32, i32) {
    %c0_i32 = arith.constant 0 : i32
    %c0_i32_0 = arith.constant 0 : i32
    %c0_i32_1 = arith.constant 0 : i32
    return %c0_i32, %c0_i32_0 : i32, i32
  }
  func.func @transform_13(%arg0: i32) -> (i32, i32) {
    %c0_i32 = arith.constant 0 : i32
    %c0_i32_0 = arith.constant 0 : i32
    %c0_i32_1 = arith.constant 0 : i32
    return %c0_i32, %c0_i32_0 : i32, i32
  }
  func.func @transform_14(%arg0: i32) -> (i32, i32) {
    %c0_i32 = arith.constant 0 : i32
    %c0_i32_0 = arith.constant 0 : i32
    return %arg0, %c0_i32 : i32, i32
  }
}

</mosaic_0001>

<llo_original>
// kernel: encoder_forward.1
$region0: #{encoder_forward.1}
  #allocation0 [shape = 'u32[]', space=smem, size = 0x4, offset = 0x4, fixed_abs, tag = 'smem constant byte address 0x4 - core index']
  #allocation1 [shape = 'u32[144,128]{1,0:T(1,128)}', space=vmem, size = 0x12000, scoped, tag = 'internal scratch']
  #allocation2 [shape = 'f32[16,2048]{1,0:T(8,128)}', space=vmem, size = 0x20000, scoped, tag = 'scratch operand']
  %s0 = inlined_call_operand.vmem [shape: f32[32,384], index: 0, kind: input, shape index: {}]
  %s1 = inlined_call_operand.vmem [shape: f32[32,64], index: 1, kind: input, shape index: {}]
  %s2 = inlined_call_operand.hbm [shape: bf16[192,1024], index: 2, kind: input, shape index: {}]
  %s3 = inlined_call_operand.hbm [shape: f32[1,1024], index: 3, kind: input, shape index: {}]
  %s4 = inlined_call_operand.hbm [shape: f32[1,1024], index: 4, kind: input, shape index: {}]
  %s5 = inlined_call_operand.vmem [shape: bf16[1024,64], index: 5, kind: input, shape index: {}]
  %s6 = inlined_call_operand.hbm [shape: bf16[192,2048], index: 6, kind: input, shape index: {}]
  %s7 = inlined_call_operand.hbm [shape: f32[1,2048], index: 7, kind: input, shape index: {}]
  %s8 = inlined_call_operand.hbm [shape: bf16[64,256], index: 8, kind: input, shape index: {}]
  %s9 = inlined_call_operand.hbm [shape: bf16[512,2048], index: 9, kind: input, shape index: {}]
  %s10 = inlined_call_operand.hbm [shape: f32[1,2048], index: 10, kind: input, shape index: {}]
  %s11 = inlined_call_operand.hbm [shape: bf16[64,256], index: 11, kind: input, shape index: {}]
  %s12 = inlined_call_operand.vmem [shape: bf16[128,16], index: 12, kind: input, shape index: {}]
  %s13 = inlined_call_operand.hbm [shape: f32[1,16], index: 13, kind: input, shape index: {}]
  %s14 = inlined_call_operand.vmem [shape: f32[32,16], index: 14, kind: output, shape index: {}]
  %s15 = sld [smem:[#allocation0]]
  $region129: #{encoder_forward.1} parent=0
    _
  %s17 = ssub.s32 1, %s15
  %s18 = scalar_select 0, %s17, %s15
  $region1: #{encoder_forward.1} parent=0
    #allocation3 [shape = 'u8[393216]{0}', space=vmem, size = 0x60000, scoped, tag = 'input window, operand 2, single buffered']
    #allocation4 [shape = 's32[2]{0}', space=sflag, size = 0x8, scoped, tag = 'scoped memory for encoder_forward.1']
    #allocation5 [shape = 'u8[4096]{0}', space=vmem, size = 0x1000, scoped, tag = 'input window, operand 3, single buffered']
    #allocation6 [shape = 's32[1]{0}', space=sflag, size = 0x4, scoped, tag = 'scoped memory for encoder_forward.1']
    #allocation7 [shape = 'u8[4096]{0}', space=vmem, size = 0x1000, scoped, tag = 'input window, operand 4, single buffered']
    #allocation8 [shape = 'u8[786432]{0}', space=vmem, size = 0xc0000, scoped, tag = 'input window, operand 6, single buffered']
    #allocation9 [shape = 's32[1]{0}', space=sflag, size = 0x4, scoped, tag = 'scoped memory for encoder_forward.1']
    #allocation10 [shape = 'u8[8192]{0}', space=vmem, size = 0x2000, scoped, tag = 'input window, operand 7, single buffered']
    #allocation11 [shape = 'u8[32768]{0}', space=vmem, size = 0x8000, scoped, tag = 'input window, operand 8, single buffered']
    #allocation12 [shape = 's32[1]{0}', space=sflag, size = 0x4, scoped, tag = 'scoped memory for encoder_forward.1']
    #allocation13 [shape = 'u8[2097152]{0}', space=vmem, size = 0x200000, scoped, tag = 'input window, operand 9, single buffered']
    #allocation14 [shape = 'u8[8192]{0}', space=vmem, size = 0x2000, scoped, tag = 'input window, operand 10, single buffered']
    #allocation15 [shape = 's32[1]{0}', space=sflag, size = 0x4, scoped, tag = 'scoped memory for encoder_forward.1']
    #allocation16 [shape = 'u8[32768]{0}', space=vmem, size = 0x8000, scoped, tag = 'input window, operand 11, single buffered']
    #allocation17 [shape = 'u8[512]{0}', space=vmem, size = 0x400, scoped, tag = 'input window, operand 13, single buffered']
    #allocation18 [shape = 's32[1]{0}', space=sflag, size = 0x4, scoped, tag = 'scoped memory for encoder_forward.1']
    %19 = vsyncpa [#allocation4], 0
    %20 = vsyncpa [#allocation6], 0
    %21 = vsyncpa [#allocation9], 0
    %22 = vsyncpa [#allocation12], 0
    %23 = vsyncpa [#allocation15], 0
    %24 = vsyncpa [#allocation18], 0
    loop: start=0, step=1, limit=4
    $region2: #{encoder_forward.1} parent=1 // loop_pre_header
      _
    $region3: #{encoder_forward.1} parent=1 // loop_header
      %s26 = sphi 0, %s30
      %p27 = scmp.ge.s32.totalorder %s26, 4
      %s36 = sphi 0, %s38
      %s39 = sphi 0, %s36
      %s40 = sphi 0, %s39
      %s56 = sphi 0, %s40
      %s62 = sphi 0, %s64
      %s65 = sphi 0, %s62
      %s66 = sphi 0, %s65
      %s82 = sphi 0, %s66
      %s86 = sphi 0, %s86
      %s88 = sphi 0, %s86
      %s89 = sphi 0, %s88
      %s103 = sphi 0, %s89
      %s107 = sphi 0, %s107
      %s109 = sphi 0, %s107
      %s110 = sphi 0, %s109
      %s124 = sphi 0, %s110
      %s128 = sphi 0, %s128
      %s130 = sphi 0, %s128
      %s131 = sphi 0, %s130
      %s145 = sphi 0, %s131
      %s149 = sphi 0, %s149
      %s151 = sphi 0, %s149
      %s152 = sphi 0, %s151
      %s166 = sphi 0, %s152
      %s170 = sphi 0, %s170
      %s172 = sphi 0, %s170
      %s173 = sphi 0, %s172
      %s187 = sphi 0, %s173
      %s191 = sphi 0, %s191
      %s193 = sphi 0, %s191
      %s194 = sphi 0, %s193
      %s208 = sphi 0, %s194
      %s212 = sphi 0, %s212
      %s214 = sphi 0, %s212
      %s215 = sphi 0, %s214
      %s229 = sphi 0, %s215
      %s233 = sphi 0, %s233
      %s235 = sphi 0, %s233
      %s236 = sphi 0, %s235
      %s250 = sphi 0, %s236
      %s254 = sphi 0, %s254
      %s256 = sphi 0, %s254
      %s257 = sphi 0, %s256
      %s271 = sphi 0, %s257
      %s275 = sphi 0, %s275
      %s277 = sphi 0, %s275
      %s278 = sphi 0, %s277
      %s292 = sphi 0, %s278
      %s296 = sphi 0, %s296
      %s298 = sphi 0, %s296
      %s299 = sphi 0, %s298
      %s313 = sphi 0, %s299
      %s317 = sphi 0, %s317
      %s319 = sphi 0, %s317
      %s320 = sphi 0, %s319
      %s334 = sphi 0, %s320
      %s340 = sphi 0, %s342
      %s343 = sphi 0, %s340
      %s344 = sphi 0, %s343
      %s360 = sphi 0, %s344
    $region4: #{encoder_forward.1} parent=1 // loop_header_branch
      %29 = sbr.rel (%p27) target = $region8
    $region5: #{encoder_forward.1} parent=1 // loop_body
      %s31 = ssub.s32 %s26, 1
      %s32 = ssub.s32 %s26, 2
      %s33 = sadd.s32 %s26, 1
      %s34 = ssub.s32 %s26, %s33
      %p35 = scmp.eq.s32.totalorder %s34, 0
      %s37 = sadd.s32 %s36, 1
      %s38 = scalar_select %p35, %s36, %s37
      %p41 = pneg %p35
      %p42 = scmp.eq.s32.totalorder %s26, 1
      %p43 = por %p41, %p42
      %p44 = scmp.ne.s32.totalorder %s36, %s39
      %p45 = scmp.eq.s32.totalorder %s26, 0
      %p46 = por %p44, %p45
      %p47 = scmp.ne.s32.totalorder %s36, %s39
      %p48 = scmp.eq.s32.totalorder %s31, 1
      %p49 = por %p47, %p48
      %p50 = scmp.ne.s32.totalorder %s39, %s40
      %p51 = scmp.eq.s32.totalorder %s31, 0
      %p52 = por %p50, %p51
      %p53 = scmp.ne.s32.totalorder %s39, %s40
      %p54 = scmp.eq.s32.totalorder %s32, 1
      %p55 = por %p53, %p54
      %p57 = scmp.ne.s32.totalorder %s40, %s56
      %p58 = scmp.eq.s32.totalorder %s32, 0
      %p59 = por %p57, %p58
      %s60 = ssub.s32 %s26, %s33
      %p61 = scmp.eq.s32.totalorder %s60, 0
      %s63 = sadd.s32 %s62, 1
      %s64 = scalar_select %p61, %s62, %s63
      %p67 = pneg %p61
      %p68 = scmp.eq.s32.totalorder %s26, 1
      %p69 = por %p67, %p68
      %p70 = scmp.ne.s32.totalorder %s62, %s65
      %p71 = scmp.eq.s32.totalorder %s26, 0
      %p72 = por %p70, %p71
      %p73 = scmp.ne.s32.totalorder %s62, %s65
      %p74 = scmp.eq.s32.totalorder %s31, 1
      %p75 = por %p73, %p74
      %p76 = scmp.ne.s32.totalorder %s65, %s66
      %p77 = scmp.eq.s32.totalorder %s31, 0
      %p78 = por %p76, %p77
      %p79 = scmp.ne.s32.totalorder %s65, %s66
      %p80 = scmp.eq.s32.totalorder %s32, 1
      %p81 = por %p79, %p80
      %p83 = scmp.ne.s32.totalorder %s66, %s82
      %p84 = scmp.eq.s32.totalorder %s32, 0
      %p85 = por %p83, %p84
      %s87 = sadd.s32 %s86, 1
      %p90 = scmp.eq.s32.totalorder %s26, 1
      %p91 = scmp.ne.s32.totalorder %s86, %s88
      %p92 = scmp.eq.s32.totalorder %s26, 0
      %p93 = por %p91, %p92
      %p94 = scmp.ne.s32.totalorder %s86, %s88
      %p95 = scmp.eq.s32.totalorder %s31, 1
      %p96 = por %p94, %p95
      %p97 = scmp.ne.s32.totalorder %s88, %s89
      %p98 = scmp.eq.s32.totalorder %s31, 0
      %p99 = por %p97, %p98
      %p100 = scmp.ne.s32.totalorder %s88, %s89
      %p101 = scmp.eq.s32.totalorder %s32, 1
      %p102 = por %p100, %p101
      %p104 = scmp.ne.s32.totalorder %s89, %s103
      %p105 = scmp.eq.s32.totalorder %s32, 0
      %p106 = por %p104, %p105
      %s108 = sadd.s32 %s107, 1
      %p111 = scmp.eq.s32.totalorder %s26, 1
      %p112 = scmp.ne.s32.totalorder %s107, %s109
      %p113 = scmp.eq.s32.totalorder %s26, 0
      %p114 = por %p112, %p113
      %p115 = scmp.ne.s32.totalorder %s107, %s109
      %p116 = scmp.eq.s32.totalorder %s31, 1
      %p117 = por %p115, %p116
      %p118 = scmp.ne.s32.totalorder %s109, %s110
      %p119 = scmp.eq.s32.totalorder %s31, 0
      %p120 = por %p118, %p119
      %p121 = scmp.ne.s32.totalorder %s109, %s110
      %p122 = scmp.eq.s32.totalorder %s32, 1
      %p123 = por %p121, %p122
      %p125 = scmp.ne.s32.totalorder %s110, %s124
      %p126 = scmp.eq.s32.totalorder %s32, 0
      %p127 = por %p125, %p126
      %s129 = sadd.s32 %s128, 1
      %p132 = scmp.eq.s32.totalorder %s26, 1
      %p133 = scmp.ne.s32.totalorder %s128, %s130
      %p134 = scmp.eq.s32.totalorder %s26, 0
      %p135 = por %p133, %p134
      %p136 = scmp.ne.s32.totalorder %s128, %s130
      %p137 = scmp.eq.s32.totalorder %s31, 1
      %p138 = por %p136, %p137
      %p139 = scmp.ne.s32.totalorder %s130, %s131
      %p140 = scmp.eq.s32.totalorder %s31, 0
      %p141 = por %p139, %p140
      %p142 = scmp.ne.s32.totalorder %s130, %s131
      %p143 = scmp.eq.s32.totalorder %s32, 1
      %p144 = por %p142, %p143
      %p146 = scmp.ne.s32.totalorder %s131, %s145
      %p147 = scmp.eq.s32.totalorder %s32, 0
      %p148 = por %p146, %p147
      %s150 = sadd.s32 %s149, 1
      %p153 = scmp.eq.s32.totalorder %s26, 1
      %p154 = scmp.ne.s32.totalorder %s149, %s151
      %p155 = scmp.eq.s32.totalorder %s26, 0
      %p156 = por %p154, %p155
      %p157 = scmp.ne.s32.totalorder %s149, %s151
      %p158 = scmp.eq.s32.totalorder %s31, 1
      %p159 = por %p157, %p158
      %p160 = scmp.ne.s32.totalorder %s151, %s152
      %p161 = scmp.eq.s32.totalorder %s31, 0
      %p162 = por %p160, %p161
      %p163 = scmp.ne.s32.totalorder %s151, %s152
      %p164 = scmp.eq.s32.totalorder %s32, 1
      %p165 = por %p163, %p164
      %p167 = scmp.ne.s32.totalorder %s152, %s166
      %p168 = scmp.eq.s32.totalorder %s32, 0
      %p169 = por %p167, %p168
      %s171 = sadd.s32 %s170, 1
      %p174 = scmp.eq.s32.totalorder %s26, 1
      %p175 = scmp.ne.s32.totalorder %s170, %s172
      %p176 = scmp.eq.s32.totalorder %s26, 0
      %p177 = por %p175, %p176
      %p178 = scmp.ne.s32.totalorder %s170, %s172
      %p179 = scmp.eq.s32.totalorder %s31, 1
      %p180 = por %p178, %p179
      %p181 = scmp.ne.s32.totalorder %s172, %s173
      %p182 = scmp.eq.s32.totalorder %s31, 0
      %p183 = por %p181, %p182
      %p184 = scmp.ne.s32.totalorder %s172, %s173
      %p185 = scmp.eq.s32.totalorder %s32, 1
      %p186 = por %p184, %p185
      %p188 = scmp.ne.s32.totalorder %s173, %s187
      %p189 = scmp.eq.s32.totalorder %s32, 0
      %p190 = por %p188, %p189
      %s192 = sadd.s32 %s191, 1
      %p195 = scmp.eq.s32.totalorder %s26, 1
      %p196 = scmp.ne.s32.totalorder %s191, %s193
      %p197 = scmp.eq.s32.totalorder %s26, 0
      %p198 = por %p196, %p197
      %p199 = scmp.ne.s32.totalorder %s191, %s193
      %p200 = scmp.eq.s32.totalorder %s31, 1
      %p201 = por %p199, %p200
      %p202 = scmp.ne.s32.totalorder %s193, %s194
      %p203 = scmp.eq.s32.totalorder %s31, 0
      %p204 = por %p202, %p203
      %p205 = scmp.ne.s32.totalorder %s193, %s194
      %p206 = scmp.eq.s32.totalorder %s32, 1
      %p207 = por %p205, %p206
      %p209 = scmp.ne.s32.totalorder %s194, %s208
      %p210 = scmp.eq.s32.totalorder %s32, 0
      %p211 = por %p209, %p210
      %s213 = sadd.s32 %s212, 1
      %p216 = scmp.eq.s32.totalorder %s26, 1
      %p217 = scmp.ne.s32.totalorder %s212, %s214
      %p218 = scmp.eq.s32.totalorder %s26, 0
      %p219 = por %p217, %p218
      %p220 = scmp.ne.s32.totalorder %s212, %s214
      %p221 = scmp.eq.s32.totalorder %s31, 1
      %p222 = por %p220, %p221
      %p223 = scmp.ne.s32.totalorder %s214, %s215
      %p224 = scmp.eq.s32.totalorder %s31, 0
      %p225 = por %p223, %p224
      %p226 = scmp.ne.s32.totalorder %s214, %s215
      %p227 = scmp.eq.s32.totalorder %s32, 1
      %p228 = por %p226, %p227
      %p230 = scmp.ne.s32.totalorder %s215, %s229
      %p231 = scmp.eq.s32.totalorder %s32, 0
      %p232 = por %p230, %p231
      %s234 = sadd.s32 %s233, 1
      %p237 = scmp.eq.s32.totalorder %s26, 1
      %p238 = scmp.ne.s32.totalorder %s233, %s235
      %p239 = scmp.eq.s32.totalorder %s26, 0
      %p240 = por %p238, %p239
      %p241 = scmp.ne.s32.totalorder %s233, %s235
      %p242 = scmp.eq.s32.totalorder %s31, 1
      %p243 = por %p241, %p242
      %p244 = scmp.ne.s32.totalorder %s235, %s236
      %p245 = scmp.eq.s32.totalorder %s31, 0
      %p246 = por %p244, %p245
      %p247 = scmp.ne.s32.totalorder %s235, %s236
      %p248 = scmp.eq.s32.totalorder %s32, 1
      %p249 = por %p247, %p248
      %p251 = scmp.ne.s32.totalorder %s236, %s250
      %p252 = scmp.eq.s32.totalorder %s32, 0
      %p253 = por %p251, %p252
      %s255 = sadd.s32 %s254, 1
      %p258 = scmp.eq.s32.totalorder %s26, 1
      %p259 = scmp.ne.s32.totalorder %s254, %s256
      %p260 = scmp.eq.s32.totalorder %s26, 0
      %p261 = por %p259, %p260
      %p262 = scmp.ne.s32.totalorder %s254, %s256
      %p263 = scmp.eq.s32.totalorder %s31, 1
      %p264 = por %p262, %p263
      %p265 = scmp.ne.s32.totalorder %s256, %s257
      %p266 = scmp.eq.s32.totalorder %s31, 0
      %p267 = por %p265, %p266
      %p268 = scmp.ne.s32.totalorder %s256, %s257
      %p269 = scmp.eq.s32.totalorder %s32, 1
      %p270 = por %p268, %p269
      %p272 = scmp.ne.s32.totalorder %s257, %s271
      %p273 = scmp.eq.s32.totalorder %s32, 0
      %p274 = por %p272, %p273
      %s276 = sadd.s32 %s275, 1
      %p279 = scmp.eq.s32.totalorder %s26, 1
      %p280 = scmp.ne.s32.totalorder %s275, %s277
      %p281 = scmp.eq.s32.totalorder %s26, 0
      %p282 = por %p280, %p281
      %p283 = scmp.ne.s32.totalorder %s275, %s277
      %p284 = scmp.eq.s32.totalorder %s31, 1
      %p285 = por %p283, %p284
      %p286 = scmp.ne.s32.totalorder %s277, %s278
      %p287 = scmp.eq.s32.totalorder %s31, 0
      %p288 = por %p286, %p287
      %p289 = scmp.ne.s32.totalorder %s277, %s278
      %p290 = scmp.eq.s32.totalorder %s32, 1
      %p291 = por %p289, %p290
      %p293 = scmp.ne.s32.totalorder %s278, %s292
      %p294 = scmp.eq.s32.totalorder %s32, 0
      %p295 = por %p293, %p294
      %s297 = sadd.s32 %s296, 1
      %p300 = scmp.eq.s32.totalorder %s26, 1
      %p301 = scmp.ne.s32.totalorder %s296, %s298
      %p302 = scmp.eq.s32.totalorder %s26, 0
      %p303 = por %p301, %p302
      %p304 = scmp.ne.s32.totalorder %s296, %s298
      %p305 = scmp.eq.s32.totalorder %s31, 1
      %p306 = por %p304, %p305
      %p307 = scmp.ne.s32.totalorder %s298, %s299
      %p308 = scmp.eq.s32.totalorder %s31, 0
      %p309 = por %p307, %p308
      %p310 = scmp.ne.s32.totalorder %s298, %s299
      %p311 = scmp.eq.s32.totalorder %s32, 1
      %p312 = por %p310, %p311
      %p314 = scmp.ne.s32.totalorder %s299, %s313
      %p315 = scmp.eq.s32.totalorder %s32, 0
      %p316 = por %p314, %p315
      %s318 = sadd.s32 %s317, 1
      %p321 = scmp.eq.s32.totalorder %s26, 1
      %p322 = scmp.ne.s32.totalorder %s317, %s319
      %p323 = scmp.eq.s32.totalorder %s26, 0
      %p324 = por %p322, %p323
      %p325 = scmp.ne.s32.totalorder %s317, %s319
      %p326 = scmp.eq.s32.totalorder %s31, 1
      %p327 = por %p325, %p326
      %p328 = scmp.ne.s32.totalorder %s319, %s320
      %p329 = scmp.eq.s32.totalorder %s31, 0
      %p330 = por %p328, %p329
      %p331 = scmp.ne.s32.totalorder %s319, %s320
      %p332 = scmp.eq.s32.totalorder %s32, 1
      %p333 = por %p331, %p332
      %p335 = scmp.ne.s32.totalorder %s320, %s334
      %p336 = scmp.eq.s32.totalorder %s32, 0
      %p337 = por %p335, %p336
      %s338 = ssub.s32 %s26, %s33
      %p339 = scmp.eq.s32.totalorder %s338, 0
      %s341 = sadd.s32 %s340, 1
      %s342 = scalar_select %p339, %s340, %s341
      %p345 = pneg %p339
      %p346 = scmp.eq.s32.totalorder %s26, 1
      %p347 = por %p345, %p346
      %p348 = scmp.ne.s32.totalorder %s340, %s343
      %p349 = scmp.eq.s32.totalorder %s26, 0
      %p350 = por %p348, %p349
      %p351 = scmp.ne.s32.totalorder %s340, %s343
      %p352 = scmp.eq.s32.totalorder %s31, 1
      %p353 = por %p351, %p352
      %p354 = scmp.ne.s32.totalorder %s343, %s344
      %p355 = scmp.eq.s32.totalorder %s31, 0
      %p356 = por %p354, %p355
      %p357 = scmp.ne.s32.totalorder %s343, %s344
      %p358 = scmp.eq.s32.totalorder %s32, 1
      %p359 = por %p357, %p358
      %p361 = scmp.ne.s32.totalorder %s344, %s360
      %p362 = scmp.eq.s32.totalorder %s32, 0
      %p363 = por %p361, %p362
      %p364 = scmp.le.s32.totalorder 1, %s26
      %p365 = scmp.lt.s32.totalorder %s26, 3
      %p366 = pnand %p364, %p365
      %p367 = pneg %p366
      // Predicated region
      $region9: #{encoder_forward.1} parent=5 // pred_check
        _
      $region10: #{encoder_forward.1} parent=5 // pred_check_branch
        %369 = sbr.rel (%p366) target = $region12
      $region11: #{encoder_forward.1} parent=5 // pred_region
        %s370 = ssub.s32 %s26, 1
        // Predicated region
        $region13: #{encoder_forward.1} parent=11 // pred_check
          %p371 = pneg %p99
        $region14: #{encoder_forward.1} parent=11 // pred_check_branch
          %373 = sbr.rel (%p371) target = $region16
        $region15: #{encoder_forward.1} parent=11 // pred_region
          %s375 = ssub.s32 12288, 12288
          %376 = vsyncadd [#allocation4], %s375
          %s377 = sshll.u32 [#allocation3], 4
          %s378 = int_to_ptr.vmem [resolvable:$true] %s377
          %383 = dma.hbm_to_vmem [thread:$0]  %s2, 12288, %s378, [#allocation4], 512, 512, 32
        $region16: #{encoder_forward.1} parent=11 // pred_fallthru
          _
        // Predicated region
        $region17: #{encoder_forward.1} parent=11 // pred_check
          %p384 = pneg %p120
        $region18: #{encoder_forward.1} parent=11 // pred_check_branch
          %386 = sbr.rel (%p384) target = $region20
        $region19: #{encoder_forward.1} parent=11 // pred_region
          %s388 = ssub.s32 128, 128
          %389 = vsyncadd [#allocation6], %s388
          %s391 = sshll.u32 [#allocation5], 4
          %s392 = int_to_ptr.vmem [resolvable:$true] %s391
          %394 = dma.hbm_to_vmem [thread:$0]  %s3, 128, %s392, [#allocation6]
        $region20: #{encoder_forward.1} parent=11 // pred_fallthru
          _
        // Predicated region
        $region21: #{encoder_forward.1} parent=11 // pred_check
          %p395 = pneg %p141
        $region22: #{encoder_forward.1} parent=11 // pred_check_branch
          %397 = sbr.rel (%p395) target = $region24
        $region23: #{encoder_forward.1} parent=11 // pred_region
          %s399 = ssub.s32 128, 128
          %400 = vsyncadd [#allocation6], %s399
          %s402 = sshll.u32 [#allocation7], 4
          %s403 = int_to_ptr.vmem [resolvable:$true] %s402
          %405 = dma.hbm_to_vmem [thread:$0]  %s4, 128, %s403, [#allocation6]
        $region24: #{encoder_forward.1} parent=11 // pred_fallthru
          _
        // Predicated region
        $region25: #{encoder_forward.1} parent=11 // pred_check
          %p406 = pneg %p162
        $region26: #{encoder_forward.1} parent=11 // pred_check_branch
          %408 = sbr.rel (%p406) target = $region28
        $region27: #{encoder_forward.1} parent=11 // pred_region
          _
        $region28: #{encoder_forward.1} parent=11 // pred_fallthru
          _
        // Predicated region
        $region29: #{encoder_forward.1} parent=11 // pred_check
          %p409 = pneg %p183
        $region30: #{encoder_forward.1} parent=11 // pred_check_branch
          %411 = sbr.rel (%p409) target = $region32
        $region31: #{encoder_forward.1} parent=11 // pred_region
          %s413 = ssub.s32 24576, 24576
          %414 = vsyncadd [#allocation9], %s413
          %s415 = sshll.u32 [#allocation8], 4
          %s416 = int_to_ptr.vmem [resolvable:$true] %s415
          %421 = dma.hbm_to_vmem [thread:$0]  %s6, 24576, %s416, [#allocation9], 1024, 1024, 64
        $region32: #{encoder_forward.1} parent=11 // pred_fallthru
          _
        // Predicated region
        $region33: #{encoder_forward.1} parent=11 // pred_check
          %p422 = pneg %p204
        $region34: #{encoder_forward.1} parent=11 // pred_check_branch
          %424 = sbr.rel (%p422) target = $region36
        $region35: #{encoder_forward.1} parent=11 // pred_region
          %s426 = ssub.s32 256, 256
          %427 = vsyncadd [#allocation9], %s426
          %s429 = sshll.u32 [#allocation10], 4
          %s430 = int_to_ptr.vmem [resolvable:$true] %s429
          %432 = dma.hbm_to_vmem [thread:$0]  %s7, 256, %s430, [#allocation9]
        $region36: #{encoder_forward.1} parent=11 // pred_fallthru
          _
        // Predicated region
        $region37: #{encoder_forward.1} parent=11 // pred_check
          %p433 = pneg %p225
        $region38: #{encoder_forward.1} parent=11 // pred_check_branch
          %435 = sbr.rel (%p433) target = $region40
        $region39: #{encoder_forward.1} parent=11 // pred_region
          %s437 = ssub.s32 1024, 1024
          %438 = vsyncadd [#allocation12], %s437
          %s439 = sshll.u32 [#allocation11], 4
          %s440 = int_to_ptr.vmem [resolvable:$true] %s439
          %445 = dma.hbm_to_vmem [thread:$0]  %s8, 1024, %s440, [#allocation12], 128, 128, 8
        $region40: #{encoder_forward.1} parent=11 // pred_fallthru
          _
        // Predicated region
        $region41: #{encoder_forward.1} parent=11 // pred_check
          %p446 = pneg %p246
        $region42: #{encoder_forward.1} parent=11 // pred_check_branch
          %448 = sbr.rel (%p446) target = $region44
        $region43: #{encoder_forward.1} parent=11 // pred_region
          %s450 = ssub.s32 65536, 65536
          %451 = vsyncadd [#allocation12], %s450
          %s452 = sshll.u32 [#allocation13], 4
          %s453 = int_to_ptr.vmem [resolvable:$true] %s452
          %458 = dma.hbm_to_vmem [thread:$0]  %s9, 65536, %s453, [#allocation12], 1024, 1024, 64
        $region44: #{encoder_forward.1} parent=11 // pred_fallthru
          _
        // Predicated region
        $region45: #{encoder_forward.1} parent=11 // pred_check
          %p459 = pneg %p267
        $region46: #{encoder_forward.1} parent=11 // pred_check_branch
          %461 = sbr.rel (%p459) target = $region48
        $region47: #{encoder_forward.1} parent=11 // pred_region
          %s463 = ssub.s32 256, 256
          %464 = vsyncadd [#allocation15], %s463
          %s466 = sshll.u32 [#allocation14], 4
          %s467 = int_to_ptr.vmem [resolvable:$true] %s466
          %469 = dma.hbm_to_vmem [thread:$0]  %s10, 256, %s467, [#allocation15]
        $region48: #{encoder_forward.1} parent=11 // pred_fallthru
          _
        // Predicated region
        $region49: #{encoder_forward.1} parent=11 // pred_check
          %p470 = pneg %p288
        $region50: #{encoder_forward.1} parent=11 // pred_check_branch
          %472 = sbr.rel (%p470) target = $region52
        $region51: #{encoder_forward.1} parent=11 // pred_region
          %s474 = ssub.s32 1024, 1024
          %475 = vsyncadd [#allocation15], %s474
          %s476 = sshll.u32 [#allocation16], 4
          %s477 = int_to_ptr.vmem [resolvable:$true] %s476
          %482 = dma.hbm_to_vmem [thread:$0]  %s11, 1024, %s477, [#allocation15], 128, 128, 8
        $region52: #{encoder_forward.1} parent=11 // pred_fallthru
          _
        // Predicated region
        $region53: #{encoder_forward.1} parent=11 // pred_check
          %p483 = pneg %p309
        $region54: #{encoder_forward.1} parent=11 // pred_check_branch
          %485 = sbr.rel (%p483) target = $region56
        $region55: #{encoder_forward.1} parent=11 // pred_region
          _
        $region56: #{encoder_forward.1} parent=11 // pred_fallthru
          _
        // Predicated region
        $region57: #{encoder_forward.1} parent=11 // pred_check
          %p486 = pneg %p330
        $region58: #{encoder_forward.1} parent=11 // pred_check_branch
          %488 = sbr.rel (%p486) target = $region60
        $region59: #{encoder_forward.1} parent=11 // pred_region
          %s490 = ssub.s32 16, 16
          %491 = vsyncadd [#allocation18], %s490
          %s493 = sshll.u32 [#allocation17], 4
          %s494 = int_to_ptr.vmem [resolvable:$true] %s493
          %496 = dma.hbm_to_vmem [thread:$0]  %s13, 16, %s494, [#allocation18]
        $region60: #{encoder_forward.1} parent=11 // pred_fallthru
          _
      $region12: #{encoder_forward.1} parent=5 // pred_fallthru
        _
      %p497 = scmp.lt.s32.totalorder %s26, 2
      // Predicated region
      $region61: #{encoder_forward.1} parent=5 // pred_check
        %p498 = pneg %p497
      $region62: #{encoder_forward.1} parent=5 // pred_check_branch
        %500 = sbr.rel (%p498) target = $region64
      $region63: #{encoder_forward.1} parent=5 // pred_region
        // Predicated region
        $region65: #{encoder_forward.1} parent=63 // pred_check
          %p501 = pneg %p46
        $region66: #{encoder_forward.1} parent=63 // pred_check_branch
          %503 = sbr.rel (%p501) target = $region68
        $region67: #{encoder_forward.1} parent=63 // pred_region
          %s504 = smul.u32 2, %s26
          %p505 = scmp.lt.s32.totalorder %s504, 3
          %s506 = scalar_select %p505, %s504, 3
          %s507 = smul.addr %s506, 3
          %s508 = smul.addr %s507, 8
          %s509 = scalar_lea.vmem %s0, %s508
          %s510 = smul.u32 2, %s26
        $region68: #{encoder_forward.1} parent=63 // pred_fallthru
          _
        // Predicated region
        $region69: #{encoder_forward.1} parent=63 // pred_check
          %p511 = pneg %p72
        $region70: #{encoder_forward.1} parent=63 // pred_check_branch
          %513 = sbr.rel (%p511) target = $region72
        $region71: #{encoder_forward.1} parent=63 // pred_region
          %s514 = smul.u32 2, %s26
          %p515 = scmp.lt.s32.totalorder %s514, 3
          %s516 = scalar_select %p515, %s514, 3
          %s517 = smul.addr %s516, 8
          %s518 = scalar_lea.vmem %s1, %s517
          %s519 = smul.u32 2, %s26
        $region72: #{encoder_forward.1} parent=63 // pred_fallthru
          _
      $region64: #{encoder_forward.1} parent=5 // pred_fallthru
        _
      %p520 = scmp.le.s32.totalorder 1, %s26
      %p521 = scmp.lt.s32.totalorder %s26, 3
      %p522 = pnand %p520, %p521
      %p523 = pneg %p522
      // Predicated region
      $region73: #{encoder_forward.1} parent=5 // pred_check
        _
      $region74: #{encoder_forward.1} parent=5 // pred_check_branch
        %525 = sbr.rel (%p522) target = $region76
      $region75: #{encoder_forward.1} parent=5 // pred_region
        %s526 = ssub.s32 %s26, 1
        // Predicated region
        $region77: #{encoder_forward.1} parent=75 // pred_check
          %p527 = pneg %p99
        $region78: #{encoder_forward.1} parent=75 // pred_check_branch
          %529 = sbr.rel (%p527) target = $region80
        $region79: #{encoder_forward.1} parent=75 // pred_region
          %530 = dma.done [#allocation4], 12288
        $region80: #{encoder_forward.1} parent=75 // pred_fallthru
          _
        // Predicated region
        $region81: #{encoder_forward.1} parent=75 // pred_check
          %p531 = pneg %p120
        $region82: #{encoder_forward.1} parent=75 // pred_check_branch
          %533 = sbr.rel (%p531) target = $region84
        $region83: #{encoder_forward.1} parent=75 // pred_region
          %534 = dma.done [#allocation6], 128
        $region84: #{encoder_forward.1} parent=75 // pred_fallthru
          _
        // Predicated region
        $region85: #{encoder_forward.1} parent=75 // pred_check
          %p535 = pneg %p141
        $region86: #{encoder_forward.1} parent=75 // pred_check_branch
          %537 = sbr.rel (%p535) target = $region88
        $region87: #{encoder_forward.1} parent=75 // pred_region
          %538 = dma.done [#allocation6], 128
        $region88: #{encoder_forward.1} parent=75 // pred_fallthru
          _
        // Predicated region
        $region89: #{encoder_forward.1} parent=75 // pred_check
          %p539 = pneg %p183
        $region90: #{encoder_forward.1} parent=75 // pred_check_branch
          %541 = sbr.rel (%p539) target = $region92
        $region91: #{encoder_forward.1} parent=75 // pred_region
          %542 = dma.done [#allocation9], 24576
        $region92: #{encoder_forward.1} parent=75 // pred_fallthru
          _
        // Predicated region
        $region93: #{encoder_forward.1} parent=75 // pred_check
          %p543 = pneg %p204
        $region94: #{encoder_forward.1} parent=75 // pred_check_branch
          %545 = sbr.rel (%p543) target = $region96
        $region95: #{encoder_forward.1} parent=75 // pred_region
          %546 = dma.done [#allocation9], 256
        $region96: #{encoder_forward.1} parent=75 // pred_fallthru
          _
        // Predicated region
        $region97: #{encoder_forward.1} parent=75 // pred_check
          %p547 = pneg %p225
        $region98: #{encoder_forward.1} parent=75 // pred_check_branch
          %549 = sbr.rel (%p547) target = $region100
        $region99: #{encoder_forward.1} parent=75 // pred_region
          %550 = dma.done [#allocation12], 1024
        $region100: #{encoder_forward.1} parent=75 // pred_fallthru
          _
        // Predicated region
        $region101: #{encoder_forward.1} parent=75 // pred_check
          %p551 = pneg %p246
        $region102: #{encoder_forward.1} parent=75 // pred_check_branch
          %553 = sbr.rel (%p551) target = $region104
        $region103: #{encoder_forward.1} parent=75 // pred_region
          %554 = dma.done [#allocation12], 65536
        $region104: #{encoder_forward.1} parent=75 // pred_fallthru
          _
        // Predicated region
        $region105: #{encoder_forward.1} parent=75 // pred_check
          %p555 = pneg %p267
        $region106: #{encoder_forward.1} parent=75 // pred_check_branch
          %557 = sbr.rel (%p555) target = $region108
        $region107: #{encoder_forward.1} parent=75 // pred_region
          %558 = dma.done [#allocation15], 256
        $region108: #{encoder_forward.1} parent=75 // pred_fallthru
          _
        // Predicated region
        $region109: #{encoder_forward.1} parent=75 // pred_check
          %p559 = pneg %p288
        $region110: #{encoder_forward.1} parent=75 // pred_check_branch
          %561 = sbr.rel (%p559) target = $region112
        $region111: #{encoder_forward.1} parent=75 // pred_region
          %562 = dma.done [#allocation15], 1024
        $region112: #{encoder_forward.1} parent=75 // pred_fallthru
          _
        // Predicated region
        $region113: #{encoder_forward.1} parent=75 // pred_check
          %p563 = pneg %p330
        $region114: #{encoder_forward.1} parent=75 // pred_check_branch
          %565 = sbr.rel (%p563) target = $region116
        $region115: #{encoder_forward.1} parent=75 // pred_region
          %566 = dma.done [#allocation18], 16
        $region116: #{encoder_forward.1} parent=75 // pred_fallthru
          _
        %s567 = smul.u32 2, %s31
        %p568 = scmp.lt.s32.totalorder %s567, 3
        %s569 = scalar_select %p568, %s567, 3
        %s570 = smul.addr %s569, 3
        %s571 = smul.addr %s570, 8
        %s572 = scalar_lea.vmem %s0, %s571
        %p573 = pneg %p52
        %p574 = pneg %p49
        %s575 = smul.u32 2, %s31
        %p576 = scmp.lt.s32.totalorder %s575, 3
        %s577 = scalar_select %p576, %s575, 3
        %s578 = smul.addr %s577, 8
        %s579 = scalar_lea.vmem %s1, %s578
        %p580 = pneg %p78
        %p581 = pneg %p75
        %p582 = pneg %p99
        %p583 = pneg %p96
        %p584 = pneg %p120
        %p585 = pneg %p117
        %p586 = pneg %p141
        %p587 = pneg %p138
        %p588 = pneg %p162
        %p589 = pneg %p159
        %p590 = pneg %p183
        %p591 = pneg %p180
        %p592 = pneg %p204
        %p593 = pneg %p201
        %p594 = pneg %p225
        %p595 = pneg %p222
        %p596 = pneg %p246
        %p597 = pneg %p243
        %p598 = pneg %p267
        %p599 = pneg %p264
        %p600 = pneg %p288
        %p601 = pneg %p285
        %p602 = pneg %p309
        %p603 = pneg %p306
        %p604 = pneg %p330
        %p605 = pneg %p327
        %p606 = pneg %p356
        %p607 = pneg %p353
        %s608 = smul.u32 2, %s31
        %p609 = scmp.lt.s32.totalorder %s608, 3
        %s610 = scalar_select %p609, %s608, 3
        %s611 = smul.addr %s610, 8
        %s612 = scalar_lea.vmem %s14, %s611
        %s613 = smul.u32 2, %s31
        %p614 = scmp.lt.s32.totalorder %s613, 3
        %s615 = scalar_select %p614, %s613, 3
        %s616 = smul.addr %s615, 3
        %s617 = smul.addr %s616, 8
        %s618 = scalar_lea.vmem %s0, %s617
        %s619 = smul.u32 2, %s31
        %s620 = smul.u32 2, %s31
        %p621 = scmp.lt.s32.totalorder %s620, 3
        %s622 = scalar_select %p621, %s620, 3
        %s623 = smul.addr %s622, 8
        %s624 = scalar_lea.vmem %s1, %s623
        %s625 = smul.u32 2, %s31
        %s626 = smul.u32 2, %s31
        %p627 = scmp.lt.s32.totalorder %s626, 3
        %s628 = scalar_select %p627, %s626, 3
        %s629 = smul.addr %s628, 8
        %s630 = scalar_lea.vmem %s14, %s629
        %s631 = smul.u32 2, %s31
        %v633 = vld [vmem:[%s618] sm:$0xff]
        %v634 = vld [vmem:[%s618 + $0x8] sm:$0xff]
        %v635 = vld [vmem:[%s618 + $0x10] sm:$0xff]
        %v636 = vld [vmem:[%s618 + $0x18] sm:$0xff]
        %v637 = vld [vmem:[%s618 + $0x20] sm:$0xff]
        %v638 = vld [vmem:[%s618 + $0x28] sm:$0xff]
        %v639 = vpack.c.bf16 %v636, %v633
        %v640 = vpack.c.bf16 %v637, %v634
        %v641 = vpack.c.bf16 %v638, %v635
        %v642 = vld [vmem:[#allocation3] sm:$0xff]
        %v643 = vld [vmem:[#allocation3 + $0x8] sm:$0xff]
        %v644 = vld [vmem:[#allocation3 + $0x10] sm:$0xff]
        %v645 = vld [vmem:[#allocation3 + $0x18] sm:$0xff]
        %v646 = vld [vmem:[#allocation3 + $0x20] sm:$0xff]
        %v647 = vld [vmem:[#allocation3 + $0x28] sm:$0xff]
        %v648 = vld [vmem:[#allocation3 + $0x30] sm:$0xff]
        %v649 = vld [vmem:[#allocation3 + $0x38] sm:$0xff]
        %v650 = vld [vmem:[#allocation3 + $0x40] sm:$0xff]
        %v651 = vld [vmem:[#allocation3 + $0x48] sm:$0xff]
        %v652 = vld [vmem:[#allocation3 + $0x50] sm:$0xff]
        %v653 = vld [vmem:[#allocation3 + $0x58] sm:$0xff]
        %v654 = vld [vmem:[#allocation3 + $0x60] sm:$0xff]
        %v655 = vld [vmem:[#allocation3 + $0x68] sm:$0xff]
        %v656 = vld [vmem:[#allocation3 + $0x70] sm:$0xff]
        %v657 = vld [vmem:[#allocation3 + $0x78] sm:$0xff]
        %v658 = vld [vmem:[#allocation3 + $0x80] sm:$0xff]
        %v659 = vld [vmem:[#allocation3 + $0x88] sm:$0xff]
        %v660 = vld [vmem:[#allocation3 + $0x90] sm:$0xff]
        %v661 = vld [vmem:[#allocation3 + $0x98] sm:$0xff]
        %v662 = vld [vmem:[#allocation3 + $0xa0] sm:$0xff]
        %v663 = vld [vmem:[#allocation3 + $0xa8] sm:$0xff]
        %v664 = vld [vmem:[#allocation3 + $0xb0] sm:$0xff]
        %v665 = vld [vmem:[#allocation3 + $0xb8] sm:$0xff]
        %v666 = vld [vmem:[#allocation3 + $0xc0] sm:$0xff]
        %v667 = vld [vmem:[#allocation3 + $0xc8] sm:$0xff]
        %v668 = vld [vmem:[#allocation3 + $0xd0] sm:$0xff]
        %v669 = vld [vmem:[#allocation3 + $0xd8] sm:$0xff]
        %v670 = vld [vmem:[#allocation3 + $0xe0] sm:$0xff]
        %v671 = vld [vmem:[#allocation3 + $0xe8] sm:$0xff]
        %v672 = vld [vmem:[#allocation3 + $0xf0] sm:$0xff]
        %v673 = vld [vmem:[#allocation3 + $0xf8] sm:$0xff]
        %v674 = vld [vmem:[#allocation3 + $0x100] sm:$0xff]
        %v675 = vld [vmem:[#allocation3 + $0x108] sm:$0xff]
        %v676 = vld [vmem:[#allocation3 + $0x110] sm:$0xff]
        %v677 = vld [vmem:[#allocation3 + $0x118] sm:$0xff]
        %v678 = vld [vmem:[#allocation3 + $0x120] sm:$0xff]
        %v679 = vld [vmem:[#allocation3 + $0x128] sm:$0xff]
        %v680 = vld [vmem:[#allocation3 + $0x130] sm:$0xff]
        %v681 = vld [vmem:[#allocation3 + $0x138] sm:$0xff]
        %v682 = vld [vmem:[#allocation3 + $0x140] sm:$0xff]
        %v683 = vld [vmem:[#allocation3 + $0x148] sm:$0xff]
        %v684 = vld [vmem:[#allocation3 + $0x150] sm:$0xff]
        %v685 = vld [vmem:[#allocation3 + $0x158] sm:$0xff]
        %v686 = vld [vmem:[#allocation3 + $0x160] sm:$0xff]
        %v687 = vld [vmem:[#allocation3 + $0x168] sm:$0xff]
        %v688 = vld [vmem:[#allocation3 + $0x170] sm:$0xff]
        %v689 = vld [vmem:[#allocation3 + $0x178] sm:$0xff]
        %v690 = vld [vmem:[#allocation3 + $0x180] sm:$0xff]
        %v691 = vld [vmem:[#allocation3 + $0x188] sm:$0xff]
        %v692 = vld [vmem:[#allocation3 + $0x190] sm:$0xff]
        %v693 = vld [vmem:[#allocation3 + $0x198] sm:$0xff]
        %v694 = vld [vmem:[#allocation3 + $0x1a0] sm:$0xff]
        %v695 = vld [vmem:[#allocation3 + $0x1a8] sm:$0xff]
        %v696 = vld [vmem:[#allocation3 + $0x1b0] sm:$0xff]
        %v697 = vld [vmem:[#allocation3 + $0x1b8] sm:$0xff]
        %v698 = vld [vmem:[#allocation3 + $0x1c0] sm:$0xff]
        %v699 = vld [vmem:[#allocation3 + $0x1c8] sm:$0xff]
        %v700 = vld [vmem:[#allocation3 + $0x1d0] sm:$0xff]
        %v701 = vld [vmem:[#allocation3 + $0x1d8] sm:$0xff]
        %v702 = vld [vmem:[#allocation3 + $0x1e0] sm:$0xff]
        %v703 = vld [vmem:[#allocation3 + $0x1e8] sm:$0xff]
        %v704 = vld [vmem:[#allocation3 + $0x1f0] sm:$0xff]
        %v705 = vld [vmem:[#allocation3 + $0x1f8] sm:$0xff]
        %v706 = vld [vmem:[#allocation3 + $0x200] sm:$0xff]
        %v707 = vld [vmem:[#allocation3 + $0x208] sm:$0xff]
        %v708 = vld [vmem:[#allocation3 + $0x210] sm:$0xff]
        %v709 = vld [vmem:[#allocation3 + $0x218] sm:$0xff]
        %v710 = vld [vmem:[#allocation3 + $0x220] sm:$0xff]
        %v711 = vld [vmem:[#allocation3 + $0x228] sm:$0xff]
        %v712 = vld [vmem:[#allocation3 + $0x230] sm:$0xff]
        %v713 = vld [vmem:[#allocation3 + $0x238] sm:$0xff]
        %v714 = vld [vmem:[#allocation3 + $0x240] sm:$0xff]
        %v715 = vld [vmem:[#allocation3 + $0x248] sm:$0xff]
        %v716 = vld [vmem:[#allocation3 + $0x250] sm:$0xff]
        %v717 = vld [vmem:[#allocation3 + $0x258] sm:$0xff]
        %v718 = vld [vmem:[#allocation3 + $0x260] sm:$0xff]
        %v719 = vld [vmem:[#allocation3 + $0x268] sm:$0xff]
        %v720 = vld [vmem:[#allocation3 + $0x270] sm:$0xff]
        %v721 = vld [vmem:[#allocation3 + $0x278] sm:$0xff]
        %v722 = vld [vmem:[#allocation3 + $0x280] sm:$0xff]
        %v723 = vld [vmem:[#allocation3 + $0x288] sm:$0xff]
        %v724 = vld [vmem:[#allocation3 + $0x290] sm:$0xff]
        %v725 = vld [vmem:[#allocation3 + $0x298] sm:$0xff]
        %v726 = vld [vmem:[#allocation3 + $0x2a0] sm:$0xff]
        %v727 = vld [vmem:[#allocation3 + $0x2a8] sm:$0xff]
        %v728 = vld [vmem:[#allocation3 + $0x2b0] sm:$0xff]
        %v729 = vld [vmem:[#allocation3 + $0x2b8] sm:$0xff]
        %v730 = vld [vmem:[#allocation3 + $0x2c0] sm:$0xff]
        %v731 = vld [vmem:[#allocation3 + $0x2c8] sm:$0xff]
        %v732 = vld [vmem:[#allocation3 + $0x2d0] sm:$0xff]
        %v733 = vld [vmem:[#allocation3 + $0x2d8] sm:$0xff]
        %v734 = vld [vmem:[#allocation3 + $0x2e0] sm:$0xff]
        %v735 = vld [vmem:[#allocation3 + $0x2e8] sm:$0xff]
        %v736 = vld [vmem:[#allocation3 + $0x2f0] sm:$0xff]
        %v737 = vld [vmem:[#allocation3 + $0x2f8] sm:$0xff]
        %v834 = vunpack.c.l.b16 %v642
        %v835 = vunpack.c.h.b16 %v642
        %v836 = vunpack.c.l.b16 %v643
        %v837 = vunpack.c.h.b16 %v643
        %v838 = vunpack.c.l.b16 %v644
        %v839 = vunpack.c.h.b16 %v644
        %v840 = vunpack.c.l.b16 %v645
        %v841 = vunpack.c.h.b16 %v645
        %v842 = vunpack.c.l.b16 %v646
        %v843 = vunpack.c.h.b16 %v646
        %v844 = vunpack.c.l.b16 %v647
        %v845 = vunpack.c.h.b16 %v647
        %v846 = vunpack.c.l.b16 %v648
        %v847 = vunpack.c.h.b16 %v648
        %v848 = vunpack.c.l.b16 %v649
        %v849 = vunpack.c.h.b16 %v649
        %v850 = vunpack.c.l.b16 %v650
        %v851 = vunpack.c.h.b16 %v650
        %v852 = vunpack.c.l.b16 %v651
        %v853 = vunpack.c.h.b16 %v651
        %v854 = vunpack.c.l.b16 %v652
        %v855 = vunpack.c.h.b16 %v652
        %v856 = vunpack.c.l.b16 %v653
        %v857 = vunpack.c.h.b16 %v653
        %v858 = vunpack.c.l.b16 %v654
        %v859 = vunpack.c.h.b16 %v654
        %v860 = vunpack.c.l.b16 %v655
        %v861 = vunpack.c.h.b16 %v655
        %v862 = vunpack.c.l.b16 %v656
        %v863 = vunpack.c.h.b16 %v656
        %v864 = vunpack.c.l.b16 %v657
        %v865 = vunpack.c.h.b16 %v657
        %v866 = vunpack.c.l.b16 %v658
        %v867 = vunpack.c.h.b16 %v658
        %v868 = vunpack.c.l.b16 %v659
        %v869 = vunpack.c.h.b16 %v659
        %v870 = vunpack.c.l.b16 %v660
        %v871 = vunpack.c.h.b16 %v660
        %v872 = vunpack.c.l.b16 %v661
        %v873 = vunpack.c.h.b16 %v661
        %v874 = vunpack.c.l.b16 %v662
        %v875 = vunpack.c.h.b16 %v662
        %v876 = vunpack.c.l.b16 %v663
        %v877 = vunpack.c.h.b16 %v663
        %v878 = vunpack.c.l.b16 %v664
        %v879 = vunpack.c.h.b16 %v664
        %v880 = vunpack.c.l.b16 %v665
        %v881 = vunpack.c.h.b16 %v665
        %v882 = vunpack.c.l.b16 %v666
        %v883 = vunpack.c.h.b16 %v666
        %v884 = vunpack.c.l.b16 %v667
        %v885 = vunpack.c.h.b16 %v667
        %v886 = vunpack.c.l.b16 %v668
        %v887 = vunpack.c.h.b16 %v668
        %v888 = vunpack.c.l.b16 %v669
        %v889 = vunpack.c.h.b16 %v669
        %v890 = vunpack.c.l.b16 %v670
        %v891 = vunpack.c.h.b16 %v670
        %v892 = vunpack.c.l.b16 %v671
        %v893 = vunpack.c.h.b16 %v671
        %v894 = vunpack.c.l.b16 %v672
        %v895 = vunpack.c.h.b16 %v672
        %v896 = vunpack.c.l.b16 %v673
        %v897 = vunpack.c.h.b16 %v673
        %v898 = vunpack.c.l.b16 %v674
        %v899 = vunpack.c.h.b16 %v674
        %v900 = vunpack.c.l.b16 %v675
        %v901 = vunpack.c.h.b16 %v675
        %v902 = vunpack.c.l.b16 %v676
        %v903 = vunpack.c.h.b16 %v676
        %v904 = vunpack.c.l.b16 %v677
        %v905 = vunpack.c.h.b16 %v677
        %v906 = vunpack.c.l.b16 %v678
        %v907 = vunpack.c.h.b16 %v678
        %v908 = vunpack.c.l.b16 %v679
        %v909 = vunpack.c.h.b16 %v679
        %v910 = vunpack.c.l.b16 %v680
        %v911 = vunpack.c.h.b16 %v680
        %v912 = vunpack.c.l.b16 %v681
        %v913 = vunpack.c.h.b16 %v681
        %v914 = vunpack.c.l.b16 %v682
        %v915 = vunpack.c.h.b16 %v682
        %v916 = vunpack.c.l.b16 %v683
        %v917 = vunpack.c.h.b16 %v683
        %v918 = vunpack.c.l.b16 %v684
        %v919 = vunpack.c.h.b16 %v684
        %v920 = vunpack.c.l.b16 %v685
        %v921 = vunpack.c.h.b16 %v685
        %v922 = vunpack.c.l.b16 %v686
        %v923 = vunpack.c.h.b16 %v686
        %v924 = vunpack.c.l.b16 %v687
        %v925 = vunpack.c.h.b16 %v687
        %v926 = vunpack.c.l.b16 %v688
        %v927 = vunpack.c.h.b16 %v688
        %v928 = vunpack.c.l.b16 %v689
        %v929 = vunpack.c.h.b16 %v689
        %v930 = vunpack.c.l.b16 %v690
        %v931 = vunpack.c.h.b16 %v690
        %v932 = vunpack.c.l.b16 %v691
        %v933 = vunpack.c.h.b16 %v691
        %v934 = vunpack.c.l.b16 %v692
        %v935 = vunpack.c.h.b16 %v692
        %v936 = vunpack.c.l.b16 %v693
        %v937 = vunpack.c.h.b16 %v693
        %v938 = vunpack.c.l.b16 %v694
        %v939 = vunpack.c.h.b16 %v694
        %v940 = vunpack.c.l.b16 %v695
        %v941 = vunpack.c.h.b16 %v695
        %v942 = vunpack.c.l.b16 %v696
        %v943 = vunpack.c.h.b16 %v696
        %v944 = vunpack.c.l.b16 %v697
        %v945 = vunpack.c.h.b16 %v697
        %v946 = vunpack.c.l.b16 %v698
        %v947 = vunpack.c.h.b16 %v698
        %v948 = vunpack.c.l.b16 %v699
        %v949 = vunpack.c.h.b16 %v699
        %v950 = vunpack.c.l.b16 %v700
        %v951 = vunpack.c.h.b16 %v700
        %v952 = vunpack.c.l.b16 %v701
        %v953 = vunpack.c.h.b16 %v701
        %v954 = vunpack.c.l.b16 %v702
        %v955 = vunpack.c.h.b16 %v702
        %v956 = vunpack.c.l.b16 %v703
        %v957 = vunpack.c.h.b16 %v703
        %v958 = vunpack.c.l.b16 %v704
        %v959 = vunpack.c.h.b16 %v704
        %v960 = vunpack.c.l.b16 %v705
        %v961 = vunpack.c.h.b16 %v705
        %v962 = vunpack.c.l.b16 %v706
        %v963 = vunpack.c.h.b16 %v706
        %v964 = vunpack.c.l.b16 %v707
        %v965 = vunpack.c.h.b16 %v707
        %v966 = vunpack.c.l.b16 %v708
        %v967 = vunpack.c.h.b16 %v708
        %v968 = vunpack.c.l.b16 %v709
        %v969 = vunpack.c.h.b16 %v709
        %v970 = vunpack.c.l.b16 %v710
        %v971 = vunpack.c.h.b16 %v710
        %v972 = vunpack.c.l.b16 %v711
        %v973 = vunpack.c.h.b16 %v711
        %v974 = vunpack.c.l.b16 %v712
        %v975 = vunpack.c.h.b16 %v712
        %v976 = vunpack.c.l.b16 %v713
        %v977 = vunpack.c.h.b16 %v713
        %v978 = vunpack.c.l.b16 %v714
        %v979 = vunpack.c.h.b16 %v714
        %v980 = vunpack.c.l.b16 %v715
        %v981 = vunpack.c.h.b16 %v715
        %v982 = vunpack.c.l.b16 %v716
        %v983 = vunpack.c.h.b16 %v716
        %v984 = vunpack.c.l.b16 %v717
        %v985 = vunpack.c.h.b16 %v717
        %v986 = vunpack.c.l.b16 %v718
        %v987 = vunpack.c.h.b16 %v718
        %v988 = vunpack.c.l.b16 %v719
        %v989 = vunpack.c.h.b16 %v719
        %v990 = vunpack.c.l.b16 %v720
        %v991 = vunpack.c.h.b16 %v720
        %v992 = vunpack.c.l.b16 %v721
        %v993 = vunpack.c.h.b16 %v721
        %v994 = vunpack.c.l.b16 %v722
        %v995 = vunpack.c.h.b16 %v722
        %v996 = vunpack.c.l.b16 %v723
        %v997 = vunpack.c.h.b16 %v723
        %v998 = vunpack.c.l.b16 %v724
        %v999 = vunpack.c.h.b16 %v724
        %v1000 = vunpack.c.l.b16 %v725
        %v1001 = vunpack.c.h.b16 %v725
        %v1002 = vunpack.c.l.b16 %v726
        %v1003 = vunpack.c.h.b16 %v726
        %v1004 = vunpack.c.l.b16 %v727
        %v1005 = vunpack.c.h.b16 %v727
        %v1006 = vunpack.c.l.b16 %v728
        %v1007 = vunpack.c.h.b16 %v728
        %v1008 = vunpack.c.l.b16 %v729
        %v1009 = vunpack.c.h.b16 %v729
        %v1010 = vunpack.c.l.b16 %v730
        %v1011 = vunpack.c.h.b16 %v730
        %v1012 = vunpack.c.l.b16 %v731
        %v1013 = vunpack.c.h.b16 %v731
        %v1014 = vunpack.c.l.b16 %v732
        %v1015 = vunpack.c.h.b16 %v732
        %v1016 = vunpack.c.l.b16 %v733
        %v1017 = vunpack.c.h.b16 %v733
        %v1018 = vunpack.c.l.b16 %v734
        %v1019 = vunpack.c.h.b16 %v734
        %v1020 = vunpack.c.l.b16 %v735
        %v1021 = vunpack.c.h.b16 %v735
        %v1022 = vunpack.c.l.b16 %v736
        %v1023 = vunpack.c.h.b16 %v736
        %v1024 = vunpack.c.l.b16 %v737
        %v1025 = vunpack.c.h.b16 %v737
        %v1026 = vpack.c.b16 %v842, %v834
        %v1027 = vpack.c.b16 %v843, %v835
        %v1028 = vpack.c.b16 %v844, %v836
        %v1029 = vpack.c.b16 %v845, %v837
        %v1030 = vpack.c.b16 %v846, %v838
        %v1031 = vpack.c.b16 %v847, %v839
        %v1032 = vpack.c.b16 %v848, %v840
        %v1033 = vpack.c.b16 %v849, %v841
        %v1034 = vpack.c.b16 %v858, %v850
        %v1035 = vpack.c.b16 %v859, %v851
        %v1036 = vpack.c.b16 %v860, %v852
        %v1037 = vpack.c.b16 %v861, %v853
        %v1038 = vpack.c.b16 %v862, %v854
        %v1039 = vpack.c.b16 %v863, %v855
        %v1040 = vpack.c.b16 %v864, %v856
        %v1041 = vpack.c.b16 %v865, %v857
        %v1042 = vpack.c.b16 %v874, %v866
        %v1043 = vpack.c.b16 %v875, %v867
        %v1044 = vpack.c.b16 %v876, %v868
        %v1045 = vpack.c.b16 %v877, %v869
        %v1046 = vpack.c.b16 %v878, %v870
        %v1047 = vpack.c.b16 %v879, %v871
        %v1048 = vpack.c.b16 %v880, %v872
        %v1049 = vpack.c.b16 %v881, %v873
        %v1050 = vpack.c.b16 %v890, %v882
        %v1051 = vpack.c.b16 %v891, %v883
        %v1052 = vpack.c.b16 %v892, %v884
        %v1053 = vpack.c.b16 %v893, %v885
        %v1054 = vpack.c.b16 %v894, %v886
        %v1055 = vpack.c.b16 %v895, %v887
        %v1056 = vpack.c.b16 %v896, %v888
        %v1057 = vpack.c.b16 %v897, %v889
        %v1058 = vpack.c.b16 %v906, %v898
        %v1059 = vpack.c.b16 %v907, %v899
        %v1060 = vpack.c.b16 %v908, %v900
        %v1061 = vpack.c.b16 %v909, %v901
        %v1062 = vpack.c.b16 %v910, %v902
        %v1063 = vpack.c.b16 %v911, %v903
        %v1064 = vpack.c.b16 %v912, %v904
        %v1065 = vpack.c.b16 %v913, %v905
        %v1066 = vpack.c.b16 %v922, %v914
        %v1067 = vpack.c.b16 %v923, %v915
        %v1068 = vpack.c.b16 %v924, %v916
        %v1069 = vpack.c.b16 %v925, %v917
        %v1070 = vpack.c.b16 %v926, %v918
        %v1071 = vpack.c.b16 %v927, %v919
        %v1072 = vpack.c.b16 %v928, %v920
        %v1073 = vpack.c.b16 %v929, %v921
        %v1074 = vpack.c.b16 %v938, %v930
        %v1075 = vpack.c.b16 %v939, %v931
        %v1076 = vpack.c.b16 %v940, %v932
        %v1077 = vpack.c.b16 %v941, %v933
        %v1078 = vpack.c.b16 %v942, %v934
        %v1079 = vpack.c.b16 %v943, %v935
        %v1080 = vpack.c.b16 %v944, %v936
        %v1081 = vpack.c.b16 %v945, %v937
        %v1082 = vpack.c.b16 %v954, %v946
        %v1083 = vpack.c.b16 %v955, %v947
        %v1084 = vpack.c.b16 %v956, %v948
        %v1085 = vpack.c.b16 %v957, %v949
        %v1086 = vpack.c.b16 %v958, %v950
        %v1087 = vpack.c.b16 %v959, %v951
        %v1088 = vpack.c.b16 %v960, %v952
        %v1089 = vpack.c.b16 %v961, %v953
        %v1090 = vpack.c.b16 %v970, %v962
        %v1091 = vpack.c.b16 %v971, %v963
        %v1092 = vpack.c.b16 %v972, %v964
        %v1093 = vpack.c.b16 %v973, %v965
        %v1094 = vpack.c.b16 %v974, %v966
        %v1095 = vpack.c.b16 %v975, %v967
        %v1096 = vpack.c.b16 %v976, %v968
        %v1097 = vpack.c.b16 %v977, %v969
        %v1098 = vpack.c.b16 %v986, %v978
        %v1099 = vpack.c.b16 %v987, %v979
        %v1100 = vpack.c.b16 %v988, %v980
        %v1101 = vpack.c.b16 %v989, %v981
        %v1102 = vpack.c.b16 %v990, %v982
        %v1103 = vpack.c.b16 %v991, %v983
        %v1104 = vpack.c.b16 %v992, %v984
        %v1105 = vpack.c.b16 %v993, %v985
        %v1106 = vpack.c.b16 %v1002, %v994
        %v1107 = vpack.c.b16 %v1003, %v995
        %v1108 = vpack.c.b16 %v1004, %v996
        %v1109 = vpack.c.b16 %v1005, %v997
        %v1110 = vpack.c.b16 %v1006, %v998
        %v1111 = vpack.c.b16 %v1007, %v999
        %v1112 = vpack.c.b16 %v1008, %v1000
        %v1113 = vpack.c.b16 %v1009, %v1001
        %v1114 = vpack.c.b16 %v1018, %v1010
        %v1115 = vpack.c.b16 %v1019, %v1011
        %v1116 = vpack.c.b16 %v1020, %v1012
        %v1117 = vpack.c.b16 %v1021, %v1013
        %v1118 = vpack.c.b16 %v1022, %v1014
        %v1119 = vpack.c.b16 %v1023, %v1015
        %v1120 = vpack.c.b16 %v1024, %v1016
        %v1121 = vpack.c.b16 %v1025, %v1017
        %vm1218 = vcmask 523264
        %v1220 = vsel %vm1218, %v640, 0
        %1222 = vmatprep.subr.bf16.mxu0 %v1083
        %1223 = vmatpush1.bf16.msra.mxu0 %v1082
        %1224 = vmatprep.subr.bf16.mxu0 %v1075
        %1225 = vmatpush1.bf16.msra.mxu0 %v1074
        %1226 = vmatprep.subr.bf16.mxu0 %v1067
        %1227 = vmatpush1.bf16.msra.mxu0 %v1066
        %1228 = vmatprep.subr.bf16.mxu0 %v1059
        %1229 = vmatpush1.bf16.msra.mxu0 %v1058
        %1230 = vmatprep.subr.bf16.mxu0 %v1051
        %1231 = vmatpush1.bf16.msra.mxu0 %v1050
        %1232 = vmatprep.subr.bf16.mxu0 %v1043
        %1233 = vmatpush1.bf16.msra.mxu0 %v1042
        %1234 = vmatprep.subr.bf16.mxu0 %v1035
        %1235 = vmatpush1.bf16.msra.mxu0 %v1034
        %1236 = vmatprep.subr.bf16.mxu0 %v1027
        %1237 = vmatpush1.bf16.msra.mxu0 %v1026
        %1238 = vmatprep.subr.bf16.mxu0 0
        %1239 = vmatpush2.bf16.msra.mxu0 0
        %1240 = vmatprep.subr.bf16.mxu0 0
        %1241 = vmatpush2.bf16.msra.mxu0 0
        %1242 = vmatprep.subr.bf16.mxu0 0
        %1243 = vmatpush2.bf16.msra.mxu0 0
        %1244 = vmatprep.subr.bf16.mxu0 0
        %1245 = vmatpush2.bf16.msra.mxu0 0
        %1246 = vmatprep.subr.bf16.mxu0 %v1115
        %1247 = vmatpush2.bf16.msra.mxu0 %v1114
        %1248 = vmatprep.subr.bf16.mxu0 %v1107
        %1249 = vmatpush2.bf16.msra.mxu0 %v1106
        %1250 = vmatprep.subr.bf16.mxu0 %v1099
        %1251 = vmatpush2.bf16.msra.mxu0 %v1098
        %1252 = vmatprep.subr.bf16.mxu0 %v1091
        %1253 = vmatpush2.bf16.msra.mxu0 %v1090
        %1254 = vmatprep.mubr.bf16.mxu0 %v1220
        %1255 = vmatmul.mubr.bf16.gmra.mxu0 %v639
        %v1256 = vpop.f32.mrf.mxu0
        %v1257 = vadd.f32 0.0, %v1256
        %v1258 = vpop.f32.mrf.mxu0
        %v1259 = vadd.f32 0.0, %v1258
        %v1260 = vpop.f32.mrf.mxu0
        %v1261 = vadd.f32 0.0, %v1260
        %v1262 = vpop.f32.mrf.mxu0
        %v1263 = vadd.f32 0.0, %v1262
        %1264 = vdwg.mxu0
        %1265 = vmatprep.subr.bf16.mxu0 %v1085
        %1266 = vmatpush1.bf16.msra.mxu0 %v1084
        %1267 = vmatprep.subr.bf16.mxu0 %v1077
        %1268 = vmatpush1.bf16.msra.mxu0 %v1076
        %1269 = vmatprep.subr.bf16.mxu0 %v1069
        %1270 = vmatpush1.bf16.msra.mxu0 %v1068
        %1271 = vmatprep.subr.bf16.mxu0 %v1061
        %1272 = vmatpush1.bf16.msra.mxu0 %v1060
        %1273 = vmatprep.subr.bf16.mxu0 %v1053
        %1274 = vmatpush1.bf16.msra.mxu0 %v1052
        %1275 = vmatprep.subr.bf16.mxu0 %v1045
        %1276 = vmatpush1.bf16.msra.mxu0 %v1044
        %1277 = vmatprep.subr.bf16.mxu0 %v1037
        %1278 = vmatpush1.bf16.msra.mxu0 %v1036
        %1279 = vmatprep.subr.bf16.mxu0 %v1029
        %1280 = vmatpush1.bf16.msra.mxu0 %v1028
        %1281 = vmatprep.subr.bf16.mxu0 0
        %1282 = vmatpush2.bf16.msra.mxu0 0
        %1283 = vmatprep.subr.bf16.mxu0 0
        %1284 = vmatpush2.bf16.msra.mxu0 0
        %1285 = vmatprep.subr.bf16.mxu0 0
        %1286 = vmatpush2.bf16.msra.mxu0 0
        %1287 = vmatprep.subr.bf16.mxu0 0
        %1288 = vmatpush2.bf16.msra.mxu0 0
        %1289 = vmatprep.subr.bf16.mxu0 %v1117
        %1290 = vmatpush2.bf16.msra.mxu0 %v1116
        %1291 = vmatprep.subr.bf16.mxu0 %v1109
        %1292 = vmatpush2.bf16.msra.mxu0 %v1108
        %1293 = vmatprep.subr.bf16.mxu0 %v1101
        %1294 = vmatpush2.bf16.msra.mxu0 %v1100
        %1295 = vmatprep.subr.bf16.mxu0 %v1093
        %1296 = vmatpush2.bf16.msra.mxu0 %v1092
        %1297 = vmatprep.mubr.bf16.mxu0 %v1220
        %1298 = vmatmul.mubr.bf16.gmra.mxu0 %v639
        %v1299 = vpop.f32.mrf.mxu0
        %v1300 = vadd.f32 0.0, %v1299
        %v1301 = vpop.f32.mrf.mxu0
        %v1302 = vadd.f32 0.0, %v1301
        %v1303 = vpop.f32.mrf.mxu0
        %v1304 = vadd.f32 0.0, %v1303
        %v1305 = vpop.f32.mrf.mxu0
        %v1306 = vadd.f32 0.0, %v1305
        %1307 = vdwg.mxu0
        %1308 = vmatprep.subr.bf16.mxu0 %v1087
        %1309 = vmatpush1.bf16.msra.mxu0 %v1086
        %1310 = vmatprep.subr.bf16.mxu0 %v1079
        %1311 = vmatpush1.bf16.msra.mxu0 %v1078
        %1312 = vmatprep.subr.bf16.mxu0 %v1071
        %1313 = vmatpush1.bf16.msra.mxu0 %v1070
        %1314 = vmatprep.subr.bf16.mxu0 %v1063
        %1315 = vmatpush1.bf16.msra.mxu0 %v1062
        %1316 = vmatprep.subr.bf16.mxu0 %v1055
        %1317 = vmatpush1.bf16.msra.mxu0 %v1054
        %1318 = vmatprep.subr.bf16.mxu0 %v1047
        %1319 = vmatpush1.bf16.msra.mxu0 %v1046
        %1320 = vmatprep.subr.bf16.mxu0 %v1039
        %1321 = vmatpush1.bf16.msra.mxu0 %v1038
        %1322 = vmatprep.subr.bf16.mxu0 %v1031
        %1323 = vmatpush1.bf16.msra.mxu0 %v1030
        %1324 = vmatprep.subr.bf16.mxu0 0
        %1325 = vmatpush2.bf16.msra.mxu0 0
        %1326 = vmatprep.subr.bf16.mxu0 0
        %1327 = vmatpush2.bf16.msra.mxu0 0
        %1328 = vmatprep.subr.bf16.mxu0 0
        %1329 = vmatpush2.bf16.msra.mxu0 0
        %1330 = vmatprep.subr.bf16.mxu0 0
        %1331 = vmatpush2.bf16.msra.mxu0 0
        %1332 = vmatprep.subr.bf16.mxu0 %v1119
        %1333 = vmatpush2.bf16.msra.mxu0 %v1118
        %1334 = vmatprep.subr.bf16.mxu0 %v1111
        %1335 = vmatpush2.bf16.msra.mxu0 %v1110
        %1336 = vmatprep.subr.bf16.mxu0 %v1103
        %1337 = vmatpush2.bf16.msra.mxu0 %v1102
        %1338 = vmatprep.subr.bf16.mxu0 %v1095
        %1339 = vmatpush2.bf16.msra.mxu0 %v1094
        %1340 = vmatprep.mubr.bf16.mxu0 %v1220
        %1341 = vmatmul.mubr.bf16.gmra.mxu0 %v639
        %v1342 = vpop.f32.mrf.mxu0
        %v1343 = vadd.f32 0.0, %v1342
        %v1344 = vpop.f32.mrf.mxu0
        %v1345 = vadd.f32 0.0, %v1344
        %v1346 = vpop.f32.mrf.mxu0
        %v1347 = vadd.f32 0.0, %v1346
        %v1348 = vpop.f32.mrf.mxu0
        %v1349 = vadd.f32 0.0, %v1348
        %1350 = vdwg.mxu0
        %1351 = vmatprep.subr.bf16.mxu0 %v1089
        %1352 = vmatpush1.bf16.msra.mxu0 %v1088
        %1353 = vmatprep.subr.bf16.mxu0 %v1081
        %1354 = vmatpush1.bf16.msra.mxu0 %v1080
        %1355 = vmatprep.subr.bf16.mxu0 %v1073
        %1356 = vmatpush1.bf16.msra.mxu0 %v1072
        %1357 = vmatprep.subr.bf16.mxu0 %v1065
        %1358 = vmatpush1.bf16.msra.mxu0 %v1064
        %1359 = vmatprep.subr.bf16.mxu0 %v1057
        %1360 = vmatpush1.bf16.msra.mxu0 %v1056
        %1361 = vmatprep.subr.bf16.mxu0 %v1049
        %1362 = vmatpush1.bf16.msra.mxu0 %v1048
        %1363 = vmatprep.subr.bf16.mxu0 %v1041
        %1364 = vmatpush1.bf16.msra.mxu0 %v1040
        %1365 = vmatprep.subr.bf16.mxu0 %v1033
        %1366 = vmatpush1.bf16.msra.mxu0 %v1032
        %1367 = vmatprep.subr.bf16.mxu0 0
        %1368 = vmatpush2.bf16.msra.mxu0 0
        %1369 = vmatprep.subr.bf16.mxu0 0
        %1370 = vmatpush2.bf16.msra.mxu0 0
        %1371 = vmatprep.subr.bf16.mxu0 0
        %1372 = vmatpush2.bf16.msra.mxu0 0
        %1373 = vmatprep.subr.bf16.mxu0 0
        %1374 = vmatpush2.bf16.msra.mxu0 0
        %1375 = vmatprep.subr.bf16.mxu0 %v1121
        %1376 = vmatpush2.bf16.msra.mxu0 %v1120
        %1377 = vmatprep.subr.bf16.mxu0 %v1113
        %1378 = vmatpush2.bf16.msra.mxu0 %v1112
        %1379 = vmatprep.subr.bf16.mxu0 %v1105
        %1380 = vmatpush2.bf16.msra.mxu0 %v1104
        %1381 = vmatprep.subr.bf16.mxu0 %v1097
        %1382 = vmatpush2.bf16.msra.mxu0 %v1096
        %1383 = vmatprep.mubr.bf16.mxu0 %v1220
        %1384 = vmatmul.mubr.bf16.gmra.mxu0 %v639
        %v1385 = vpop.f32.mrf.mxu0
        %v1386 = vadd.f32 0.0, %v1385
        %v1387 = vpop.f32.mrf.mxu0
        %v1388 = vadd.f32 0.0, %v1387
        %v1389 = vpop.f32.mrf.mxu0
        %v1390 = vadd.f32 0.0, %v1389
        %v1391 = vpop.f32.mrf.mxu0
        %v1392 = vadd.f32 0.0, %v1391
        %1393 = vdwg.mxu0
        %v1394 = vadd.f32 %v1257, %v1259
        %v1395 = vadd.f32 %v1394, %v1300
        %v1396 = vadd.f32 %v1395, %v1302
        %v1397 = vadd.f32 %v1396, %v1343
        %v1398 = vadd.f32 %v1397, %v1345
        %v1399 = vadd.f32 %v1398, %v1386
        %v1400 = vadd.f32 %v1399, %v1388
        %1401 = vadd.xlane.f32.xlu0 %v1400
        %v1402 = vpop.xlane.xlu0 %1401
        %v1403 = vadd.f32 %v1261, %v1263
        %v1404 = vadd.f32 %v1403, %v1304
        %v1405 = vadd.f32 %v1404, %v1306
        %v1406 = vadd.f32 %v1405, %v1347
        %v1407 = vadd.f32 %v1406, %v1349
        %v1408 = vadd.f32 %v1407, %v1390
        %v1409 = vadd.f32 %v1408, %v1392
        %1410 = vadd.xlane.f32.xlu0 %v1409
        %v1411 = vpop.xlane.xlu0 %1410
        %v1412 = vrcp.pop 1024.0
        %v1413 = vmul.f32 %v1402, %v1412
        %v1414 = vmul.f32 %v1411, %v1412
        %v1415 = vsub.f32 %v1257, %v1413
        %v1416 = vsub.f32 %v1259, %v1413
        %v1417 = vsub.f32 %v1300, %v1413
        %v1418 = vsub.f32 %v1302, %v1413
        %v1419 = vsub.f32 %v1343, %v1413
        %v1420 = vsub.f32 %v1345, %v1413
        %v1421 = vsub.f32 %v1386, %v1413
        %v1422 = vsub.f32 %v1388, %v1413
        %v1423 = vsub.f32 %v1261, %v1414
        %v1424 = vsub.f32 %v1263, %v1414
        %v1425 = vsub.f32 %v1304, %v1414
        %v1426 = vsub.f32 %v1306, %v1414
        %v1427 = vsub.f32 %v1347, %v1414
        %v1428 = vsub.f32 %v1349, %v1414
        %v1429 = vsub.f32 %v1390, %v1414
        %v1430 = vsub.f32 %v1392, %v1414
        %v1431 = vmul.f32 %v1415, %v1415
        %v1432 = vmul.f32 %v1416, %v1416
        %v1433 = vmul.f32 %v1417, %v1417
        %v1434 = vmul.f32 %v1418, %v1418
        %v1435 = vmul.f32 %v1419, %v1419
        %v1436 = vmul.f32 %v1420, %v1420
        %v1437 = vmul.f32 %v1421, %v1421
        %v1438 = vmul.f32 %v1422, %v1422
        %v1439 = vmul.f32 %v1423, %v1423
        %v1440 = vmul.f32 %v1424, %v1424
        %v1441 = vmul.f32 %v1425, %v1425
        %v1442 = vmul.f32 %v1426, %v1426
        %v1443 = vmul.f32 %v1427, %v1427
        %v1444 = vmul.f32 %v1428, %v1428
        %v1445 = vmul.f32 %v1429, %v1429
        %v1446 = vmul.f32 %v1430, %v1430
        %v1447 = vadd.f32 %v1431, %v1432
        %v1448 = vadd.f32 %v1447, %v1433
        %v1449 = vadd.f32 %v1448, %v1434
        %v1450 = vadd.f32 %v1449, %v1435
        %v1451 = vadd.f32 %v1450, %v1436
        %v1452 = vadd.f32 %v1451, %v1437
        %v1453 = vadd.f32 %v1452, %v1438
        %1454 = vadd.xlane.f32.xlu0 %v1453
        %v1455 = vpop.xlane.xlu0 %1454
        %v1456 = vadd.f32 %v1439, %v1440
        %v1457 = vadd.f32 %v1456, %v1441
        %v1458 = vadd.f32 %v1457, %v1442
        %v1459 = vadd.f32 %v1458, %v1443
        %v1460 = vadd.f32 %v1459, %v1444
        %v1461 = vadd.f32 %v1460, %v1445
        %v1462 = vadd.f32 %v1461, %v1446
        %1463 = vadd.xlane.f32.xlu0 %v1462
        %v1464 = vpop.xlane.xlu0 %1463
        %v1465 = vmul.f32 %v1455, %v1412
        %v1466 = vmul.f32 %v1464, %v1412
        %v1467 = vadd.f32 %v1465, 1e-05
        %v1468 = vadd.f32 %v1466, 1e-05
        %v1469 = vrsqrt.pop %v1467
        %v1470 = vrsqrt.pop %v1468
        %v1471 = vmul.f32 %v1415, %v1469
        %v1472 = vmul.f32 %v1416, %v1469
        %v1473 = vmul.f32 %v1417, %v1469
        %v1474 = vmul.f32 %v1418, %v1469
        %v1475 = vmul.f32 %v1419, %v1469
        %v1476 = vmul.f32 %v1420, %v1469
        %v1477 = vmul.f32 %v1421, %v1469
        %v1478 = vmul.f32 %v1422, %v1469
        %v1479 = vmul.f32 %v1423, %v1470
        %v1480 = vmul.f32 %v1424, %v1470
        %v1481 = vmul.f32 %v1425, %v1470
        %v1482 = vmul.f32 %v1426, %v1470
        %v1483 = vmul.f32 %v1427, %v1470
        %v1484 = vmul.f32 %v1428, %v1470
        %v1485 = vmul.f32 %v1429, %v1470
        %v1486 = vmul.f32 %v1430, %v1470
        %v1487 = vld [vmem:[#allocation5] sm:$0xff]
        %v1489 = vlaneseq
        %v1490 = vshrl.u32 %v1489, 7
        %v1491 = vsub.s32 0, %v1490
        %v1492 = vrot.slane %v1487, %v1491
        %v1493 = vlaneseq
        %v1494 = vshrl.u32 %v1493, 7
        %v1495 = vsub.s32 1, %v1494
        %v1496 = vrot.slane %v1487, %v1495
        %v1497 = vlaneseq
        %v1498 = vshrl.u32 %v1497, 7
        %v1499 = vsub.s32 2, %v1498
        %v1500 = vrot.slane %v1487, %v1499
        %v1501 = vlaneseq
        %v1502 = vshrl.u32 %v1501, 7
        %v1503 = vsub.s32 3, %v1502
        %v1504 = vrot.slane %v1487, %v1503
        %v1505 = vlaneseq
        %v1506 = vshrl.u32 %v1505, 7
        %v1507 = vsub.s32 4, %v1506
        %v1508 = vrot.slane %v1487, %v1507
        %v1509 = vlaneseq
        %v1510 = vshrl.u32 %v1509, 7
        %v1511 = vsub.s32 5, %v1510
        %v1512 = vrot.slane %v1487, %v1511
        %v1513 = vlaneseq
        %v1514 = vshrl.u32 %v1513, 7
        %v1515 = vsub.s32 6, %v1514
        %v1516 = vrot.slane %v1487, %v1515
        %v1517 = vlaneseq
        %v1518 = vshrl.u32 %v1517, 7
        %v1519 = vsub.s32 7, %v1518
        %v1520 = vrot.slane %v1487, %v1519
        %v1529 = vmul.f32 %v1471, %v1492
        %v1530 = vmul.f32 %v1472, %v1496
        %v1531 = vmul.f32 %v1473, %v1500
        %v1532 = vmul.f32 %v1474, %v1504
        %v1533 = vmul.f32 %v1475, %v1508
        %v1534 = vmul.f32 %v1476, %v1512
        %v1535 = vmul.f32 %v1477, %v1516
        %v1536 = vmul.f32 %v1478, %v1520
        %v1537 = vmul.f32 %v1479, %v1492
        %v1538 = vmul.f32 %v1480, %v1496
        %v1539 = vmul.f32 %v1481, %v1500
        %v1540 = vmul.f32 %v1482, %v1504
        %v1541 = vmul.f32 %v1483, %v1508
        %v1542 = vmul.f32 %v1484, %v1512
        %v1543 = vmul.f32 %v1485, %v1516
        %v1544 = vmul.f32 %v1486, %v1520
        %v1545 = vld [vmem:[#allocation7] sm:$0xff]
        %v1547 = vlaneseq
        %v1548 = vshrl.u32 %v1547, 7
        %v1549 = vsub.s32 0, %v1548
        %v1550 = vrot.slane %v1545, %v1549
        %v1551 = vlaneseq
        %v1552 = vshrl.u32 %v1551, 7
        %v1553 = vsub.s32 1, %v1552
        %v1554 = vrot.slane %v1545, %v1553
        %v1555 = vlaneseq
        %v1556 = vshrl.u32 %v1555, 7
        %v1557 = vsub.s32 2, %v1556
        %v1558 = vrot.slane %v1545, %v1557
        %v1559 = vlaneseq
        %v1560 = vshrl.u32 %v1559, 7
        %v1561 = vsub.s32 3, %v1560
        %v1562 = vrot.slane %v1545, %v1561
        %v1563 = vlaneseq
        %v1564 = vshrl.u32 %v1563, 7
        %v1565 = vsub.s32 4, %v1564
        %v1566 = vrot.slane %v1545, %v1565
        %v1567 = vlaneseq
        %v1568 = vshrl.u32 %v1567, 7
        %v1569 = vsub.s32 5, %v1568
        %v1570 = vrot.slane %v1545, %v1569
        %v1571 = vlaneseq
        %v1572 = vshrl.u32 %v1571, 7
        %v1573 = vsub.s32 6, %v1572
        %v1574 = vrot.slane %v1545, %v1573
        %v1575 = vlaneseq
        %v1576 = vshrl.u32 %v1575, 7
        %v1577 = vsub.s32 7, %v1576
        %v1578 = vrot.slane %v1545, %v1577
        %v1587 = vadd.f32 %v1529, %v1550
        %v1588 = vadd.f32 %v1530, %v1554
        %v1589 = vadd.f32 %v1531, %v1558
        %v1590 = vadd.f32 %v1532, %v1562
        %v1591 = vadd.f32 %v1533, %v1566
        %v1592 = vadd.f32 %v1534, %v1570
        %v1593 = vadd.f32 %v1535, %v1574
        %v1594 = vadd.f32 %v1536, %v1578
        %v1595 = vadd.f32 %v1537, %v1550
        %v1596 = vadd.f32 %v1538, %v1554
        %v1597 = vadd.f32 %v1539, %v1558
        %v1598 = vadd.f32 %v1540, %v1562
        %v1599 = vadd.f32 %v1541, %v1566
        %v1600 = vadd.f32 %v1542, %v1570
        %v1601 = vadd.f32 %v1543, %v1574
        %v1602 = vadd.f32 %v1544, %v1578
        %v1603 = vmax.f32 %v1587, 0.0
        %v1604 = vmax.f32 %v1588, 0.0
        %v1605 = vmax.f32 %v1589, 0.0
        %v1606 = vmax.f32 %v1590, 0.0
        %v1607 = vmax.f32 %v1591, 0.0
        %v1608 = vmax.f32 %v1592, 0.0
        %v1609 = vmax.f32 %v1593, 0.0
        %v1610 = vmax.f32 %v1594, 0.0
        %v1611 = vmax.f32 %v1595, 0.0
        %v1612 = vmax.f32 %v1596, 0.0
        %v1613 = vmax.f32 %v1597, 0.0
        %v1614 = vmax.f32 %v1598, 0.0
        %v1615 = vmax.f32 %v1599, 0.0
        %v1616 = vmax.f32 %v1600, 0.0
        %v1617 = vmax.f32 %v1601, 0.0
        %v1618 = vmax.f32 %v1602, 0.0
        %v1619 = vpack.c.bf16 %v1611, %v1603
        %v1620 = vpack.c.bf16 %v1612, %v1604
        %v1621 = vpack.c.bf16 %v1613, %v1605
        %v1622 = vpack.c.bf16 %v1614, %v1606
        %v1623 = vpack.c.bf16 %v1615, %v1607
        %v1624 = vpack.c.bf16 %v1616, %v1608
        %v1625 = vpack.c.bf16 %v1617, %v1609
        %v1626 = vpack.c.bf16 %v1618, %v1610
        %v1627 = vld [vmem:[%s5] sm:$0xf]
        %v1628 = vld [vmem:[%s5 + $0x4] sm:$0xf]
        %v1629 = vld [vmem:[%s5 + $0x8] sm:$0xf]
        %v1630 = vld [vmem:[%s5 + $0xc] sm:$0xf]
        %v1631 = vld [vmem:[%s5 + $0x10] sm:$0xf]
        %v1632 = vld [vmem:[%s5 + $0x14] sm:$0xf]
        %v1633 = vld [vmem:[%s5 + $0x18] sm:$0xf]
        %v1634 = vld [vmem:[%s5 + $0x1c] sm:$0xf]
        %v1635 = vld [vmem:[%s5 + $0x20] sm:$0xf]
        %v1636 = vld [vmem:[%s5 + $0x24] sm:$0xf]
        %v1637 = vld [vmem:[%s5 + $0x28] sm:$0xf]
        %v1638 = vld [vmem:[%s5 + $0x2c] sm:$0xf]
        %v1639 = vld [vmem:[%s5 + $0x30] sm:$0xf]
        %v1640 = vld [vmem:[%s5 + $0x34] sm:$0xf]
        %v1641 = vld [vmem:[%s5 + $0x38] sm:$0xf]
        %v1642 = vld [vmem:[%s5 + $0x3c] sm:$0xf]
        %v1643 = vld [vmem:[%s5 + $0x40] sm:$0xf]
        %v1644 = vld [vmem:[%s5 + $0x44] sm:$0xf]
        %v1645 = vld [vmem:[%s5 + $0x48] sm:$0xf]
        %v1646 = vld [vmem:[%s5 + $0x4c] sm:$0xf]
        %v1647 = vld [vmem:[%s5 + $0x50] sm:$0xf]
        %v1648 = vld [vmem:[%s5 + $0x54] sm:$0xf]
        %v1649 = vld [vmem:[%s5 + $0x58] sm:$0xf]
        %v1650 = vld [vmem:[%s5 + $0x5c] sm:$0xf]
        %v1651 = vld [vmem:[%s5 + $0x60] sm:$0xf]
        %v1652 = vld [vmem:[%s5 + $0x64] sm:$0xf]
        %v1653 = vld [vmem:[%s5 + $0x68] sm:$0xf]
        %v1654 = vld [vmem:[%s5 + $0x6c] sm:$0xf]
        %v1655 = vld [vmem:[%s5 + $0x70] sm:$0xf]
        %v1656 = vld [vmem:[%s5 + $0x74] sm:$0xf]
        %v1657 = vld [vmem:[%s5 + $0x78] sm:$0xf]
        %v1658 = vld [vmem:[%s5 + $0x7c] sm:$0xf]
        %v1659 = vld [vmem:[%s5 + $0x80] sm:$0xf]
        %v1660 = vld [vmem:[%s5 + $0x84] sm:$0xf]
        %v1661 = vld [vmem:[%s5 + $0x88] sm:$0xf]
        %v1662 = vld [vmem:[%s5 + $0x8c] sm:$0xf]
        %v1663 = vld [vmem:[%s5 + $0x90] sm:$0xf]
        %v1664 = vld [vmem:[%s5 + $0x94] sm:$0xf]
        %v1665 = vld [vmem:[%s5 + $0x98] sm:$0xf]
        %v1666 = vld [vmem:[%s5 + $0x9c] sm:$0xf]
        %v1667 = vld [vmem:[%s5 + $0xa0] sm:$0xf]
        %v1668 = vld [vmem:[%s5 + $0xa4] sm:$0xf]
        %v1669 = vld [vmem:[%s5 + $0xa8] sm:$0xf]
        %v1670 = vld [vmem:[%s5 + $0xac] sm:$0xf]
        %v1671 = vld [vmem:[%s5 + $0xb0] sm:$0xf]
        %v1672 = vld [vmem:[%s5 + $0xb4] sm:$0xf]
        %v1673 = vld [vmem:[%s5 + $0xb8] sm:$0xf]
        %v1674 = vld [vmem:[%s5 + $0xbc] sm:$0xf]
        %v1675 = vld [vmem:[%s5 + $0xc0] sm:$0xf]
        %v1676 = vld [vmem:[%s5 + $0xc4] sm:$0xf]
        %v1677 = vld [vmem:[%s5 + $0xc8] sm:$0xf]
        %v1678 = vld [vmem:[%s5 + $0xcc] sm:$0xf]
        %v1679 = vld [vmem:[%s5 + $0xd0] sm:$0xf]
        %v1680 = vld [vmem:[%s5 + $0xd4] sm:$0xf]
        %v1681 = vld [vmem:[%s5 + $0xd8] sm:$0xf]
        %v1682 = vld [vmem:[%s5 + $0xdc] sm:$0xf]
        %v1683 = vld [vmem:[%s5 + $0xe0] sm:$0xf]
        %v1684 = vld [vmem:[%s5 + $0xe4] sm:$0xf]
        %v1685 = vld [vmem:[%s5 + $0xe8] sm:$0xf]
        %v1686 = vld [vmem:[%s5 + $0xec] sm:$0xf]
        %v1687 = vld [vmem:[%s5 + $0xf0] sm:$0xf]
        %v1688 = vld [vmem:[%s5 + $0xf4] sm:$0xf]
        %v1689 = vld [vmem:[%s5 + $0xf8] sm:$0xf]
        %v1690 = vld [vmem:[%s5 + $0xfc] sm:$0xf]
        %v1691 = vld [vmem:[%s5 + $0x100] sm:$0xf]
        %v1692 = vld [vmem:[%s5 + $0x104] sm:$0xf]
        %v1693 = vld [vmem:[%s5 + $0x108] sm:$0xf]
        %v1694 = vld [vmem:[%s5 + $0x10c] sm:$0xf]
        %v1695 = vld [vmem:[%s5 + $0x110] sm:$0xf]
        %v1696 = vld [vmem:[%s5 + $0x114] sm:$0xf]
        %v1697 = vld [vmem:[%s5 + $0x118] sm:$0xf]
        %v1698 = vld [vmem:[%s5 + $0x11c] sm:$0xf]
        %v1699 = vld [vmem:[%s5 + $0x120] sm:$0xf]
        %v1700 = vld [vmem:[%s5 + $0x124] sm:$0xf]
        %v1701 = vld [vmem:[%s5 + $0x128] sm:$0xf]
        %v1702 = vld [vmem:[%s5 + $0x12c] sm:$0xf]
        %v1703 = vld [vmem:[%s5 + $0x130] sm:$0xf]
        %v1704 = vld [vmem:[%s5 + $0x134] sm:$0xf]
        %v1705 = vld [vmem:[%s5 + $0x138] sm:$0xf]
        %v1706 = vld [vmem:[%s5 + $0x13c] sm:$0xf]
        %v1707 = vld [vmem:[%s5 + $0x140] sm:$0xf]
        %v1708 = vld [vmem:[%s5 + $0x144] sm:$0xf]
        %v1709 = vld [vmem:[%s5 + $0x148] sm:$0xf]
        %v1710 = vld [vmem:[%s5 + $0x14c] sm:$0xf]
        %v1711 = vld [vmem:[%s5 + $0x150] sm:$0xf]
        %v1712 = vld [vmem:[%s5 + $0x154] sm:$0xf]
        %v1713 = vld [vmem:[%s5 + $0x158] sm:$0xf]
        %v1714 = vld [vmem:[%s5 + $0x15c] sm:$0xf]
        %v1715 = vld [vmem:[%s5 + $0x160] sm:$0xf]
        %v1716 = vld [vmem:[%s5 + $0x164] sm:$0xf]
        %v1717 = vld [vmem:[%s5 + $0x168] sm:$0xf]
        %v1718 = vld [vmem:[%s5 + $0x16c] sm:$0xf]
        %v1719 = vld [vmem:[%s5 + $0x170] sm:$0xf]
        %v1720 = vld [vmem:[%s5 + $0x174] sm:$0xf]
        %v1721 = vld [vmem:[%s5 + $0x178] sm:$0xf]
        %v1722 = vld [vmem:[%s5 + $0x17c] sm:$0xf]
        %v1723 = vld [vmem:[%s5 + $0x180] sm:$0xf]
        %v1724 = vld [vmem:[%s5 + $0x184] sm:$0xf]
        %v1725 = vld [vmem:[%s5 + $0x188] sm:$0xf]
        %v1726 = vld [vmem:[%s5 + $0x18c] sm:$0xf]
        %v1727 = vld [vmem:[%s5 + $0x190] sm:$0xf]
        %v1728 = vld [vmem:[%s5 + $0x194] sm:$0xf]
        %v1729 = vld [vmem:[%s5 + $0x198] sm:$0xf]
        %v1730 = vld [vmem:[%s5 + $0x19c] sm:$0xf]
        %v1731 = vld [vmem:[%s5 + $0x1a0] sm:$0xf]
        %v1732 = vld [vmem:[%s5 + $0x1a4] sm:$0xf]
        %v1733 = vld [vmem:[%s5 + $0x1a8] sm:$0xf]
        %v1734 = vld [vmem:[%s5 + $0x1ac] sm:$0xf]
        %v1735 = vld [vmem:[%s5 + $0x1b0] sm:$0xf]
        %v1736 = vld [vmem:[%s5 + $0x1b4] sm:$0xf]
        %v1737 = vld [vmem:[%s5 + $0x1b8] sm:$0xf]
        %v1738 = vld [vmem:[%s5 + $0x1bc] sm:$0xf]
        %v1739 = vld [vmem:[%s5 + $0x1c0] sm:$0xf]
        %v1740 = vld [vmem:[%s5 + $0x1c4] sm:$0xf]
        %v1741 = vld [vmem:[%s5 + $0x1c8] sm:$0xf]
        %v1742 = vld [vmem:[%s5 + $0x1cc] sm:$0xf]
        %v1743 = vld [vmem:[%s5 + $0x1d0] sm:$0xf]
        %v1744 = vld [vmem:[%s5 + $0x1d4] sm:$0xf]
        %v1745 = vld [vmem:[%s5 + $0x1d8] sm:$0xf]
        %v1746 = vld [vmem:[%s5 + $0x1dc] sm:$0xf]
        %v1747 = vld [vmem:[%s5 + $0x1e0] sm:$0xf]
        %v1748 = vld [vmem:[%s5 + $0x1e4] sm:$0xf]
        %v1749 = vld [vmem:[%s5 + $0x1e8] sm:$0xf]
        %v1750 = vld [vmem:[%s5 + $0x1ec] sm:$0xf]
        %v1751 = vld [vmem:[%s5 + $0x1f0] sm:$0xf]
        %v1752 = vld [vmem:[%s5 + $0x1f4] sm:$0xf]
        %v1753 = vld [vmem:[%s5 + $0x1f8] sm:$0xf]
        %v1754 = vld [vmem:[%s5 + $0x1fc] sm:$0xf]
        %v1883 = vunpack.c.l.b16 %v1627
        %v1884 = vunpack.c.l.b16 %v1628
        %v1885 = vunpack.c.l.b16 %v1629
        %v1886 = vunpack.c.l.b16 %v1630
        %v1887 = vunpack.c.l.b16 %v1631
        %v1888 = vunpack.c.l.b16 %v1632
        %v1889 = vunpack.c.l.b16 %v1633
        %v1890 = vunpack.c.l.b16 %v1634
        %v1891 = vunpack.c.l.b16 %v1635
        %v1892 = vunpack.c.l.b16 %v1636
        %v1893 = vunpack.c.l.b16 %v1637
        %v1894 = vunpack.c.l.b16 %v1638
        %v1895 = vunpack.c.l.b16 %v1639
        %v1896 = vunpack.c.l.b16 %v1640
        %v1897 = vunpack.c.l.b16 %v1641
        %v1898 = vunpack.c.l.b16 %v1642
        %v1899 = vunpack.c.l.b16 %v1643
        %v1900 = vunpack.c.l.b16 %v1644
        %v1901 = vunpack.c.l.b16 %v1645
        %v1902 = vunpack.c.l.b16 %v1646
        %v1903 = vunpack.c.l.b16 %v1647
        %v1904 = vunpack.c.l.b16 %v1648
        %v1905 = vunpack.c.l.b16 %v1649
        %v1906 = vunpack.c.l.b16 %v1650
        %v1907 = vunpack.c.l.b16 %v1651
        %v1908 = vunpack.c.l.b16 %v1652
        %v1909 = vunpack.c.l.b16 %v1653
        %v1910 = vunpack.c.l.b16 %v1654
        %v1911 = vunpack.c.l.b16 %v1655
        %v1912 = vunpack.c.l.b16 %v1656
        %v1913 = vunpack.c.l.b16 %v1657
        %v1914 = vunpack.c.l.b16 %v1658
        %v1915 = vunpack.c.l.b16 %v1659
        %v1916 = vunpack.c.l.b16 %v1660
        %v1917 = vunpack.c.l.b16 %v1661
        %v1918 = vunpack.c.l.b16 %v1662
        %v1919 = vunpack.c.l.b16 %v1663
        %v1920 = vunpack.c.l.b16 %v1664
        %v1921 = vunpack.c.l.b16 %v1665
        %v1922 = vunpack.c.l.b16 %v1666
        %v1923 = vunpack.c.l.b16 %v1667
        %v1924 = vunpack.c.l.b16 %v1668
        %v1925 = vunpack.c.l.b16 %v1669
        %v1926 = vunpack.c.l.b16 %v1670
        %v1927 = vunpack.c.l.b16 %v1671
        %v1928 = vunpack.c.l.b16 %v1672
        %v1929 = vunpack.c.l.b16 %v1673
        %v1930 = vunpack.c.l.b16 %v1674
        %v1931 = vunpack.c.l.b16 %v1675
        %v1932 = vunpack.c.l.b16 %v1676
        %v1933 = vunpack.c.l.b16 %v1677
        %v1934 = vunpack.c.l.b16 %v1678
        %v1935 = vunpack.c.l.b16 %v1679
        %v1936 = vunpack.c.l.b16 %v1680
        %v1937 = vunpack.c.l.b16 %v1681
        %v1938 = vunpack.c.l.b16 %v1682
        %v1939 = vunpack.c.l.b16 %v1683
        %v1940 = vunpack.c.l.b16 %v1684
        %v1941 = vunpack.c.l.b16 %v1685
        %v1942 = vunpack.c.l.b16 %v1686
        %v1943 = vunpack.c.l.b16 %v1687
        %v1944 = vunpack.c.l.b16 %v1688
        %v1945 = vunpack.c.l.b16 %v1689
        %v1946 = vunpack.c.l.b16 %v1690
        %v1947 = vunpack.c.l.b16 %v1691
        %v1948 = vunpack.c.l.b16 %v1692
        %v1949 = vunpack.c.l.b16 %v1693
        %v1950 = vunpack.c.l.b16 %v1694
        %v1951 = vunpack.c.l.b16 %v1695
        %v1952 = vunpack.c.l.b16 %v1696
        %v1953 = vunpack.c.l.b16 %v1697
        %v1954 = vunpack.c.l.b16 %v1698
        %v1955 = vunpack.c.l.b16 %v1699
        %v1956 = vunpack.c.l.b16 %v1700
        %v1957 = vunpack.c.l.b16 %v1701
        %v1958 = vunpack.c.l.b16 %v1702
        %v1959 = vunpack.c.l.b16 %v1703
        %v1960 = vunpack.c.l.b16 %v1704
        %v1961 = vunpack.c.l.b16 %v1705
        %v1962 = vunpack.c.l.b16 %v1706
        %v1963 = vunpack.c.l.b16 %v1707
        %v1964 = vunpack.c.l.b16 %v1708
        %v1965 = vunpack.c.l.b16 %v1709
        %v1966 = vunpack.c.l.b16 %v1710
        %v1967 = vunpack.c.l.b16 %v1711
        %v1968 = vunpack.c.l.b16 %v1712
        %v1969 = vunpack.c.l.b16 %v1713
        %v1970 = vunpack.c.l.b16 %v1714
        %v1971 = vunpack.c.l.b16 %v1715
        %v1972 = vunpack.c.l.b16 %v1716
        %v1973 = vunpack.c.l.b16 %v1717
        %v1974 = vunpack.c.l.b16 %v1718
        %v1975 = vunpack.c.l.b16 %v1719
        %v1976 = vunpack.c.l.b16 %v1720
        %v1977 = vunpack.c.l.b16 %v1721
        %v1978 = vunpack.c.l.b16 %v1722
        %v1979 = vunpack.c.l.b16 %v1723
        %v1980 = vunpack.c.l.b16 %v1724
        %v1981 = vunpack.c.l.b16 %v1725
        %v1982 = vunpack.c.l.b16 %v1726
        %v1983 = vunpack.c.l.b16 %v1727
        %v1984 = vunpack.c.l.b16 %v1728
        %v1985 = vunpack.c.l.b16 %v1729
        %v1986 = vunpack.c.l.b16 %v1730
        %v1987 = vunpack.c.l.b16 %v1731
        %v1988 = vunpack.c.l.b16 %v1732
        %v1989 = vunpack.c.l.b16 %v1733
        %v1990 = vunpack.c.l.b16 %v1734
        %v1991 = vunpack.c.l.b16 %v1735
        %v1992 = vunpack.c.l.b16 %v1736
        %v1993 = vunpack.c.l.b16 %v1737
        %v1994 = vunpack.c.l.b16 %v1738
        %v1995 = vunpack.c.l.b16 %v1739
        %v1996 = vunpack.c.l.b16 %v1740
        %v1997 = vunpack.c.l.b16 %v1741
        %v1998 = vunpack.c.l.b16 %v1742
        %v1999 = vunpack.c.l.b16 %v1743
        %v2000 = vunpack.c.l.b16 %v1744
        %v2001 = vunpack.c.l.b16 %v1745
        %v2002 = vunpack.c.l.b16 %v1746
        %v2003 = vunpack.c.l.b16 %v1747
        %v2004 = vunpack.c.l.b16 %v1748
        %v2005 = vunpack.c.l.b16 %v1749
        %v2006 = vunpack.c.l.b16 %v1750
        %v2007 = vunpack.c.l.b16 %v1751
        %v2008 = vunpack.c.l.b16 %v1752
        %v2009 = vunpack.c.l.b16 %v1753
        %v2010 = vunpack.c.l.b16 %v1754
        %v2011 = vpack.c.b16 %v1884, %v1883
        %v2012 = vpack.c.b16 %v1886, %v1885
        %v2013 = vpack.c.b16 %v1888, %v1887
        %v2014 = vpack.c.b16 %v1890, %v1889
        %v2015 = vpack.c.b16 %v1892, %v1891
        %v2016 = vpack.c.b16 %v1894, %v1893
        %v2017 = vpack.c.b16 %v1896, %v1895
        %v2018 = vpack.c.b16 %v1898, %v1897
        %v2019 = vpack.c.b16 %v1900, %v1899
        %v2020 = vpack.c.b16 %v1902, %v1901
        %v2021 = vpack.c.b16 %v1904, %v1903
        %v2022 = vpack.c.b16 %v1906, %v1905
        %v2023 = vpack.c.b16 %v1908, %v1907
        %v2024 = vpack.c.b16 %v1910, %v1909
        %v2025 = vpack.c.b16 %v1912, %v1911
        %v2026 = vpack.c.b16 %v1914, %v1913
        %v2027 = vpack.c.b16 %v1916, %v1915
        %v2028 = vpack.c.b16 %v1918, %v1917
        %v2029 = vpack.c.b16 %v1920, %v1919
        %v2030 = vpack.c.b16 %v1922, %v1921
        %v2031 = vpack.c.b16 %v1924, %v1923
        %v2032 = vpack.c.b16 %v1926, %v1925
        %v2033 = vpack.c.b16 %v1928, %v1927
        %v2034 = vpack.c.b16 %v1930, %v1929
        %v2035 = vpack.c.b16 %v1932, %v1931
        %v2036 = vpack.c.b16 %v1934, %v1933
        %v2037 = vpack.c.b16 %v1936, %v1935
        %v2038 = vpack.c.b16 %v1938, %v1937
        %v2039 = vpack.c.b16 %v1940, %v1939
        %v2040 = vpack.c.b16 %v1942, %v1941
        %v2041 = vpack.c.b16 %v1944, %v1943
        %v2042 = vpack.c.b16 %v1946, %v1945
        %v2043 = vpack.c.b16 %v1948, %v1947
        %v2044 = vpack.c.b16 %v1950, %v1949
        %v2045 = vpack.c.b16 %v1952, %v1951
        %v2046 = vpack.c.b16 %v1954, %v1953
        %v2047 = vpack.c.b16 %v1956, %v1955
        %v2048 = vpack.c.b16 %v1958, %v1957
        %v2049 = vpack.c.b16 %v1960, %v1959
        %v2050 = vpack.c.b16 %v1962, %v1961
        %v2051 = vpack.c.b16 %v1964, %v1963
        %v2052 = vpack.c.b16 %v1966, %v1965
        %v2053 = vpack.c.b16 %v1968, %v1967
        %v2054 = vpack.c.b16 %v1970, %v1969
        %v2055 = vpack.c.b16 %v1972, %v1971
        %v2056 = vpack.c.b16 %v1974, %v1973
        %v2057 = vpack.c.b16 %v1976, %v1975
        %v2058 = vpack.c.b16 %v1978, %v1977
        %v2059 = vpack.c.b16 %v1980, %v1979
        %v2060 = vpack.c.b16 %v1982, %v1981
        %v2061 = vpack.c.b16 %v1984, %v1983
        %v2062 = vpack.c.b16 %v1986, %v1985
        %v2063 = vpack.c.b16 %v1988, %v1987
        %v2064 = vpack.c.b16 %v1990, %v1989
        %v2065 = vpack.c.b16 %v1992, %v1991
        %v2066 = vpack.c.b16 %v1994, %v1993
        %v2067 = vpack.c.b16 %v1996, %v1995
        %v2068 = vpack.c.b16 %v1998, %v1997
        %v2069 = vpack.c.b16 %v2000, %v1999
        %v2070 = vpack.c.b16 %v2002, %v2001
        %v2071 = vpack.c.b16 %v2004, %v2003
        %v2072 = vpack.c.b16 %v2006, %v2005
        %v2073 = vpack.c.b16 %v2008, %v2007
        %v2074 = vpack.c.b16 %v2010, %v2009
        %2139 = vmatprep.subr.bf16.mxu0 0
        %2140 = vmatpush1.bf16.msra.mxu0 %v2018
        %2141 = vmatprep.subr.bf16.mxu0 0
        %2142 = vmatpush1.bf16.msra.mxu0 %v2017
        %2143 = vmatprep.subr.bf16.mxu0 0
        %2144 = vmatpush1.bf16.msra.mxu0 %v2016
        %2145 = vmatprep.subr.bf16.mxu0 0
        %2146 = vmatpush1.bf16.msra.mxu0 %v2015
        %2147 = vmatprep.subr.bf16.mxu0 0
        %2148 = vmatpush1.bf16.msra.mxu0 %v2014
        %2149 = vmatprep.subr.bf16.mxu0 0
        %2150 = vmatpush1.bf16.msra.mxu0 %v2013
        %2151 = vmatprep.subr.bf16.mxu0 0
        %2152 = vmatpush1.bf16.msra.mxu0 %v2012
        %2153 = vmatprep.subr.bf16.mxu0 0
        %2154 = vmatpush1.bf16.msra.mxu0 %v2011
        %2155 = vmatprep.subr.bf16.mxu0 0
        %2156 = vmatpush2.bf16.msra.mxu0 %v2026
        %2157 = vmatprep.subr.bf16.mxu0 0
        %2158 = vmatpush2.bf16.msra.mxu0 %v2025
        %2159 = vmatprep.subr.bf16.mxu0 0
        %2160 = vmatpush2.bf16.msra.mxu0 %v2024
        %2161 = vmatprep.subr.bf16.mxu0 0
        %2162 = vmatpush2.bf16.msra.mxu0 %v2023
        %2163 = vmatprep.subr.bf16.mxu0 0
        %2164 = vmatpush2.bf16.msra.mxu0 %v2022
        %2165 = vmatprep.subr.bf16.mxu0 0
        %2166 = vmatpush2.bf16.msra.mxu0 %v2021
        %2167 = vmatprep.subr.bf16.mxu0 0
        %2168 = vmatpush2.bf16.msra.mxu0 %v2020
        %2169 = vmatprep.subr.bf16.mxu0 0
        %2170 = vmatpush2.bf16.msra.mxu0 %v2019
        %2171 = vmatprep.mubr.bf16.mxu0 %v1620
        %2172 = vmatmul.mubr.bf16.gmra.mxu0 %v1619
        %v2173 = vpop.f32.mrf.mxu0
        %v2174 = vadd.f32 0.0, %v2173
        %v2175 = vpop.f32.mrf.mxu0
        %v2176 = vpop.f32.mrf.mxu0
        %v2177 = vadd.f32 0.0, %v2176
        %v2178 = vpop.f32.mrf.mxu0
        %2179 = vdwg.mxu0
        %2180 = vmatprep.subr.bf16.mxu0 0
        %2181 = vmatpush1.bf16.msra.mxu0 %v2034
        %2182 = vmatprep.subr.bf16.mxu0 0
        %2183 = vmatpush1.bf16.msra.mxu0 %v2033
        %2184 = vmatprep.subr.bf16.mxu0 0
        %2185 = vmatpush1.bf16.msra.mxu0 %v2032
        %2186 = vmatprep.subr.bf16.mxu0 0
        %2187 = vmatpush1.bf16.msra.mxu0 %v2031
        %2188 = vmatprep.subr.bf16.mxu0 0
        %2189 = vmatpush1.bf16.msra.mxu0 %v2030
        %2190 = vmatprep.subr.bf16.mxu0 0
        %2191 = vmatpush1.bf16.msra.mxu0 %v2029
        %2192 = vmatprep.subr.bf16.mxu0 0
        %2193 = vmatpush1.bf16.msra.mxu0 %v2028
        %2194 = vmatprep.subr.bf16.mxu0 0
        %2195 = vmatpush1.bf16.msra.mxu0 %v2027
        %2196 = vmatprep.subr.bf16.mxu0 0
        %2197 = vmatpush2.bf16.msra.mxu0 %v2042
        %2198 = vmatprep.subr.bf16.mxu0 0
        %2199 = vmatpush2.bf16.msra.mxu0 %v2041
        %2200 = vmatprep.subr.bf16.mxu0 0
        %2201 = vmatpush2.bf16.msra.mxu0 %v2040
        %2202 = vmatprep.subr.bf16.mxu0 0
        %2203 = vmatpush2.bf16.msra.mxu0 %v2039
        %2204 = vmatprep.subr.bf16.mxu0 0
        %2205 = vmatpush2.bf16.msra.mxu0 %v2038
        %2206 = vmatprep.subr.bf16.mxu0 0
        %2207 = vmatpush2.bf16.msra.mxu0 %v2037
        %2208 = vmatprep.subr.bf16.mxu0 0
        %2209 = vmatpush2.bf16.msra.mxu0 %v2036
        %2210 = vmatprep.subr.bf16.mxu0 0
        %2211 = vmatpush2.bf16.msra.mxu0 %v2035
        %2212 = vmatprep.mubr.bf16.mxu0 %v1622
        %2213 = vmatmul.mubr.bf16.gmra.mxu0 %v1621
        %v2214 = vpop.f32.mrf.mxu0
        %v2215 = vadd.f32 %v2174, %v2214
        %v2216 = vpop.f32.mrf.mxu0
        %v2217 = vpop.f32.mrf.mxu0
        %v2218 = vadd.f32 %v2177, %v2217
        %v2219 = vpop.f32.mrf.mxu0
        %2220 = vdwg.mxu0
        %2221 = vmatprep.subr.bf16.mxu0 0
        %2222 = vmatpush1.bf16.msra.mxu0 %v2050
        %2223 = vmatprep.subr.bf16.mxu0 0
        %2224 = vmatpush1.bf16.msra.mxu0 %v2049
        %2225 = vmatprep.subr.bf16.mxu0 0
        %2226 = vmatpush1.bf16.msra.mxu0 %v2048
        %2227 = vmatprep.subr.bf16.mxu0 0
        %2228 = vmatpush1.bf16.msra.mxu0 %v2047
        %2229 = vmatprep.subr.bf16.mxu0 0
        %2230 = vmatpush1.bf16.msra.mxu0 %v2046
        %2231 = vmatprep.subr.bf16.mxu0 0
        %2232 = vmatpush1.bf16.msra.mxu0 %v2045
        %2233 = vmatprep.subr.bf16.mxu0 0
        %2234 = vmatpush1.bf16.msra.mxu0 %v2044
        %2235 = vmatprep.subr.bf16.mxu0 0
        %2236 = vmatpush1.bf16.msra.mxu0 %v2043
        %2237 = vmatprep.subr.bf16.mxu0 0
        %2238 = vmatpush2.bf16.msra.mxu0 %v2058
        %2239 = vmatprep.subr.bf16.mxu0 0
        %2240 = vmatpush2.bf16.msra.mxu0 %v2057
        %2241 = vmatprep.subr.bf16.mxu0 0
        %2242 = vmatpush2.bf16.msra.mxu0 %v2056
        %2243 = vmatprep.subr.bf16.mxu0 0
        %2244 = vmatpush2.bf16.msra.mxu0 %v2055
        %2245 = vmatprep.subr.bf16.mxu0 0
        %2246 = vmatpush2.bf16.msra.mxu0 %v2054
        %2247 = vmatprep.subr.bf16.mxu0 0
        %2248 = vmatpush2.bf16.msra.mxu0 %v2053
        %2249 = vmatprep.subr.bf16.mxu0 0
        %2250 = vmatpush2.bf16.msra.mxu0 %v2052
        %2251 = vmatprep.subr.bf16.mxu0 0
        %2252 = vmatpush2.bf16.msra.mxu0 %v2051
        %2253 = vmatprep.mubr.bf16.mxu0 %v1624
        %2254 = vmatmul.mubr.bf16.gmra.mxu0 %v1623
        %v2255 = vpop.f32.mrf.mxu0
        %v2256 = vadd.f32 %v2215, %v2255
        %v2257 = vpop.f32.mrf.mxu0
        %v2258 = vpop.f32.mrf.mxu0
        %v2259 = vadd.f32 %v2218, %v2258
        %v2260 = vpop.f32.mrf.mxu0
        %2261 = vdwg.mxu0
        %2262 = vmatprep.subr.bf16.mxu0 0
        %2263 = vmatpush1.bf16.msra.mxu0 %v2066
        %2264 = vmatprep.subr.bf16.mxu0 0
        %2265 = vmatpush1.bf16.msra.mxu0 %v2065
        %2266 = vmatprep.subr.bf16.mxu0 0
        %2267 = vmatpush1.bf16.msra.mxu0 %v2064
        %2268 = vmatprep.subr.bf16.mxu0 0
        %2269 = vmatpush1.bf16.msra.mxu0 %v2063
        %2270 = vmatprep.subr.bf16.mxu0 0
        %2271 = vmatpush1.bf16.msra.mxu0 %v2062
        %2272 = vmatprep.subr.bf16.mxu0 0
        %2273 = vmatpush1.bf16.msra.mxu0 %v2061
        %2274 = vmatprep.subr.bf16.mxu0 0
        %2275 = vmatpush1.bf16.msra.mxu0 %v2060
        %2276 = vmatprep.subr.bf16.mxu0 0
        %2277 = vmatpush1.bf16.msra.mxu0 %v2059
        %2278 = vmatprep.subr.bf16.mxu0 0
        %2279 = vmatpush2.bf16.msra.mxu0 %v2074
        %2280 = vmatprep.subr.bf16.mxu0 0
        %2281 = vmatpush2.bf16.msra.mxu0 %v2073
        %2282 = vmatprep.subr.bf16.mxu0 0
        %2283 = vmatpush2.bf16.msra.mxu0 %v2072
        %2284 = vmatprep.subr.bf16.mxu0 0
        %2285 = vmatpush2.bf16.msra.mxu0 %v2071
        %2286 = vmatprep.subr.bf16.mxu0 0
        %2287 = vmatpush2.bf16.msra.mxu0 %v2070
        %2288 = vmatprep.subr.bf16.mxu0 0
        %2289 = vmatpush2.bf16.msra.mxu0 %v2069
        %2290 = vmatprep.subr.bf16.mxu0 0
        %2291 = vmatpush2.bf16.msra.mxu0 %v2068
        %2292 = vmatprep.subr.bf16.mxu0 0
        %2293 = vmatpush2.bf16.msra.mxu0 %v2067
        %2294 = vmatprep.mubr.bf16.mxu0 %v1626
        %2295 = vmatmul.mubr.bf16.gmra.mxu0 %v1625
        %v2296 = vpop.f32.mrf.mxu0
        %v2297 = vadd.f32 %v2256, %v2296
        %v2298 = vpop.f32.mrf.mxu0
        %v2299 = vpop.f32.mrf.mxu0
        %v2300 = vadd.f32 %v2259, %v2299
        %v2301 = vpop.f32.mrf.mxu0
        %2302 = vdwg.mxu0
        %2305 = vrot.lane.b32.xlu0 %v640, 64
        %v2306 = vpop.permute.xlu0 %2305
        %2307 = vrot.lane.b32.xlu0 %v641, 64
        %v2308 = vpop.permute.xlu0 %2307
        %vm2309 = vcmask 523264
        %v2310 = vsel %vm2309, %v2306, %v2308
        %v2313 = vsel %vm1218, %v2308, 0
        %2315 = vmatprep.subr.bf16.mxu0 %v1083
        %2316 = vmatpush1.bf16.msra.mxu0 %v1082
        %2317 = vmatprep.subr.bf16.mxu0 %v1075
        %2318 = vmatpush1.bf16.msra.mxu0 %v1074
        %2319 = vmatprep.subr.bf16.mxu0 %v1067
        %2320 = vmatpush1.bf16.msra.mxu0 %v1066
        %2321 = vmatprep.subr.bf16.mxu0 %v1059
        %2322 = vmatpush1.bf16.msra.mxu0 %v1058
        %2323 = vmatprep.subr.bf16.mxu0 %v1051
        %2324 = vmatpush1.bf16.msra.mxu0 %v1050
        %2325 = vmatprep.subr.bf16.mxu0 %v1043
        %2326 = vmatpush1.bf16.msra.mxu0 %v1042
        %2327 = vmatprep.subr.bf16.mxu0 %v1035
        %2328 = vmatpush1.bf16.msra.mxu0 %v1034
        %2329 = vmatprep.subr.bf16.mxu0 %v1027
        %2330 = vmatpush1.bf16.msra.mxu0 %v1026
        %2331 = vmatprep.subr.bf16.mxu0 0
        %2332 = vmatpush2.bf16.msra.mxu0 0
        %2333 = vmatprep.subr.bf16.mxu0 0
        %2334 = vmatpush2.bf16.msra.mxu0 0
        %2335 = vmatprep.subr.bf16.mxu0 0
        %2336 = vmatpush2.bf16.msra.mxu0 0
        %2337 = vmatprep.subr.bf16.mxu0 0
        %2338 = vmatpush2.bf16.msra.mxu0 0
        %2339 = vmatprep.subr.bf16.mxu0 %v1115
        %2340 = vmatpush2.bf16.msra.mxu0 %v1114
        %2341 = vmatprep.subr.bf16.mxu0 %v1107
        %2342 = vmatpush2.bf16.msra.mxu0 %v1106
        %2343 = vmatprep.subr.bf16.mxu0 %v1099
        %2344 = vmatpush2.bf16.msra.mxu0 %v1098
        %2345 = vmatprep.subr.bf16.mxu0 %v1091
        %2346 = vmatpush2.bf16.msra.mxu0 %v1090
        %2347 = vmatprep.mubr.bf16.mxu0 %v2313
        %2348 = vmatmul.mubr.bf16.gmra.mxu0 %v2310
        %v2349 = vpop.f32.mrf.mxu0
        %v2350 = vadd.f32 0.0, %v2349
        %v2351 = vpop.f32.mrf.mxu0
        %v2352 = vadd.f32 0.0, %v2351
        %v2353 = vpop.f32.mrf.mxu0
        %v2354 = vadd.f32 0.0, %v2353
        %v2355 = vpop.f32.mrf.mxu0
        %v2356 = vadd.f32 0.0, %v2355
        %2357 = vdwg.mxu0
        %2358 = vmatprep.subr.bf16.mxu0 %v1085
        %2359 = vmatpush1.bf16.msra.mxu0 %v1084
        %2360 = vmatprep.subr.bf16.mxu0 %v1077
        %2361 = vmatpush1.bf16.msra.mxu0 %v1076
        %2362 = vmatprep.subr.bf16.mxu0 %v1069
        %2363 = vmatpush1.bf16.msra.mxu0 %v1068
        %2364 = vmatprep.subr.bf16.mxu0 %v1061
        %2365 = vmatpush1.bf16.msra.mxu0 %v1060
        %2366 = vmatprep.subr.bf16.mxu0 %v1053
        %2367 = vmatpush1.bf16.msra.mxu0 %v1052
        %2368 = vmatprep.subr.bf16.mxu0 %v1045
        %2369 = vmatpush1.bf16.msra.mxu0 %v1044
        %2370 = vmatprep.subr.bf16.mxu0 %v1037
        %2371 = vmatpush1.bf16.msra.mxu0 %v1036
        %2372 = vmatprep.subr.bf16.mxu0 %v1029
        %2373 = vmatpush1.bf16.msra.mxu0 %v1028
        %2374 = vmatprep.subr.bf16.mxu0 0
        %2375 = vmatpush2.bf16.msra.mxu0 0
        %2376 = vmatprep.subr.bf16.mxu0 0
        %2377 = vmatpush2.bf16.msra.mxu0 0
        %2378 = vmatprep.subr.bf16.mxu0 0
        %2379 = vmatpush2.bf16.msra.mxu0 0
        %2380 = vmatprep.subr.bf16.mxu0 0
        %2381 = vmatpush2.bf16.msra.mxu0 0
        %2382 = vmatprep.subr.bf16.mxu0 %v1117
        %2383 = vmatpush2.bf16.msra.mxu0 %v1116
        %2384 = vmatprep.subr.bf16.mxu0 %v1109
        %2385 = vmatpush2.bf16.msra.mxu0 %v1108
        %2386 = vmatprep.subr.bf16.mxu0 %v1101
        %2387 = vmatpush2.bf16.msra.mxu0 %v1100
        %2388 = vmatprep.subr.bf16.mxu0 %v1093
        %2389 = vmatpush2.bf16.msra.mxu0 %v1092
        %2390 = vmatprep.mubr.bf16.mxu0 %v2313
        %2391 = vmatmul.mubr.bf16.gmra.mxu0 %v2310
        %v2392 = vpop.f32.mrf.mxu0
        %v2393 = vadd.f32 0.0, %v2392
        %v2394 = vpop.f32.mrf.mxu0
        %v2395 = vadd.f32 0.0, %v2394
        %v2396 = vpop.f32.mrf.mxu0
        %v2397 = vadd.f32 0.0, %v2396
        %v2398 = vpop.f32.mrf.mxu0
        %v2399 = vadd.f32 0.0, %v2398
        %2400 = vdwg.mxu0
        %2401 = vmatprep.subr.bf16.mxu0 %v1087
        %2402 = vmatpush1.bf16.msra.mxu0 %v1086
        %2403 = vmatprep.subr.bf16.mxu0 %v1079
        %2404 = vmatpush1.bf16.msra.mxu0 %v1078
        %2405 = vmatprep.subr.bf16.mxu0 %v1071
        %2406 = vmatpush1.bf16.msra.mxu0 %v1070
        %2407 = vmatprep.subr.bf16.mxu0 %v1063
        %2408 = vmatpush1.bf16.msra.mxu0 %v1062
        %2409 = vmatprep.subr.bf16.mxu0 %v1055
        %2410 = vmatpush1.bf16.msra.mxu0 %v1054
        %2411 = vmatprep.subr.bf16.mxu0 %v1047
        %2412 = vmatpush1.bf16.msra.mxu0 %v1046
        %2413 = vmatprep.subr.bf16.mxu0 %v1039
        %2414 = vmatpush1.bf16.msra.mxu0 %v1038
        %2415 = vmatprep.subr.bf16.mxu0 %v1031
        %2416 = vmatpush1.bf16.msra.mxu0 %v1030
        %2417 = vmatprep.subr.bf16.mxu0 0
        %2418 = vmatpush2.bf16.msra.mxu0 0
        %2419 = vmatprep.subr.bf16.mxu0 0
        %2420 = vmatpush2.bf16.msra.mxu0 0
        %2421 = vmatprep.subr.bf16.mxu0 0
        %2422 = vmatpush2.bf16.msra.mxu0 0
        %2423 = vmatprep.subr.bf16.mxu0 0
        %2424 = vmatpush2.bf16.msra.mxu0 0
        %2425 = vmatprep.subr.bf16.mxu0 %v1119
        %2426 = vmatpush2.bf16.msra.mxu0 %v1118
        %2427 = vmatprep.subr.bf16.mxu0 %v1111
        %2428 = vmatpush2.bf16.msra.mxu0 %v1110
        %2429 = vmatprep.subr.bf16.mxu0 %v1103
        %2430 = vmatpush2.bf16.msra.mxu0 %v1102
        %2431 = vmatprep.subr.bf16.mxu0 %v1095
        %2432 = vmatpush2.bf16.msra.mxu0 %v1094
        %2433 = vmatprep.mubr.bf16.mxu0 %v2313
        %2434 = vmatmul.mubr.bf16.gmra.mxu0 %v2310
        %v2435 = vpop.f32.mrf.mxu0
        %v2436 = vadd.f32 0.0, %v2435
        %v2437 = vpop.f32.mrf.mxu0
        %v2438 = vadd.f32 0.0, %v2437
        %v2439 = vpop.f32.mrf.mxu0
        %v2440 = vadd.f32 0.0, %v2439
        %v2441 = vpop.f32.mrf.mxu0
        %v2442 = vadd.f32 0.0, %v2441
        %2443 = vdwg.mxu0
        %2444 = vmatprep.subr.bf16.mxu0 %v1089
        %2445 = vmatpush1.bf16.msra.mxu0 %v1088
        %2446 = vmatprep.subr.bf16.mxu0 %v1081
        %2447 = vmatpush1.bf16.msra.mxu0 %v1080
        %2448 = vmatprep.subr.bf16.mxu0 %v1073
        %2449 = vmatpush1.bf16.msra.mxu0 %v1072
        %2450 = vmatprep.subr.bf16.mxu0 %v1065
        %2451 = vmatpush1.bf16.msra.mxu0 %v1064
        %2452 = vmatprep.subr.bf16.mxu0 %v1057
        %2453 = vmatpush1.bf16.msra.mxu0 %v1056
        %2454 = vmatprep.subr.bf16.mxu0 %v1049
        %2455 = vmatpush1.bf16.msra.mxu0 %v1048
        %2456 = vmatprep.subr.bf16.mxu0 %v1041
        %2457 = vmatpush1.bf16.msra.mxu0 %v1040
        %2458 = vmatprep.subr.bf16.mxu0 %v1033
        %2459 = vmatpush1.bf16.msra.mxu0 %v1032
        %2460 = vmatprep.subr.bf16.mxu0 0
        %2461 = vmatpush2.bf16.msra.mxu0 0
        %2462 = vmatprep.subr.bf16.mxu0 0
        %2463 = vmatpush2.bf16.msra.mxu0 0
        %2464 = vmatprep.subr.bf16.mxu0 0
        %2465 = vmatpush2.bf16.msra.mxu0 0
        %2466 = vmatprep.subr.bf16.mxu0 0
        %2467 = vmatpush2.bf16.msra.mxu0 0
        %2468 = vmatprep.subr.bf16.mxu0 %v1121
        %2469 = vmatpush2.bf16.msra.mxu0 %v1120
        %2470 = vmatprep.subr.bf16.mxu0 %v1113
        %2471 = vmatpush2.bf16.msra.mxu0 %v1112
        %2472 = vmatprep.subr.bf16.mxu0 %v1105
        %2473 = vmatpush2.bf16.msra.mxu0 %v1104
        %2474 = vmatprep.subr.bf16.mxu0 %v1097
        %2475 = vmatpush2.bf16.msra.mxu0 %v1096
        %2476 = vmatprep.mubr.bf16.mxu0 %v2313
        %2477 = vmatmul.mubr.bf16.gmra.mxu0 %v2310
        %v2478 = vpop.f32.mrf.mxu0
        %v2479 = vadd.f32 0.0, %v2478
        %v2480 = vpop.f32.mrf.mxu0
        %v2481 = vadd.f32 0.0, %v2480
        %v2482 = vpop.f32.mrf.mxu0
        %v2483 = vadd.f32 0.0, %v2482
        %v2484 = vpop.f32.mrf.mxu0
        %v2485 = vadd.f32 0.0, %v2484
        %2486 = vdwg.mxu0
        %v2487 = vadd.f32 %v2350, %v2352
        %v2488 = vadd.f32 %v2487, %v2393
        %v2489 = vadd.f32 %v2488, %v2395
        %v2490 = vadd.f32 %v2489, %v2436
        %v2491 = vadd.f32 %v2490, %v2438
        %v2492 = vadd.f32 %v2491, %v2479
        %v2493 = vadd.f32 %v2492, %v2481
        %2494 = vadd.xlane.f32.xlu0 %v2493
        %v2495 = vpop.xlane.xlu0 %2494
        %v2496 = vadd.f32 %v2354, %v2356
        %v2497 = vadd.f32 %v2496, %v2397
        %v2498 = vadd.f32 %v2497, %v2399
        %v2499 = vadd.f32 %v2498, %v2440
        %v2500 = vadd.f32 %v2499, %v2442
        %v2501 = vadd.f32 %v2500, %v2483
        %v2502 = vadd.f32 %v2501, %v2485
        %2503 = vadd.xlane.f32.xlu0 %v2502
        %v2504 = vpop.xlane.xlu0 %2503
        %v2505 = vmul.f32 %v2495, %v1412
        %v2506 = vmul.f32 %v2504, %v1412
        %v2507 = vsub.f32 %v2350, %v2505
        %v2508 = vsub.f32 %v2352, %v2505
        %v2509 = vsub.f32 %v2393, %v2505
        %v2510 = vsub.f32 %v2395, %v2505
        %v2511 = vsub.f32 %v2436, %v2505
        %v2512 = vsub.f32 %v2438, %v2505
        %v2513 = vsub.f32 %v2479, %v2505
        %v2514 = vsub.f32 %v2481, %v2505
        %v2515 = vsub.f32 %v2354, %v2506
        %v2516 = vsub.f32 %v2356, %v2506
        %v2517 = vsub.f32 %v2397, %v2506
        %v2518 = vsub.f32 %v2399, %v2506
        %v2519 = vsub.f32 %v2440, %v2506
        %v2520 = vsub.f32 %v2442, %v2506
        %v2521 = vsub.f32 %v2483, %v2506
        %v2522 = vsub.f32 %v2485, %v2506
        %v2523 = vmul.f32 %v2507, %v2507
        %v2524 = vmul.f32 %v2508, %v2508
        %v2525 = vmul.f32 %v2509, %v2509
        %v2526 = vmul.f32 %v2510, %v2510
        %v2527 = vmul.f32 %v2511, %v2511
        %v2528 = vmul.f32 %v2512, %v2512
        %v2529 = vmul.f32 %v2513, %v2513
        %v2530 = vmul.f32 %v2514, %v2514
        %v2531 = vmul.f32 %v2515, %v2515
        %v2532 = vmul.f32 %v2516, %v2516
        %v2533 = vmul.f32 %v2517, %v2517
        %v2534 = vmul.f32 %v2518, %v2518
        %v2535 = vmul.f32 %v2519, %v2519
        %v2536 = vmul.f32 %v2520, %v2520
        %v2537 = vmul.f32 %v2521, %v2521
        %v2538 = vmul.f32 %v2522, %v2522
        %v2539 = vadd.f32 %v2523, %v2524
        %v2540 = vadd.f32 %v2539, %v2525
        %v2541 = vadd.f32 %v2540, %v2526
        %v2542 = vadd.f32 %v2541, %v2527
        %v2543 = vadd.f32 %v2542, %v2528
        %v2544 = vadd.f32 %v2543, %v2529
        %v2545 = vadd.f32 %v2544, %v2530
        %2546 = vadd.xlane.f32.xlu0 %v2545
        %v2547 = vpop.xlane.xlu0 %2546
        %v2548 = vadd.f32 %v2531, %v2532
        %v2549 = vadd.f32 %v2548, %v2533
        %v2550 = vadd.f32 %v2549, %v2534
        %v2551 = vadd.f32 %v2550, %v2535
        %v2552 = vadd.f32 %v2551, %v2536
        %v2553 = vadd.f32 %v2552, %v2537
        %v2554 = vadd.f32 %v2553, %v2538
        %2555 = vadd.xlane.f32.xlu0 %v2554
        %v2556 = vpop.xlane.xlu0 %2555
        %v2557 = vmul.f32 %v2547, %v1412
        %v2558 = vmul.f32 %v2556, %v1412
        %v2559 = vadd.f32 %v2557, 1e-05
        %v2560 = vadd.f32 %v2558, 1e-05
        %v2561 = vrsqrt.pop %v2559
        %v2562 = vrsqrt.pop %v2560
        %v2563 = vmul.f32 %v2507, %v2561
        %v2564 = vmul.f32 %v2508, %v2561
        %v2565 = vmul.f32 %v2509, %v2561
        %v2566 = vmul.f32 %v2510, %v2561
        %v2567 = vmul.f32 %v2511, %v2561
        %v2568 = vmul.f32 %v2512, %v2561
        %v2569 = vmul.f32 %v2513, %v2561
        %v2570 = vmul.f32 %v2514, %v2561
        %v2571 = vmul.f32 %v2515, %v2562
        %v2572 = vmul.f32 %v2516, %v2562
        %v2573 = vmul.f32 %v2517, %v2562
        %v2574 = vmul.f32 %v2518, %v2562
        %v2575 = vmul.f32 %v2519, %v2562
        %v2576 = vmul.f32 %v2520, %v2562
        %v2577 = vmul.f32 %v2521, %v2562
        %v2578 = vmul.f32 %v2522, %v2562
        %v2579 = vmul.f32 %v2563, %v1492
        %v2580 = vmul.f32 %v2564, %v1496
        %v2581 = vmul.f32 %v2565, %v1500
        %v2582 = vmul.f32 %v2566, %v1504
        %v2583 = vmul.f32 %v2567, %v1508
        %v2584 = vmul.f32 %v2568, %v1512
        %v2585 = vmul.f32 %v2569, %v1516
        %v2586 = vmul.f32 %v2570, %v1520
        %v2587 = vmul.f32 %v2571, %v1492
        %v2588 = vmul.f32 %v2572, %v1496
        %v2589 = vmul.f32 %v2573, %v1500
        %v2590 = vmul.f32 %v2574, %v1504
        %v2591 = vmul.f32 %v2575, %v1508
        %v2592 = vmul.f32 %v2576, %v1512
        %v2593 = vmul.f32 %v2577, %v1516
        %v2594 = vmul.f32 %v2578, %v1520
        %v2595 = vadd.f32 %v2579, %v1550
        %v2596 = vadd.f32 %v2580, %v1554
        %v2597 = vadd.f32 %v2581, %v1558
        %v2598 = vadd.f32 %v2582, %v1562
        %v2599 = vadd.f32 %v2583, %v1566
        %v2600 = vadd.f32 %v2584, %v1570
        %v2601 = vadd.f32 %v2585, %v1574
        %v2602 = vadd.f32 %v2586, %v1578
        %v2603 = vadd.f32 %v2587, %v1550
        %v2604 = vadd.f32 %v2588, %v1554
        %v2605 = vadd.f32 %v2589, %v1558
        %v2606 = vadd.f32 %v2590, %v1562
        %v2607 = vadd.f32 %v2591, %v1566
        %v2608 = vadd.f32 %v2592, %v1570
        %v2609 = vadd.f32 %v2593, %v1574
        %v2610 = vadd.f32 %v2594, %v1578
        %v2611 = vmax.f32 %v2595, 0.0
        %v2612 = vmax.f32 %v2596, 0.0
        %v2613 = vmax.f32 %v2597, 0.0
        %v2614 = vmax.f32 %v2598, 0.0
        %v2615 = vmax.f32 %v2599, 0.0
        %v2616 = vmax.f32 %v2600, 0.0
        %v2617 = vmax.f32 %v2601, 0.0
        %v2618 = vmax.f32 %v2602, 0.0
        %v2619 = vmax.f32 %v2603, 0.0
        %v2620 = vmax.f32 %v2604, 0.0
        %v2621 = vmax.f32 %v2605, 0.0
        %v2622 = vmax.f32 %v2606, 0.0
        %v2623 = vmax.f32 %v2607, 0.0
        %v2624 = vmax.f32 %v2608, 0.0
        %v2625 = vmax.f32 %v2609, 0.0
        %v2626 = vmax.f32 %v2610, 0.0
        %v2627 = vpack.c.bf16 %v2619, %v2611
        %v2628 = vpack.c.bf16 %v2620, %v2612
        %v2629 = vpack.c.bf16 %v2621, %v2613
        %v2630 = vpack.c.bf16 %v2622, %v2614
        %v2631 = vpack.c.bf16 %v2623, %v2615
        %v2632 = vpack.c.bf16 %v2624, %v2616
        %v2633 = vpack.c.bf16 %v2625, %v2617
        %v2634 = vpack.c.bf16 %v2626, %v2618
        %2635 = vmatprep.subr.bf16.mxu0 0
        %2636 = vmatpush1.bf16.msra.mxu0 %v2018
        %2637 = vmatprep.subr.bf16.mxu0 0
        %2638 = vmatpush1.bf16.msra.mxu0 %v2017
        %2639 = vmatprep.subr.bf16.mxu0 0
        %2640 = vmatpush1.bf16.msra.mxu0 %v2016
        %2641 = vmatprep.subr.bf16.mxu0 0
        %2642 = vmatpush1.bf16.msra.mxu0 %v2015
        %2643 = vmatprep.subr.bf16.mxu0 0
        %2644 = vmatpush1.bf16.msra.mxu0 %v2014
        %2645 = vmatprep.subr.bf16.mxu0 0
        %2646 = vmatpush1.bf16.msra.mxu0 %v2013
        %2647 = vmatprep.subr.bf16.mxu0 0
        %2648 = vmatpush1.bf16.msra.mxu0 %v2012
        %2649 = vmatprep.subr.bf16.mxu0 0
        %2650 = vmatpush1.bf16.msra.mxu0 %v2011
        %2651 = vmatprep.subr.bf16.mxu0 0
        %2652 = vmatpush2.bf16.msra.mxu0 %v2026
        %2653 = vmatprep.subr.bf16.mxu0 0
        %2654 = vmatpush2.bf16.msra.mxu0 %v2025
        %2655 = vmatprep.subr.bf16.mxu0 0
        %2656 = vmatpush2.bf16.msra.mxu0 %v2024
        %2657 = vmatprep.subr.bf16.mxu0 0
        %2658 = vmatpush2.bf16.msra.mxu0 %v2023
        %2659 = vmatprep.subr.bf16.mxu0 0
        %2660 = vmatpush2.bf16.msra.mxu0 %v2022
        %2661 = vmatprep.subr.bf16.mxu0 0
        %2662 = vmatpush2.bf16.msra.mxu0 %v2021
        %2663 = vmatprep.subr.bf16.mxu0 0
        %2664 = vmatpush2.bf16.msra.mxu0 %v2020
        %2665 = vmatprep.subr.bf16.mxu0 0
        %2666 = vmatpush2.bf16.msra.mxu0 %v2019
        %2667 = vmatprep.mubr.bf16.mxu0 %v2628
        %2668 = vmatmul.mubr.bf16.gmra.mxu0 %v2627
        %v2669 = vpop.f32.mrf.mxu0
        %v2670 = vadd.f32 0.0, %v2669
        %v2671 = vpop.f32.mrf.mxu0
        %v2672 = vpop.f32.mrf.mxu0
        %v2673 = vadd.f32 0.0, %v2672
        %v2674 = vpop.f32.mrf.mxu0
        %2675 = vdwg.mxu0
        %2676 = vmatprep.subr.bf16.mxu0 0
        %2677 = vmatpush1.bf16.msra.mxu0 %v2034
        %2678 = vmatprep.subr.bf16.mxu0 0
        %2679 = vmatpush1.bf16.msra.mxu0 %v2033
        %2680 = vmatprep.subr.bf16.mxu0 0
        %2681 = vmatpush1.bf16.msra.mxu0 %v2032
        %2682 = vmatprep.subr.bf16.mxu0 0
        %2683 = vmatpush1.bf16.msra.mxu0 %v2031
        %2684 = vmatprep.subr.bf16.mxu0 0
        %2685 = vmatpush1.bf16.msra.mxu0 %v2030
        %2686 = vmatprep.subr.bf16.mxu0 0
        %2687 = vmatpush1.bf16.msra.mxu0 %v2029
        %2688 = vmatprep.subr.bf16.mxu0 0
        %2689 = vmatpush1.bf16.msra.mxu0 %v2028
        %2690 = vmatprep.subr.bf16.mxu0 0
        %2691 = vmatpush1.bf16.msra.mxu0 %v2027
        %2692 = vmatprep.subr.bf16.mxu0 0
        %2693 = vmatpush2.bf16.msra.mxu0 %v2042
        %2694 = vmatprep.subr.bf16.mxu0 0
        %2695 = vmatpush2.bf16.msra.mxu0 %v2041
        %2696 = vmatprep.subr.bf16.mxu0 0
        %2697 = vmatpush2.bf16.msra.mxu0 %v2040
        %2698 = vmatprep.subr.bf16.mxu0 0
        %2699 = vmatpush2.bf16.msra.mxu0 %v2039
        %2700 = vmatprep.subr.bf16.mxu0 0
        %2701 = vmatpush2.bf16.msra.mxu0 %v2038
        %2702 = vmatprep.subr.bf16.mxu0 0
        %2703 = vmatpush2.bf16.msra.mxu0 %v2037
        %2704 = vmatprep.subr.bf16.mxu0 0
        %2705 = vmatpush2.bf16.msra.mxu0 %v2036
        %2706 = vmatprep.subr.bf16.mxu0 0
        %2707 = vmatpush2.bf16.msra.mxu0 %v2035
        %2708 = vmatprep.mubr.bf16.mxu0 %v2630
        %2709 = vmatmul.mubr.bf16.gmra.mxu0 %v2629
        %v2710 = vpop.f32.mrf.mxu0
        %v2711 = vadd.f32 %v2670, %v2710
        %v2712 = vpop.f32.mrf.mxu0
        %v2713 = vpop.f32.mrf.mxu0
        %v2714 = vadd.f32 %v2673, %v2713
        %v2715 = vpop.f32.mrf.mxu0
        %2716 = vdwg.mxu0
        %2717 = vmatprep.subr.bf16.mxu0 0
        %2718 = vmatpush1.bf16.msra.mxu0 %v2050
        %2719 = vmatprep.subr.bf16.mxu0 0
        %2720 = vmatpush1.bf16.msra.mxu0 %v2049
        %2721 = vmatprep.subr.bf16.mxu0 0
        %2722 = vmatpush1.bf16.msra.mxu0 %v2048
        %2723 = vmatprep.subr.bf16.mxu0 0
        %2724 = vmatpush1.bf16.msra.mxu0 %v2047
        %2725 = vmatprep.subr.bf16.mxu0 0
        %2726 = vmatpush1.bf16.msra.mxu0 %v2046
        %2727 = vmatprep.subr.bf16.mxu0 0
        %2728 = vmatpush1.bf16.msra.mxu0 %v2045
        %2729 = vmatprep.subr.bf16.mxu0 0
        %2730 = vmatpush1.bf16.msra.mxu0 %v2044
        %2731 = vmatprep.subr.bf16.mxu0 0
        %2732 = vmatpush1.bf16.msra.mxu0 %v2043
        %2733 = vmatprep.subr.bf16.mxu0 0
        %2734 = vmatpush2.bf16.msra.mxu0 %v2058
        %2735 = vmatprep.subr.bf16.mxu0 0
        %2736 = vmatpush2.bf16.msra.mxu0 %v2057
        %2737 = vmatprep.subr.bf16.mxu0 0
        %2738 = vmatpush2.bf16.msra.mxu0 %v2056
        %2739 = vmatprep.subr.bf16.mxu0 0
        %2740 = vmatpush2.bf16.msra.mxu0 %v2055
        %2741 = vmatprep.subr.bf16.mxu0 0
        %2742 = vmatpush2.bf16.msra.mxu0 %v2054
        %2743 = vmatprep.subr.bf16.mxu0 0
        %2744 = vmatpush2.bf16.msra.mxu0 %v2053
        %2745 = vmatprep.subr.bf16.mxu0 0
        %2746 = vmatpush2.bf16.msra.mxu0 %v2052
        %2747 = vmatprep.subr.bf16.mxu0 0
        %2748 = vmatpush2.bf16.msra.mxu0 %v2051
        %2749 = vmatprep.mubr.bf16.mxu0 %v2632
        %2750 = vmatmul.mubr.bf16.gmra.mxu0 %v2631
        %v2751 = vpop.f32.mrf.mxu0
        %v2752 = vadd.f32 %v2711, %v2751
        %v2753 = vpop.f32.mrf.mxu0
        %v2754 = vpop.f32.mrf.mxu0
        %v2755 = vadd.f32 %v2714, %v2754
        %v2756 = vpop.f32.mrf.mxu0
        %2757 = vdwg.mxu0
        %2758 = vmatprep.subr.bf16.mxu0 0
        %2759 = vmatpush1.bf16.msra.mxu0 %v2066
        %2760 = vmatprep.subr.bf16.mxu0 0
        %2761 = vmatpush1.bf16.msra.mxu0 %v2065
        %2762 = vmatprep.subr.bf16.mxu0 0
        %2763 = vmatpush1.bf16.msra.mxu0 %v2064
        %2764 = vmatprep.subr.bf16.mxu0 0
        %2765 = vmatpush1.bf16.msra.mxu0 %v2063
        %2766 = vmatprep.subr.bf16.mxu0 0
        %2767 = vmatpush1.bf16.msra.mxu0 %v2062
        %2768 = vmatprep.subr.bf16.mxu0 0
        %2769 = vmatpush1.bf16.msra.mxu0 %v2061
        %2770 = vmatprep.subr.bf16.mxu0 0
        %2771 = vmatpush1.bf16.msra.mxu0 %v2060
        %2772 = vmatprep.subr.bf16.mxu0 0
        %2773 = vmatpush1.bf16.msra.mxu0 %v2059
        %2774 = vmatprep.subr.bf16.mxu0 0
        %2775 = vmatpush2.bf16.msra.mxu0 %v2074
        %2776 = vmatprep.subr.bf16.mxu0 0
        %2777 = vmatpush2.bf16.msra.mxu0 %v2073
        %2778 = vmatprep.subr.bf16.mxu0 0
        %2779 = vmatpush2.bf16.msra.mxu0 %v2072
        %2780 = vmatprep.subr.bf16.mxu0 0
        %2781 = vmatpush2.bf16.msra.mxu0 %v2071
        %2782 = vmatprep.subr.bf16.mxu0 0
        %2783 = vmatpush2.bf16.msra.mxu0 %v2070
        %2784 = vmatprep.subr.bf16.mxu0 0
        %2785 = vmatpush2.bf16.msra.mxu0 %v2069
        %2786 = vmatprep.subr.bf16.mxu0 0
        %2787 = vmatpush2.bf16.msra.mxu0 %v2068
        %2788 = vmatprep.subr.bf16.mxu0 0
        %2789 = vmatpush2.bf16.msra.mxu0 %v2067
        %2790 = vmatprep.mubr.bf16.mxu0 %v2634
        %2791 = vmatmul.mubr.bf16.gmra.mxu0 %v2633
        %v2792 = vpop.f32.mrf.mxu0
        %v2793 = vadd.f32 %v2752, %v2792
        %v2794 = vpop.f32.mrf.mxu0
        %v2795 = vpop.f32.mrf.mxu0
        %v2796 = vadd.f32 %v2755, %v2795
        %v2797 = vpop.f32.mrf.mxu0
        %2798 = vdwg.mxu0
        %v2799 = vld [vmem:[%s624] sm:$0xff]
        %v2800 = vld [vmem:[%s624 + $0x8] sm:$0xff]
        %2803 = vrot.lane.b32.xlu0 %v2793, 64
        %v2804 = vpop.permute.xlu0 %2803
        %2805 = vrot.lane.b32.xlu0 %v2796, 64
        %v2806 = vpop.permute.xlu0 %2805
        %v2809 = vsel %vm1218, %v2297, %v2804
        %v2810 = vsel %vm1218, %v2300, %v2806
        %v2811 = vpack.c.bf16 %v2810, %v2809
        %v2812 = vpack.c.bf16 %v2800, %v2799
        %v2813 = vld [vmem:[#allocation8] sm:$0xff]
        %v2814 = vld [vmem:[#allocation8 + $0x8] sm:$0xff]
        %v2815 = vld [vmem:[#allocation8 + $0x40] sm:$0xff]
        %v2816 = vld [vmem:[#allocation8 + $0x48] sm:$0xff]
        %v2817 = vld [vmem:[#allocation8 + $0x80] sm:$0xff]
        %v2818 = vld [vmem:[#allocation8 + $0x88] sm:$0xff]
        %v2819 = vld [vmem:[#allocation8 + $0xc0] sm:$0xff]
        %v2820 = vld [vmem:[#allocation8 + $0xc8] sm:$0xff]
        %v2821 = vld [vmem:[#allocation8 + $0x100] sm:$0xff]
        %v2822 = vld [vmem:[#allocation8 + $0x108] sm:$0xff]
        %v2823 = vld [vmem:[#allocation8 + $0x140] sm:$0xff]
        %v2824 = vld [vmem:[#allocation8 + $0x148] sm:$0xff]
        %v2825 = vld [vmem:[#allocation8 + $0x180] sm:$0xff]
        %v2826 = vld [vmem:[#allocation8 + $0x188] sm:$0xff]
        %v2827 = vld [vmem:[#allocation8 + $0x1c0] sm:$0xff]
        %v2828 = vld [vmem:[#allocation8 + $0x1c8] sm:$0xff]
        %v2829 = vld [vmem:[#allocation8 + $0x200] sm:$0xff]
        %v2830 = vld [vmem:[#allocation8 + $0x208] sm:$0xff]
        %v2831 = vld [vmem:[#allocation8 + $0x240] sm:$0xff]
        %v2832 = vld [vmem:[#allocation8 + $0x248] sm:$0xff]
        %v2833 = vld [vmem:[#allocation8 + $0x280] sm:$0xff]
        %v2834 = vld [vmem:[#allocation8 + $0x288] sm:$0xff]
        %v2835 = vld [vmem:[#allocation8 + $0x2c0] sm:$0xff]
        %v2836 = vld [vmem:[#allocation8 + $0x2c8] sm:$0xff]
        %v2837 = vld [vmem:[#allocation8 + $0x300] sm:$0xff]
        %v2838 = vld [vmem:[#allocation8 + $0x308] sm:$0xff]
        %v2839 = vld [vmem:[#allocation8 + $0x340] sm:$0xff]
        %v2840 = vld [vmem:[#allocation8 + $0x348] sm:$0xff]
        %v2841 = vld [vmem:[#allocation8 + $0x380] sm:$0xff]
        %v2842 = vld [vmem:[#allocation8 + $0x388] sm:$0xff]
        %v2843 = vld [vmem:[#allocation8 + $0x3c0] sm:$0xff]
        %v2844 = vld [vmem:[#allocation8 + $0x3c8] sm:$0xff]
        %v2845 = vld [vmem:[#allocation8 + $0x400] sm:$0xff]
        %v2846 = vld [vmem:[#allocation8 + $0x408] sm:$0xff]
        %v2847 = vld [vmem:[#allocation8 + $0x440] sm:$0xff]
        %v2848 = vld [vmem:[#allocation8 + $0x448] sm:$0xff]
        %v2849 = vld [vmem:[#allocation8 + $0x480] sm:$0xff]
        %v2850 = vld [vmem:[#allocation8 + $0x488] sm:$0xff]
        %v2851 = vld [vmem:[#allocation8 + $0x4c0] sm:$0xff]
        %v2852 = vld [vmem:[#allocation8 + $0x4c8] sm:$0xff]
        %v2853 = vld [vmem:[#allocation8 + $0x500] sm:$0xff]
        %v2854 = vld [vmem:[#allocation8 + $0x508] sm:$0xff]
        %v2855 = vld [vmem:[#allocation8 + $0x540] sm:$0xff]
        %v2856 = vld [vmem:[#allocation8 + $0x548] sm:$0xff]
        %v2857 = vld [vmem:[#allocation8 + $0x580] sm:$0xff]
        %v2858 = vld [vmem:[#allocation8 + $0x588] sm:$0xff]
        %v2859 = vld [vmem:[#allocation8 + $0x5c0] sm:$0xff]
        %v2860 = vld [vmem:[#allocation8 + $0x5c8] sm:$0xff]
        %v2861 = vld [vmem:[#allocation10] sm:$0xf]
        %v2863 = vlaneseq
        %v2864 = vshrl.u32 %v2863, 7
        %v2865 = vsub.s32 0, %v2864
        %v2866 = vrot.slane %v2861, %v2865
        %v2867 = vlaneseq
        %v2868 = vshrl.u32 %v2867, 7
        %v2869 = vsub.s32 1, %v2868
        %v2870 = vrot.slane %v2861, %v2869
        %v2871 = vlaneseq
        %v2872 = vshrl.u32 %v2871, 7
        %v2873 = vsub.s32 2, %v2872
        %v2874 = vrot.slane %v2861, %v2873
        %v2875 = vlaneseq
        %v2876 = vshrl.u32 %v2875, 7
        %v2877 = vsub.s32 3, %v2876
        %v2878 = vrot.slane %v2861, %v2877
        %v2931 = vunpack.c.l.b16 %v2813
        %v2932 = vunpack.c.h.b16 %v2813
        %v2933 = vunpack.c.l.b16 %v2814
        %v2934 = vunpack.c.h.b16 %v2814
        %v2935 = vunpack.c.l.b16 %v2815
        %v2936 = vunpack.c.h.b16 %v2815
        %v2937 = vunpack.c.l.b16 %v2816
        %v2938 = vunpack.c.h.b16 %v2816
        %v2939 = vunpack.c.l.b16 %v2817
        %v2940 = vunpack.c.h.b16 %v2817
        %v2941 = vunpack.c.l.b16 %v2818
        %v2942 = vunpack.c.h.b16 %v2818
        %v2943 = vunpack.c.l.b16 %v2819
        %v2944 = vunpack.c.h.b16 %v2819
        %v2945 = vunpack.c.l.b16 %v2820
        %v2946 = vunpack.c.h.b16 %v2820
        %v2947 = vunpack.c.l.b16 %v2821
        %v2948 = vunpack.c.h.b16 %v2821
        %v2949 = vunpack.c.l.b16 %v2822
        %v2950 = vunpack.c.h.b16 %v2822
        %v2951 = vunpack.c.l.b16 %v2823
        %v2952 = vunpack.c.h.b16 %v2823
        %v2953 = vunpack.c.l.b16 %v2824
        %v2954 = vunpack.c.h.b16 %v2824
        %v2955 = vunpack.c.l.b16 %v2825
        %v2956 = vunpack.c.h.b16 %v2825
        %v2957 = vunpack.c.l.b16 %v2826
        %v2958 = vunpack.c.h.b16 %v2826
        %v2959 = vunpack.c.l.b16 %v2827
        %v2960 = vunpack.c.h.b16 %v2827
        %v2961 = vunpack.c.l.b16 %v2828
        %v2962 = vunpack.c.h.b16 %v2828
        %v2963 = vunpack.c.l.b16 %v2829
        %v2964 = vunpack.c.h.b16 %v2829
        %v2965 = vunpack.c.l.b16 %v2830
        %v2966 = vunpack.c.h.b16 %v2830
        %v2967 = vunpack.c.l.b16 %v2831
        %v2968 = vunpack.c.h.b16 %v2831
        %v2969 = vunpack.c.l.b16 %v2832
        %v2970 = vunpack.c.h.b16 %v2832
        %v2971 = vunpack.c.l.b16 %v2833
        %v2972 = vunpack.c.h.b16 %v2833
        %v2973 = vunpack.c.l.b16 %v2834
        %v2974 = vunpack.c.h.b16 %v2834
        %v2975 = vunpack.c.l.b16 %v2835
        %v2976 = vunpack.c.h.b16 %v2835
        %v2977 = vunpack.c.l.b16 %v2836
        %v2978 = vunpack.c.h.b16 %v2836
        %v2979 = vunpack.c.l.b16 %v2837
        %v2980 = vunpack.c.h.b16 %v2837
        %v2981 = vunpack.c.l.b16 %v2838
        %v2982 = vunpack.c.h.b16 %v2838
        %v2983 = vunpack.c.l.b16 %v2839
        %v2984 = vunpack.c.h.b16 %v2839
        %v2985 = vunpack.c.l.b16 %v2840
        %v2986 = vunpack.c.h.b16 %v2840
        %v2987 = vunpack.c.l.b16 %v2841
        %v2988 = vunpack.c.h.b16 %v2841
        %v2989 = vunpack.c.l.b16 %v2842
        %v2990 = vunpack.c.h.b16 %v2842
        %v2991 = vunpack.c.l.b16 %v2843
        %v2992 = vunpack.c.h.b16 %v2843
        %v2993 = vunpack.c.l.b16 %v2844
        %v2994 = vunpack.c.h.b16 %v2844
        %v2995 = vunpack.c.l.b16 %v2845
        %v2996 = vunpack.c.h.b16 %v2845
        %v2997 = vunpack.c.l.b16 %v2846
        %v2998 = vunpack.c.h.b16 %v2846
        %v2999 = vunpack.c.l.b16 %v2847
        %v3000 = vunpack.c.h.b16 %v2847
        %v3001 = vunpack.c.l.b16 %v2848
        %v3002 = vunpack.c.h.b16 %v2848
        %v3003 = vunpack.c.l.b16 %v2849
        %v3004 = vunpack.c.h.b16 %v2849
        %v3005 = vunpack.c.l.b16 %v2850
        %v3006 = vunpack.c.h.b16 %v2850
        %v3007 = vunpack.c.l.b16 %v2851
        %v3008 = vunpack.c.h.b16 %v2851
        %v3009 = vunpack.c.l.b16 %v2852
        %v3010 = vunpack.c.h.b16 %v2852
        %v3011 = vunpack.c.l.b16 %v2853
        %v3012 = vunpack.c.h.b16 %v2853
        %v3013 = vunpack.c.l.b16 %v2854
        %v3014 = vunpack.c.h.b16 %v2854
        %v3015 = vunpack.c.l.b16 %v2855
        %v3016 = vunpack.c.h.b16 %v2855
        %v3017 = vunpack.c.l.b16 %v2856
        %v3018 = vunpack.c.h.b16 %v2856
        %v3019 = vunpack.c.l.b16 %v2857
        %v3020 = vunpack.c.h.b16 %v2857
        %v3021 = vunpack.c.l.b16 %v2858
        %v3022 = vunpack.c.h.b16 %v2858
        %v3023 = vunpack.c.l.b16 %v2859
        %v3024 = vunpack.c.h.b16 %v2859
        %v3025 = vunpack.c.l.b16 %v2860
        %v3026 = vunpack.c.h.b16 %v2860
        %v3027 = vpack.c.b16 %v2935, %v2931
        %v3028 = vpack.c.b16 %v2936, %v2932
        %v3029 = vpack.c.b16 %v2937, %v2933
        %v3030 = vpack.c.b16 %v2938, %v2934
        %v3031 = vpack.c.b16 %v2943, %v2939
        %v3032 = vpack.c.b16 %v2944, %v2940
        %v3033 = vpack.c.b16 %v2945, %v2941
        %v3034 = vpack.c.b16 %v2946, %v2942
        %v3035 = vpack.c.b16 %v2951, %v2947
        %v3036 = vpack.c.b16 %v2952, %v2948
        %v3037 = vpack.c.b16 %v2953, %v2949
        %v3038 = vpack.c.b16 %v2954, %v2950
        %v3039 = vpack.c.b16 %v2959, %v2955
        %v3040 = vpack.c.b16 %v2960, %v2956
        %v3041 = vpack.c.b16 %v2961, %v2957
        %v3042 = vpack.c.b16 %v2962, %v2958
        %v3043 = vpack.c.b16 %v2967, %v2963
        %v3044 = vpack.c.b16 %v2968, %v2964
        %v3045 = vpack.c.b16 %v2969, %v2965
        %v3046 = vpack.c.b16 %v2970, %v2966
        %v3047 = vpack.c.b16 %v2975, %v2971
        %v3048 = vpack.c.b16 %v2976, %v2972
        %v3049 = vpack.c.b16 %v2977, %v2973
        %v3050 = vpack.c.b16 %v2978, %v2974
        %v3051 = vpack.c.b16 %v2983, %v2979
        %v3052 = vpack.c.b16 %v2984, %v2980
        %v3053 = vpack.c.b16 %v2985, %v2981
        %v3054 = vpack.c.b16 %v2986, %v2982
        %v3055 = vpack.c.b16 %v2991, %v2987
        %v3056 = vpack.c.b16 %v2992, %v2988
        %v3057 = vpack.c.b16 %v2993, %v2989
        %v3058 = vpack.c.b16 %v2994, %v2990
        %v3059 = vpack.c.b16 %v2999, %v2995
        %v3060 = vpack.c.b16 %v3000, %v2996
        %v3061 = vpack.c.b16 %v3001, %v2997
        %v3062 = vpack.c.b16 %v3002, %v2998
        %v3063 = vpack.c.b16 %v3007, %v3003
        %v3064 = vpack.c.b16 %v3008, %v3004
        %v3065 = vpack.c.b16 %v3009, %v3005
        %v3066 = vpack.c.b16 %v3010, %v3006
        %v3067 = vpack.c.b16 %v3015, %v3011
        %v3068 = vpack.c.b16 %v3016, %v3012
        %v3069 = vpack.c.b16 %v3017, %v3013
        %v3070 = vpack.c.b16 %v3018, %v3014
        %v3071 = vpack.c.b16 %v3023, %v3019
        %v3072 = vpack.c.b16 %v3024, %v3020
        %v3073 = vpack.c.b16 %v3025, %v3021
        %v3074 = vpack.c.b16 %v3026, %v3022
        %v3124 = vsel %vm1218, %v2812, 0
        %3126 = vmatprep.subr.bf16.mxu0 %v3056
        %3127 = vmatpush1.bf16.msra.mxu0 %v3055
        %3128 = vmatprep.subr.bf16.mxu0 %v3052
        %3129 = vmatpush1.bf16.msra.mxu0 %v3051
        %3130 = vmatprep.subr.bf16.mxu0 %v3048
        %3131 = vmatpush1.bf16.msra.mxu0 %v3047
        %3132 = vmatprep.subr.bf16.mxu0 %v3044
        %3133 = vmatpush1.bf16.msra.mxu0 %v3043
        %3134 = vmatprep.subr.bf16.mxu0 %v3040
        %3135 = vmatpush1.bf16.msra.mxu0 %v3039
        %3136 = vmatprep.subr.bf16.mxu0 %v3036
        %3137 = vmatpush1.bf16.msra.mxu0 %v3035
        %3138 = vmatprep.subr.bf16.mxu0 %v3032
        %3139 = vmatpush1.bf16.msra.mxu0 %v3031
        %3140 = vmatprep.subr.bf16.mxu0 %v3028
        %3141 = vmatpush1.bf16.msra.mxu0 %v3027
        %3142 = vmatprep.subr.bf16.mxu0 0
        %3143 = vmatpush2.bf16.msra.mxu0 0
        %3144 = vmatprep.subr.bf16.mxu0 0
        %3145 = vmatpush2.bf16.msra.mxu0 0
        %3146 = vmatprep.subr.bf16.mxu0 0
        %3147 = vmatpush2.bf16.msra.mxu0 0
        %3148 = vmatprep.subr.bf16.mxu0 0
        %3149 = vmatpush2.bf16.msra.mxu0 0
        %3150 = vmatprep.subr.bf16.mxu0 %v3072
        %3151 = vmatpush2.bf16.msra.mxu0 %v3071
        %3152 = vmatprep.subr.bf16.mxu0 %v3068
        %3153 = vmatpush2.bf16.msra.mxu0 %v3067
        %3154 = vmatprep.subr.bf16.mxu0 %v3064
        %3155 = vmatpush2.bf16.msra.mxu0 %v3063
        %3156 = vmatprep.subr.bf16.mxu0 %v3060
        %3157 = vmatpush2.bf16.msra.mxu0 %v3059
        %3158 = vmatprep.mubr.bf16.mxu0 %v3124
        %3159 = vmatmul.mubr.bf16.gmra.mxu0 %v2811
        %v3160 = vpop.f32.mrf.mxu0
        %v3161 = vadd.f32 %v2866, %v3160
        %v3162 = vpop.f32.mrf.mxu0
        %v3163 = vadd.f32 %v2870, %v3162
        %v3164 = vpop.f32.mrf.mxu0
        %v3165 = vadd.f32 %v2866, %v3164
        %v3166 = vpop.f32.mrf.mxu0
        %v3167 = vadd.f32 %v2870, %v3166
        %3168 = vdwg.mxu0
        %3169 = vmatprep.subr.bf16.mxu0 %v3058
        %3170 = vmatpush1.bf16.msra.mxu0 %v3057
        %3171 = vmatprep.subr.bf16.mxu0 %v3054
        %3172 = vmatpush1.bf16.msra.mxu0 %v3053
        %3173 = vmatprep.subr.bf16.mxu0 %v3050
        %3174 = vmatpush1.bf16.msra.mxu0 %v3049
        %3175 = vmatprep.subr.bf16.mxu0 %v3046
        %3176 = vmatpush1.bf16.msra.mxu0 %v3045
        %3177 = vmatprep.subr.bf16.mxu0 %v3042
        %3178 = vmatpush1.bf16.msra.mxu0 %v3041
        %3179 = vmatprep.subr.bf16.mxu0 %v3038
        %3180 = vmatpush1.bf16.msra.mxu0 %v3037
        %3181 = vmatprep.subr.bf16.mxu0 %v3034
        %3182 = vmatpush1.bf16.msra.mxu0 %v3033
        %3183 = vmatprep.subr.bf16.mxu0 %v3030
        %3184 = vmatpush1.bf16.msra.mxu0 %v3029
        %3185 = vmatprep.subr.bf16.mxu0 0
        %3186 = vmatpush2.bf16.msra.mxu0 0
        %3187 = vmatprep.subr.bf16.mxu0 0
        %3188 = vmatpush2.bf16.msra.mxu0 0
        %3189 = vmatprep.subr.bf16.mxu0 0
        %3190 = vmatpush2.bf16.msra.mxu0 0
        %3191 = vmatprep.subr.bf16.mxu0 0
        %3192 = vmatpush2.bf16.msra.mxu0 0
        %3193 = vmatprep.subr.bf16.mxu0 %v3074
        %3194 = vmatpush2.bf16.msra.mxu0 %v3073
        %3195 = vmatprep.subr.bf16.mxu0 %v3070
        %3196 = vmatpush2.bf16.msra.mxu0 %v3069
        %3197 = vmatprep.subr.bf16.mxu0 %v3066
        %3198 = vmatpush2.bf16.msra.mxu0 %v3065
        %3199 = vmatprep.subr.bf16.mxu0 %v3062
        %3200 = vmatpush2.bf16.msra.mxu0 %v3061
        %3201 = vmatprep.mubr.bf16.mxu0 %v3124
        %3202 = vmatmul.mubr.bf16.gmra.mxu0 %v2811
        %v3203 = vpop.f32.mrf.mxu0
        %v3204 = vadd.f32 %v2874, %v3203
        %v3205 = vpop.f32.mrf.mxu0
        %v3206 = vadd.f32 %v2878, %v3205
        %v3207 = vpop.f32.mrf.mxu0
        %v3208 = vadd.f32 %v2874, %v3207
        %v3209 = vpop.f32.mrf.mxu0
        %v3210 = vadd.f32 %v2878, %v3209
        %3211 = vdwg.mxu0
        %3212 = vst [vmem:[#allocation2] sm:$0xff] %v3161
        %3213 = vst [vmem:[#allocation2 + $0x8] sm:$0xff] %v3163
        %3214 = vst [vmem:[#allocation2 + $0x10] sm:$0xff] %v3204
        %3215 = vst [vmem:[#allocation2 + $0x18] sm:$0xff] %v3206
        %3216 = vst [vmem:[#allocation2 + $0x80] sm:$0xff] %v3165
        %3217 = vst [vmem:[#allocation2 + $0x88] sm:$0xff] %v3167
        %3218 = vst [vmem:[#allocation2 + $0x90] sm:$0xff] %v3208
        %3219 = vst [vmem:[#allocation2 + $0x98] sm:$0xff] %v3210
        %v3220 = vld [vmem:[#allocation8 + $0x10] sm:$0xff]
        %v3221 = vld [vmem:[#allocation8 + $0x18] sm:$0xff]
        %v3222 = vld [vmem:[#allocation8 + $0x50] sm:$0xff]
        %v3223 = vld [vmem:[#allocation8 + $0x58] sm:$0xff]
        %v3224 = vld [vmem:[#allocation8 + $0x90] sm:$0xff]
        %v3225 = vld [vmem:[#allocation8 + $0x98] sm:$0xff]
        %v3226 = vld [vmem:[#allocation8 + $0xd0] sm:$0xff]
        %v3227 = vld [vmem:[#allocation8 + $0xd8] sm:$0xff]
        %v3228 = vld [vmem:[#allocation8 + $0x110] sm:$0xff]
        %v3229 = vld [vmem:[#allocation8 + $0x118] sm:$0xff]
        %v3230 = vld [vmem:[#allocation8 + $0x150] sm:$0xff]
        %v3231 = vld [vmem:[#allocation8 + $0x158] sm:$0xff]
        %v3232 = vld [vmem:[#allocation8 + $0x190] sm:$0xff]
        %v3233 = vld [vmem:[#allocation8 + $0x198] sm:$0xff]
        %v3234 = vld [vmem:[#allocation8 + $0x1d0] sm:$0xff]
        %v3235 = vld [vmem:[#allocation8 + $0x1d8] sm:$0xff]
        %v3236 = vld [vmem:[#allocation8 + $0x210] sm:$0xff]
        %v3237 = vld [vmem:[#allocation8 + $0x218] sm:$0xff]
        %v3238 = vld [vmem:[#allocation8 + $0x250] sm:$0xff]
        %v3239 = vld [vmem:[#allocation8 + $0x258] sm:$0xff]
        %v3240 = vld [vmem:[#allocation8 + $0x290] sm:$0xff]
        %v3241 = vld [vmem:[#allocation8 + $0x298] sm:$0xff]
        %v3242 = vld [vmem:[#allocation8 + $0x2d0] sm:$0xff]
        %v3243 = vld [vmem:[#allocation8 + $0x2d8] sm:$0xff]
        %v3244 = vld [vmem:[#allocation8 + $0x310] sm:$0xff]
        %v3245 = vld [vmem:[#allocation8 + $0x318] sm:$0xff]
        %v3246 = vld [vmem:[#allocation8 + $0x350] sm:$0xff]
        %v3247 = vld [vmem:[#allocation8 + $0x358] sm:$0xff]
        %v3248 = vld [vmem:[#allocation8 + $0x390] sm:$0xff]
        %v3249 = vld [vmem:[#allocation8 + $0x398] sm:$0xff]
        %v3250 = vld [vmem:[#allocation8 + $0x3d0] sm:$0xff]
        %v3251 = vld [vmem:[#allocation8 + $0x3d8] sm:$0xff]
        %v3252 = vld [vmem:[#allocation8 + $0x410] sm:$0xff]
        %v3253 = vld [vmem:[#allocation8 + $0x418] sm:$0xff]
        %v3254 = vld [vmem:[#allocation8 + $0x450] sm:$0xff]
        %v3255 = vld [vmem:[#allocation8 + $0x458] sm:$0xff]
        %v3256 = vld [vmem:[#allocation8 + $0x490] sm:$0xff]
        %v3257 = vld [vmem:[#allocation8 + $0x498] sm:$0xff]
        %v3258 = vld [vmem:[#allocation8 + $0x4d0] sm:$0xff]
        %v3259 = vld [vmem:[#allocation8 + $0x4d8] sm:$0xff]
        %v3260 = vld [vmem:[#allocation8 + $0x510] sm:$0xff]
        %v3261 = vld [vmem:[#allocation8 + $0x518] sm:$0xff]
        %v3262 = vld [vmem:[#allocation8 + $0x550] sm:$0xff]
        %v3263 = vld [vmem:[#allocation8 + $0x558] sm:$0xff]
        %v3264 = vld [vmem:[#allocation8 + $0x590] sm:$0xff]
        %v3265 = vld [vmem:[#allocation8 + $0x598] sm:$0xff]
        %v3266 = vld [vmem:[#allocation8 + $0x5d0] sm:$0xff]
        %v3267 = vld [vmem:[#allocation8 + $0x5d8] sm:$0xff]
        %v3268 = vld [vmem:[#allocation10 + $0x4] sm:$0xf]
        %v3270 = vlaneseq
        %v3271 = vshrl.u32 %v3270, 7
        %v3272 = vsub.s32 0, %v3271
        %v3273 = vrot.slane %v3268, %v3272
        %v3274 = vlaneseq
        %v3275 = vshrl.u32 %v3274, 7
        %v3276 = vsub.s32 1, %v3275
        %v3277 = vrot.slane %v3268, %v3276
        %v3278 = vlaneseq
        %v3279 = vshrl.u32 %v3278, 7
        %v3280 = vsub.s32 2, %v3279
        %v3281 = vrot.slane %v3268, %v3280
        %v3282 = vlaneseq
        %v3283 = vshrl.u32 %v3282, 7
        %v3284 = vsub.s32 3, %v3283
        %v3285 = vrot.slane %v3268, %v3284
        %v3338 = vunpack.c.l.b16 %v3220
        %v3339 = vunpack.c.h.b16 %v3220
        %v3340 = vunpack.c.l.b16 %v3221
        %v3341 = vunpack.c.h.b16 %v3221
        %v3342 = vunpack.c.l.b16 %v3222
        %v3343 = vunpack.c.h.b16 %v3222
        %v3344 = vunpack.c.l.b16 %v3223
        %v3345 = vunpack.c.h.b16 %v3223
        %v3346 = vunpack.c.l.b16 %v3224
        %v3347 = vunpack.c.h.b16 %v3224
        %v3348 = vunpack.c.l.b16 %v3225
        %v3349 = vunpack.c.h.b16 %v3225
        %v3350 = vunpack.c.l.b16 %v3226
        %v3351 = vunpack.c.h.b16 %v3226
        %v3352 = vunpack.c.l.b16 %v3227
        %v3353 = vunpack.c.h.b16 %v3227
        %v3354 = vunpack.c.l.b16 %v3228
        %v3355 = vunpack.c.h.b16 %v3228
        %v3356 = vunpack.c.l.b16 %v3229
        %v3357 = vunpack.c.h.b16 %v3229
        %v3358 = vunpack.c.l.b16 %v3230
        %v3359 = vunpack.c.h.b16 %v3230
        %v3360 = vunpack.c.l.b16 %v3231
        %v3361 = vunpack.c.h.b16 %v3231
        %v3362 = vunpack.c.l.b16 %v3232
        %v3363 = vunpack.c.h.b16 %v3232
        %v3364 = vunpack.c.l.b16 %v3233
        %v3365 = vunpack.c.h.b16 %v3233
        %v3366 = vunpack.c.l.b16 %v3234
        %v3367 = vunpack.c.h.b16 %v3234
        %v3368 = vunpack.c.l.b16 %v3235
        %v3369 = vunpack.c.h.b16 %v3235
        %v3370 = vunpack.c.l.b16 %v3236
        %v3371 = vunpack.c.h.b16 %v3236
        %v3372 = vunpack.c.l.b16 %v3237
        %v3373 = vunpack.c.h.b16 %v3237
        %v3374 = vunpack.c.l.b16 %v3238
        %v3375 = vunpack.c.h.b16 %v3238
        %v3376 = vunpack.c.l.b16 %v3239
        %v3377 = vunpack.c.h.b16 %v3239
        %v3378 = vunpack.c.l.b16 %v3240
        %v3379 = vunpack.c.h.b16 %v3240
        %v3380 = vunpack.c.l.b16 %v3241
        %v3381 = vunpack.c.h.b16 %v3241
        %v3382 = vunpack.c.l.b16 %v3242
        %v3383 = vunpack.c.h.b16 %v3242
        %v3384 = vunpack.c.l.b16 %v3243
        %v3385 = vunpack.c.h.b16 %v3243
        %v3386 = vunpack.c.l.b16 %v3244
        %v3387 = vunpack.c.h.b16 %v3244
        %v3388 = vunpack.c.l.b16 %v3245
        %v3389 = vunpack.c.h.b16 %v3245
        %v3390 = vunpack.c.l.b16 %v3246
        %v3391 = vunpack.c.h.b16 %v3246
        %v3392 = vunpack.c.l.b16 %v3247
        %v3393 = vunpack.c.h.b16 %v3247
        %v3394 = vunpack.c.l.b16 %v3248
        %v3395 = vunpack.c.h.b16 %v3248
        %v3396 = vunpack.c.l.b16 %v3249
        %v3397 = vunpack.c.h.b16 %v3249
        %v3398 = vunpack.c.l.b16 %v3250
        %v3399 = vunpack.c.h.b16 %v3250
        %v3400 = vunpack.c.l.b16 %v3251
        %v3401 = vunpack.c.h.b16 %v3251
        %v3402 = vunpack.c.l.b16 %v3252
        %v3403 = vunpack.c.h.b16 %v3252
        %v3404 = vunpack.c.l.b16 %v3253
        %v3405 = vunpack.c.h.b16 %v3253
        %v3406 = vunpack.c.l.b16 %v3254
        %v3407 = vunpack.c.h.b16 %v3254
        %v3408 = vunpack.c.l.b16 %v3255
        %v3409 = vunpack.c.h.b16 %v3255
        %v3410 = vunpack.c.l.b16 %v3256
        %v3411 = vunpack.c.h.b16 %v3256
        %v3412 = vunpack.c.l.b16 %v3257
        %v3413 = vunpack.c.h.b16 %v3257
        %v3414 = vunpack.c.l.b16 %v3258
        %v3415 = vunpack.c.h.b16 %v3258
        %v3416 = vunpack.c.l.b16 %v3259
        %v3417 = vunpack.c.h.b16 %v3259
        %v3418 = vunpack.c.l.b16 %v3260
        %v3419 = vunpack.c.h.b16 %v3260
        %v3420 = vunpack.c.l.b16 %v3261
        %v3421 = vunpack.c.h.b16 %v3261
        %v3422 = vunpack.c.l.b16 %v3262
        %v3423 = vunpack.c.h.b16 %v3262
        %v3424 = vunpack.c.l.b16 %v3263
        %v3425 = vunpack.c.h.b16 %v3263
        %v3426 = vunpack.c.l.b16 %v3264
        %v3427 = vunpack.c.h.b16 %v3264
        %v3428 = vunpack.c.l.b16 %v3265
        %v3429 = vunpack.c.h.b16 %v3265
        %v3430 = vunpack.c.l.b16 %v3266
        %v3431 = vunpack.c.h.b16 %v3266
        %v3432 = vunpack.c.l.b16 %v3267
        %v3433 = vunpack.c.h.b16 %v3267
        %v3434 = vpack.c.b16 %v3342, %v3338
        %v3435 = vpack.c.b16 %v3343, %v3339
        %v3436 = vpack.c.b16 %v3344, %v3340
        %v3437 = vpack.c.b16 %v3345, %v3341
        %v3438 = vpack.c.b16 %v3350, %v3346
        %v3439 = vpack.c.b16 %v3351, %v3347
        %v3440 = vpack.c.b16 %v3352, %v3348
        %v3441 = vpack.c.b16 %v3353, %v3349
        %v3442 = vpack.c.b16 %v3358, %v3354
        %v3443 = vpack.c.b16 %v3359, %v3355
        %v3444 = vpack.c.b16 %v3360, %v3356
        %v3445 = vpack.c.b16 %v3361, %v3357
        %v3446 = vpack.c.b16 %v3366, %v3362
        %v3447 = vpack.c.b16 %v3367, %v3363
        %v3448 = vpack.c.b16 %v3368, %v3364
        %v3449 = vpack.c.b16 %v3369, %v3365
        %v3450 = vpack.c.b16 %v3374, %v3370
        %v3451 = vpack.c.b16 %v3375, %v3371
        %v3452 = vpack.c.b16 %v3376, %v3372
        %v3453 = vpack.c.b16 %v3377, %v3373
        %v3454 = vpack.c.b16 %v3382, %v3378
        %v3455 = vpack.c.b16 %v3383, %v3379
        %v3456 = vpack.c.b16 %v3384, %v3380
        %v3457 = vpack.c.b16 %v3385, %v3381
        %v3458 = vpack.c.b16 %v3390, %v3386
        %v3459 = vpack.c.b16 %v3391, %v3387
        %v3460 = vpack.c.b16 %v3392, %v3388
        %v3461 = vpack.c.b16 %v3393, %v3389
        %v3462 = vpack.c.b16 %v3398, %v3394
        %v3463 = vpack.c.b16 %v3399, %v3395
        %v3464 = vpack.c.b16 %v3400, %v3396
        %v3465 = vpack.c.b16 %v3401, %v3397
        %v3466 = vpack.c.b16 %v3406, %v3402
        %v3467 = vpack.c.b16 %v3407, %v3403
        %v3468 = vpack.c.b16 %v3408, %v3404
        %v3469 = vpack.c.b16 %v3409, %v3405
        %v3470 = vpack.c.b16 %v3414, %v3410
        %v3471 = vpack.c.b16 %v3415, %v3411
        %v3472 = vpack.c.b16 %v3416, %v3412
        %v3473 = vpack.c.b16 %v3417, %v3413
        %v3474 = vpack.c.b16 %v3422, %v3418
        %v3475 = vpack.c.b16 %v3423, %v3419
        %v3476 = vpack.c.b16 %v3424, %v3420
        %v3477 = vpack.c.b16 %v3425, %v3421
        %v3478 = vpack.c.b16 %v3430, %v3426
        %v3479 = vpack.c.b16 %v3431, %v3427
        %v3480 = vpack.c.b16 %v3432, %v3428
        %v3481 = vpack.c.b16 %v3433, %v3429
        %3530 = vmatprep.subr.bf16.mxu0 %v3463
        %3531 = vmatpush1.bf16.msra.mxu0 %v3462
        %3532 = vmatprep.subr.bf16.mxu0 %v3459
        %3533 = vmatpush1.bf16.msra.mxu0 %v3458
        %3534 = vmatprep.subr.bf16.mxu0 %v3455
        %3535 = vmatpush1.bf16.msra.mxu0 %v3454
        %3536 = vmatprep.subr.bf16.mxu0 %v3451
        %3537 = vmatpush1.bf16.msra.mxu0 %v3450
        %3538 = vmatprep.subr.bf16.mxu0 %v3447
        %3539 = vmatpush1.bf16.msra.mxu0 %v3446
        %3540 = vmatprep.subr.bf16.mxu0 %v3443
        %3541 = vmatpush1.bf16.msra.mxu0 %v3442
        %3542 = vmatprep.subr.bf16.mxu0 %v3439
        %3543 = vmatpush1.bf16.msra.mxu0 %v3438
        %3544 = vmatprep.subr.bf16.mxu0 %v3435
        %3545 = vmatpush1.bf16.msra.mxu0 %v3434
        %3546 = vmatprep.subr.bf16.mxu0 0
        %3547 = vmatpush2.bf16.msra.mxu0 0
        %3548 = vmatprep.subr.bf16.mxu0 0
        %3549 = vmatpush2.bf16.msra.mxu0 0
        %3550 = vmatprep.subr.bf16.mxu0 0
        %3551 = vmatpush2.bf16.msra.mxu0 0
        %3552 = vmatprep.subr.bf16.mxu0 0
        %3553 = vmatpush2.bf16.msra.mxu0 0
        %3554 = vmatprep.subr.bf16.mxu0 %v3479
        %3555 = vmatpush2.bf16.msra.mxu0 %v3478
        %3556 = vmatprep.subr.bf16.mxu0 %v3475
        %3557 = vmatpush2.bf16.msra.mxu0 %v3474
        %3558 = vmatprep.subr.bf16.mxu0 %v3471
        %3559 = vmatpush2.bf16.msra.mxu0 %v3470
        %3560 = vmatprep.subr.bf16.mxu0 %v3467
        %3561 = vmatpush2.bf16.msra.mxu0 %v3466
        %3562 = vmatprep.mubr.bf16.mxu0 %v3124
        %3563 = vmatmul.mubr.bf16.gmra.mxu0 %v2811
        %v3564 = vpop.f32.mrf.mxu0
        %v3565 = vadd.f32 %v3273, %v3564
        %v3566 = vpop.f32.mrf.mxu0
        %v3567 = vadd.f32 %v3277, %v3566
        %v3568 = vpop.f32.mrf.mxu0
        %v3569 = vadd.f32 %v3273, %v3568
        %v3570 = vpop.f32.mrf.mxu0
        %v3571 = vadd.f32 %v3277, %v3570
        %3572 = vdwg.mxu0
        %3573 = vmatprep.subr.bf16.mxu0 %v3465
        %3574 = vmatpush1.bf16.msra.mxu0 %v3464
        %3575 = vmatprep.subr.bf16.mxu0 %v3461
        %3576 = vmatpush1.bf16.msra.mxu0 %v3460
        %3577 = vmatprep.subr.bf16.mxu0 %v3457
        %3578 = vmatpush1.bf16.msra.mxu0 %v3456
        %3579 = vmatprep.subr.bf16.mxu0 %v3453
        %3580 = vmatpush1.bf16.msra.mxu0 %v3452
        %3581 = vmatprep.subr.bf16.mxu0 %v3449
        %3582 = vmatpush1.bf16.msra.mxu0 %v3448
        %3583 = vmatprep.subr.bf16.mxu0 %v3445
        %3584 = vmatpush1.bf16.msra.mxu0 %v3444
        %3585 = vmatprep.subr.bf16.mxu0 %v3441
        %3586 = vmatpush1.bf16.msra.mxu0 %v3440
        %3587 = vmatprep.subr.bf16.mxu0 %v3437
        %3588 = vmatpush1.bf16.msra.mxu0 %v3436
        %3589 = vmatprep.subr.bf16.mxu0 0
        %3590 = vmatpush2.bf16.msra.mxu0 0
        %3591 = vmatprep.subr.bf16.mxu0 0
        %3592 = vmatpush2.bf16.msra.mxu0 0
        %3593 = vmatprep.subr.bf16.mxu0 0
        %3594 = vmatpush2.bf16.msra.mxu0 0
        %3595 = vmatprep.subr.bf16.mxu0 0
        %3596 = vmatpush2.bf16.msra.mxu0 0
        %3597 = vmatprep.subr.bf16.mxu0 %v3481
        %3598 = vmatpush2.bf16.msra.mxu0 %v3480
        %3599 = vmatprep.subr.bf16.mxu0 %v3477
        %3600 = vmatpush2.bf16.msra.mxu0 %v3476
        %3601 = vmatprep.subr.bf16.mxu0 %v3473
        %3602 = vmatpush2.bf16.msra.mxu0 %v3472
        %3603 = vmatprep.subr.bf16.mxu0 %v3469
        %3604 = vmatpush2.bf16.msra.mxu0 %v3468
        %3605 = vmatprep.mubr.bf16.mxu0 %v3124
        %3606 = vmatmul.mubr.bf16.gmra.mxu0 %v2811
        %v3607 = vpop.f32.mrf.mxu0
        %v3608 = vadd.f32 %v3281, %v3607
        %v3609 = vpop.f32.mrf.mxu0
        %v3610 = vadd.f32 %v3285, %v3609
        %v3611 = vpop.f32.mrf.mxu0
        %v3612 = vadd.f32 %v3281, %v3611
        %v3613 = vpop.f32.mrf.mxu0
        %v3614 = vadd.f32 %v3285, %v3613
        %3615 = vdwg.mxu0
        %3616 = vst [vmem:[#allocation2 + $0x20] sm:$0xff] %v3565
        %3617 = vst [vmem:[#allocation2 + $0x28] sm:$0xff] %v3567
        %3618 = vst [vmem:[#allocation2 + $0x30] sm:$0xff] %v3608
        %3619 = vst [vmem:[#allocation2 + $0x38] sm:$0xff] %v3610
        %3620 = vst [vmem:[#allocation2 + $0xa0] sm:$0xff] %v3569
        %3621 = vst [vmem:[#allocation2 + $0xa8] sm:$0xff] %v3571
        %3622 = vst [vmem:[#allocation2 + $0xb0] sm:$0xff] %v3612
        %3623 = vst [vmem:[#allocation2 + $0xb8] sm:$0xff] %v3614
        %v3624 = vld [vmem:[#allocation8 + $0x20] sm:$0xff]
        %v3625 = vld [vmem:[#allocation8 + $0x28] sm:$0xff]
        %v3626 = vld [vmem:[#allocation8 + $0x60] sm:$0xff]
        %v3627 = vld [vmem:[#allocation8 + $0x68] sm:$0xff]
        %v3628 = vld [vmem:[#allocation8 + $0xa0] sm:$0xff]
        %v3629 = vld [vmem:[#allocation8 + $0xa8] sm:$0xff]
        %v3630 = vld [vmem:[#allocation8 + $0xe0] sm:$0xff]
        %v3631 = vld [vmem:[#allocation8 + $0xe8] sm:$0xff]
        %v3632 = vld [vmem:[#allocation8 + $0x120] sm:$0xff]
        %v3633 = vld [vmem:[#allocation8 + $0x128] sm:$0xff]
        %v3634 = vld [vmem:[#allocation8 + $0x160] sm:$0xff]
        %v3635 = vld [vmem:[#allocation8 + $0x168] sm:$0xff]
        %v3636 = vld [vmem:[#allocation8 + $0x1a0] sm:$0xff]
        %v3637 = vld [vmem:[#allocation8 + $0x1a8] sm:$0xff]
        %v3638 = vld [vmem:[#allocation8 + $0x1e0] sm:$0xff]
        %v3639 = vld [vmem:[#allocation8 + $0x1e8] sm:$0xff]
        %v3640 = vld [vmem:[#allocation8 + $0x220] sm:$0xff]
        %v3641 = vld [vmem:[#allocation8 + $0x228] sm:$0xff]
        %v3642 = vld [vmem:[#allocation8 + $0x260] sm:$0xff]
        %v3643 = vld [vmem:[#allocation8 + $0x268] sm:$0xff]
        %v3644 = vld [vmem:[#allocation8 + $0x2a0] sm:$0xff]
        %v3645 = vld [vmem:[#allocation8 + $0x2a8] sm:$0xff]
        %v3646 = vld [vmem:[#allocation8 + $0x2e0] sm:$0xff]
        %v3647 = vld [vmem:[#allocation8 + $0x2e8] sm:$0xff]
        %v3648 = vld [vmem:[#allocation8 + $0x320] sm:$0xff]
        %v3649 = vld [vmem:[#allocation8 + $0x328] sm:$0xff]
        %v3650 = vld [vmem:[#allocation8 + $0x360] sm:$0xff]
        %v3651 = vld [vmem:[#allocation8 + $0x368] sm:$0xff]
        %v3652 = vld [vmem:[#allocation8 + $0x3a0] sm:$0xff]
        %v3653 = vld [vmem:[#allocation8 + $0x3a8] sm:$0xff]
        %v3654 = vld [vmem:[#allocation8 + $0x3e0] sm:$0xff]
        %v3655 = vld [vmem:[#allocation8 + $0x3e8] sm:$0xff]
        %v3656 = vld [vmem:[#allocation8 + $0x420] sm:$0xff]
        %v3657 = vld [vmem:[#allocation8 + $0x428] sm:$0xff]
        %v3658 = vld [vmem:[#allocation8 + $0x460] sm:$0xff]
        %v3659 = vld [vmem:[#allocation8 + $0x468] sm:$0xff]
        %v3660 = vld [vmem:[#allocation8 + $0x4a0] sm:$0xff]
        %v3661 = vld [vmem:[#allocation8 + $0x4a8] sm:$0xff]
        %v3662 = vld [vmem:[#allocation8 + $0x4e0] sm:$0xff]
        %v3663 = vld [vmem:[#allocation8 + $0x4e8] sm:$0xff]
        %v3664 = vld [vmem:[#allocation8 + $0x520] sm:$0xff]
        %v3665 = vld [vmem:[#allocation8 + $0x528] sm:$0xff]
        %v3666 = vld [vmem:[#allocation8 + $0x560] sm:$0xff]
        %v3667 = vld [vmem:[#allocation8 + $0x568] sm:$0xff]
        %v3668 = vld [vmem:[#allocation8 + $0x5a0] sm:$0xff]
        %v3669 = vld [vmem:[#allocation8 + $0x5a8] sm:$0xff]
        %v3670 = vld [vmem:[#allocation8 + $0x5e0] sm:$0xff]
        %v3671 = vld [vmem:[#allocation8 + $0x5e8] sm:$0xff]
        %v3672 = vld [vmem:[#allocation10 + $0x8] sm:$0xf]
        %v3674 = vlaneseq
        %v3675 = vshrl.u32 %v3674, 7
        %v3676 = vsub.s32 0, %v3675
        %v3677 = vrot.slane %v3672, %v3676
        %v3678 = vlaneseq
        %v3679 = vshrl.u32 %v3678, 7
        %v3680 = vsub.s32 1, %v3679
        %v3681 = vrot.slane %v3672, %v3680
        %v3682 = vlaneseq
        %v3683 = vshrl.u32 %v3682, 7
        %v3684 = vsub.s32 2, %v3683
        %v3685 = vrot.slane %v3672, %v3684
        %v3686 = vlaneseq
        %v3687 = vshrl.u32 %v3686, 7
        %v3688 = vsub.s32 3, %v3687
        %v3689 = vrot.slane %v3672, %v3688
        %v3742 = vunpack.c.l.b16 %v3624
        %v3743 = vunpack.c.h.b16 %v3624
        %v3744 = vunpack.c.l.b16 %v3625
        %v3745 = vunpack.c.h.b16 %v3625
        %v3746 = vunpack.c.l.b16 %v3626
        %v3747 = vunpack.c.h.b16 %v3626
        %v3748 = vunpack.c.l.b16 %v3627
        %v3749 = vunpack.c.h.b16 %v3627
        %v3750 = vunpack.c.l.b16 %v3628
        %v3751 = vunpack.c.h.b16 %v3628
        %v3752 = vunpack.c.l.b16 %v3629
        %v3753 = vunpack.c.h.b16 %v3629
        %v3754 = vunpack.c.l.b16 %v3630
        %v3755 = vunpack.c.h.b16 %v3630
        %v3756 = vunpack.c.l.b16 %v3631
        %v3757 = vunpack.c.h.b16 %v3631
        %v3758 = vunpack.c.l.b16 %v3632
        %v3759 = vunpack.c.h.b16 %v3632
        %v3760 = vunpack.c.l.b16 %v3633
        %v3761 = vunpack.c.h.b16 %v3633
        %v3762 = vunpack.c.l.b16 %v3634
        %v3763 = vunpack.c.h.b16 %v3634
        %v3764 = vunpack.c.l.b16 %v3635
        %v3765 = vunpack.c.h.b16 %v3635
        %v3766 = vunpack.c.l.b16 %v3636
        %v3767 = vunpack.c.h.b16 %v3636
        %v3768 = vunpack.c.l.b16 %v3637
        %v3769 = vunpack.c.h.b16 %v3637
        %v3770 = vunpack.c.l.b16 %v3638
        %v3771 = vunpack.c.h.b16 %v3638
        %v3772 = vunpack.c.l.b16 %v3639
        %v3773 = vunpack.c.h.b16 %v3639
        %v3774 = vunpack.c.l.b16 %v3640
        %v3775 = vunpack.c.h.b16 %v3640
        %v3776 = vunpack.c.l.b16 %v3641
        %v3777 = vunpack.c.h.b16 %v3641
        %v3778 = vunpack.c.l.b16 %v3642
        %v3779 = vunpack.c.h.b16 %v3642
        %v3780 = vunpack.c.l.b16 %v3643
        %v3781 = vunpack.c.h.b16 %v3643
        %v3782 = vunpack.c.l.b16 %v3644
        %v3783 = vunpack.c.h.b16 %v3644
        %v3784 = vunpack.c.l.b16 %v3645
        %v3785 = vunpack.c.h.b16 %v3645
        %v3786 = vunpack.c.l.b16 %v3646
        %v3787 = vunpack.c.h.b16 %v3646
        %v3788 = vunpack.c.l.b16 %v3647
        %v3789 = vunpack.c.h.b16 %v3647
        %v3790 = vunpack.c.l.b16 %v3648
        %v3791 = vunpack.c.h.b16 %v3648
        %v3792 = vunpack.c.l.b16 %v3649
        %v3793 = vunpack.c.h.b16 %v3649
        %v3794 = vunpack.c.l.b16 %v3650
        %v3795 = vunpack.c.h.b16 %v3650
        %v3796 = vunpack.c.l.b16 %v3651
        %v3797 = vunpack.c.h.b16 %v3651
        %v3798 = vunpack.c.l.b16 %v3652
        %v3799 = vunpack.c.h.b16 %v3652
        %v3800 = vunpack.c.l.b16 %v3653
        %v3801 = vunpack.c.h.b16 %v3653
        %v3802 = vunpack.c.l.b16 %v3654
        %v3803 = vunpack.c.h.b16 %v3654
        %v3804 = vunpack.c.l.b16 %v3655
        %v3805 = vunpack.c.h.b16 %v3655
        %v3806 = vunpack.c.l.b16 %v3656
        %v3807 = vunpack.c.h.b16 %v3656
        %v3808 = vunpack.c.l.b16 %v3657
        %v3809 = vunpack.c.h.b16 %v3657
        %v3810 = vunpack.c.l.b16 %v3658
        %v3811 = vunpack.c.h.b16 %v3658
        %v3812 = vunpack.c.l.b16 %v3659
        %v3813 = vunpack.c.h.b16 %v3659
        %v3814 = vunpack.c.l.b16 %v3660
        %v3815 = vunpack.c.h.b16 %v3660
        %v3816 = vunpack.c.l.b16 %v3661
        %v3817 = vunpack.c.h.b16 %v3661
        %v3818 = vunpack.c.l.b16 %v3662
        %v3819 = vunpack.c.h.b16 %v3662
        %v3820 = vunpack.c.l.b16 %v3663
        %v3821 = vunpack.c.h.b16 %v3663
        %v3822 = vunpack.c.l.b16 %v3664
        %v3823 = vunpack.c.h.b16 %v3664
        %v3824 = vunpack.c.l.b16 %v3665
        %v3825 = vunpack.c.h.b16 %v3665
        %v3826 = vunpack.c.l.b16 %v3666
        %v3827 = vunpack.c.h.b16 %v3666
        %v3828 = vunpack.c.l.b16 %v3667
        %v3829 = vunpack.c.h.b16 %v3667
        %v3830 = vunpack.c.l.b16 %v3668
        %v3831 = vunpack.c.h.b16 %v3668
        %v3832 = vunpack.c.l.b16 %v3669
        %v3833 = vunpack.c.h.b16 %v3669
        %v3834 = vunpack.c.l.b16 %v3670
        %v3835 = vunpack.c.h.b16 %v3670
        %v3836 = vunpack.c.l.b16 %v3671
        %v3837 = vunpack.c.h.b16 %v3671
        %v3838 = vpack.c.b16 %v3746, %v3742
        %v3839 = vpack.c.b16 %v3747, %v3743
        %v3840 = vpack.c.b16 %v3748, %v3744
        %v3841 = vpack.c.b16 %v3749, %v3745
        %v3842 = vpack.c.b16 %v3754, %v3750
        %v3843 = vpack.c.b16 %v3755, %v3751
        %v3844 = vpack.c.b16 %v3756, %v3752
        %v3845 = vpack.c.b16 %v3757, %v3753
        %v3846 = vpack.c.b16 %v3762, %v3758
        %v3847 = vpack.c.b16 %v3763, %v3759
        %v3848 = vpack.c.b16 %v3764, %v3760
        %v3849 = vpack.c.b16 %v3765, %v3761
        %v3850 = vpack.c.b16 %v3770, %v3766
        %v3851 = vpack.c.b16 %v3771, %v3767
        %v3852 = vpack.c.b16 %v3772, %v3768
        %v3853 = vpack.c.b16 %v3773, %v3769
        %v3854 = vpack.c.b16 %v3778, %v3774
        %v3855 = vpack.c.b16 %v3779, %v3775
        %v3856 = vpack.c.b16 %v3780, %v3776
        %v3857 = vpack.c.b16 %v3781, %v3777
        %v3858 = vpack.c.b16 %v3786, %v3782
        %v3859 = vpack.c.b16 %v3787, %v3783
        %v3860 = vpack.c.b16 %v3788, %v3784
        %v3861 = vpack.c.b16 %v3789, %v3785
        %v3862 = vpack.c.b16 %v3794, %v3790
        %v3863 = vpack.c.b16 %v3795, %v3791
        %v3864 = vpack.c.b16 %v3796, %v3792
        %v3865 = vpack.c.b16 %v3797, %v3793
        %v3866 = vpack.c.b16 %v3802, %v3798
        %v3867 = vpack.c.b16 %v3803, %v3799
        %v3868 = vpack.c.b16 %v3804, %v3800
        %v3869 = vpack.c.b16 %v3805, %v3801
        %v3870 = vpack.c.b16 %v3810, %v3806
        %v3871 = vpack.c.b16 %v3811, %v3807
        %v3872 = vpack.c.b16 %v3812, %v3808
        %v3873 = vpack.c.b16 %v3813, %v3809
        %v3874 = vpack.c.b16 %v3818, %v3814
        %v3875 = vpack.c.b16 %v3819, %v3815
        %v3876 = vpack.c.b16 %v3820, %v3816
        %v3877 = vpack.c.b16 %v3821, %v3817
        %v3878 = vpack.c.b16 %v3826, %v3822
        %v3879 = vpack.c.b16 %v3827, %v3823
        %v3880 = vpack.c.b16 %v3828, %v3824
        %v3881 = vpack.c.b16 %v3829, %v3825
        %v3882 = vpack.c.b16 %v3834, %v3830
        %v3883 = vpack.c.b16 %v3835, %v3831
        %v3884 = vpack.c.b16 %v3836, %v3832
        %v3885 = vpack.c.b16 %v3837, %v3833
        %3934 = vmatprep.subr.bf16.mxu0 %v3867
        %3935 = vmatpush1.bf16.msra.mxu0 %v3866
        %3936 = vmatprep.subr.bf16.mxu0 %v3863
        %3937 = vmatpush1.bf16.msra.mxu0 %v3862
        %3938 = vmatprep.subr.bf16.mxu0 %v3859
        %3939 = vmatpush1.bf16.msra.mxu0 %v3858
        %3940 = vmatprep.subr.bf16.mxu0 %v3855
        %3941 = vmatpush1.bf16.msra.mxu0 %v3854
        %3942 = vmatprep.subr.bf16.mxu0 %v3851
        %3943 = vmatpush1.bf16.msra.mxu0 %v3850
        %3944 = vmatprep.subr.bf16.mxu0 %v3847
        %3945 = vmatpush1.bf16.msra.mxu0 %v3846
        %3946 = vmatprep.subr.bf16.mxu0 %v3843
        %3947 = vmatpush1.bf16.msra.mxu0 %v3842
        %3948 = vmatprep.subr.bf16.mxu0 %v3839
        %3949 = vmatpush1.bf16.msra.mxu0 %v3838
        %3950 = vmatprep.subr.bf16.mxu0 0
        %3951 = vmatpush2.bf16.msra.mxu0 0
        %3952 = vmatprep.subr.bf16.mxu0 0
        %3953 = vmatpush2.bf16.msra.mxu0 0
        %3954 = vmatprep.subr.bf16.mxu0 0
        %3955 = vmatpush2.bf16.msra.mxu0 0
        %3956 = vmatprep.subr.bf16.mxu0 0
        %3957 = vmatpush2.bf16.msra.mxu0 0
        %3958 = vmatprep.subr.bf16.mxu0 %v3883
        %3959 = vmatpush2.bf16.msra.mxu0 %v3882
        %3960 = vmatprep.subr.bf16.mxu0 %v3879
        %3961 = vmatpush2.bf16.msra.mxu0 %v3878
        %3962 = vmatprep.subr.bf16.mxu0 %v3875
        %3963 = vmatpush2.bf16.msra.mxu0 %v3874
        %3964 = vmatprep.subr.bf16.mxu0 %v3871
        %3965 = vmatpush2.bf16.msra.mxu0 %v3870
        %3966 = vmatprep.mubr.bf16.mxu0 %v3124
        %3967 = vmatmul.mubr.bf16.gmra.mxu0 %v2811
        %v3968 = vpop.f32.mrf.mxu0
        %v3969 = vadd.f32 %v3677, %v3968
        %v3970 = vpop.f32.mrf.mxu0
        %v3971 = vadd.f32 %v3681, %v3970
        %v3972 = vpop.f32.mrf.mxu0
        %v3973 = vadd.f32 %v3677, %v3972
        %v3974 = vpop.f32.mrf.mxu0
        %v3975 = vadd.f32 %v3681, %v3974
        %3976 = vdwg.mxu0
        %3977 = vmatprep.subr.bf16.mxu0 %v3869
        %3978 = vmatpush1.bf16.msra.mxu0 %v3868
        %3979 = vmatprep.subr.bf16.mxu0 %v3865
        %3980 = vmatpush1.bf16.msra.mxu0 %v3864
        %3981 = vmatprep.subr.bf16.mxu0 %v3861
        %3982 = vmatpush1.bf16.msra.mxu0 %v3860
        %3983 = vmatprep.subr.bf16.mxu0 %v3857
        %3984 = vmatpush1.bf16.msra.mxu0 %v3856
        %3985 = vmatprep.subr.bf16.mxu0 %v3853
        %3986 = vmatpush1.bf16.msra.mxu0 %v3852
        %3987 = vmatprep.subr.bf16.mxu0 %v3849
        %3988 = vmatpush1.bf16.msra.mxu0 %v3848
        %3989 = vmatprep.subr.bf16.mxu0 %v3845
        %3990 = vmatpush1.bf16.msra.mxu0 %v3844
        %3991 = vmatprep.subr.bf16.mxu0 %v3841
        %3992 = vmatpush1.bf16.msra.mxu0 %v3840
        %3993 = vmatprep.subr.bf16.mxu0 0
        %3994 = vmatpush2.bf16.msra.mxu0 0
        %3995 = vmatprep.subr.bf16.mxu0 0
        %3996 = vmatpush2.bf16.msra.mxu0 0
        %3997 = vmatprep.subr.bf16.mxu0 0
        %3998 = vmatpush2.bf16.msra.mxu0 0
        %3999 = vmatprep.subr.bf16.mxu0 0
        %4000 = vmatpush2.bf16.msra.mxu0 0
        %4001 = vmatprep.subr.bf16.mxu0 %v3885
        %4002 = vmatpush2.bf16.msra.mxu0 %v3884
        %4003 = vmatprep.subr.bf16.mxu0 %v3881
        %4004 = vmatpush2.bf16.msra.mxu0 %v3880
        %4005 = vmatprep.subr.bf16.mxu0 %v3877
        %4006 = vmatpush2.bf16.msra.mxu0 %v3876
        %4007 = vmatprep.subr.bf16.mxu0 %v3873
        %4008 = vmatpush2.bf16.msra.mxu0 %v3872
        %4009 = vmatprep.mubr.bf16.mxu0 %v3124
        %4010 = vmatmul.mubr.bf16.gmra.mxu0 %v2811
        %v4011 = vpop.f32.mrf.mxu0
        %v4012 = vadd.f32 %v3685, %v4011
        %v4013 = vpop.f32.mrf.mxu0
        %v4014 = vadd.f32 %v3689, %v4013
        %v4015 = vpop.f32.mrf.mxu0
        %v4016 = vadd.f32 %v3685, %v4015
        %v4017 = vpop.f32.mrf.mxu0
        %v4018 = vadd.f32 %v3689, %v4017
        %4019 = vdwg.mxu0
        %4020 = vst [vmem:[#allocation2 + $0x40] sm:$0xff] %v3969
        %4021 = vst [vmem:[#allocation2 + $0x48] sm:$0xff] %v3971
        %4022 = vst [vmem:[#allocation2 + $0x50] sm:$0xff] %v4012
        %4023 = vst [vmem:[#allocation2 + $0x58] sm:$0xff] %v4014
        %4024 = vst [vmem:[#allocation2 + $0xc0] sm:$0xff] %v3973
        %4025 = vst [vmem:[#allocation2 + $0xc8] sm:$0xff] %v3975
        %4026 = vst [vmem:[#allocation2 + $0xd0] sm:$0xff] %v4016
        %4027 = vst [vmem:[#allocation2 + $0xd8] sm:$0xff] %v4018
        %v4028 = vld [vmem:[#allocation8 + $0x30] sm:$0xff]
        %v4029 = vld [vmem:[#allocation8 + $0x38] sm:$0xff]
        %v4030 = vld [vmem:[#allocation8 + $0x70] sm:$0xff]
        %v4031 = vld [vmem:[#allocation8 + $0x78] sm:$0xff]
        %v4032 = vld [vmem:[#allocation8 + $0xb0] sm:$0xff]
        %v4033 = vld [vmem:[#allocation8 + $0xb8] sm:$0xff]
        %v4034 = vld [vmem:[#allocation8 + $0xf0] sm:$0xff]
        %v4035 = vld [vmem:[#allocation8 + $0xf8] sm:$0xff]
        %v4036 = vld [vmem:[#allocation8 + $0x130] sm:$0xff]
        %v4037 = vld [vmem:[#allocation8 + $0x138] sm:$0xff]
        %v4038 = vld [vmem:[#allocation8 + $0x170] sm:$0xff]
        %v4039 = vld [vmem:[#allocation8 + $0x178] sm:$0xff]
        %v4040 = vld [vmem:[#allocation8 + $0x1b0] sm:$0xff]
        %v4041 = vld [vmem:[#allocation8 + $0x1b8] sm:$0xff]
        %v4042 = vld [vmem:[#allocation8 + $0x1f0] sm:$0xff]
        %v4043 = vld [vmem:[#allocation8 + $0x1f8] sm:$0xff]
        %v4044 = vld [vmem:[#allocation8 + $0x230] sm:$0xff]
        %v4045 = vld [vmem:[#allocation8 + $0x238] sm:$0xff]
        %v4046 = vld [vmem:[#allocation8 + $0x270] sm:$0xff]
        %v4047 = vld [vmem:[#allocation8 + $0x278] sm:$0xff]
        %v4048 = vld [vmem:[#allocation8 + $0x2b0] sm:$0xff]
        %v4049 = vld [vmem:[#allocation8 + $0x2b8] sm:$0xff]
        %v4050 = vld [vmem:[#allocation8 + $0x2f0] sm:$0xff]
        %v4051 = vld [vmem:[#allocation8 + $0x2f8] sm:$0xff]
        %v4052 = vld [vmem:[#allocation8 + $0x330] sm:$0xff]
        %v4053 = vld [vmem:[#allocation8 + $0x338] sm:$0xff]
        %v4054 = vld [vmem:[#allocation8 + $0x370] sm:$0xff]
        %v4055 = vld [vmem:[#allocation8 + $0x378] sm:$0xff]
        %v4056 = vld [vmem:[#allocation8 + $0x3b0] sm:$0xff]
        %v4057 = vld [vmem:[#allocation8 + $0x3b8] sm:$0xff]
        %v4058 = vld [vmem:[#allocation8 + $0x3f0] sm:$0xff]
        %v4059 = vld [vmem:[#allocation8 + $0x3f8] sm:$0xff]
        %v4060 = vld [vmem:[#allocation8 + $0x430] sm:$0xff]
        %v4061 = vld [vmem:[#allocation8 + $0x438] sm:$0xff]
        %v4062 = vld [vmem:[#allocation8 + $0x470] sm:$0xff]
        %v4063 = vld [vmem:[#allocation8 + $0x478] sm:$0xff]
        %v4064 = vld [vmem:[#allocation8 + $0x4b0] sm:$0xff]
        %v4065 = vld [vmem:[#allocation8 + $0x4b8] sm:$0xff]
        %v4066 = vld [vmem:[#allocation8 + $0x4f0] sm:$0xff]
        %v4067 = vld [vmem:[#allocation8 + $0x4f8] sm:$0xff]
        %v4068 = vld [vmem:[#allocation8 + $0x530] sm:$0xff]
        %v4069 = vld [vmem:[#allocation8 + $0x538] sm:$0xff]
        %v4070 = vld [vmem:[#allocation8 + $0x570] sm:$0xff]
        %v4071 = vld [vmem:[#allocation8 + $0x578] sm:$0xff]
        %v4072 = vld [vmem:[#allocation8 + $0x5b0] sm:$0xff]
        %v4073 = vld [vmem:[#allocation8 + $0x5b8] sm:$0xff]
        %v4074 = vld [vmem:[#allocation8 + $0x5f0] sm:$0xff]
        %v4075 = vld [vmem:[#allocation8 + $0x5f8] sm:$0xff]
        %v4076 = vld [vmem:[#allocation10 + $0xc] sm:$0xf]
        %v4078 = vlaneseq
        %v4079 = vshrl.u32 %v4078, 7
        %v4080 = vsub.s32 0, %v4079
        %v4081 = vrot.slane %v4076, %v4080
        %v4082 = vlaneseq
        %v4083 = vshrl.u32 %v4082, 7
        %v4084 = vsub.s32 1, %v4083
        %v4085 = vrot.slane %v4076, %v4084
        %v4086 = vlaneseq
        %v4087 = vshrl.u32 %v4086, 7
        %v4088 = vsub.s32 2, %v4087
        %v4089 = vrot.slane %v4076, %v4088
        %v4090 = vlaneseq
        %v4091 = vshrl.u32 %v4090, 7
        %v4092 = vsub.s32 3, %v4091
        %v4093 = vrot.slane %v4076, %v4092
        %v4146 = vunpack.c.l.b16 %v4028
        %v4147 = vunpack.c.h.b16 %v4028
        %v4148 = vunpack.c.l.b16 %v4029
        %v4149 = vunpack.c.h.b16 %v4029
        %v4150 = vunpack.c.l.b16 %v4030
        %v4151 = vunpack.c.h.b16 %v4030
        %v4152 = vunpack.c.l.b16 %v4031
        %v4153 = vunpack.c.h.b16 %v4031
        %v4154 = vunpack.c.l.b16 %v4032
        %v4155 = vunpack.c.h.b16 %v4032
        %v4156 = vunpack.c.l.b16 %v4033
        %v4157 = vunpack.c.h.b16 %v4033
        %v4158 = vunpack.c.l.b16 %v4034
        %v4159 = vunpack.c.h.b16 %v4034
        %v4160 = vunpack.c.l.b16 %v4035
        %v4161 = vunpack.c.h.b16 %v4035
        %v4162 = vunpack.c.l.b16 %v4036
        %v4163 = vunpack.c.h.b16 %v4036
        %v4164 = vunpack.c.l.b16 %v4037
        %v4165 = vunpack.c.h.b16 %v4037
        %v4166 = vunpack.c.l.b16 %v4038
        %v4167 = vunpack.c.h.b16 %v4038
        %v4168 = vunpack.c.l.b16 %v4039
        %v4169 = vunpack.c.h.b16 %v4039
        %v4170 = vunpack.c.l.b16 %v4040
        %v4171 = vunpack.c.h.b16 %v4040
        %v4172 = vunpack.c.l.b16 %v4041
        %v4173 = vunpack.c.h.b16 %v4041
        %v4174 = vunpack.c.l.b16 %v4042
        %v4175 = vunpack.c.h.b16 %v4042
        %v4176 = vunpack.c.l.b16 %v4043
        %v4177 = vunpack.c.h.b16 %v4043
        %v4178 = vunpack.c.l.b16 %v4044
        %v4179 = vunpack.c.h.b16 %v4044
        %v4180 = vunpack.c.l.b16 %v4045
        %v4181 = vunpack.c.h.b16 %v4045
        %v4182 = vunpack.c.l.b16 %v4046
        %v4183 = vunpack.c.h.b16 %v4046
        %v4184 = vunpack.c.l.b16 %v4047
        %v4185 = vunpack.c.h.b16 %v4047
        %v4186 = vunpack.c.l.b16 %v4048
        %v4187 = vunpack.c.h.b16 %v4048
        %v4188 = vunpack.c.l.b16 %v4049
        %v4189 = vunpack.c.h.b16 %v4049
        %v4190 = vunpack.c.l.b16 %v4050
        %v4191 = vunpack.c.h.b16 %v4050
        %v4192 = vunpack.c.l.b16 %v4051
        %v4193 = vunpack.c.h.b16 %v4051
        %v4194 = vunpack.c.l.b16 %v4052
        %v4195 = vunpack.c.h.b16 %v4052
        %v4196 = vunpack.c.l.b16 %v4053
        %v4197 = vunpack.c.h.b16 %v4053
        %v4198 = vunpack.c.l.b16 %v4054
        %v4199 = vunpack.c.h.b16 %v4054
        %v4200 = vunpack.c.l.b16 %v4055
        %v4201 = vunpack.c.h.b16 %v4055
        %v4202 = vunpack.c.l.b16 %v4056
        %v4203 = vunpack.c.h.b16 %v4056
        %v4204 = vunpack.c.l.b16 %v4057
        %v4205 = vunpack.c.h.b16 %v4057
        %v4206 = vunpack.c.l.b16 %v4058
        %v4207 = vunpack.c.h.b16 %v4058
        %v4208 = vunpack.c.l.b16 %v4059
        %v4209 = vunpack.c.h.b16 %v4059
        %v4210 = vunpack.c.l.b16 %v4060
        %v4211 = vunpack.c.h.b16 %v4060
        %v4212 = vunpack.c.l.b16 %v4061
        %v4213 = vunpack.c.h.b16 %v4061
        %v4214 = vunpack.c.l.b16 %v4062
        %v4215 = vunpack.c.h.b16 %v4062
        %v4216 = vunpack.c.l.b16 %v4063
        %v4217 = vunpack.c.h.b16 %v4063
        %v4218 = vunpack.c.l.b16 %v4064
        %v4219 = vunpack.c.h.b16 %v4064
        %v4220 = vunpack.c.l.b16 %v4065
        %v4221 = vunpack.c.h.b16 %v4065
        %v4222 = vunpack.c.l.b16 %v4066
        %v4223 = vunpack.c.h.b16 %v4066
        %v4224 = vunpack.c.l.b16 %v4067
        %v4225 = vunpack.c.h.b16 %v4067
        %v4226 = vunpack.c.l.b16 %v4068
        %v4227 = vunpack.c.h.b16 %v4068
        %v4228 = vunpack.c.l.b16 %v4069
        %v4229 = vunpack.c.h.b16 %v4069
        %v4230 = vunpack.c.l.b16 %v4070
        %v4231 = vunpack.c.h.b16 %v4070
        %v4232 = vunpack.c.l.b16 %v4071
        %v4233 = vunpack.c.h.b16 %v4071
        %v4234 = vunpack.c.l.b16 %v4072
        %v4235 = vunpack.c.h.b16 %v4072
        %v4236 = vunpack.c.l.b16 %v4073
        %v4237 = vunpack.c.h.b16 %v4073
        %v4238 = vunpack.c.l.b16 %v4074
        %v4239 = vunpack.c.h.b16 %v4074
        %v4240 = vunpack.c.l.b16 %v4075
        %v4241 = vunpack.c.h.b16 %v4075
        %v4242 = vpack.c.b16 %v4150, %v4146
        %v4243 = vpack.c.b16 %v4151, %v4147
        %v4244 = vpack.c.b16 %v4152, %v4148
        %v4245 = vpack.c.b16 %v4153, %v4149
        %v4246 = vpack.c.b16 %v4158, %v4154
        %v4247 = vpack.c.b16 %v4159, %v4155
        %v4248 = vpack.c.b16 %v4160, %v4156
        %v4249 = vpack.c.b16 %v4161, %v4157
        %v4250 = vpack.c.b16 %v4166, %v4162
        %v4251 = vpack.c.b16 %v4167, %v4163
        %v4252 = vpack.c.b16 %v4168, %v4164
        %v4253 = vpack.c.b16 %v4169, %v4165
        %v4254 = vpack.c.b16 %v4174, %v4170
        %v4255 = vpack.c.b16 %v4175, %v4171
        %v4256 = vpack.c.b16 %v4176, %v4172
        %v4257 = vpack.c.b16 %v4177, %v4173
        %v4258 = vpack.c.b16 %v4182, %v4178
        %v4259 = vpack.c.b16 %v4183, %v4179
        %v4260 = vpack.c.b16 %v4184, %v4180
        %v4261 = vpack.c.b16 %v4185, %v4181
        %v4262 = vpack.c.b16 %v4190, %v4186
        %v4263 = vpack.c.b16 %v4191, %v4187
        %v4264 = vpack.c.b16 %v4192, %v4188
        %v4265 = vpack.c.b16 %v4193, %v4189
        %v4266 = vpack.c.b16 %v4198, %v4194
        %v4267 = vpack.c.b16 %v4199, %v4195
        %v4268 = vpack.c.b16 %v4200, %v4196
        %v4269 = vpack.c.b16 %v4201, %v4197
        %v4270 = vpack.c.b16 %v4206, %v4202
        %v4271 = vpack.c.b16 %v4207, %v4203
        %v4272 = vpack.c.b16 %v4208, %v4204
        %v4273 = vpack.c.b16 %v4209, %v4205
        %v4274 = vpack.c.b16 %v4214, %v4210
        %v4275 = vpack.c.b16 %v4215, %v4211
        %v4276 = vpack.c.b16 %v4216, %v4212
        %v4277 = vpack.c.b16 %v4217, %v4213
        %v4278 = vpack.c.b16 %v4222, %v4218
        %v4279 = vpack.c.b16 %v4223, %v4219
        %v4280 = vpack.c.b16 %v4224, %v4220
        %v4281 = vpack.c.b16 %v4225, %v4221
        %v4282 = vpack.c.b16 %v4230, %v4226
        %v4283 = vpack.c.b16 %v4231, %v4227
        %v4284 = vpack.c.b16 %v4232, %v4228
        %v4285 = vpack.c.b16 %v4233, %v4229
        %v4286 = vpack.c.b16 %v4238, %v4234
        %v4287 = vpack.c.b16 %v4239, %v4235
        %v4288 = vpack.c.b16 %v4240, %v4236
        %v4289 = vpack.c.b16 %v4241, %v4237
        %4338 = vmatprep.subr.bf16.mxu0 %v4271
        %4339 = vmatpush1.bf16.msra.mxu0 %v4270
        %4340 = vmatprep.subr.bf16.mxu0 %v4267
        %4341 = vmatpush1.bf16.msra.mxu0 %v4266
        %4342 = vmatprep.subr.bf16.mxu0 %v4263
        %4343 = vmatpush1.bf16.msra.mxu0 %v4262
        %4344 = vmatprep.subr.bf16.mxu0 %v4259
        %4345 = vmatpush1.bf16.msra.mxu0 %v4258
        %4346 = vmatprep.subr.bf16.mxu0 %v4255
        %4347 = vmatpush1.bf16.msra.mxu0 %v4254
        %4348 = vmatprep.subr.bf16.mxu0 %v4251
        %4349 = vmatpush1.bf16.msra.mxu0 %v4250
        %4350 = vmatprep.subr.bf16.mxu0 %v4247
        %4351 = vmatpush1.bf16.msra.mxu0 %v4246
        %4352 = vmatprep.subr.bf16.mxu0 %v4243
        %4353 = vmatpush1.bf16.msra.mxu0 %v4242
        %4354 = vmatprep.subr.bf16.mxu0 0
        %4355 = vmatpush2.bf16.msra.mxu0 0
        %4356 = vmatprep.subr.bf16.mxu0 0
        %4357 = vmatpush2.bf16.msra.mxu0 0
        %4358 = vmatprep.subr.bf16.mxu0 0
        %4359 = vmatpush2.bf16.msra.mxu0 0
        %4360 = vmatprep.subr.bf16.mxu0 0
        %4361 = vmatpush2.bf16.msra.mxu0 0
        %4362 = vmatprep.subr.bf16.mxu0 %v4287
        %4363 = vmatpush2.bf16.msra.mxu0 %v4286
        %4364 = vmatprep.subr.bf16.mxu0 %v4283
        %4365 = vmatpush2.bf16.msra.mxu0 %v4282
        %4366 = vmatprep.subr.bf16.mxu0 %v4279
        %4367 = vmatpush2.bf16.msra.mxu0 %v4278
        %4368 = vmatprep.subr.bf16.mxu0 %v4275
        %4369 = vmatpush2.bf16.msra.mxu0 %v4274
        %4370 = vmatprep.mubr.bf16.mxu0 %v3124
        %4371 = vmatmul.mubr.bf16.gmra.mxu0 %v2811
        %v4372 = vpop.f32.mrf.mxu0
        %v4373 = vadd.f32 %v4081, %v4372
        %v4374 = vpop.f32.mrf.mxu0
        %v4375 = vadd.f32 %v4085, %v4374
        %v4376 = vpop.f32.mrf.mxu0
        %v4377 = vadd.f32 %v4081, %v4376
        %v4378 = vpop.f32.mrf.mxu0
        %v4379 = vadd.f32 %v4085, %v4378
        %4380 = vdwg.mxu0
        %4381 = vmatprep.subr.bf16.mxu0 %v4273
        %4382 = vmatpush1.bf16.msra.mxu0 %v4272
        %4383 = vmatprep.subr.bf16.mxu0 %v4269
        %4384 = vmatpush1.bf16.msra.mxu0 %v4268
        %4385 = vmatprep.subr.bf16.mxu0 %v4265
        %4386 = vmatpush1.bf16.msra.mxu0 %v4264
        %4387 = vmatprep.subr.bf16.mxu0 %v4261
        %4388 = vmatpush1.bf16.msra.mxu0 %v4260
        %4389 = vmatprep.subr.bf16.mxu0 %v4257
        %4390 = vmatpush1.bf16.msra.mxu0 %v4256
        %4391 = vmatprep.subr.bf16.mxu0 %v4253
        %4392 = vmatpush1.bf16.msra.mxu0 %v4252
        %4393 = vmatprep.subr.bf16.mxu0 %v4249
        %4394 = vmatpush1.bf16.msra.mxu0 %v4248
        %4395 = vmatprep.subr.bf16.mxu0 %v4245
        %4396 = vmatpush1.bf16.msra.mxu0 %v4244
        %4397 = vmatprep.subr.bf16.mxu0 0
        %4398 = vmatpush2.bf16.msra.mxu0 0
        %4399 = vmatprep.subr.bf16.mxu0 0
        %4400 = vmatpush2.bf16.msra.mxu0 0
        %4401 = vmatprep.subr.bf16.mxu0 0
        %4402 = vmatpush2.bf16.msra.mxu0 0
        %4403 = vmatprep.subr.bf16.mxu0 0
        %4404 = vmatpush2.bf16.msra.mxu0 0
        %4405 = vmatprep.subr.bf16.mxu0 %v4289
        %4406 = vmatpush2.bf16.msra.mxu0 %v4288
        %4407 = vmatprep.subr.bf16.mxu0 %v4285
        %4408 = vmatpush2.bf16.msra.mxu0 %v4284
        %4409 = vmatprep.subr.bf16.mxu0 %v4281
        %4410 = vmatpush2.bf16.msra.mxu0 %v4280
        %4411 = vmatprep.subr.bf16.mxu0 %v4277
        %4412 = vmatpush2.bf16.msra.mxu0 %v4276
        %4413 = vmatprep.mubr.bf16.mxu0 %v3124
        %4414 = vmatmul.mubr.bf16.gmra.mxu0 %v2811
        %v4415 = vpop.f32.mrf.mxu0
        %v4416 = vadd.f32 %v4089, %v4415
        %v4417 = vpop.f32.mrf.mxu0
        %v4418 = vadd.f32 %v4093, %v4417
        %v4419 = vpop.f32.mrf.mxu0
        %v4420 = vadd.f32 %v4089, %v4419
        %v4421 = vpop.f32.mrf.mxu0
        %v4422 = vadd.f32 %v4093, %v4421
        %4423 = vdwg.mxu0
        %4424 = vst [vmem:[#allocation2 + $0x60] sm:$0xff] %v4373
        %4425 = vst [vmem:[#allocation2 + $0x68] sm:$0xff] %v4375
        %4426 = vst [vmem:[#allocation2 + $0x70] sm:$0xff] %v4416
        %4427 = vst [vmem:[#allocation2 + $0x78] sm:$0xff] %v4418
        %4428 = vst [vmem:[#allocation2 + $0xe0] sm:$0xff] %v4377
        %4429 = vst [vmem:[#allocation2 + $0xe8] sm:$0xff] %v4379
        %4430 = vst [vmem:[#allocation2 + $0xf0] sm:$0xff] %v4420
        %4431 = vst [vmem:[#allocation2 + $0xf8] sm:$0xff] %v4422
        %v4432 = vld [vmem:[#allocation11] sm:$0xff]
        %v4433 = vld [vmem:[#allocation11 + $0x8] sm:$0xff]
        %v4434 = vld [vmem:[#allocation11 + $0x10] sm:$0xff]
        %v4435 = vld [vmem:[#allocation11 + $0x18] sm:$0xff]
        %v4436 = vld [vmem:[#allocation11 + $0x20] sm:$0xff]
        %v4437 = vld [vmem:[#allocation11 + $0x28] sm:$0xff]
        %v4438 = vld [vmem:[#allocation11 + $0x30] sm:$0xff]
        %v4439 = vld [vmem:[#allocation11 + $0x38] sm:$0xff]
        %v4448 = vunpack.c.l.b16 %v4432
        %v4449 = vunpack.c.h.b16 %v4432
        %v4450 = vunpack.c.l.b16 %v4433
        %v4451 = vunpack.c.h.b16 %v4433
        %v4452 = vunpack.c.l.b16 %v4434
        %v4453 = vunpack.c.h.b16 %v4434
        %v4454 = vunpack.c.l.b16 %v4435
        %v4455 = vunpack.c.h.b16 %v4435
        %v4456 = vunpack.c.l.b16 %v4436
        %v4457 = vunpack.c.h.b16 %v4436
        %v4458 = vunpack.c.l.b16 %v4437
        %v4459 = vunpack.c.h.b16 %v4437
        %v4460 = vunpack.c.l.b16 %v4438
        %v4461 = vunpack.c.h.b16 %v4438
        %v4462 = vunpack.c.l.b16 %v4439
        %v4463 = vunpack.c.h.b16 %v4439
        %v4464 = vpack.c.b16 %v4450, %v4448
        %v4465 = vpack.c.b16 %v4451, %v4449
        %v4466 = vpack.c.b16 %v4454, %v4452
        %v4467 = vpack.c.b16 %v4455, %v4453
        %v4468 = vpack.c.b16 %v4458, %v4456
        %v4469 = vpack.c.b16 %v4459, %v4457
        %v4470 = vpack.c.b16 %v4462, %v4460
        %v4471 = vpack.c.b16 %v4463, %v4461
        %v4481 = vsel %vm1218, 0, 0
        %4483 = vmatprep.subr.bf16.mxu0 0
        %4484 = vmatpush1.bf16.msra.mxu0 0
        %4485 = vmatprep.subr.bf16.mxu0 0
        %4486 = vmatpush1.bf16.msra.mxu0 0
        %4487 = vmatprep.subr.bf16.mxu0 0
        %4488 = vmatpush1.bf16.msra.mxu0 0
        %4489 = vmatprep.subr.bf16.mxu0 0
        %4490 = vmatpush1.bf16.msra.mxu0 0
        %4491 = vmatprep.subr.bf16.mxu0 %v4471
        %4492 = vmatpush1.bf16.msra.mxu0 %v4470
        %4493 = vmatprep.subr.bf16.mxu0 %v4469
        %4494 = vmatpush1.bf16.msra.mxu0 %v4468
        %4495 = vmatprep.subr.bf16.mxu0 %v4467
        %4496 = vmatpush1.bf16.msra.mxu0 %v4466
        %4497 = vmatprep.subr.bf16.mxu0 %v4465
        %4498 = vmatpush1.bf16.msra.mxu0 %v4464
        %4499 = vmatprep.subr.bf16.mxu0 0
        %4500 = vmatpush2.bf16.msra.mxu0 0
        %4501 = vmatprep.subr.bf16.mxu0 0
        %4502 = vmatpush2.bf16.msra.mxu0 0
        %4503 = vmatprep.subr.bf16.mxu0 0
        %4504 = vmatpush2.bf16.msra.mxu0 0
        %4505 = vmatprep.subr.bf16.mxu0 0
        %4506 = vmatpush2.bf16.msra.mxu0 0
        %4507 = vmatprep.subr.bf16.mxu0 0
        %4508 = vmatpush2.bf16.msra.mxu0 0
        %4509 = vmatprep.subr.bf16.mxu0 0
        %4510 = vmatpush2.bf16.msra.mxu0 0
        %4511 = vmatprep.subr.bf16.mxu0 0
        %4512 = vmatpush2.bf16.msra.mxu0 0
        %4513 = vmatprep.subr.bf16.mxu0 0
        %4514 = vmatpush2.bf16.msra.mxu0 0
        %4515 = vmatprep.mubr.bf16.mxu0 0
        %4516 = vmatmul.mubr.bf16.gmra.mxu0 %v4481
        %v4517 = vpop.f32.mrf.mxu0
        %v4518 = vadd.f32 0.0, %v4517
        %v4519 = vpop.f32.mrf.mxu0
        %v4520 = vadd.f32 0.0, %v4519
        %v4521 = vpop.f32.mrf.mxu0
        %v4522 = vadd.f32 0.0, %v4521
        %v4523 = vpop.f32.mrf.mxu0
        %v4524 = vadd.f32 0.0, %v4523
        %4525 = vdwg.mxu0
        %v4526 = vld [vmem:[#allocation2] sm:$0xff]
        %v4527 = vld [vmem:[#allocation2 + $0x8] sm:$0xff]
        %v4528 = vld [vmem:[#allocation2 + $0x80] sm:$0xff]
        %v4529 = vld [vmem:[#allocation2 + $0x88] sm:$0xff]
        %v4530 = vadd.f32 %v4526, %v4518
        %v4531 = vadd.f32 %v4527, %v4520
        %v4532 = vadd.f32 %v4528, %v4522
        %v4533 = vadd.f32 %v4529, %v4524
        %v4534 = vxor.u32 %v4530, 2147483648
        %v4535 = vxor.u32 %v4531, 2147483648
        %v4536 = vxor.u32 %v4532, 2147483648
        %v4537 = vxor.u32 %v4533, 2147483648
        %v4538 = vmul.f32 %v4534, 1.442695
        %v4539 = vpow.pop %v4538
        %v4540 = vmul.f32 %v4535, 1.442695
        %v4541 = vpow.pop %v4540
        %v4542 = vmul.f32 %v4536, 1.442695
        %v4543 = vpow.pop %v4542
        %v4544 = vmul.f32 %v4537, 1.442695
        %v4545 = vpow.pop %v4544
        %v4546 = vadd.f32 %v4539, 1.0
        %v4547 = vadd.f32 %v4541, 1.0
        %v4548 = vadd.f32 %v4543, 1.0
        %v4549 = vadd.f32 %v4545, 1.0
        %v4550 = vrcp.pop %v4546
        %v4551 = vmul.f32 1.0, %v4550
        %v4552 = vrcp.pop %v4547
        %v4553 = vmul.f32 1.0, %v4552
        %v4554 = vrcp.pop %v4548
        %v4555 = vmul.f32 1.0, %v4554
        %v4556 = vrcp.pop %v4549
        %v4557 = vmul.f32 1.0, %v4556
        %v4558 = vtanh.pop %v4531
        %v4559 = vtanh.pop %v4533
        %v4560 = vmul.f32 %v4551, 0.0
        %v4561 = vmul.f32 %v4555, 0.0
        %4564 = vrot.lane.b32.xlu0 %v4558, 64
        %v4565 = vpop.permute.xlu0 %4564
        %4566 = vrot.lane.b32.xlu0 %v4559, 64
        %v4567 = vpop.permute.xlu0 %4566
        %v4570 = vmul.f32 %v4551, %v4565
        %v4571 = vmul.f32 %v4555, %v4567
        %4574 = vrot.lane.b32.xlu0 %v4570, 64
        %v4575 = vpop.permute.xlu0 %4574
        %4576 = vrot.lane.b32.xlu0 %v4571, 64
        %v4577 = vpop.permute.xlu0 %4576
        %v4580 = vadd.f32 %v4560, %v4575
        %v4581 = vadd.f32 %v4561, %v4577
        %v4582 = vtanh.pop %v4580
        %v4583 = vtanh.pop %v4581
        %4586 = vrot.lane.b32.xlu0 %v4582, 64
        %v4587 = vpop.permute.xlu0 %4586
        %4588 = vrot.lane.b32.xlu0 %v4583, 64
        %v4589 = vpop.permute.xlu0 %4588
        %v4592 = vmul.f32 %v4553, %v4587
        %v4593 = vmul.f32 %v4557, %v4589
        %v4594 = vpack.c.bf16 %v4593, %v4592
        %v4596 = vsel %vm1218, %v4594, 0
        %4598 = vmatprep.subr.bf16.mxu0 0
        %4599 = vmatpush1.bf16.msra.mxu0 0
        %4600 = vmatprep.subr.bf16.mxu0 0
        %4601 = vmatpush1.bf16.msra.mxu0 0
        %4602 = vmatprep.subr.bf16.mxu0 0
        %4603 = vmatpush1.bf16.msra.mxu0 0
        %4604 = vmatprep.subr.bf16.mxu0 0
        %4605 = vmatpush1.bf16.msra.mxu0 0
        %4606 = vmatprep.subr.bf16.mxu0 %v4471
        %4607 = vmatpush1.bf16.msra.mxu0 %v4470
        %4608 = vmatprep.subr.bf16.mxu0 %v4469
        %4609 = vmatpush1.bf16.msra.mxu0 %v4468
        %4610 = vmatprep.subr.bf16.mxu0 %v4467
        %4611 = vmatpush1.bf16.msra.mxu0 %v4466
        %4612 = vmatprep.subr.bf16.mxu0 %v4465
        %4613 = vmatpush1.bf16.msra.mxu0 %v4464
        %4614 = vmatprep.subr.bf16.mxu0 0
        %4615 = vmatpush2.bf16.msra.mxu0 0
        %4616 = vmatprep.subr.bf16.mxu0 0
        %4617 = vmatpush2.bf16.msra.mxu0 0
        %4618 = vmatprep.subr.bf16.mxu0 0
        %4619 = vmatpush2.bf16.msra.mxu0 0
        %4620 = vmatprep.subr.bf16.mxu0 0
        %4621 = vmatpush2.bf16.msra.mxu0 0
        %4622 = vmatprep.subr.bf16.mxu0 0
        %4623 = vmatpush2.bf16.msra.mxu0 0
        %4624 = vmatprep.subr.bf16.mxu0 0
        %4625 = vmatpush2.bf16.msra.mxu0 0
        %4626 = vmatprep.subr.bf16.mxu0 0
        %4627 = vmatpush2.bf16.msra.mxu0 0
        %4628 = vmatprep.subr.bf16.mxu0 0
        %4629 = vmatpush2.bf16.msra.mxu0 0
        %4630 = vmatprep.mubr.bf16.mxu0 0
        %4631 = vmatmul.mubr.bf16.gmra.mxu0 %v4596
        %v4632 = vpop.f32.mrf.mxu0
        %v4633 = vadd.f32 0.0, %v4632
        %v4634 = vpop.f32.mrf.mxu0
        %v4635 = vadd.f32 0.0, %v4634
        %v4636 = vpop.f32.mrf.mxu0
        %v4637 = vadd.f32 0.0, %v4636
        %v4638 = vpop.f32.mrf.mxu0
        %v4639 = vadd.f32 0.0, %v4638
        %4640 = vdwg.mxu0
        %v4641 = vld [vmem:[#allocation2 + $0x10] sm:$0xff]
        %v4642 = vld [vmem:[#allocation2 + $0x18] sm:$0xff]
        %v4643 = vld [vmem:[#allocation2 + $0x90] sm:$0xff]
        %v4644 = vld [vmem:[#allocation2 + $0x98] sm:$0xff]
        %v4645 = vadd.f32 %v4641, %v4633
        %v4646 = vadd.f32 %v4642, %v4635
        %v4647 = vadd.f32 %v4643, %v4637
        %v4648 = vadd.f32 %v4644, %v4639
        %v4649 = vxor.u32 %v4645, 2147483648
        %v4650 = vxor.u32 %v4646, 2147483648
        %v4651 = vxor.u32 %v4647, 2147483648
        %v4652 = vxor.u32 %v4648, 2147483648
        %v4653 = vmul.f32 %v4649, 1.442695
        %v4654 = vpow.pop %v4653
        %v4655 = vmul.f32 %v4650, 1.442695
        %v4656 = vpow.pop %v4655
        %v4657 = vmul.f32 %v4651, 1.442695
        %v4658 = vpow.pop %v4657
        %v4659 = vmul.f32 %v4652, 1.442695
        %v4660 = vpow.pop %v4659
        %v4661 = vadd.f32 %v4654, 1.0
        %v4662 = vadd.f32 %v4656, 1.0
        %v4663 = vadd.f32 %v4658, 1.0
        %v4664 = vadd.f32 %v4660, 1.0
        %v4665 = vrcp.pop %v4661
        %v4666 = vmul.f32 1.0, %v4665
        %v4667 = vrcp.pop %v4662
        %v4668 = vmul.f32 1.0, %v4667
        %v4669 = vrcp.pop %v4663
        %v4670 = vmul.f32 1.0, %v4669
        %v4671 = vrcp.pop %v4664
        %v4672 = vmul.f32 1.0, %v4671
        %v4673 = vtanh.pop %v4646
        %v4674 = vtanh.pop %v4648
        %v4675 = vmul.f32 %v4666, %v4580
        %v4676 = vmul.f32 %v4670, %v4581
        %4679 = vrot.lane.b32.xlu0 %v4673, 64
        %v4680 = vpop.permute.xlu0 %4679
        %4681 = vrot.lane.b32.xlu0 %v4674, 64
        %v4682 = vpop.permute.xlu0 %4681
        %v4685 = vmul.f32 %v4666, %v4680
        %v4686 = vmul.f32 %v4670, %v4682
        %4689 = vrot.lane.b32.xlu0 %v4685, 64
        %v4690 = vpop.permute.xlu0 %4689
        %4691 = vrot.lane.b32.xlu0 %v4686, 64
        %v4692 = vpop.permute.xlu0 %4691
        %v4695 = vadd.f32 %v4675, %v4690
        %v4696 = vadd.f32 %v4676, %v4692
        %v4697 = vtanh.pop %v4695
        %v4698 = vtanh.pop %v4696
        %4701 = vrot.lane.b32.xlu0 %v4697, 64
        %v4702 = vpop.permute.xlu0 %4701
        %4703 = vrot.lane.b32.xlu0 %v4698, 64
        %v4704 = vpop.permute.xlu0 %4703
        %v4707 = vmul.f32 %v4668, %v4702
        %v4708 = vmul.f32 %v4672, %v4704
        %v4709 = vpack.c.bf16 %v4708, %v4707
        %v4711 = vsel %vm1218, %v4709, 0
        %4713 = vmatprep.subr.bf16.mxu0 0
        %4714 = vmatpush1.bf16.msra.mxu0 0
        %4715 = vmatprep.subr.bf16.mxu0 0
        %4716 = vmatpush1.bf16.msra.mxu0 0
        %4717 = vmatprep.subr.bf16.mxu0 0
        %4718 = vmatpush1.bf16.msra.mxu0 0
        %4719 = vmatprep.subr.bf16.mxu0 0
        %4720 = vmatpush1.bf16.msra.mxu0 0
        %4721 = vmatprep.subr.bf16.mxu0 %v4471
        %4722 = vmatpush1.bf16.msra.mxu0 %v4470
        %4723 = vmatprep.subr.bf16.mxu0 %v4469
        %4724 = vmatpush1.bf16.msra.mxu0 %v4468
        %4725 = vmatprep.subr.bf16.mxu0 %v4467
        %4726 = vmatpush1.bf16.msra.mxu0 %v4466
        %4727 = vmatprep.subr.bf16.mxu0 %v4465
        %4728 = vmatpush1.bf16.msra.mxu0 %v4464
        %4729 = vmatprep.subr.bf16.mxu0 0
        %4730 = vmatpush2.bf16.msra.mxu0 0
        %4731 = vmatprep.subr.bf16.mxu0 0
        %4732 = vmatpush2.bf16.msra.mxu0 0
        %4733 = vmatprep.subr.bf16.mxu0 0
        %4734 = vmatpush2.bf16.msra.mxu0 0
        %4735 = vmatprep.subr.bf16.mxu0 0
        %4736 = vmatpush2.bf16.msra.mxu0 0
        %4737 = vmatprep.subr.bf16.mxu0 0
        %4738 = vmatpush2.bf16.msra.mxu0 0
        %4739 = vmatprep.subr.bf16.mxu0 0
        %4740 = vmatpush2.bf16.msra.mxu0 0
        %4741 = vmatprep.subr.bf16.mxu0 0
        %4742 = vmatpush2.bf16.msra.mxu0 0
        %4743 = vmatprep.subr.bf16.mxu0 0
        %4744 = vmatpush2.bf16.msra.mxu0 0
        %4745 = vmatprep.mubr.bf16.mxu0 0
        %4746 = vmatmul.mubr.bf16.gmra.mxu0 %v4711
        %v4747 = vpop.f32.mrf.mxu0
        %v4748 = vadd.f32 0.0, %v4747
        %v4749 = vpop.f32.mrf.mxu0
        %v4750 = vadd.f32 0.0, %v4749
        %v4751 = vpop.f32.mrf.mxu0
        %v4752 = vadd.f32 0.0, %v4751
        %v4753 = vpop.f32.mrf.mxu0
        %v4754 = vadd.f32 0.0, %v4753
        %4755 = vdwg.mxu0
        %v4756 = vld [vmem:[#allocation2 + $0x20] sm:$0xff]
        %v4757 = vld [vmem:[#allocation2 + $0x28] sm:$0xff]
        %v4758 = vld [vmem:[#allocation2 + $0xa0] sm:$0xff]
        %v4759 = vld [vmem:[#allocation2 + $0xa8] sm:$0xff]
        %v4760 = vadd.f32 %v4756, %v4748
        %v4761 = vadd.f32 %v4757, %v4750
        %v4762 = vadd.f32 %v4758, %v4752
        %v4763 = vadd.f32 %v4759, %v4754
        %v4764 = vxor.u32 %v4760, 2147483648
        %v4765 = vxor.u32 %v4761, 2147483648
        %v4766 = vxor.u32 %v4762, 2147483648
        %v4767 = vxor.u32 %v4763, 2147483648
        %v4768 = vmul.f32 %v4764, 1.442695
        %v4769 = vpow.pop %v4768
        %v4770 = vmul.f32 %v4765, 1.442695
        %v4771 = vpow.pop %v4770
        %v4772 = vmul.f32 %v4766, 1.442695
        %v4773 = vpow.pop %v4772
        %v4774 = vmul.f32 %v4767, 1.442695
        %v4775 = vpow.pop %v4774
        %v4776 = vadd.f32 %v4769, 1.0
        %v4777 = vadd.f32 %v4771, 1.0
        %v4778 = vadd.f32 %v4773, 1.0
        %v4779 = vadd.f32 %v4775, 1.0
        %v4780 = vrcp.pop %v4776
        %v4781 = vmul.f32 1.0, %v4780
        %v4782 = vrcp.pop %v4777
        %v4783 = vmul.f32 1.0, %v4782
        %v4784 = vrcp.pop %v4778
        %v4785 = vmul.f32 1.0, %v4784
        %v4786 = vrcp.pop %v4779
        %v4787 = vmul.f32 1.0, %v4786
        %v4788 = vtanh.pop %v4761
        %v4789 = vtanh.pop %v4763
        %v4790 = vmul.f32 %v4781, %v4695
        %v4791 = vmul.f32 %v4785, %v4696
        %4794 = vrot.lane.b32.xlu0 %v4788, 64
        %v4795 = vpop.permute.xlu0 %4794
        %4796 = vrot.lane.b32.xlu0 %v4789, 64
        %v4797 = vpop.permute.xlu0 %4796
        %v4800 = vmul.f32 %v4781, %v4795
        %v4801 = vmul.f32 %v4785, %v4797
        %4804 = vrot.lane.b32.xlu0 %v4800, 64
        %v4805 = vpop.permute.xlu0 %4804
        %4806 = vrot.lane.b32.xlu0 %v4801, 64
        %v4807 = vpop.permute.xlu0 %4806
        %v4810 = vadd.f32 %v4790, %v4805
        %v4811 = vadd.f32 %v4791, %v4807
        %v4812 = vtanh.pop %v4810
        %v4813 = vtanh.pop %v4811
        %4816 = vrot.lane.b32.xlu0 %v4812, 64
        %v4817 = vpop.permute.xlu0 %4816
        %4818 = vrot.lane.b32.xlu0 %v4813, 64
        %v4819 = vpop.permute.xlu0 %4818
        %v4822 = vmul.f32 %v4783, %v4817
        %v4823 = vmul.f32 %v4787, %v4819
        %v4824 = vpack.c.bf16 %v4823, %v4822
        %v4826 = vsel %vm1218, %v4824, 0
        %4828 = vmatprep.subr.bf16.mxu0 0
        %4829 = vmatpush1.bf16.msra.mxu0 0
        %4830 = vmatprep.subr.bf16.mxu0 0
        %4831 = vmatpush1.bf16.msra.mxu0 0
        %4832 = vmatprep.subr.bf16.mxu0 0
        %4833 = vmatpush1.bf16.msra.mxu0 0
        %4834 = vmatprep.subr.bf16.mxu0 0
        %4835 = vmatpush1.bf16.msra.mxu0 0
        %4836 = vmatprep.subr.bf16.mxu0 %v4471
        %4837 = vmatpush1.bf16.msra.mxu0 %v4470
        %4838 = vmatprep.subr.bf16.mxu0 %v4469
        %4839 = vmatpush1.bf16.msra.mxu0 %v4468
        %4840 = vmatprep.subr.bf16.mxu0 %v4467
        %4841 = vmatpush1.bf16.msra.mxu0 %v4466
        %4842 = vmatprep.subr.bf16.mxu0 %v4465
        %4843 = vmatpush1.bf16.msra.mxu0 %v4464
        %4844 = vmatprep.subr.bf16.mxu0 0
        %4845 = vmatpush2.bf16.msra.mxu0 0
        %4846 = vmatprep.subr.bf16.mxu0 0
        %4847 = vmatpush2.bf16.msra.mxu0 0
        %4848 = vmatprep.subr.bf16.mxu0 0
        %4849 = vmatpush2.bf16.msra.mxu0 0
        %4850 = vmatprep.subr.bf16.mxu0 0
        %4851 = vmatpush2.bf16.msra.mxu0 0
        %4852 = vmatprep.subr.bf16.mxu0 0
        %4853 = vmatpush2.bf16.msra.mxu0 0
        %4854 = vmatprep.subr.bf16.mxu0 0
        %4855 = vmatpush2.bf16.msra.mxu0 0
        %4856 = vmatprep.subr.bf16.mxu0 0
        %4857 = vmatpush2.bf16.msra.mxu0 0
        %4858 = vmatprep.subr.bf16.mxu0 0
        %4859 = vmatpush2.bf16.msra.mxu0 0
        %4860 = vmatprep.mubr.bf16.mxu0 0
        %4861 = vmatmul.mubr.bf16.gmra.mxu0 %v4826
        %v4862 = vpop.f32.mrf.mxu0
        %v4863 = vadd.f32 0.0, %v4862
        %v4864 = vpop.f32.mrf.mxu0
        %v4865 = vadd.f32 0.0, %v4864
        %v4866 = vpop.f32.mrf.mxu0
        %v4867 = vadd.f32 0.0, %v4866
        %v4868 = vpop.f32.mrf.mxu0
        %v4869 = vadd.f32 0.0, %v4868
        %4870 = vdwg.mxu0
        %v4871 = vld [vmem:[#allocation2 + $0x30] sm:$0xff]
        %v4872 = vld [vmem:[#allocation2 + $0x38] sm:$0xff]
        %v4873 = vld [vmem:[#allocation2 + $0xb0] sm:$0xff]
        %v4874 = vld [vmem:[#allocation2 + $0xb8] sm:$0xff]
        %v4875 = vadd.f32 %v4871, %v4863
        %v4876 = vadd.f32 %v4872, %v4865
        %v4877 = vadd.f32 %v4873, %v4867
        %v4878 = vadd.f32 %v4874, %v4869
        %v4879 = vxor.u32 %v4875, 2147483648
        %v4880 = vxor.u32 %v4876, 2147483648
        %v4881 = vxor.u32 %v4877, 2147483648
        %v4882 = vxor.u32 %v4878, 2147483648
        %v4883 = vmul.f32 %v4879, 1.442695
        %v4884 = vpow.pop %v4883
        %v4885 = vmul.f32 %v4880, 1.442695
        %v4886 = vpow.pop %v4885
        %v4887 = vmul.f32 %v4881, 1.442695
        %v4888 = vpow.pop %v4887
        %v4889 = vmul.f32 %v4882, 1.442695
        %v4890 = vpow.pop %v4889
        %v4891 = vadd.f32 %v4884, 1.0
        %v4892 = vadd.f32 %v4886, 1.0
        %v4893 = vadd.f32 %v4888, 1.0
        %v4894 = vadd.f32 %v4890, 1.0
        %v4895 = vrcp.pop %v4891
        %v4896 = vmul.f32 1.0, %v4895
        %v4897 = vrcp.pop %v4892
        %v4898 = vmul.f32 1.0, %v4897
        %v4899 = vrcp.pop %v4893
        %v4900 = vmul.f32 1.0, %v4899
        %v4901 = vrcp.pop %v4894
        %v4902 = vmul.f32 1.0, %v4901
        %v4903 = vtanh.pop %v4876
        %v4904 = vtanh.pop %v4878
        %v4905 = vmul.f32 %v4896, %v4810
        %v4906 = vmul.f32 %v4900, %v4811
        %4909 = vrot.lane.b32.xlu0 %v4903, 64
        %v4910 = vpop.permute.xlu0 %4909
        %4911 = vrot.lane.b32.xlu0 %v4904, 64
        %v4912 = vpop.permute.xlu0 %4911
        %v4915 = vmul.f32 %v4896, %v4910
        %v4916 = vmul.f32 %v4900, %v4912
        %4919 = vrot.lane.b32.xlu0 %v4915, 64
        %v4920 = vpop.permute.xlu0 %4919
        %4921 = vrot.lane.b32.xlu0 %v4916, 64
        %v4922 = vpop.permute.xlu0 %4921
        %v4925 = vadd.f32 %v4905, %v4920
        %v4926 = vadd.f32 %v4906, %v4922
        %v4927 = vtanh.pop %v4925
        %v4928 = vtanh.pop %v4926
        %4931 = vrot.lane.b32.xlu0 %v4927, 64
        %v4932 = vpop.permute.xlu0 %4931
        %4933 = vrot.lane.b32.xlu0 %v4928, 64
        %v4934 = vpop.permute.xlu0 %4933
        %v4937 = vmul.f32 %v4898, %v4932
        %v4938 = vmul.f32 %v4902, %v4934
        %v4939 = vpack.c.bf16 %v4938, %v4937
        %v4941 = vsel %vm1218, %v4939, 0
        %4943 = vmatprep.subr.bf16.mxu0 0
        %4944 = vmatpush1.bf16.msra.mxu0 0
        %4945 = vmatprep.subr.bf16.mxu0 0
        %4946 = vmatpush1.bf16.msra.mxu0 0
        %4947 = vmatprep.subr.bf16.mxu0 0
        %4948 = vmatpush1.bf16.msra.mxu0 0
        %4949 = vmatprep.subr.bf16.mxu0 0
        %4950 = vmatpush1.bf16.msra.mxu0 0
        %4951 = vmatprep.subr.bf16.mxu0 %v4471
        %4952 = vmatpush1.bf16.msra.mxu0 %v4470
        %4953 = vmatprep.subr.bf16.mxu0 %v4469
        %4954 = vmatpush1.bf16.msra.mxu0 %v4468
        %4955 = vmatprep.subr.bf16.mxu0 %v4467
        %4956 = vmatpush1.bf16.msra.mxu0 %v4466
        %4957 = vmatprep.subr.bf16.mxu0 %v4465
        %4958 = vmatpush1.bf16.msra.mxu0 %v4464
        %4959 = vmatprep.subr.bf16.mxu0 0
        %4960 = vmatpush2.bf16.msra.mxu0 0
        %4961 = vmatprep.subr.bf16.mxu0 0
        %4962 = vmatpush2.bf16.msra.mxu0 0
        %4963 = vmatprep.subr.bf16.mxu0 0
        %4964 = vmatpush2.bf16.msra.mxu0 0
        %4965 = vmatprep.subr.bf16.mxu0 0
        %4966 = vmatpush2.bf16.msra.mxu0 0
        %4967 = vmatprep.subr.bf16.mxu0 0
        %4968 = vmatpush2.bf16.msra.mxu0 0
        %4969 = vmatprep.subr.bf16.mxu0 0
        %4970 = vmatpush2.bf16.msra.mxu0 0
        %4971 = vmatprep.subr.bf16.mxu0 0
        %4972 = vmatpush2.bf16.msra.mxu0 0
        %4973 = vmatprep.subr.bf16.mxu0 0
        %4974 = vmatpush2.bf16.msra.mxu0 0
        %4975 = vmatprep.mubr.bf16.mxu0 0
        %4976 = vmatmul.mubr.bf16.gmra.mxu0 %v4941
        %v4977 = vpop.f32.mrf.mxu0
        %v4978 = vadd.f32 0.0, %v4977
        %v4979 = vpop.f32.mrf.mxu0
        %v4980 = vadd.f32 0.0, %v4979
        %v4981 = vpop.f32.mrf.mxu0
        %v4982 = vadd.f32 0.0, %v4981
        %v4983 = vpop.f32.mrf.mxu0
        %v4984 = vadd.f32 0.0, %v4983
        %4985 = vdwg.mxu0
        %v4986 = vld [vmem:[#allocation2 + $0x40] sm:$0xff]
        %v4987 = vld [vmem:[#allocation2 + $0x48] sm:$0xff]
        %v4988 = vld [vmem:[#allocation2 + $0xc0] sm:$0xff]
        %v4989 = vld [vmem:[#allocation2 + $0xc8] sm:$0xff]
        %v4990 = vadd.f32 %v4986, %v4978
        %v4991 = vadd.f32 %v4987, %v4980
        %v4992 = vadd.f32 %v4988, %v4982
        %v4993 = vadd.f32 %v4989, %v4984
        %v4994 = vxor.u32 %v4990, 2147483648
        %v4995 = vxor.u32 %v4991, 2147483648
        %v4996 = vxor.u32 %v4992, 2147483648
        %v4997 = vxor.u32 %v4993, 2147483648
        %v4998 = vmul.f32 %v4994, 1.442695
        %v4999 = vpow.pop %v4998
        %v5000 = vmul.f32 %v4995, 1.442695
        %v5001 = vpow.pop %v5000
        %v5002 = vmul.f32 %v4996, 1.442695
        %v5003 = vpow.pop %v5002
        %v5004 = vmul.f32 %v4997, 1.442695
        %v5005 = vpow.pop %v5004
        %v5006 = vadd.f32 %v4999, 1.0
        %v5007 = vadd.f32 %v5001, 1.0
        %v5008 = vadd.f32 %v5003, 1.0
        %v5009 = vadd.f32 %v5005, 1.0
        %v5010 = vrcp.pop %v5006
        %v5011 = vmul.f32 1.0, %v5010
        %v5012 = vrcp.pop %v5007
        %v5013 = vmul.f32 1.0, %v5012
        %v5014 = vrcp.pop %v5008
        %v5015 = vmul.f32 1.0, %v5014
        %v5016 = vrcp.pop %v5009
        %v5017 = vmul.f32 1.0, %v5016
        %v5018 = vtanh.pop %v4991
        %v5019 = vtanh.pop %v4993
        %v5020 = vmul.f32 %v5011, %v4925
        %v5021 = vmul.f32 %v5015, %v4926
        %5024 = vrot.lane.b32.xlu0 %v5018, 64
        %v5025 = vpop.permute.xlu0 %5024
        %5026 = vrot.lane.b32.xlu0 %v5019, 64
        %v5027 = vpop.permute.xlu0 %5026
        %v5030 = vmul.f32 %v5011, %v5025
        %v5031 = vmul.f32 %v5015, %v5027
        %5034 = vrot.lane.b32.xlu0 %v5030, 64
        %v5035 = vpop.permute.xlu0 %5034
        %5036 = vrot.lane.b32.xlu0 %v5031, 64
        %v5037 = vpop.permute.xlu0 %5036
        %v5040 = vadd.f32 %v5020, %v5035
        %v5041 = vadd.f32 %v5021, %v5037
        %v5042 = vtanh.pop %v5040
        %v5043 = vtanh.pop %v5041
        %5046 = vrot.lane.b32.xlu0 %v5042, 64
        %v5047 = vpop.permute.xlu0 %5046
        %5048 = vrot.lane.b32.xlu0 %v5043, 64
        %v5049 = vpop.permute.xlu0 %5048
        %v5052 = vmul.f32 %v5013, %v5047
        %v5053 = vmul.f32 %v5017, %v5049
        %v5054 = vpack.c.bf16 %v5053, %v5052
        %v5056 = vsel %vm1218, %v5054, 0
        %5058 = vmatprep.subr.bf16.mxu0 0
        %5059 = vmatpush1.bf16.msra.mxu0 0
        %5060 = vmatprep.subr.bf16.mxu0 0
        %5061 = vmatpush1.bf16.msra.mxu0 0
        %5062 = vmatprep.subr.bf16.mxu0 0
        %5063 = vmatpush1.bf16.msra.mxu0 0
        %5064 = vmatprep.subr.bf16.mxu0 0
        %5065 = vmatpush1.bf16.msra.mxu0 0
        %5066 = vmatprep.subr.bf16.mxu0 %v4471
        %5067 = vmatpush1.bf16.msra.mxu0 %v4470
        %5068 = vmatprep.subr.bf16.mxu0 %v4469
        %5069 = vmatpush1.bf16.msra.mxu0 %v4468
        %5070 = vmatprep.subr.bf16.mxu0 %v4467
        %5071 = vmatpush1.bf16.msra.mxu0 %v4466
        %5072 = vmatprep.subr.bf16.mxu0 %v4465
        %5073 = vmatpush1.bf16.msra.mxu0 %v4464
        %5074 = vmatprep.subr.bf16.mxu0 0
        %5075 = vmatpush2.bf16.msra.mxu0 0
        %5076 = vmatprep.subr.bf16.mxu0 0
        %5077 = vmatpush2.bf16.msra.mxu0 0
        %5078 = vmatprep.subr.bf16.mxu0 0
        %5079 = vmatpush2.bf16.msra.mxu0 0
        %5080 = vmatprep.subr.bf16.mxu0 0
        %5081 = vmatpush2.bf16.msra.mxu0 0
        %5082 = vmatprep.subr.bf16.mxu0 0
        %5083 = vmatpush2.bf16.msra.mxu0 0
        %5084 = vmatprep.subr.bf16.mxu0 0
        %5085 = vmatpush2.bf16.msra.mxu0 0
        %5086 = vmatprep.subr.bf16.mxu0 0
        %5087 = vmatpush2.bf16.msra.mxu0 0
        %5088 = vmatprep.subr.bf16.mxu0 0
        %5089 = vmatpush2.bf16.msra.mxu0 0
        %5090 = vmatprep.mubr.bf16.mxu0 0
        %5091 = vmatmul.mubr.bf16.gmra.mxu0 %v5056
        %v5092 = vpop.f32.mrf.mxu0
        %v5093 = vadd.f32 0.0, %v5092
        %v5094 = vpop.f32.mrf.mxu0
        %v5095 = vadd.f32 0.0, %v5094
        %v5096 = vpop.f32.mrf.mxu0
        %v5097 = vadd.f32 0.0, %v5096
        %v5098 = vpop.f32.mrf.mxu0
        %v5099 = vadd.f32 0.0, %v5098
        %5100 = vdwg.mxu0
        %v5101 = vld [vmem:[#allocation2 + $0x50] sm:$0xff]
        %v5102 = vld [vmem:[#allocation2 + $0x58] sm:$0xff]
        %v5103 = vld [vmem:[#allocation2 + $0xd0] sm:$0xff]
        %v5104 = vld [vmem:[#allocation2 + $0xd8] sm:$0xff]
        %v5105 = vadd.f32 %v5101, %v5093
        %v5106 = vadd.f32 %v5102, %v5095
        %v5107 = vadd.f32 %v5103, %v5097
        %v5108 = vadd.f32 %v5104, %v5099
        %v5109 = vxor.u32 %v5105, 2147483648
        %v5110 = vxor.u32 %v5106, 2147483648
        %v5111 = vxor.u32 %v5107, 2147483648
        %v5112 = vxor.u32 %v5108, 2147483648
        %v5113 = vmul.f32 %v5109, 1.442695
        %v5114 = vpow.pop %v5113
        %v5115 = vmul.f32 %v5110, 1.442695
        %v5116 = vpow.pop %v5115
        %v5117 = vmul.f32 %v5111, 1.442695
        %v5118 = vpow.pop %v5117
        %v5119 = vmul.f32 %v5112, 1.442695
        %v5120 = vpow.pop %v5119
        %v5121 = vadd.f32 %v5114, 1.0
        %v5122 = vadd.f32 %v5116, 1.0
        %v5123 = vadd.f32 %v5118, 1.0
        %v5124 = vadd.f32 %v5120, 1.0
        %v5125 = vrcp.pop %v5121
        %v5126 = vmul.f32 1.0, %v5125
        %v5127 = vrcp.pop %v5122
        %v5128 = vmul.f32 1.0, %v5127
        %v5129 = vrcp.pop %v5123
        %v5130 = vmul.f32 1.0, %v5129
        %v5131 = vrcp.pop %v5124
        %v5132 = vmul.f32 1.0, %v5131
        %v5133 = vtanh.pop %v5106
        %v5134 = vtanh.pop %v5108
        %v5135 = vmul.f32 %v5126, %v5040
        %v5136 = vmul.f32 %v5130, %v5041
        %5139 = vrot.lane.b32.xlu0 %v5133, 64
        %v5140 = vpop.permute.xlu0 %5139
        %5141 = vrot.lane.b32.xlu0 %v5134, 64
        %v5142 = vpop.permute.xlu0 %5141
        %v5145 = vmul.f32 %v5126, %v5140
        %v5146 = vmul.f32 %v5130, %v5142
        %5149 = vrot.lane.b32.xlu0 %v5145, 64
        %v5150 = vpop.permute.xlu0 %5149
        %5151 = vrot.lane.b32.xlu0 %v5146, 64
        %v5152 = vpop.permute.xlu0 %5151
        %v5155 = vadd.f32 %v5135, %v5150
        %v5156 = vadd.f32 %v5136, %v5152
        %v5157 = vtanh.pop %v5155
        %v5158 = vtanh.pop %v5156
        %5161 = vrot.lane.b32.xlu0 %v5157, 64
        %v5162 = vpop.permute.xlu0 %5161
        %5163 = vrot.lane.b32.xlu0 %v5158, 64
        %v5164 = vpop.permute.xlu0 %5163
        %v5167 = vmul.f32 %v5128, %v5162
        %v5168 = vmul.f32 %v5132, %v5164
        %v5169 = vpack.c.bf16 %v5168, %v5167
        %v5171 = vsel %vm1218, %v5169, 0
        %5173 = vmatprep.subr.bf16.mxu0 0
        %5174 = vmatpush1.bf16.msra.mxu0 0
        %5175 = vmatprep.subr.bf16.mxu0 0
        %5176 = vmatpush1.bf16.msra.mxu0 0
        %5177 = vmatprep.subr.bf16.mxu0 0
        %5178 = vmatpush1.bf16.msra.mxu0 0
        %5179 = vmatprep.subr.bf16.mxu0 0
        %5180 = vmatpush1.bf16.msra.mxu0 0
        %5181 = vmatprep.subr.bf16.mxu0 %v4471
        %5182 = vmatpush1.bf16.msra.mxu0 %v4470
        %5183 = vmatprep.subr.bf16.mxu0 %v4469
        %5184 = vmatpush1.bf16.msra.mxu0 %v4468
        %5185 = vmatprep.subr.bf16.mxu0 %v4467
        %5186 = vmatpush1.bf16.msra.mxu0 %v4466
        %5187 = vmatprep.subr.bf16.mxu0 %v4465
        %5188 = vmatpush1.bf16.msra.mxu0 %v4464
        %5189 = vmatprep.subr.bf16.mxu0 0
        %5190 = vmatpush2.bf16.msra.mxu0 0
        %5191 = vmatprep.subr.bf16.mxu0 0
        %5192 = vmatpush2.bf16.msra.mxu0 0
        %5193 = vmatprep.subr.bf16.mxu0 0
        %5194 = vmatpush2.bf16.msra.mxu0 0
        %5195 = vmatprep.subr.bf16.mxu0 0
        %5196 = vmatpush2.bf16.msra.mxu0 0
        %5197 = vmatprep.subr.bf16.mxu0 0
        %5198 = vmatpush2.bf16.msra.mxu0 0
        %5199 = vmatprep.subr.bf16.mxu0 0
        %5200 = vmatpush2.bf16.msra.mxu0 0
        %5201 = vmatprep.subr.bf16.mxu0 0
        %5202 = vmatpush2.bf16.msra.mxu0 0
        %5203 = vmatprep.subr.bf16.mxu0 0
        %5204 = vmatpush2.bf16.msra.mxu0 0
        %5205 = vmatprep.mubr.bf16.mxu0 0
        %5206 = vmatmul.mubr.bf16.gmra.mxu0 %v5171
        %v5207 = vpop.f32.mrf.mxu0
        %v5208 = vadd.f32 0.0, %v5207
        %v5209 = vpop.f32.mrf.mxu0
        %v5210 = vadd.f32 0.0, %v5209
        %v5211 = vpop.f32.mrf.mxu0
        %v5212 = vadd.f32 0.0, %v5211
        %v5213 = vpop.f32.mrf.mxu0
        %v5214 = vadd.f32 0.0, %v5213
        %5215 = vdwg.mxu0
        %v5216 = vld [vmem:[#allocation2 + $0x60] sm:$0xff]
        %v5217 = vld [vmem:[#allocation2 + $0x68] sm:$0xff]
        %v5218 = vld [vmem:[#allocation2 + $0xe0] sm:$0xff]
        %v5219 = vld [vmem:[#allocation2 + $0xe8] sm:$0xff]
        %v5220 = vadd.f32 %v5216, %v5208
        %v5221 = vadd.f32 %v5217, %v5210
        %v5222 = vadd.f32 %v5218, %v5212
        %v5223 = vadd.f32 %v5219, %v5214
        %v5224 = vxor.u32 %v5220, 2147483648
        %v5225 = vxor.u32 %v5221, 2147483648
        %v5226 = vxor.u32 %v5222, 2147483648
        %v5227 = vxor.u32 %v5223, 2147483648
        %v5228 = vmul.f32 %v5224, 1.442695
        %v5229 = vpow.pop %v5228
        %v5230 = vmul.f32 %v5225, 1.442695
        %v5231 = vpow.pop %v5230
        %v5232 = vmul.f32 %v5226, 1.442695
        %v5233 = vpow.pop %v5232
        %v5234 = vmul.f32 %v5227, 1.442695
        %v5235 = vpow.pop %v5234
        %v5236 = vadd.f32 %v5229, 1.0
        %v5237 = vadd.f32 %v5231, 1.0
        %v5238 = vadd.f32 %v5233, 1.0
        %v5239 = vadd.f32 %v5235, 1.0
        %v5240 = vrcp.pop %v5236
        %v5241 = vmul.f32 1.0, %v5240
        %v5242 = vrcp.pop %v5237
        %v5243 = vmul.f32 1.0, %v5242
        %v5244 = vrcp.pop %v5238
        %v5245 = vmul.f32 1.0, %v5244
        %v5246 = vrcp.pop %v5239
        %v5247 = vmul.f32 1.0, %v5246
        %v5248 = vtanh.pop %v5221
        %v5249 = vtanh.pop %v5223
        %v5250 = vmul.f32 %v5241, %v5155
        %v5251 = vmul.f32 %v5245, %v5156
        %5254 = vrot.lane.b32.xlu0 %v5248, 64
        %v5255 = vpop.permute.xlu0 %5254
        %5256 = vrot.lane.b32.xlu0 %v5249, 64
        %v5257 = vpop.permute.xlu0 %5256
        %v5260 = vmul.f32 %v5241, %v5255
        %v5261 = vmul.f32 %v5245, %v5257
        %5264 = vrot.lane.b32.xlu0 %v5260, 64
        %v5265 = vpop.permute.xlu0 %5264
        %5266 = vrot.lane.b32.xlu0 %v5261, 64
        %v5267 = vpop.permute.xlu0 %5266
        %v5270 = vadd.f32 %v5250, %v5265
        %v5271 = vadd.f32 %v5251, %v5267
        %v5272 = vtanh.pop %v5270
        %v5273 = vtanh.pop %v5271
        %5276 = vrot.lane.b32.xlu0 %v5272, 64
        %v5277 = vpop.permute.xlu0 %5276
        %5278 = vrot.lane.b32.xlu0 %v5273, 64
        %v5279 = vpop.permute.xlu0 %5278
        %v5282 = vmul.f32 %v5243, %v5277
        %v5283 = vmul.f32 %v5247, %v5279
        %v5284 = vpack.c.bf16 %v5283, %v5282
        %v5286 = vsel %vm1218, %v5284, 0
        %5288 = vmatprep.subr.bf16.mxu0 0
        %5289 = vmatpush1.bf16.msra.mxu0 0
        %5290 = vmatprep.subr.bf16.mxu0 0
        %5291 = vmatpush1.bf16.msra.mxu0 0
        %5292 = vmatprep.subr.bf16.mxu0 0
        %5293 = vmatpush1.bf16.msra.mxu0 0
        %5294 = vmatprep.subr.bf16.mxu0 0
        %5295 = vmatpush1.bf16.msra.mxu0 0
        %5296 = vmatprep.subr.bf16.mxu0 %v4471
        %5297 = vmatpush1.bf16.msra.mxu0 %v4470
        %5298 = vmatprep.subr.bf16.mxu0 %v4469
        %5299 = vmatpush1.bf16.msra.mxu0 %v4468
        %5300 = vmatprep.subr.bf16.mxu0 %v4467
        %5301 = vmatpush1.bf16.msra.mxu0 %v4466
        %5302 = vmatprep.subr.bf16.mxu0 %v4465
        %5303 = vmatpush1.bf16.msra.mxu0 %v4464
        %5304 = vmatprep.subr.bf16.mxu0 0
        %5305 = vmatpush2.bf16.msra.mxu0 0
        %5306 = vmatprep.subr.bf16.mxu0 0
        %5307 = vmatpush2.bf16.msra.mxu0 0
        %5308 = vmatprep.subr.bf16.mxu0 0
        %5309 = vmatpush2.bf16.msra.mxu0 0
        %5310 = vmatprep.subr.bf16.mxu0 0
        %5311 = vmatpush2.bf16.msra.mxu0 0
        %5312 = vmatprep.subr.bf16.mxu0 0
        %5313 = vmatpush2.bf16.msra.mxu0 0
        %5314 = vmatprep.subr.bf16.mxu0 0
        %5315 = vmatpush2.bf16.msra.mxu0 0
        %5316 = vmatprep.subr.bf16.mxu0 0
        %5317 = vmatpush2.bf16.msra.mxu0 0
        %5318 = vmatprep.subr.bf16.mxu0 0
        %5319 = vmatpush2.bf16.msra.mxu0 0
        %5320 = vmatprep.mubr.bf16.mxu0 0
        %5321 = vmatmul.mubr.bf16.gmra.mxu0 %v5286
        %v5322 = vpop.f32.mrf.mxu0
        %v5323 = vadd.f32 0.0, %v5322
        %v5324 = vpop.f32.mrf.mxu0
        %v5325 = vadd.f32 0.0, %v5324
        %v5326 = vpop.f32.mrf.mxu0
        %v5327 = vadd.f32 0.0, %v5326
        %v5328 = vpop.f32.mrf.mxu0
        %v5329 = vadd.f32 0.0, %v5328
        %5330 = vdwg.mxu0
        %v5331 = vld [vmem:[#allocation2 + $0x70] sm:$0xff]
        %v5332 = vld [vmem:[#allocation2 + $0x78] sm:$0xff]
        %v5333 = vld [vmem:[#allocation2 + $0xf0] sm:$0xff]
        %v5334 = vld [vmem:[#allocation2 + $0xf8] sm:$0xff]
        %v5335 = vadd.f32 %v5331, %v5323
        %v5336 = vadd.f32 %v5332, %v5325
        %v5337 = vadd.f32 %v5333, %v5327
        %v5338 = vadd.f32 %v5334, %v5329
        %v5339 = vxor.u32 %v5335, 2147483648
        %v5340 = vxor.u32 %v5336, 2147483648
        %v5341 = vxor.u32 %v5337, 2147483648
        %v5342 = vxor.u32 %v5338, 2147483648
        %v5343 = vmul.f32 %v5339, 1.442695
        %v5344 = vpow.pop %v5343
        %v5345 = vmul.f32 %v5340, 1.442695
        %v5346 = vpow.pop %v5345
        %v5347 = vmul.f32 %v5341, 1.442695
        %v5348 = vpow.pop %v5347
        %v5349 = vmul.f32 %v5342, 1.442695
        %v5350 = vpow.pop %v5349
        %v5351 = vadd.f32 %v5344, 1.0
        %v5352 = vadd.f32 %v5346, 1.0
        %v5353 = vadd.f32 %v5348, 1.0
        %v5354 = vadd.f32 %v5350, 1.0
        %v5355 = vrcp.pop %v5351
        %v5356 = vmul.f32 1.0, %v5355
        %v5357 = vrcp.pop %v5352
        %v5358 = vmul.f32 1.0, %v5357
        %v5359 = vrcp.pop %v5353
        %v5360 = vmul.f32 1.0, %v5359
        %v5361 = vrcp.pop %v5354
        %v5362 = vmul.f32 1.0, %v5361
        %v5363 = vtanh.pop %v5336
        %v5364 = vtanh.pop %v5338
        %v5365 = vmul.f32 %v5356, %v5270
        %v5366 = vmul.f32 %v5360, %v5271
        %5369 = vrot.lane.b32.xlu0 %v5363, 64
        %v5370 = vpop.permute.xlu0 %5369
        %5371 = vrot.lane.b32.xlu0 %v5364, 64
        %v5372 = vpop.permute.xlu0 %5371
        %v5375 = vmul.f32 %v5356, %v5370
        %v5376 = vmul.f32 %v5360, %v5372
        %5379 = vrot.lane.b32.xlu0 %v5375, 64
        %v5380 = vpop.permute.xlu0 %5379
        %5381 = vrot.lane.b32.xlu0 %v5376, 64
        %v5382 = vpop.permute.xlu0 %5381
        %v5385 = vadd.f32 %v5365, %v5380
        %v5386 = vadd.f32 %v5366, %v5382
        %v5387 = vtanh.pop %v5385
        %v5388 = vtanh.pop %v5386
        %5391 = vrot.lane.b32.xlu0 %v5387, 64
        %v5392 = vpop.permute.xlu0 %5391
        %5393 = vrot.lane.b32.xlu0 %v5388, 64
        %v5394 = vpop.permute.xlu0 %5393
        %v5397 = vmul.f32 %v5358, %v5392
        %v5398 = vmul.f32 %v5362, %v5394
        %v5399 = vpack.c.bf16 %v5398, %v5397
        %5401 = vrot.lane.b32.xlu0 %v4709, 64
        %v5402 = vpop.permute.xlu0 %5401
        %5404 = vrot.lane.b32.xlu0 %v4939, 64
        %v5405 = vpop.permute.xlu0 %5404
        %5407 = vrot.lane.b32.xlu0 %v5169, 64
        %v5408 = vpop.permute.xlu0 %5407
        %5410 = vrot.lane.b32.xlu0 %v5399, 64
        %v5411 = vpop.permute.xlu0 %5410
        %v5413 = vsel %vm1218, %v4594, %v5402
        %v5416 = vsel %vm1218, %v4824, %v5405
        %v5419 = vsel %vm1218, %v5054, %v5408
        %v5422 = vsel %vm1218, %v5284, %v5411
        %v5424 = vld [vmem:[#allocation13] sm:$0xff]
        %v5425 = vld [vmem:[#allocation13 + $0x8] sm:$0xff]
        %v5426 = vld [vmem:[#allocation13 + $0x40] sm:$0xff]
        %v5427 = vld [vmem:[#allocation13 + $0x48] sm:$0xff]
        %v5428 = vld [vmem:[#allocation13 + $0x80] sm:$0xff]
        %v5429 = vld [vmem:[#allocation13 + $0x88] sm:$0xff]
        %v5430 = vld [vmem:[#allocation13 + $0xc0] sm:$0xff]
        %v5431 = vld [vmem:[#allocation13 + $0xc8] sm:$0xff]
        %v5432 = vld [vmem:[#allocation13 + $0x100] sm:$0xff]
        %v5433 = vld [vmem:[#allocation13 + $0x108] sm:$0xff]
        %v5434 = vld [vmem:[#allocation13 + $0x140] sm:$0xff]
        %v5435 = vld [vmem:[#allocation13 + $0x148] sm:$0xff]
        %v5436 = vld [vmem:[#allocation13 + $0x180] sm:$0xff]
        %v5437 = vld [vmem:[#allocation13 + $0x188] sm:$0xff]
        %v5438 = vld [vmem:[#allocation13 + $0x1c0] sm:$0xff]
        %v5439 = vld [vmem:[#allocation13 + $0x1c8] sm:$0xff]
        %v5440 = vld [vmem:[#allocation13 + $0x200] sm:$0xff]
        %v5441 = vld [vmem:[#allocation13 + $0x208] sm:$0xff]
        %v5442 = vld [vmem:[#allocation13 + $0x240] sm:$0xff]
        %v5443 = vld [vmem:[#allocation13 + $0x248] sm:$0xff]
        %v5444 = vld [vmem:[#allocation13 + $0x280] sm:$0xff]
        %v5445 = vld [vmem:[#allocation13 + $0x288] sm:$0xff]
        %v5446 = vld [vmem:[#allocation13 + $0x2c0] sm:$0xff]
        %v5447 = vld [vmem:[#allocation13 + $0x2c8] sm:$0xff]
        %v5448 = vld [vmem:[#allocation13 + $0x300] sm:$0xff]
        %v5449 = vld [vmem:[#allocation13 + $0x308] sm:$0xff]
        %v5450 = vld [vmem:[#allocation13 + $0x340] sm:$0xff]
        %v5451 = vld [vmem:[#allocation13 + $0x348] sm:$0xff]
        %v5452 = vld [vmem:[#allocation13 + $0x380] sm:$0xff]
        %v5453 = vld [vmem:[#allocation13 + $0x388] sm:$0xff]
        %v5454 = vld [vmem:[#allocation13 + $0x3c0] sm:$0xff]
        %v5455 = vld [vmem:[#allocation13 + $0x3c8] sm:$0xff]
        %v5456 = vld [vmem:[#allocation13 + $0x400] sm:$0xff]
        %v5457 = vld [vmem:[#allocation13 + $0x408] sm:$0xff]
        %v5458 = vld [vmem:[#allocation13 + $0x440] sm:$0xff]
        %v5459 = vld [vmem:[#allocation13 + $0x448] sm:$0xff]
        %v5460 = vld [vmem:[#allocation13 + $0x480] sm:$0xff]
        %v5461 = vld [vmem:[#allocation13 + $0x488] sm:$0xff]
        %v5462 = vld [vmem:[#allocation13 + $0x4c0] sm:$0xff]
        %v5463 = vld [vmem:[#allocation13 + $0x4c8] sm:$0xff]
        %v5464 = vld [vmem:[#allocation13 + $0x500] sm:$0xff]
        %v5465 = vld [vmem:[#allocation13 + $0x508] sm:$0xff]
        %v5466 = vld [vmem:[#allocation13 + $0x540] sm:$0xff]
        %v5467 = vld [vmem:[#allocation13 + $0x548] sm:$0xff]
        %v5468 = vld [vmem:[#allocation13 + $0x580] sm:$0xff]
        %v5469 = vld [vmem:[#allocation13 + $0x588] sm:$0xff]
        %v5470 = vld [vmem:[#allocation13 + $0x5c0] sm:$0xff]
        %v5471 = vld [vmem:[#allocation13 + $0x5c8] sm:$0xff]
        %v5472 = vld [vmem:[#allocation13 + $0x600] sm:$0xff]
        %v5473 = vld [vmem:[#allocation13 + $0x608] sm:$0xff]
        %v5474 = vld [vmem:[#allocation13 + $0x640] sm:$0xff]
        %v5475 = vld [vmem:[#allocation13 + $0x648] sm:$0xff]
        %v5476 = vld [vmem:[#allocation13 + $0x680] sm:$0xff]
        %v5477 = vld [vmem:[#allocation13 + $0x688] sm:$0xff]
        %v5478 = vld [vmem:[#allocation13 + $0x6c0] sm:$0xff]
        %v5479 = vld [vmem:[#allocation13 + $0x6c8] sm:$0xff]
        %v5480 = vld [vmem:[#allocation13 + $0x700] sm:$0xff]
        %v5481 = vld [vmem:[#allocation13 + $0x708] sm:$0xff]
        %v5482 = vld [vmem:[#allocation13 + $0x740] sm:$0xff]
        %v5483 = vld [vmem:[#allocation13 + $0x748] sm:$0xff]
        %v5484 = vld [vmem:[#allocation13 + $0x780] sm:$0xff]
        %v5485 = vld [vmem:[#allocation13 + $0x788] sm:$0xff]
        %v5486 = vld [vmem:[#allocation13 + $0x7c0] sm:$0xff]
        %v5487 = vld [vmem:[#allocation13 + $0x7c8] sm:$0xff]
        %v5488 = vld [vmem:[#allocation13 + $0x800] sm:$0xff]
        %v5489 = vld [vmem:[#allocation13 + $0x808] sm:$0xff]
        %v5490 = vld [vmem:[#allocation13 + $0x840] sm:$0xff]
        %v5491 = vld [vmem:[#allocation13 + $0x848] sm:$0xff]
        %v5492 = vld [vmem:[#allocation13 + $0x880] sm:$0xff]
        %v5493 = vld [vmem:[#allocation13 + $0x888] sm:$0xff]
        %v5494 = vld [vmem:[#allocation13 + $0x8c0] sm:$0xff]
        %v5495 = vld [vmem:[#allocation13 + $0x8c8] sm:$0xff]
        %v5496 = vld [vmem:[#allocation13 + $0x900] sm:$0xff]
        %v5497 = vld [vmem:[#allocation13 + $0x908] sm:$0xff]
        %v5498 = vld [vmem:[#allocation13 + $0x940] sm:$0xff]
        %v5499 = vld [vmem:[#allocation13 + $0x948] sm:$0xff]
        %v5500 = vld [vmem:[#allocation13 + $0x980] sm:$0xff]
        %v5501 = vld [vmem:[#allocation13 + $0x988] sm:$0xff]
        %v5502 = vld [vmem:[#allocation13 + $0x9c0] sm:$0xff]
        %v5503 = vld [vmem:[#allocation13 + $0x9c8] sm:$0xff]
        %v5504 = vld [vmem:[#allocation13 + $0xa00] sm:$0xff]
        %v5505 = vld [vmem:[#allocation13 + $0xa08] sm:$0xff]
        %v5506 = vld [vmem:[#allocation13 + $0xa40] sm:$0xff]
        %v5507 = vld [vmem:[#allocation13 + $0xa48] sm:$0xff]
        %v5508 = vld [vmem:[#allocation13 + $0xa80] sm:$0xff]
        %v5509 = vld [vmem:[#allocation13 + $0xa88] sm:$0xff]
        %v5510 = vld [vmem:[#allocation13 + $0xac0] sm:$0xff]
        %v5511 = vld [vmem:[#allocation13 + $0xac8] sm:$0xff]
        %v5512 = vld [vmem:[#allocation13 + $0xb00] sm:$0xff]
        %v5513 = vld [vmem:[#allocation13 + $0xb08] sm:$0xff]
        %v5514 = vld [vmem:[#allocation13 + $0xb40] sm:$0xff]
        %v5515 = vld [vmem:[#allocation13 + $0xb48] sm:$0xff]
        %v5516 = vld [vmem:[#allocation13 + $0xb80] sm:$0xff]
        %v5517 = vld [vmem:[#allocation13 + $0xb88] sm:$0xff]
        %v5518 = vld [vmem:[#allocation13 + $0xbc0] sm:$0xff]
        %v5519 = vld [vmem:[#allocation13 + $0xbc8] sm:$0xff]
        %v5520 = vld [vmem:[#allocation13 + $0xc00] sm:$0xff]
        %v5521 = vld [vmem:[#allocation13 + $0xc08] sm:$0xff]
        %v5522 = vld [vmem:[#allocation13 + $0xc40] sm:$0xff]
        %v5523 = vld [vmem:[#allocation13 + $0xc48] sm:$0xff]
        %v5524 = vld [vmem:[#allocation13 + $0xc80] sm:$0xff]
        %v5525 = vld [vmem:[#allocation13 + $0xc88] sm:$0xff]
        %v5526 = vld [vmem:[#allocation13 + $0xcc0] sm:$0xff]
        %v5527 = vld [vmem:[#allocation13 + $0xcc8] sm:$0xff]
        %v5528 = vld [vmem:[#allocation13 + $0xd00] sm:$0xff]
        %v5529 = vld [vmem:[#allocation13 + $0xd08] sm:$0xff]
        %v5530 = vld [vmem:[#allocation13 + $0xd40] sm:$0xff]
        %v5531 = vld [vmem:[#allocation13 + $0xd48] sm:$0xff]
        %v5532 = vld [vmem:[#allocation13 + $0xd80] sm:$0xff]
        %v5533 = vld [vmem:[#allocation13 + $0xd88] sm:$0xff]
        %v5534 = vld [vmem:[#allocation13 + $0xdc0] sm:$0xff]
        %v5535 = vld [vmem:[#allocation13 + $0xdc8] sm:$0xff]
        %v5536 = vld [vmem:[#allocation13 + $0xe00] sm:$0xff]
        %v5537 = vld [vmem:[#allocation13 + $0xe08] sm:$0xff]
        %v5538 = vld [vmem:[#allocation13 + $0xe40] sm:$0xff]
        %v5539 = vld [vmem:[#allocation13 + $0xe48] sm:$0xff]
        %v5540 = vld [vmem:[#allocation13 + $0xe80] sm:$0xff]
        %v5541 = vld [vmem:[#allocation13 + $0xe88] sm:$0xff]
        %v5542 = vld [vmem:[#allocation13 + $0xec0] sm:$0xff]
        %v5543 = vld [vmem:[#allocation13 + $0xec8] sm:$0xff]
        %v5544 = vld [vmem:[#allocation13 + $0xf00] sm:$0xff]
        %v5545 = vld [vmem:[#allocation13 + $0xf08] sm:$0xff]
        %v5546 = vld [vmem:[#allocation13 + $0xf40] sm:$0xff]
        %v5547 = vld [vmem:[#allocation13 + $0xf48] sm:$0xff]
        %v5548 = vld [vmem:[#allocation13 + $0xf80] sm:$0xff]
        %v5549 = vld [vmem:[#allocation13 + $0xf88] sm:$0xff]
        %v5550 = vld [vmem:[#allocation13 + $0xfc0] sm:$0xff]
        %v5551 = vld [vmem:[#allocation13 + $0xfc8] sm:$0xff]
        %v5552 = vld [vmem:[#allocation14] sm:$0xf]
        %v5554 = vlaneseq
        %v5555 = vshrl.u32 %v5554, 7
        %v5556 = vsub.s32 0, %v5555
        %v5557 = vrot.slane %v5552, %v5556
        %v5558 = vlaneseq
        %v5559 = vshrl.u32 %v5558, 7
        %v5560 = vsub.s32 1, %v5559
        %v5561 = vrot.slane %v5552, %v5560
        %v5562 = vlaneseq
        %v5563 = vshrl.u32 %v5562, 7
        %v5564 = vsub.s32 2, %v5563
        %v5565 = vrot.slane %v5552, %v5564
        %v5566 = vlaneseq
        %v5567 = vshrl.u32 %v5566, 7
        %v5568 = vsub.s32 3, %v5567
        %v5569 = vrot.slane %v5552, %v5568
        %v5702 = vunpack.c.l.b16 %v5424
        %v5703 = vunpack.c.h.b16 %v5424
        %v5704 = vunpack.c.l.b16 %v5425
        %v5705 = vunpack.c.h.b16 %v5425
        %v5706 = vunpack.c.l.b16 %v5426
        %v5707 = vunpack.c.h.b16 %v5426
        %v5708 = vunpack.c.l.b16 %v5427
        %v5709 = vunpack.c.h.b16 %v5427
        %v5710 = vunpack.c.l.b16 %v5428
        %v5711 = vunpack.c.h.b16 %v5428
        %v5712 = vunpack.c.l.b16 %v5429
        %v5713 = vunpack.c.h.b16 %v5429
        %v5714 = vunpack.c.l.b16 %v5430
        %v5715 = vunpack.c.h.b16 %v5430
        %v5716 = vunpack.c.l.b16 %v5431
        %v5717 = vunpack.c.h.b16 %v5431
        %v5718 = vunpack.c.l.b16 %v5432
        %v5719 = vunpack.c.h.b16 %v5432
        %v5720 = vunpack.c.l.b16 %v5433
        %v5721 = vunpack.c.h.b16 %v5433
        %v5722 = vunpack.c.l.b16 %v5434
        %v5723 = vunpack.c.h.b16 %v5434
        %v5724 = vunpack.c.l.b16 %v5435
        %v5725 = vunpack.c.h.b16 %v5435
        %v5726 = vunpack.c.l.b16 %v5436
        %v5727 = vunpack.c.h.b16 %v5436
        %v5728 = vunpack.c.l.b16 %v5437
        %v5729 = vunpack.c.h.b16 %v5437
        %v5730 = vunpack.c.l.b16 %v5438
        %v5731 = vunpack.c.h.b16 %v5438
        %v5732 = vunpack.c.l.b16 %v5439
        %v5733 = vunpack.c.h.b16 %v5439
        %v5734 = vunpack.c.l.b16 %v5440
        %v5735 = vunpack.c.h.b16 %v5440
        %v5736 = vunpack.c.l.b16 %v5441
        %v5737 = vunpack.c.h.b16 %v5441
        %v5738 = vunpack.c.l.b16 %v5442
        %v5739 = vunpack.c.h.b16 %v5442
        %v5740 = vunpack.c.l.b16 %v5443
        %v5741 = vunpack.c.h.b16 %v5443
        %v5742 = vunpack.c.l.b16 %v5444
        %v5743 = vunpack.c.h.b16 %v5444
        %v5744 = vunpack.c.l.b16 %v5445
        %v5745 = vunpack.c.h.b16 %v5445
        %v5746 = vunpack.c.l.b16 %v5446
        %v5747 = vunpack.c.h.b16 %v5446
        %v5748 = vunpack.c.l.b16 %v5447
        %v5749 = vunpack.c.h.b16 %v5447
        %v5750 = vunpack.c.l.b16 %v5448
        %v5751 = vunpack.c.h.b16 %v5448
        %v5752 = vunpack.c.l.b16 %v5449
        %v5753 = vunpack.c.h.b16 %v5449
        %v5754 = vunpack.c.l.b16 %v5450
        %v5755 = vunpack.c.h.b16 %v5450
        %v5756 = vunpack.c.l.b16 %v5451
        %v5757 = vunpack.c.h.b16 %v5451
        %v5758 = vunpack.c.l.b16 %v5452
        %v5759 = vunpack.c.h.b16 %v5452
        %v5760 = vunpack.c.l.b16 %v5453
        %v5761 = vunpack.c.h.b16 %v5453
        %v5762 = vunpack.c.l.b16 %v5454
        %v5763 = vunpack.c.h.b16 %v5454
        %v5764 = vunpack.c.l.b16 %v5455
        %v5765 = vunpack.c.h.b16 %v5455
        %v5766 = vunpack.c.l.b16 %v5456
        %v5767 = vunpack.c.h.b16 %v5456
        %v5768 = vunpack.c.l.b16 %v5457
        %v5769 = vunpack.c.h.b16 %v5457
        %v5770 = vunpack.c.l.b16 %v5458
        %v5771 = vunpack.c.h.b16 %v5458
        %v5772 = vunpack.c.l.b16 %v5459
        %v5773 = vunpack.c.h.b16 %v5459
        %v5774 = vunpack.c.l.b16 %v5460
        %v5775 = vunpack.c.h.b16 %v5460
        %v5776 = vunpack.c.l.b16 %v5461
        %v5777 = vunpack.c.h.b16 %v5461
        %v5778 = vunpack.c.l.b16 %v5462
        %v5779 = vunpack.c.h.b16 %v5462
        %v5780 = vunpack.c.l.b16 %v5463
        %v5781 = vunpack.c.h.b16 %v5463
        %v5782 = vunpack.c.l.b16 %v5464
        %v5783 = vunpack.c.h.b16 %v5464
        %v5784 = vunpack.c.l.b16 %v5465
        %v5785 = vunpack.c.h.b16 %v5465
        %v5786 = vunpack.c.l.b16 %v5466
        %v5787 = vunpack.c.h.b16 %v5466
        %v5788 = vunpack.c.l.b16 %v5467
        %v5789 = vunpack.c.h.b16 %v5467
        %v5790 = vunpack.c.l.b16 %v5468
        %v5791 = vunpack.c.h.b16 %v5468
        %v5792 = vunpack.c.l.b16 %v5469
        %v5793 = vunpack.c.h.b16 %v5469
        %v5794 = vunpack.c.l.b16 %v5470
        %v5795 = vunpack.c.h.b16 %v5470
        %v5796 = vunpack.c.l.b16 %v5471
        %v5797 = vunpack.c.h.b16 %v5471
        %v5798 = vunpack.c.l.b16 %v5472
        %v5799 = vunpack.c.h.b16 %v5472
        %v5800 = vunpack.c.l.b16 %v5473
        %v5801 = vunpack.c.h.b16 %v5473
        %v5802 = vunpack.c.l.b16 %v5474
        %v5803 = vunpack.c.h.b16 %v5474
        %v5804 = vunpack.c.l.b16 %v5475
        %v5805 = vunpack.c.h.b16 %v5475
        %v5806 = vunpack.c.l.b16 %v5476
        %v5807 = vunpack.c.h.b16 %v5476
        %v5808 = vunpack.c.l.b16 %v5477
        %v5809 = vunpack.c.h.b16 %v5477
        %v5810 = vunpack.c.l.b16 %v5478
        %v5811 = vunpack.c.h.b16 %v5478
        %v5812 = vunpack.c.l.b16 %v5479
        %v5813 = vunpack.c.h.b16 %v5479
        %v5814 = vunpack.c.l.b16 %v5480
        %v5815 = vunpack.c.h.b16 %v5480
        %v5816 = vunpack.c.l.b16 %v5481
        %v5817 = vunpack.c.h.b16 %v5481
        %v5818 = vunpack.c.l.b16 %v5482
        %v5819 = vunpack.c.h.b16 %v5482
        %v5820 = vunpack.c.l.b16 %v5483
        %v5821 = vunpack.c.h.b16 %v5483
        %v5822 = vunpack.c.l.b16 %v5484
        %v5823 = vunpack.c.h.b16 %v5484
        %v5824 = vunpack.c.l.b16 %v5485
        %v5825 = vunpack.c.h.b16 %v5485
        %v5826 = vunpack.c.l.b16 %v5486
        %v5827 = vunpack.c.h.b16 %v5486
        %v5828 = vunpack.c.l.b16 %v5487
        %v5829 = vunpack.c.h.b16 %v5487
        %v5830 = vunpack.c.l.b16 %v5488
        %v5831 = vunpack.c.h.b16 %v5488
        %v5832 = vunpack.c.l.b16 %v5489
        %v5833 = vunpack.c.h.b16 %v5489
        %v5834 = vunpack.c.l.b16 %v5490
        %v5835 = vunpack.c.h.b16 %v5490
        %v5836 = vunpack.c.l.b16 %v5491
        %v5837 = vunpack.c.h.b16 %v5491
        %v5838 = vunpack.c.l.b16 %v5492
        %v5839 = vunpack.c.h.b16 %v5492
        %v5840 = vunpack.c.l.b16 %v5493
        %v5841 = vunpack.c.h.b16 %v5493
        %v5842 = vunpack.c.l.b16 %v5494
        %v5843 = vunpack.c.h.b16 %v5494
        %v5844 = vunpack.c.l.b16 %v5495
        %v5845 = vunpack.c.h.b16 %v5495
        %v5846 = vunpack.c.l.b16 %v5496
        %v5847 = vunpack.c.h.b16 %v5496
        %v5848 = vunpack.c.l.b16 %v5497
        %v5849 = vunpack.c.h.b16 %v5497
        %v5850 = vunpack.c.l.b16 %v5498
        %v5851 = vunpack.c.h.b16 %v5498
        %v5852 = vunpack.c.l.b16 %v5499
        %v5853 = vunpack.c.h.b16 %v5499
        %v5854 = vunpack.c.l.b16 %v5500
        %v5855 = vunpack.c.h.b16 %v5500
        %v5856 = vunpack.c.l.b16 %v5501
        %v5857 = vunpack.c.h.b16 %v5501
        %v5858 = vunpack.c.l.b16 %v5502
        %v5859 = vunpack.c.h.b16 %v5502
        %v5860 = vunpack.c.l.b16 %v5503
        %v5861 = vunpack.c.h.b16 %v5503
        %v5862 = vunpack.c.l.b16 %v5504
        %v5863 = vunpack.c.h.b16 %v5504
        %v5864 = vunpack.c.l.b16 %v5505
        %v5865 = vunpack.c.h.b16 %v5505
        %v5866 = vunpack.c.l.b16 %v5506
        %v5867 = vunpack.c.h.b16 %v5506
        %v5868 = vunpack.c.l.b16 %v5507
        %v5869 = vunpack.c.h.b16 %v5507
        %v5870 = vunpack.c.l.b16 %v5508
        %v5871 = vunpack.c.h.b16 %v5508
        %v5872 = vunpack.c.l.b16 %v5509
        %v5873 = vunpack.c.h.b16 %v5509
        %v5874 = vunpack.c.l.b16 %v5510
        %v5875 = vunpack.c.h.b16 %v5510
        %v5876 = vunpack.c.l.b16 %v5511
        %v5877 = vunpack.c.h.b16 %v5511
        %v5878 = vunpack.c.l.b16 %v5512
        %v5879 = vunpack.c.h.b16 %v5512
        %v5880 = vunpack.c.l.b16 %v5513
        %v5881 = vunpack.c.h.b16 %v5513
        %v5882 = vunpack.c.l.b16 %v5514
        %v5883 = vunpack.c.h.b16 %v5514
        %v5884 = vunpack.c.l.b16 %v5515
        %v5885 = vunpack.c.h.b16 %v5515
        %v5886 = vunpack.c.l.b16 %v5516
        %v5887 = vunpack.c.h.b16 %v5516
        %v5888 = vunpack.c.l.b16 %v5517
        %v5889 = vunpack.c.h.b16 %v5517
        %v5890 = vunpack.c.l.b16 %v5518
        %v5891 = vunpack.c.h.b16 %v5518
        %v5892 = vunpack.c.l.b16 %v5519
        %v5893 = vunpack.c.h.b16 %v5519
        %v5894 = vunpack.c.l.b16 %v5520
        %v5895 = vunpack.c.h.b16 %v5520
        %v5896 = vunpack.c.l.b16 %v5521
        %v5897 = vunpack.c.h.b16 %v5521
        %v5898 = vunpack.c.l.b16 %v5522
        %v5899 = vunpack.c.h.b16 %v5522
        %v5900 = vunpack.c.l.b16 %v5523
        %v5901 = vunpack.c.h.b16 %v5523
        %v5902 = vunpack.c.l.b16 %v5524
        %v5903 = vunpack.c.h.b16 %v5524
        %v5904 = vunpack.c.l.b16 %v5525
        %v5905 = vunpack.c.h.b16 %v5525
        %v5906 = vunpack.c.l.b16 %v5526
        %v5907 = vunpack.c.h.b16 %v5526
        %v5908 = vunpack.c.l.b16 %v5527
        %v5909 = vunpack.c.h.b16 %v5527
        %v5910 = vunpack.c.l.b16 %v5528
        %v5911 = vunpack.c.h.b16 %v5528
        %v5912 = vunpack.c.l.b16 %v5529
        %v5913 = vunpack.c.h.b16 %v5529
        %v5914 = vunpack.c.l.b16 %v5530
        %v5915 = vunpack.c.h.b16 %v5530
        %v5916 = vunpack.c.l.b16 %v5531
        %v5917 = vunpack.c.h.b16 %v5531
        %v5918 = vunpack.c.l.b16 %v5532
        %v5919 = vunpack.c.h.b16 %v5532
        %v5920 = vunpack.c.l.b16 %v5533
        %v5921 = vunpack.c.h.b16 %v5533
        %v5922 = vunpack.c.l.b16 %v5534
        %v5923 = vunpack.c.h.b16 %v5534
        %v5924 = vunpack.c.l.b16 %v5535
        %v5925 = vunpack.c.h.b16 %v5535
        %v5926 = vunpack.c.l.b16 %v5536
        %v5927 = vunpack.c.h.b16 %v5536
        %v5928 = vunpack.c.l.b16 %v5537
        %v5929 = vunpack.c.h.b16 %v5537
        %v5930 = vunpack.c.l.b16 %v5538
        %v5931 = vunpack.c.h.b16 %v5538
        %v5932 = vunpack.c.l.b16 %v5539
        %v5933 = vunpack.c.h.b16 %v5539
        %v5934 = vunpack.c.l.b16 %v5540
        %v5935 = vunpack.c.h.b16 %v5540
        %v5936 = vunpack.c.l.b16 %v5541
        %v5937 = vunpack.c.h.b16 %v5541
        %v5938 = vunpack.c.l.b16 %v5542
        %v5939 = vunpack.c.h.b16 %v5542
        %v5940 = vunpack.c.l.b16 %v5543
        %v5941 = vunpack.c.h.b16 %v5543
        %v5942 = vunpack.c.l.b16 %v5544
        %v5943 = vunpack.c.h.b16 %v5544
        %v5944 = vunpack.c.l.b16 %v5545
        %v5945 = vunpack.c.h.b16 %v5545
        %v5946 = vunpack.c.l.b16 %v5546
        %v5947 = vunpack.c.h.b16 %v5546
        %v5948 = vunpack.c.l.b16 %v5547
        %v5949 = vunpack.c.h.b16 %v5547
        %v5950 = vunpack.c.l.b16 %v5548
        %v5951 = vunpack.c.h.b16 %v5548
        %v5952 = vunpack.c.l.b16 %v5549
        %v5953 = vunpack.c.h.b16 %v5549
        %v5954 = vunpack.c.l.b16 %v5550
        %v5955 = vunpack.c.h.b16 %v5550
        %v5956 = vunpack.c.l.b16 %v5551
        %v5957 = vunpack.c.h.b16 %v5551
        %v5958 = vpack.c.b16 %v5706, %v5702
        %v5959 = vpack.c.b16 %v5707, %v5703
        %v5960 = vpack.c.b16 %v5708, %v5704
        %v5961 = vpack.c.b16 %v5709, %v5705
        %v5962 = vpack.c.b16 %v5714, %v5710
        %v5963 = vpack.c.b16 %v5715, %v5711
        %v5964 = vpack.c.b16 %v5716, %v5712
        %v5965 = vpack.c.b16 %v5717, %v5713
        %v5966 = vpack.c.b16 %v5722, %v5718
        %v5967 = vpack.c.b16 %v5723, %v5719
        %v5968 = vpack.c.b16 %v5724, %v5720
        %v5969 = vpack.c.b16 %v5725, %v5721
        %v5970 = vpack.c.b16 %v5730, %v5726
        %v5971 = vpack.c.b16 %v5731, %v5727
        %v5972 = vpack.c.b16 %v5732, %v5728
        %v5973 = vpack.c.b16 %v5733, %v5729
        %v5974 = vpack.c.b16 %v5738, %v5734
        %v5975 = vpack.c.b16 %v5739, %v5735
        %v5976 = vpack.c.b16 %v5740, %v5736
        %v5977 = vpack.c.b16 %v5741, %v5737
        %v5978 = vpack.c.b16 %v5746, %v5742
        %v5979 = vpack.c.b16 %v5747, %v5743
        %v5980 = vpack.c.b16 %v5748, %v5744
        %v5981 = vpack.c.b16 %v5749, %v5745
        %v5982 = vpack.c.b16 %v5754, %v5750
        %v5983 = vpack.c.b16 %v5755, %v5751
        %v5984 = vpack.c.b16 %v5756, %v5752
        %v5985 = vpack.c.b16 %v5757, %v5753
        %v5986 = vpack.c.b16 %v5762, %v5758
        %v5987 = vpack.c.b16 %v5763, %v5759
        %v5988 = vpack.c.b16 %v5764, %v5760
        %v5989 = vpack.c.b16 %v5765, %v5761
        %v5990 = vpack.c.b16 %v5770, %v5766
        %v5991 = vpack.c.b16 %v5771, %v5767
        %v5992 = vpack.c.b16 %v5772, %v5768
        %v5993 = vpack.c.b16 %v5773, %v5769
        %v5994 = vpack.c.b16 %v5778, %v5774
        %v5995 = vpack.c.b16 %v5779, %v5775
        %v5996 = vpack.c.b16 %v5780, %v5776
        %v5997 = vpack.c.b16 %v5781, %v5777
        %v5998 = vpack.c.b16 %v5786, %v5782
        %v5999 = vpack.c.b16 %v5787, %v5783
        %v6000 = vpack.c.b16 %v5788, %v5784
        %v6001 = vpack.c.b16 %v5789, %v5785
        %v6002 = vpack.c.b16 %v5794, %v5790
        %v6003 = vpack.c.b16 %v5795, %v5791
        %v6004 = vpack.c.b16 %v5796, %v5792
        %v6005 = vpack.c.b16 %v5797, %v5793
        %v6006 = vpack.c.b16 %v5802, %v5798
        %v6007 = vpack.c.b16 %v5803, %v5799
        %v6008 = vpack.c.b16 %v5804, %v5800
        %v6009 = vpack.c.b16 %v5805, %v5801
        %v6010 = vpack.c.b16 %v5810, %v5806
        %v6011 = vpack.c.b16 %v5811, %v5807
        %v6012 = vpack.c.b16 %v5812, %v5808
        %v6013 = vpack.c.b16 %v5813, %v5809
        %v6014 = vpack.c.b16 %v5818, %v5814
        %v6015 = vpack.c.b16 %v5819, %v5815
        %v6016 = vpack.c.b16 %v5820, %v5816
        %v6017 = vpack.c.b16 %v5821, %v5817
        %v6018 = vpack.c.b16 %v5826, %v5822
        %v6019 = vpack.c.b16 %v5827, %v5823
        %v6020 = vpack.c.b16 %v5828, %v5824
        %v6021 = vpack.c.b16 %v5829, %v5825
        %v6022 = vpack.c.b16 %v5834, %v5830
        %v6023 = vpack.c.b16 %v5835, %v5831
        %v6024 = vpack.c.b16 %v5836, %v5832
        %v6025 = vpack.c.b16 %v5837, %v5833
        %v6026 = vpack.c.b16 %v5842, %v5838
        %v6027 = vpack.c.b16 %v5843, %v5839
        %v6028 = vpack.c.b16 %v5844, %v5840
        %v6029 = vpack.c.b16 %v5845, %v5841
        %v6030 = vpack.c.b16 %v5850, %v5846
        %v6031 = vpack.c.b16 %v5851, %v5847
        %v6032 = vpack.c.b16 %v5852, %v5848
        %v6033 = vpack.c.b16 %v5853, %v5849
        %v6034 = vpack.c.b16 %v5858, %v5854
        %v6035 = vpack.c.b16 %v5859, %v5855
        %v6036 = vpack.c.b16 %v5860, %v5856
        %v6037 = vpack.c.b16 %v5861, %v5857
        %v6038 = vpack.c.b16 %v5866, %v5862
        %v6039 = vpack.c.b16 %v5867, %v5863
        %v6040 = vpack.c.b16 %v5868, %v5864
        %v6041 = vpack.c.b16 %v5869, %v5865
        %v6042 = vpack.c.b16 %v5874, %v5870
        %v6043 = vpack.c.b16 %v5875, %v5871
        %v6044 = vpack.c.b16 %v5876, %v5872
        %v6045 = vpack.c.b16 %v5877, %v5873
        %v6046 = vpack.c.b16 %v5882, %v5878
        %v6047 = vpack.c.b16 %v5883, %v5879
        %v6048 = vpack.c.b16 %v5884, %v5880
        %v6049 = vpack.c.b16 %v5885, %v5881
        %v6050 = vpack.c.b16 %v5890, %v5886
        %v6051 = vpack.c.b16 %v5891, %v5887
        %v6052 = vpack.c.b16 %v5892, %v5888
        %v6053 = vpack.c.b16 %v5893, %v5889
        %v6054 = vpack.c.b16 %v5898, %v5894
        %v6055 = vpack.c.b16 %v5899, %v5895
        %v6056 = vpack.c.b16 %v5900, %v5896
        %v6057 = vpack.c.b16 %v5901, %v5897
        %v6058 = vpack.c.b16 %v5906, %v5902
        %v6059 = vpack.c.b16 %v5907, %v5903
        %v6060 = vpack.c.b16 %v5908, %v5904
        %v6061 = vpack.c.b16 %v5909, %v5905
        %v6062 = vpack.c.b16 %v5914, %v5910
        %v6063 = vpack.c.b16 %v5915, %v5911
        %v6064 = vpack.c.b16 %v5916, %v5912
        %v6065 = vpack.c.b16 %v5917, %v5913
        %v6066 = vpack.c.b16 %v5922, %v5918
        %v6067 = vpack.c.b16 %v5923, %v5919
        %v6068 = vpack.c.b16 %v5924, %v5920
        %v6069 = vpack.c.b16 %v5925, %v5921
        %v6070 = vpack.c.b16 %v5930, %v5926
        %v6071 = vpack.c.b16 %v5931, %v5927
        %v6072 = vpack.c.b16 %v5932, %v5928
        %v6073 = vpack.c.b16 %v5933, %v5929
        %v6074 = vpack.c.b16 %v5938, %v5934
        %v6075 = vpack.c.b16 %v5939, %v5935
        %v6076 = vpack.c.b16 %v5940, %v5936
        %v6077 = vpack.c.b16 %v5941, %v5937
        %v6078 = vpack.c.b16 %v5946, %v5942
        %v6079 = vpack.c.b16 %v5947, %v5943
        %v6080 = vpack.c.b16 %v5948, %v5944
        %v6081 = vpack.c.b16 %v5949, %v5945
        %v6082 = vpack.c.b16 %v5954, %v5950
        %v6083 = vpack.c.b16 %v5955, %v5951
        %v6084 = vpack.c.b16 %v5956, %v5952
        %v6085 = vpack.c.b16 %v5957, %v5953
        %6214 = vmatprep.subr.bf16.mxu0 %v5987
        %6215 = vmatpush1.bf16.msra.mxu0 %v5986
        %6216 = vmatprep.subr.bf16.mxu0 %v5983
        %6217 = vmatpush1.bf16.msra.mxu0 %v5982
        %6218 = vmatprep.subr.bf16.mxu0 %v5979
        %6219 = vmatpush1.bf16.msra.mxu0 %v5978
        %6220 = vmatprep.subr.bf16.mxu0 %v5975
        %6221 = vmatpush1.bf16.msra.mxu0 %v5974
        %6222 = vmatprep.subr.bf16.mxu0 %v5971
        %6223 = vmatpush1.bf16.msra.mxu0 %v5970
        %6224 = vmatprep.subr.bf16.mxu0 %v5967
        %6225 = vmatpush1.bf16.msra.mxu0 %v5966
        %6226 = vmatprep.subr.bf16.mxu0 %v5963
        %6227 = vmatpush1.bf16.msra.mxu0 %v5962
        %6228 = vmatprep.subr.bf16.mxu0 %v5959
        %6229 = vmatpush1.bf16.msra.mxu0 %v5958
        %6230 = vmatprep.subr.bf16.mxu0 %v6019
        %6231 = vmatpush2.bf16.msra.mxu0 %v6018
        %6232 = vmatprep.subr.bf16.mxu0 %v6015
        %6233 = vmatpush2.bf16.msra.mxu0 %v6014
        %6234 = vmatprep.subr.bf16.mxu0 %v6011
        %6235 = vmatpush2.bf16.msra.mxu0 %v6010
        %6236 = vmatprep.subr.bf16.mxu0 %v6007
        %6237 = vmatpush2.bf16.msra.mxu0 %v6006
        %6238 = vmatprep.subr.bf16.mxu0 %v6003
        %6239 = vmatpush2.bf16.msra.mxu0 %v6002
        %6240 = vmatprep.subr.bf16.mxu0 %v5999
        %6241 = vmatpush2.bf16.msra.mxu0 %v5998
        %6242 = vmatprep.subr.bf16.mxu0 %v5995
        %6243 = vmatpush2.bf16.msra.mxu0 %v5994
        %6244 = vmatprep.subr.bf16.mxu0 %v5991
        %6245 = vmatpush2.bf16.msra.mxu0 %v5990
        %6246 = vmatprep.mubr.bf16.mxu0 %v5416
        %6247 = vmatmul.mubr.bf16.gmra.mxu0 %v5413
        %v6248 = vpop.f32.mrf.mxu0
        %v6249 = vadd.f32 %v5557, %v6248
        %v6250 = vpop.f32.mrf.mxu0
        %v6251 = vadd.f32 %v5561, %v6250
        %v6252 = vpop.f32.mrf.mxu0
        %v6253 = vadd.f32 %v5557, %v6252
        %v6254 = vpop.f32.mrf.mxu0
        %v6255 = vadd.f32 %v5561, %v6254
        %6256 = vdwg.mxu0
        %6257 = vmatprep.subr.bf16.mxu0 %v6051
        %6258 = vmatpush1.bf16.msra.mxu0 %v6050
        %6259 = vmatprep.subr.bf16.mxu0 %v6047
        %6260 = vmatpush1.bf16.msra.mxu0 %v6046
        %6261 = vmatprep.subr.bf16.mxu0 %v6043
        %6262 = vmatpush1.bf16.msra.mxu0 %v6042
        %6263 = vmatprep.subr.bf16.mxu0 %v6039
        %6264 = vmatpush1.bf16.msra.mxu0 %v6038
        %6265 = vmatprep.subr.bf16.mxu0 %v6035
        %6266 = vmatpush1.bf16.msra.mxu0 %v6034
        %6267 = vmatprep.subr.bf16.mxu0 %v6031
        %6268 = vmatpush1.bf16.msra.mxu0 %v6030
        %6269 = vmatprep.subr.bf16.mxu0 %v6027
        %6270 = vmatpush1.bf16.msra.mxu0 %v6026
        %6271 = vmatprep.subr.bf16.mxu0 %v6023
        %6272 = vmatpush1.bf16.msra.mxu0 %v6022
        %6273 = vmatprep.subr.bf16.mxu0 %v6083
        %6274 = vmatpush2.bf16.msra.mxu0 %v6082
        %6275 = vmatprep.subr.bf16.mxu0 %v6079
        %6276 = vmatpush2.bf16.msra.mxu0 %v6078
        %6277 = vmatprep.subr.bf16.mxu0 %v6075
        %6278 = vmatpush2.bf16.msra.mxu0 %v6074
        %6279 = vmatprep.subr.bf16.mxu0 %v6071
        %6280 = vmatpush2.bf16.msra.mxu0 %v6070
        %6281 = vmatprep.subr.bf16.mxu0 %v6067
        %6282 = vmatpush2.bf16.msra.mxu0 %v6066
        %6283 = vmatprep.subr.bf16.mxu0 %v6063
        %6284 = vmatpush2.bf16.msra.mxu0 %v6062
        %6285 = vmatprep.subr.bf16.mxu0 %v6059
        %6286 = vmatpush2.bf16.msra.mxu0 %v6058
        %6287 = vmatprep.subr.bf16.mxu0 %v6055
        %6288 = vmatpush2.bf16.msra.mxu0 %v6054
        %6289 = vmatprep.mubr.bf16.mxu0 %v5422
        %6290 = vmatmul.mubr.bf16.gmra.mxu0 %v5419
        %v6291 = vpop.f32.mrf.mxu0
        %v6292 = vadd.f32 %v6249, %v6291
        %v6293 = vpop.f32.mrf.mxu0
        %v6294 = vadd.f32 %v6251, %v6293
        %v6295 = vpop.f32.mrf.mxu0
        %v6296 = vadd.f32 %v6253, %v6295
        %v6297 = vpop.f32.mrf.mxu0
        %v6298 = vadd.f32 %v6255, %v6297
        %6299 = vdwg.mxu0
        %6300 = vmatprep.subr.bf16.mxu0 %v5989
        %6301 = vmatpush1.bf16.msra.mxu0 %v5988
        %6302 = vmatprep.subr.bf16.mxu0 %v5985
        %6303 = vmatpush1.bf16.msra.mxu0 %v5984
        %6304 = vmatprep.subr.bf16.mxu0 %v5981
        %6305 = vmatpush1.bf16.msra.mxu0 %v5980
        %6306 = vmatprep.subr.bf16.mxu0 %v5977
        %6307 = vmatpush1.bf16.msra.mxu0 %v5976
        %6308 = vmatprep.subr.bf16.mxu0 %v5973
        %6309 = vmatpush1.bf16.msra.mxu0 %v5972
        %6310 = vmatprep.subr.bf16.mxu0 %v5969
        %6311 = vmatpush1.bf16.msra.mxu0 %v5968
        %6312 = vmatprep.subr.bf16.mxu0 %v5965
        %6313 = vmatpush1.bf16.msra.mxu0 %v5964
        %6314 = vmatprep.subr.bf16.mxu0 %v5961
        %6315 = vmatpush1.bf16.msra.mxu0 %v5960
        %6316 = vmatprep.subr.bf16.mxu0 %v6021
        %6317 = vmatpush2.bf16.msra.mxu0 %v6020
        %6318 = vmatprep.subr.bf16.mxu0 %v6017
        %6319 = vmatpush2.bf16.msra.mxu0 %v6016
        %6320 = vmatprep.subr.bf16.mxu0 %v6013
        %6321 = vmatpush2.bf16.msra.mxu0 %v6012
        %6322 = vmatprep.subr.bf16.mxu0 %v6009
        %6323 = vmatpush2.bf16.msra.mxu0 %v6008
        %6324 = vmatprep.subr.bf16.mxu0 %v6005
        %6325 = vmatpush2.bf16.msra.mxu0 %v6004
        %6326 = vmatprep.subr.bf16.mxu0 %v6001
        %6327 = vmatpush2.bf16.msra.mxu0 %v6000
        %6328 = vmatprep.subr.bf16.mxu0 %v5997
        %6329 = vmatpush2.bf16.msra.mxu0 %v5996
        %6330 = vmatprep.subr.bf16.mxu0 %v5993
        %6331 = vmatpush2.bf16.msra.mxu0 %v5992
        %6332 = vmatprep.mubr.bf16.mxu0 %v5416
        %6333 = vmatmul.mubr.bf16.gmra.mxu0 %v5413
        %v6334 = vpop.f32.mrf.mxu0
        %v6335 = vadd.f32 %v5565, %v6334
        %v6336 = vpop.f32.mrf.mxu0
        %v6337 = vadd.f32 %v5569, %v6336
        %v6338 = vpop.f32.mrf.mxu0
        %v6339 = vadd.f32 %v5565, %v6338
        %v6340 = vpop.f32.mrf.mxu0
        %v6341 = vadd.f32 %v5569, %v6340
        %6342 = vdwg.mxu0
        %6343 = vmatprep.subr.bf16.mxu0 %v6053
        %6344 = vmatpush1.bf16.msra.mxu0 %v6052
        %6345 = vmatprep.subr.bf16.mxu0 %v6049
        %6346 = vmatpush1.bf16.msra.mxu0 %v6048
        %6347 = vmatprep.subr.bf16.mxu0 %v6045
        %6348 = vmatpush1.bf16.msra.mxu0 %v6044
        %6349 = vmatprep.subr.bf16.mxu0 %v6041
        %6350 = vmatpush1.bf16.msra.mxu0 %v6040
        %6351 = vmatprep.subr.bf16.mxu0 %v6037
        %6352 = vmatpush1.bf16.msra.mxu0 %v6036
        %6353 = vmatprep.subr.bf16.mxu0 %v6033
        %6354 = vmatpush1.bf16.msra.mxu0 %v6032
        %6355 = vmatprep.subr.bf16.mxu0 %v6029
        %6356 = vmatpush1.bf16.msra.mxu0 %v6028
        %6357 = vmatprep.subr.bf16.mxu0 %v6025
        %6358 = vmatpush1.bf16.msra.mxu0 %v6024
        %6359 = vmatprep.subr.bf16.mxu0 %v6085
        %6360 = vmatpush2.bf16.msra.mxu0 %v6084
        %6361 = vmatprep.subr.bf16.mxu0 %v6081
        %6362 = vmatpush2.bf16.msra.mxu0 %v6080
        %6363 = vmatprep.subr.bf16.mxu0 %v6077
        %6364 = vmatpush2.bf16.msra.mxu0 %v6076
        %6365 = vmatprep.subr.bf16.mxu0 %v6073
        %6366 = vmatpush2.bf16.msra.mxu0 %v6072
        %6367 = vmatprep.subr.bf16.mxu0 %v6069
        %6368 = vmatpush2.bf16.msra.mxu0 %v6068
        %6369 = vmatprep.subr.bf16.mxu0 %v6065
        %6370 = vmatpush2.bf16.msra.mxu0 %v6064
        %6371 = vmatprep.subr.bf16.mxu0 %v6061
        %6372 = vmatpush2.bf16.msra.mxu0 %v6060
        %6373 = vmatprep.subr.bf16.mxu0 %v6057
        %6374 = vmatpush2.bf16.msra.mxu0 %v6056
        %6375 = vmatprep.mubr.bf16.mxu0 %v5422
        %6376 = vmatmul.mubr.bf16.gmra.mxu0 %v5419
        %v6377 = vpop.f32.mrf.mxu0
        %v6378 = vadd.f32 %v6335, %v6377
        %v6379 = vpop.f32.mrf.mxu0
        %v6380 = vadd.f32 %v6337, %v6379
        %v6381 = vpop.f32.mrf.mxu0
        %v6382 = vadd.f32 %v6339, %v6381
        %v6383 = vpop.f32.mrf.mxu0
        %v6384 = vadd.f32 %v6341, %v6383
        %6385 = vdwg.mxu0
        %6386 = vst [vmem:[#allocation2] sm:$0xff] %v6292
        %6387 = vst [vmem:[#allocation2 + $0x8] sm:$0xff] %v6294
        %6388 = vst [vmem:[#allocation2 + $0x10] sm:$0xff] %v6378
        %6389 = vst [vmem:[#allocation2 + $0x18] sm:$0xff] %v6380
        %6390 = vst [vmem:[#allocation2 + $0x80] sm:$0xff] %v6296
        %6391 = vst [vmem:[#allocation2 + $0x88] sm:$0xff] %v6298
        %6392 = vst [vmem:[#allocation2 + $0x90] sm:$0xff] %v6382
        %6393 = vst [vmem:[#allocation2 + $0x98] sm:$0xff] %v6384
        %v6394 = vld [vmem:[#allocation13 + $0x10] sm:$0xff]
        %v6395 = vld [vmem:[#allocation13 + $0x18] sm:$0xff]
        %v6396 = vld [vmem:[#allocation13 + $0x50] sm:$0xff]
        %v6397 = vld [vmem:[#allocation13 + $0x58] sm:$0xff]
        %v6398 = vld [vmem:[#allocation13 + $0x90] sm:$0xff]
        %v6399 = vld [vmem:[#allocation13 + $0x98] sm:$0xff]
        %v6400 = vld [vmem:[#allocation13 + $0xd0] sm:$0xff]
        %v6401 = vld [vmem:[#allocation13 + $0xd8] sm:$0xff]
        %v6402 = vld [vmem:[#allocation13 + $0x110] sm:$0xff]
        %v6403 = vld [vmem:[#allocation13 + $0x118] sm:$0xff]
        %v6404 = vld [vmem:[#allocation13 + $0x150] sm:$0xff]
        %v6405 = vld [vmem:[#allocation13 + $0x158] sm:$0xff]
        %v6406 = vld [vmem:[#allocation13 + $0x190] sm:$0xff]
        %v6407 = vld [vmem:[#allocation13 + $0x198] sm:$0xff]
        %v6408 = vld [vmem:[#allocation13 + $0x1d0] sm:$0xff]
        %v6409 = vld [vmem:[#allocation13 + $0x1d8] sm:$0xff]
        %v6410 = vld [vmem:[#allocation13 + $0x210] sm:$0xff]
        %v6411 = vld [vmem:[#allocation13 + $0x218] sm:$0xff]
        %v6412 = vld [vmem:[#allocation13 + $0x250] sm:$0xff]
        %v6413 = vld [vmem:[#allocation13 + $0x258] sm:$0xff]
        %v6414 = vld [vmem:[#allocation13 + $0x290] sm:$0xff]
        %v6415 = vld [vmem:[#allocation13 + $0x298] sm:$0xff]
        %v6416 = vld [vmem:[#allocation13 + $0x2d0] sm:$0xff]
        %v6417 = vld [vmem:[#allocation13 + $0x2d8] sm:$0xff]
        %v6418 = vld [vmem:[#allocation13 + $0x310] sm:$0xff]
        %v6419 = vld [vmem:[#allocation13 + $0x318] sm:$0xff]
        %v6420 = vld [vmem:[#allocation13 + $0x350] sm:$0xff]
        %v6421 = vld [vmem:[#allocation13 + $0x358] sm:$0xff]
        %v6422 = vld [vmem:[#allocation13 + $0x390] sm:$0xff]
        %v6423 = vld [vmem:[#allocation13 + $0x398] sm:$0xff]
        %v6424 = vld [vmem:[#allocation13 + $0x3d0] sm:$0xff]
        %v6425 = vld [vmem:[#allocation13 + $0x3d8] sm:$0xff]
        %v6426 = vld [vmem:[#allocation13 + $0x410] sm:$0xff]
        %v6427 = vld [vmem:[#allocation13 + $0x418] sm:$0xff]
        %v6428 = vld [vmem:[#allocation13 + $0x450] sm:$0xff]
        %v6429 = vld [vmem:[#allocation13 + $0x458] sm:$0xff]
        %v6430 = vld [vmem:[#allocation13 + $0x490] sm:$0xff]
        %v6431 = vld [vmem:[#allocation13 + $0x498] sm:$0xff]
        %v6432 = vld [vmem:[#allocation13 + $0x4d0] sm:$0xff]
        %v6433 = vld [vmem:[#allocation13 + $0x4d8] sm:$0xff]
        %v6434 = vld [vmem:[#allocation13 + $0x510] sm:$0xff]
        %v6435 = vld [vmem:[#allocation13 + $0x518] sm:$0xff]
        %v6436 = vld [vmem:[#allocation13 + $0x550] sm:$0xff]
        %v6437 = vld [vmem:[#allocation13 + $0x558] sm:$0xff]
        %v6438 = vld [vmem:[#allocation13 + $0x590] sm:$0xff]
        %v6439 = vld [vmem:[#allocation13 + $0x598] sm:$0xff]
        %v6440 = vld [vmem:[#allocation13 + $0x5d0] sm:$0xff]
        %v6441 = vld [vmem:[#allocation13 + $0x5d8] sm:$0xff]
        %v6442 = vld [vmem:[#allocation13 + $0x610] sm:$0xff]
        %v6443 = vld [vmem:[#allocation13 + $0x618] sm:$0xff]
        %v6444 = vld [vmem:[#allocation13 + $0x650] sm:$0xff]
        %v6445 = vld [vmem:[#allocation13 + $0x658] sm:$0xff]
        %v6446 = vld [vmem:[#allocation13 + $0x690] sm:$0xff]
        %v6447 = vld [vmem:[#allocation13 + $0x698] sm:$0xff]
        %v6448 = vld [vmem:[#allocation13 + $0x6d0] sm:$0xff]
        %v6449 = vld [vmem:[#allocation13 + $0x6d8] sm:$0xff]
        %v6450 = vld [vmem:[#allocation13 + $0x710] sm:$0xff]
        %v6451 = vld [vmem:[#allocation13 + $0x718] sm:$0xff]
        %v6452 = vld [vmem:[#allocation13 + $0x750] sm:$0xff]
        %v6453 = vld [vmem:[#allocation13 + $0x758] sm:$0xff]
        %v6454 = vld [vmem:[#allocation13 + $0x790] sm:$0xff]
        %v6455 = vld [vmem:[#allocation13 + $0x798] sm:$0xff]
        %v6456 = vld [vmem:[#allocation13 + $0x7d0] sm:$0xff]
        %v6457 = vld [vmem:[#allocation13 + $0x7d8] sm:$0xff]
        %v6458 = vld [vmem:[#allocation13 + $0x810] sm:$0xff]
        %v6459 = vld [vmem:[#allocation13 + $0x818] sm:$0xff]
        %v6460 = vld [vmem:[#allocation13 + $0x850] sm:$0xff]
        %v6461 = vld [vmem:[#allocation13 + $0x858] sm:$0xff]
        %v6462 = vld [vmem:[#allocation13 + $0x890] sm:$0xff]
        %v6463 = vld [vmem:[#allocation13 + $0x898] sm:$0xff]
        %v6464 = vld [vmem:[#allocation13 + $0x8d0] sm:$0xff]
        %v6465 = vld [vmem:[#allocation13 + $0x8d8] sm:$0xff]
        %v6466 = vld [vmem:[#allocation13 + $0x910] sm:$0xff]
        %v6467 = vld [vmem:[#allocation13 + $0x918] sm:$0xff]
        %v6468 = vld [vmem:[#allocation13 + $0x950] sm:$0xff]
        %v6469 = vld [vmem:[#allocation13 + $0x958] sm:$0xff]
        %v6470 = vld [vmem:[#allocation13 + $0x990] sm:$0xff]
        %v6471 = vld [vmem:[#allocation13 + $0x998] sm:$0xff]
        %v6472 = vld [vmem:[#allocation13 + $0x9d0] sm:$0xff]
        %v6473 = vld [vmem:[#allocation13 + $0x9d8] sm:$0xff]
        %v6474 = vld [vmem:[#allocation13 + $0xa10] sm:$0xff]
        %v6475 = vld [vmem:[#allocation13 + $0xa18] sm:$0xff]
        %v6476 = vld [vmem:[#allocation13 + $0xa50] sm:$0xff]
        %v6477 = vld [vmem:[#allocation13 + $0xa58] sm:$0xff]
        %v6478 = vld [vmem:[#allocation13 + $0xa90] sm:$0xff]
        %v6479 = vld [vmem:[#allocation13 + $0xa98] sm:$0xff]
        %v6480 = vld [vmem:[#allocation13 + $0xad0] sm:$0xff]
        %v6481 = vld [vmem:[#allocation13 + $0xad8] sm:$0xff]
        %v6482 = vld [vmem:[#allocation13 + $0xb10] sm:$0xff]
        %v6483 = vld [vmem:[#allocation13 + $0xb18] sm:$0xff]
        %v6484 = vld [vmem:[#allocation13 + $0xb50] sm:$0xff]
        %v6485 = vld [vmem:[#allocation13 + $0xb58] sm:$0xff]
        %v6486 = vld [vmem:[#allocation13 + $0xb90] sm:$0xff]
        %v6487 = vld [vmem:[#allocation13 + $0xb98] sm:$0xff]
        %v6488 = vld [vmem:[#allocation13 + $0xbd0] sm:$0xff]
        %v6489 = vld [vmem:[#allocation13 + $0xbd8] sm:$0xff]
        %v6490 = vld [vmem:[#allocation13 + $0xc10] sm:$0xff]
        %v6491 = vld [vmem:[#allocation13 + $0xc18] sm:$0xff]
        %v6492 = vld [vmem:[#allocation13 + $0xc50] sm:$0xff]
        %v6493 = vld [vmem:[#allocation13 + $0xc58] sm:$0xff]
        %v6494 = vld [vmem:[#allocation13 + $0xc90] sm:$0xff]
        %v6495 = vld [vmem:[#allocation13 + $0xc98] sm:$0xff]
        %v6496 = vld [vmem:[#allocation13 + $0xcd0] sm:$0xff]
        %v6497 = vld [vmem:[#allocation13 + $0xcd8] sm:$0xff]
        %v6498 = vld [vmem:[#allocation13 + $0xd10] sm:$0xff]
        %v6499 = vld [vmem:[#allocation13 + $0xd18] sm:$0xff]
        %v6500 = vld [vmem:[#allocation13 + $0xd50] sm:$0xff]
        %v6501 = vld [vmem:[#allocation13 + $0xd58] sm:$0xff]
        %v6502 = vld [vmem:[#allocation13 + $0xd90] sm:$0xff]
        %v6503 = vld [vmem:[#allocation13 + $0xd98] sm:$0xff]
        %v6504 = vld [vmem:[#allocation13 + $0xdd0] sm:$0xff]
        %v6505 = vld [vmem:[#allocation13 + $0xdd8] sm:$0xff]
        %v6506 = vld [vmem:[#allocation13 + $0xe10] sm:$0xff]
        %v6507 = vld [vmem:[#allocation13 + $0xe18] sm:$0xff]
        %v6508 = vld [vmem:[#allocation13 + $0xe50] sm:$0xff]
        %v6509 = vld [vmem:[#allocation13 + $0xe58] sm:$0xff]
        %v6510 = vld [vmem:[#allocation13 + $0xe90] sm:$0xff]
        %v6511 = vld [vmem:[#allocation13 + $0xe98] sm:$0xff]
        %v6512 = vld [vmem:[#allocation13 + $0xed0] sm:$0xff]
        %v6513 = vld [vmem:[#allocation13 + $0xed8] sm:$0xff]
        %v6514 = vld [vmem:[#allocation13 + $0xf10] sm:$0xff]
        %v6515 = vld [vmem:[#allocation13 + $0xf18] sm:$0xff]
        %v6516 = vld [vmem:[#allocation13 + $0xf50] sm:$0xff]
        %v6517 = vld [vmem:[#allocation13 + $0xf58] sm:$0xff]
        %v6518 = vld [vmem:[#allocation13 + $0xf90] sm:$0xff]
        %v6519 = vld [vmem:[#allocation13 + $0xf98] sm:$0xff]
        %v6520 = vld [vmem:[#allocation13 + $0xfd0] sm:$0xff]
        %v6521 = vld [vmem:[#allocation13 + $0xfd8] sm:$0xff]
        %v6522 = vld [vmem:[#allocation14 + $0x4] sm:$0xf]
        %v6524 = vlaneseq
        %v6525 = vshrl.u32 %v6524, 7
        %v6526 = vsub.s32 0, %v6525
        %v6527 = vrot.slane %v6522, %v6526
        %v6528 = vlaneseq
        %v6529 = vshrl.u32 %v6528, 7
        %v6530 = vsub.s32 1, %v6529
        %v6531 = vrot.slane %v6522, %v6530
        %v6532 = vlaneseq
        %v6533 = vshrl.u32 %v6532, 7
        %v6534 = vsub.s32 2, %v6533
        %v6535 = vrot.slane %v6522, %v6534
        %v6536 = vlaneseq
        %v6537 = vshrl.u32 %v6536, 7
        %v6538 = vsub.s32 3, %v6537
        %v6539 = vrot.slane %v6522, %v6538
        %v6672 = vunpack.c.l.b16 %v6394
        %v6673 = vunpack.c.h.b16 %v6394
        %v6674 = vunpack.c.l.b16 %v6395
        %v6675 = vunpack.c.h.b16 %v6395
        %v6676 = vunpack.c.l.b16 %v6396
        %v6677 = vunpack.c.h.b16 %v6396
        %v6678 = vunpack.c.l.b16 %v6397
        %v6679 = vunpack.c.h.b16 %v6397
        %v6680 = vunpack.c.l.b16 %v6398
        %v6681 = vunpack.c.h.b16 %v6398
        %v6682 = vunpack.c.l.b16 %v6399
        %v6683 = vunpack.c.h.b16 %v6399
        %v6684 = vunpack.c.l.b16 %v6400
        %v6685 = vunpack.c.h.b16 %v6400
        %v6686 = vunpack.c.l.b16 %v6401
        %v6687 = vunpack.c.h.b16 %v6401
        %v6688 = vunpack.c.l.b16 %v6402
        %v6689 = vunpack.c.h.b16 %v6402
        %v6690 = vunpack.c.l.b16 %v6403
        %v6691 = vunpack.c.h.b16 %v6403
        %v6692 = vunpack.c.l.b16 %v6404
        %v6693 = vunpack.c.h.b16 %v6404
        %v6694 = vunpack.c.l.b16 %v6405
        %v6695 = vunpack.c.h.b16 %v6405
        %v6696 = vunpack.c.l.b16 %v6406
        %v6697 = vunpack.c.h.b16 %v6406
        %v6698 = vunpack.c.l.b16 %v6407
        %v6699 = vunpack.c.h.b16 %v6407
        %v6700 = vunpack.c.l.b16 %v6408
        %v6701 = vunpack.c.h.b16 %v6408
        %v6702 = vunpack.c.l.b16 %v6409
        %v6703 = vunpack.c.h.b16 %v6409
        %v6704 = vunpack.c.l.b16 %v6410
        %v6705 = vunpack.c.h.b16 %v6410
        %v6706 = vunpack.c.l.b16 %v6411
        %v6707 = vunpack.c.h.b16 %v6411
        %v6708 = vunpack.c.l.b16 %v6412
        %v6709 = vunpack.c.h.b16 %v6412
        %v6710 = vunpack.c.l.b16 %v6413
        %v6711 = vunpack.c.h.b16 %v6413
        %v6712 = vunpack.c.l.b16 %v6414
        %v6713 = vunpack.c.h.b16 %v6414
        %v6714 = vunpack.c.l.b16 %v6415
        %v6715 = vunpack.c.h.b16 %v6415
        %v6716 = vunpack.c.l.b16 %v6416
        %v6717 = vunpack.c.h.b16 %v6416
        %v6718 = vunpack.c.l.b16 %v6417
        %v6719 = vunpack.c.h.b16 %v6417
        %v6720 = vunpack.c.l.b16 %v6418
        %v6721 = vunpack.c.h.b16 %v6418
        %v6722 = vunpack.c.l.b16 %v6419
        %v6723 = vunpack.c.h.b16 %v6419
        %v6724 = vunpack.c.l.b16 %v6420
        %v6725 = vunpack.c.h.b16 %v6420
        %v6726 = vunpack.c.l.b16 %v6421
        %v6727 = vunpack.c.h.b16 %v6421
        %v6728 = vunpack.c.l.b16 %v6422
        %v6729 = vunpack.c.h.b16 %v6422
        %v6730 = vunpack.c.l.b16 %v6423
        %v6731 = vunpack.c.h.b16 %v6423
        %v6732 = vunpack.c.l.b16 %v6424
        %v6733 = vunpack.c.h.b16 %v6424
        %v6734 = vunpack.c.l.b16 %v6425
        %v6735 = vunpack.c.h.b16 %v6425
        %v6736 = vunpack.c.l.b16 %v6426
        %v6737 = vunpack.c.h.b16 %v6426
        %v6738 = vunpack.c.l.b16 %v6427
        %v6739 = vunpack.c.h.b16 %v6427
        %v6740 = vunpack.c.l.b16 %v6428
        %v6741 = vunpack.c.h.b16 %v6428
        %v6742 = vunpack.c.l.b16 %v6429
        %v6743 = vunpack.c.h.b16 %v6429
        %v6744 = vunpack.c.l.b16 %v6430
        %v6745 = vunpack.c.h.b16 %v6430
        %v6746 = vunpack.c.l.b16 %v6431
        %v6747 = vunpack.c.h.b16 %v6431
        %v6748 = vunpack.c.l.b16 %v6432
        %v6749 = vunpack.c.h.b16 %v6432
        %v6750 = vunpack.c.l.b16 %v6433
        %v6751 = vunpack.c.h.b16 %v6433
        %v6752 = vunpack.c.l.b16 %v6434
        %v6753 = vunpack.c.h.b16 %v6434
        %v6754 = vunpack.c.l.b16 %v6435
        %v6755 = vunpack.c.h.b16 %v6435
        %v6756 = vunpack.c.l.b16 %v6436
        %v6757 = vunpack.c.h.b16 %v6436
        %v6758 = vunpack.c.l.b16 %v6437
        %v6759 = vunpack.c.h.b16 %v6437
        %v6760 = vunpack.c.l.b16 %v6438
        %v6761 = vunpack.c.h.b16 %v6438
        %v6762 = vunpack.c.l.b16 %v6439
        %v6763 = vunpack.c.h.b16 %v6439
        %v6764 = vunpack.c.l.b16 %v6440
        %v6765 = vunpack.c.h.b16 %v6440
        %v6766 = vunpack.c.l.b16 %v6441
        %v6767 = vunpack.c.h.b16 %v6441
        %v6768 = vunpack.c.l.b16 %v6442
        %v6769 = vunpack.c.h.b16 %v6442
        %v6770 = vunpack.c.l.b16 %v6443
        %v6771 = vunpack.c.h.b16 %v6443
        %v6772 = vunpack.c.l.b16 %v6444
        %v6773 = vunpack.c.h.b16 %v6444
        %v6774 = vunpack.c.l.b16 %v6445
        %v6775 = vunpack.c.h.b16 %v6445
        %v6776 = vunpack.c.l.b16 %v6446
        %v6777 = vunpack.c.h.b16 %v6446
        %v6778 = vunpack.c.l.b16 %v6447
        %v6779 = vunpack.c.h.b16 %v6447
        %v6780 = vunpack.c.l.b16 %v6448
        %v6781 = vunpack.c.h.b16 %v6448
        %v6782 = vunpack.c.l.b16 %v6449
        %v6783 = vunpack.c.h.b16 %v6449
        %v6784 = vunpack.c.l.b16 %v6450
        %v6785 = vunpack.c.h.b16 %v6450
        %v6786 = vunpack.c.l.b16 %v6451
        %v6787 = vunpack.c.h.b16 %v6451
        %v6788 = vunpack.c.l.b16 %v6452
        %v6789 = vunpack.c.h.b16 %v6452
        %v6790 = vunpack.c.l.b16 %v6453
        %v6791 = vunpack.c.h.b16 %v6453
        %v6792 = vunpack.c.l.b16 %v6454
        %v6793 = vunpack.c.h.b16 %v6454
        %v6794 = vunpack.c.l.b16 %v6455
        %v6795 = vunpack.c.h.b16 %v6455
        %v6796 = vunpack.c.l.b16 %v6456
        %v6797 = vunpack.c.h.b16 %v6456
        %v6798 = vunpack.c.l.b16 %v6457
        %v6799 = vunpack.c.h.b16 %v6457
        %v6800 = vunpack.c.l.b16 %v6458
        %v6801 = vunpack.c.h.b16 %v6458
        %v6802 = vunpack.c.l.b16 %v6459
        %v6803 = vunpack.c.h.b16 %v6459
        %v6804 = vunpack.c.l.b16 %v6460
        %v6805 = vunpack.c.h.b16 %v6460
        %v6806 = vunpack.c.l.b16 %v6461
        %v6807 = vunpack.c.h.b16 %v6461
        %v6808 = vunpack.c.l.b16 %v6462
        %v6809 = vunpack.c.h.b16 %v6462
        %v6810 = vunpack.c.l.b16 %v6463
        %v6811 = vunpack.c.h.b16 %v6463
        %v6812 = vunpack.c.l.b16 %v6464
        %v6813 = vunpack.c.h.b16 %v6464
        %v6814 = vunpack.c.l.b16 %v6465
        %v6815 = vunpack.c.h.b16 %v6465
        %v6816 = vunpack.c.l.b16 %v6466
        %v6817 = vunpack.c.h.b16 %v6466
        %v6818 = vunpack.c.l.b16 %v6467
        %v6819 = vunpack.c.h.b16 %v6467
        %v6820 = vunpack.c.l.b16 %v6468
        %v6821 = vunpack.c.h.b16 %v6468
        %v6822 = vunpack.c.l.b16 %v6469
        %v6823 = vunpack.c.h.b16 %v6469
        %v6824 = vunpack.c.l.b16 %v6470
        %v6825 = vunpack.c.h.b16 %v6470
        %v6826 = vunpack.c.l.b16 %v6471
        %v6827 = vunpack.c.h.b16 %v6471
        %v6828 = vunpack.c.l.b16 %v6472
        %v6829 = vunpack.c.h.b16 %v6472
        %v6830 = vunpack.c.l.b16 %v6473
        %v6831 = vunpack.c.h.b16 %v6473
        %v6832 = vunpack.c.l.b16 %v6474
        %v6833 = vunpack.c.h.b16 %v6474
        %v6834 = vunpack.c.l.b16 %v6475
        %v6835 = vunpack.c.h.b16 %v6475
        %v6836 = vunpack.c.l.b16 %v6476
        %v6837 = vunpack.c.h.b16 %v6476
        %v6838 = vunpack.c.l.b16 %v6477
        %v6839 = vunpack.c.h.b16 %v6477
        %v6840 = vunpack.c.l.b16 %v6478
        %v6841 = vunpack.c.h.b16 %v6478
        %v6842 = vunpack.c.l.b16 %v6479
        %v6843 = vunpack.c.h.b16 %v6479
        %v6844 = vunpack.c.l.b16 %v6480
        %v6845 = vunpack.c.h.b16 %v6480
        %v6846 = vunpack.c.l.b16 %v6481
        %v6847 = vunpack.c.h.b16 %v6481
        %v6848 = vunpack.c.l.b16 %v6482
        %v6849 = vunpack.c.h.b16 %v6482
        %v6850 = vunpack.c.l.b16 %v6483
        %v6851 = vunpack.c.h.b16 %v6483
        %v6852 = vunpack.c.l.b16 %v6484
        %v6853 = vunpack.c.h.b16 %v6484
        %v6854 = vunpack.c.l.b16 %v6485
        %v6855 = vunpack.c.h.b16 %v6485
        %v6856 = vunpack.c.l.b16 %v6486
        %v6857 = vunpack.c.h.b16 %v6486
        %v6858 = vunpack.c.l.b16 %v6487
        %v6859 = vunpack.c.h.b16 %v6487
        %v6860 = vunpack.c.l.b16 %v6488
        %v6861 = vunpack.c.h.b16 %v6488
        %v6862 = vunpack.c.l.b16 %v6489
        %v6863 = vunpack.c.h.b16 %v6489
        %v6864 = vunpack.c.l.b16 %v6490
        %v6865 = vunpack.c.h.b16 %v6490
        %v6866 = vunpack.c.l.b16 %v6491
        %v6867 = vunpack.c.h.b16 %v6491
        %v6868 = vunpack.c.l.b16 %v6492
        %v6869 = vunpack.c.h.b16 %v6492
        %v6870 = vunpack.c.l.b16 %v6493
        %v6871 = vunpack.c.h.b16 %v6493
        %v6872 = vunpack.c.l.b16 %v6494
        %v6873 = vunpack.c.h.b16 %v6494
        %v6874 = vunpack.c.l.b16 %v6495
        %v6875 = vunpack.c.h.b16 %v6495
        %v6876 = vunpack.c.l.b16 %v6496
        %v6877 = vunpack.c.h.b16 %v6496
        %v6878 = vunpack.c.l.b16 %v6497
        %v6879 = vunpack.c.h.b16 %v6497
        %v6880 = vunpack.c.l.b16 %v6498
        %v6881 = vunpack.c.h.b16 %v6498
        %v6882 = vunpack.c.l.b16 %v6499
        %v6883 = vunpack.c.h.b16 %v6499
        %v6884 = vunpack.c.l.b16 %v6500
        %v6885 = vunpack.c.h.b16 %v6500
        %v6886 = vunpack.c.l.b16 %v6501
        %v6887 = vunpack.c.h.b16 %v6501
        %v6888 = vunpack.c.l.b16 %v6502
        %v6889 = vunpack.c.h.b16 %v6502
        %v6890 = vunpack.c.l.b16 %v6503
        %v6891 = vunpack.c.h.b16 %v6503
        %v6892 = vunpack.c.l.b16 %v6504
        %v6893 = vunpack.c.h.b16 %v6504
        %v6894 = vunpack.c.l.b16 %v6505
        %v6895 = vunpack.c.h.b16 %v6505
        %v6896 = vunpack.c.l.b16 %v6506
        %v6897 = vunpack.c.h.b16 %v6506
        %v6898 = vunpack.c.l.b16 %v6507
        %v6899 = vunpack.c.h.b16 %v6507
        %v6900 = vunpack.c.l.b16 %v6508
        %v6901 = vunpack.c.h.b16 %v6508
        %v6902 = vunpack.c.l.b16 %v6509
        %v6903 = vunpack.c.h.b16 %v6509
        %v6904 = vunpack.c.l.b16 %v6510
        %v6905 = vunpack.c.h.b16 %v6510
        %v6906 = vunpack.c.l.b16 %v6511
        %v6907 = vunpack.c.h.b16 %v6511
        %v6908 = vunpack.c.l.b16 %v6512
        %v6909 = vunpack.c.h.b16 %v6512
        %v6910 = vunpack.c.l.b16 %v6513
        %v6911 = vunpack.c.h.b16 %v6513
        %v6912 = vunpack.c.l.b16 %v6514
        %v6913 = vunpack.c.h.b16 %v6514
        %v6914 = vunpack.c.l.b16 %v6515
        %v6915 = vunpack.c.h.b16 %v6515
        %v6916 = vunpack.c.l.b16 %v6516
        %v6917 = vunpack.c.h.b16 %v6516
        %v6918 = vunpack.c.l.b16 %v6517
        %v6919 = vunpack.c.h.b16 %v6517
        %v6920 = vunpack.c.l.b16 %v6518
        %v6921 = vunpack.c.h.b16 %v6518
        %v6922 = vunpack.c.l.b16 %v6519
        %v6923 = vunpack.c.h.b16 %v6519
        %v6924 = vunpack.c.l.b16 %v6520
        %v6925 = vunpack.c.h.b16 %v6520
        %v6926 = vunpack.c.l.b16 %v6521
        %v6927 = vunpack.c.h.b16 %v6521
        %v6928 = vpack.c.b16 %v6676, %v6672
        %v6929 = vpack.c.b16 %v6677, %v6673
        %v6930 = vpack.c.b16 %v6678, %v6674
        %v6931 = vpack.c.b16 %v6679, %v6675
        %v6932 = vpack.c.b16 %v6684, %v6680
        %v6933 = vpack.c.b16 %v6685, %v6681
        %v6934 = vpack.c.b16 %v6686, %v6682
        %v6935 = vpack.c.b16 %v6687, %v6683
        %v6936 = vpack.c.b16 %v6692, %v6688
        %v6937 = vpack.c.b16 %v6693, %v6689
        %v6938 = vpack.c.b16 %v6694, %v6690
        %v6939 = vpack.c.b16 %v6695, %v6691
        %v6940 = vpack.c.b16 %v6700, %v6696
        %v6941 = vpack.c.b16 %v6701, %v6697
        %v6942 = vpack.c.b16 %v6702, %v6698
        %v6943 = vpack.c.b16 %v6703, %v6699
        %v6944 = vpack.c.b16 %v6708, %v6704
        %v6945 = vpack.c.b16 %v6709, %v6705
        %v6946 = vpack.c.b16 %v6710, %v6706
        %v6947 = vpack.c.b16 %v6711, %v6707
        %v6948 = vpack.c.b16 %v6716, %v6712
        %v6949 = vpack.c.b16 %v6717, %v6713
        %v6950 = vpack.c.b16 %v6718, %v6714
        %v6951 = vpack.c.b16 %v6719, %v6715
        %v6952 = vpack.c.b16 %v6724, %v6720
        %v6953 = vpack.c.b16 %v6725, %v6721
        %v6954 = vpack.c.b16 %v6726, %v6722
        %v6955 = vpack.c.b16 %v6727, %v6723
        %v6956 = vpack.c.b16 %v6732, %v6728
        %v6957 = vpack.c.b16 %v6733, %v6729
        %v6958 = vpack.c.b16 %v6734, %v6730
        %v6959 = vpack.c.b16 %v6735, %v6731
        %v6960 = vpack.c.b16 %v6740, %v6736
        %v6961 = vpack.c.b16 %v6741, %v6737
        %v6962 = vpack.c.b16 %v6742, %v6738
        %v6963 = vpack.c.b16 %v6743, %v6739
        %v6964 = vpack.c.b16 %v6748, %v6744
        %v6965 = vpack.c.b16 %v6749, %v6745
        %v6966 = vpack.c.b16 %v6750, %v6746
        %v6967 = vpack.c.b16 %v6751, %v6747
        %v6968 = vpack.c.b16 %v6756, %v6752
        %v6969 = vpack.c.b16 %v6757, %v6753
        %v6970 = vpack.c.b16 %v6758, %v6754
        %v6971 = vpack.c.b16 %v6759, %v6755
        %v6972 = vpack.c.b16 %v6764, %v6760
        %v6973 = vpack.c.b16 %v6765, %v6761
        %v6974 = vpack.c.b16 %v6766, %v6762
        %v6975 = vpack.c.b16 %v6767, %v6763
        %v6976 = vpack.c.b16 %v6772, %v6768
        %v6977 = vpack.c.b16 %v6773, %v6769
        %v6978 = vpack.c.b16 %v6774, %v6770
        %v6979 = vpack.c.b16 %v6775, %v6771
        %v6980 = vpack.c.b16 %v6780, %v6776
        %v6981 = vpack.c.b16 %v6781, %v6777
        %v6982 = vpack.c.b16 %v6782, %v6778
        %v6983 = vpack.c.b16 %v6783, %v6779
        %v6984 = vpack.c.b16 %v6788, %v6784
        %v6985 = vpack.c.b16 %v6789, %v6785
        %v6986 = vpack.c.b16 %v6790, %v6786
        %v6987 = vpack.c.b16 %v6791, %v6787
        %v6988 = vpack.c.b16 %v6796, %v6792
        %v6989 = vpack.c.b16 %v6797, %v6793
        %v6990 = vpack.c.b16 %v6798, %v6794
        %v6991 = vpack.c.b16 %v6799, %v6795
        %v6992 = vpack.c.b16 %v6804, %v6800
        %v6993 = vpack.c.b16 %v6805, %v6801
        %v6994 = vpack.c.b16 %v6806, %v6802
        %v6995 = vpack.c.b16 %v6807, %v6803
        %v6996 = vpack.c.b16 %v6812, %v6808
        %v6997 = vpack.c.b16 %v6813, %v6809
        %v6998 = vpack.c.b16 %v6814, %v6810
        %v6999 = vpack.c.b16 %v6815, %v6811
        %v7000 = vpack.c.b16 %v6820, %v6816
        %v7001 = vpack.c.b16 %v6821, %v6817
        %v7002 = vpack.c.b16 %v6822, %v6818
        %v7003 = vpack.c.b16 %v6823, %v6819
        %v7004 = vpack.c.b16 %v6828, %v6824
        %v7005 = vpack.c.b16 %v6829, %v6825
        %v7006 = vpack.c.b16 %v6830, %v6826
        %v7007 = vpack.c.b16 %v6831, %v6827
        %v7008 = vpack.c.b16 %v6836, %v6832
        %v7009 = vpack.c.b16 %v6837, %v6833
        %v7010 = vpack.c.b16 %v6838, %v6834
        %v7011 = vpack.c.b16 %v6839, %v6835
        %v7012 = vpack.c.b16 %v6844, %v6840
        %v7013 = vpack.c.b16 %v6845, %v6841
        %v7014 = vpack.c.b16 %v6846, %v6842
        %v7015 = vpack.c.b16 %v6847, %v6843
        %v7016 = vpack.c.b16 %v6852, %v6848
        %v7017 = vpack.c.b16 %v6853, %v6849
        %v7018 = vpack.c.b16 %v6854, %v6850
        %v7019 = vpack.c.b16 %v6855, %v6851
        %v7020 = vpack.c.b16 %v6860, %v6856
        %v7021 = vpack.c.b16 %v6861, %v6857
        %v7022 = vpack.c.b16 %v6862, %v6858
        %v7023 = vpack.c.b16 %v6863, %v6859
        %v7024 = vpack.c.b16 %v6868, %v6864
        %v7025 = vpack.c.b16 %v6869, %v6865
        %v7026 = vpack.c.b16 %v6870, %v6866
        %v7027 = vpack.c.b16 %v6871, %v6867
        %v7028 = vpack.c.b16 %v6876, %v6872
        %v7029 = vpack.c.b16 %v6877, %v6873
        %v7030 = vpack.c.b16 %v6878, %v6874
        %v7031 = vpack.c.b16 %v6879, %v6875
        %v7032 = vpack.c.b16 %v6884, %v6880
        %v7033 = vpack.c.b16 %v6885, %v6881
        %v7034 = vpack.c.b16 %v6886, %v6882
        %v7035 = vpack.c.b16 %v6887, %v6883
        %v7036 = vpack.c.b16 %v6892, %v6888
        %v7037 = vpack.c.b16 %v6893, %v6889
        %v7038 = vpack.c.b16 %v6894, %v6890
        %v7039 = vpack.c.b16 %v6895, %v6891
        %v7040 = vpack.c.b16 %v6900, %v6896
        %v7041 = vpack.c.b16 %v6901, %v6897
        %v7042 = vpack.c.b16 %v6902, %v6898
        %v7043 = vpack.c.b16 %v6903, %v6899
        %v7044 = vpack.c.b16 %v6908, %v6904
        %v7045 = vpack.c.b16 %v6909, %v6905
        %v7046 = vpack.c.b16 %v6910, %v6906
        %v7047 = vpack.c.b16 %v6911, %v6907
        %v7048 = vpack.c.b16 %v6916, %v6912
        %v7049 = vpack.c.b16 %v6917, %v6913
        %v7050 = vpack.c.b16 %v6918, %v6914
        %v7051 = vpack.c.b16 %v6919, %v6915
        %v7052 = vpack.c.b16 %v6924, %v6920
        %v7053 = vpack.c.b16 %v6925, %v6921
        %v7054 = vpack.c.b16 %v6926, %v6922
        %v7055 = vpack.c.b16 %v6927, %v6923
        %7184 = vmatprep.subr.bf16.mxu0 %v6957
        %7185 = vmatpush1.bf16.msra.mxu0 %v6956
        %7186 = vmatprep.subr.bf16.mxu0 %v6953
        %7187 = vmatpush1.bf16.msra.mxu0 %v6952
        %7188 = vmatprep.subr.bf16.mxu0 %v6949
        %7189 = vmatpush1.bf16.msra.mxu0 %v6948
        %7190 = vmatprep.subr.bf16.mxu0 %v6945
        %7191 = vmatpush1.bf16.msra.mxu0 %v6944
        %7192 = vmatprep.subr.bf16.mxu0 %v6941
        %7193 = vmatpush1.bf16.msra.mxu0 %v6940
        %7194 = vmatprep.subr.bf16.mxu0 %v6937
        %7195 = vmatpush1.bf16.msra.mxu0 %v6936
        %7196 = vmatprep.subr.bf16.mxu0 %v6933
        %7197 = vmatpush1.bf16.msra.mxu0 %v6932
        %7198 = vmatprep.subr.bf16.mxu0 %v6929
        %7199 = vmatpush1.bf16.msra.mxu0 %v6928
        %7200 = vmatprep.subr.bf16.mxu0 %v6989
        %7201 = vmatpush2.bf16.msra.mxu0 %v6988
        %7202 = vmatprep.subr.bf16.mxu0 %v6985
        %7203 = vmatpush2.bf16.msra.mxu0 %v6984
        %7204 = vmatprep.subr.bf16.mxu0 %v6981
        %7205 = vmatpush2.bf16.msra.mxu0 %v6980
        %7206 = vmatprep.subr.bf16.mxu0 %v6977
        %7207 = vmatpush2.bf16.msra.mxu0 %v6976
        %7208 = vmatprep.subr.bf16.mxu0 %v6973
        %7209 = vmatpush2.bf16.msra.mxu0 %v6972
        %7210 = vmatprep.subr.bf16.mxu0 %v6969
        %7211 = vmatpush2.bf16.msra.mxu0 %v6968
        %7212 = vmatprep.subr.bf16.mxu0 %v6965
        %7213 = vmatpush2.bf16.msra.mxu0 %v6964
        %7214 = vmatprep.subr.bf16.mxu0 %v6961
        %7215 = vmatpush2.bf16.msra.mxu0 %v6960
        %7216 = vmatprep.mubr.bf16.mxu0 %v5416
        %7217 = vmatmul.mubr.bf16.gmra.mxu0 %v5413
        %v7218 = vpop.f32.mrf.mxu0
        %v7219 = vadd.f32 %v6527, %v7218
        %v7220 = vpop.f32.mrf.mxu0
        %v7221 = vadd.f32 %v6531, %v7220
        %v7222 = vpop.f32.mrf.mxu0
        %v7223 = vadd.f32 %v6527, %v7222
        %v7224 = vpop.f32.mrf.mxu0
        %v7225 = vadd.f32 %v6531, %v7224
        %7226 = vdwg.mxu0
        %7227 = vmatprep.subr.bf16.mxu0 %v7021
        %7228 = vmatpush1.bf16.msra.mxu0 %v7020
        %7229 = vmatprep.subr.bf16.mxu0 %v7017
        %7230 = vmatpush1.bf16.msra.mxu0 %v7016
        %7231 = vmatprep.subr.bf16.mxu0 %v7013
        %7232 = vmatpush1.bf16.msra.mxu0 %v7012
        %7233 = vmatprep.subr.bf16.mxu0 %v7009
        %7234 = vmatpush1.bf16.msra.mxu0 %v7008
        %7235 = vmatprep.subr.bf16.mxu0 %v7005
        %7236 = vmatpush1.bf16.msra.mxu0 %v7004
        %7237 = vmatprep.subr.bf16.mxu0 %v7001
        %7238 = vmatpush1.bf16.msra.mxu0 %v7000
        %7239 = vmatprep.subr.bf16.mxu0 %v6997
        %7240 = vmatpush1.bf16.msra.mxu0 %v6996
        %7241 = vmatprep.subr.bf16.mxu0 %v6993
        %7242 = vmatpush1.bf16.msra.mxu0 %v6992
        %7243 = vmatprep.subr.bf16.mxu0 %v7053
        %7244 = vmatpush2.bf16.msra.mxu0 %v7052
        %7245 = vmatprep.subr.bf16.mxu0 %v7049
        %7246 = vmatpush2.bf16.msra.mxu0 %v7048
        %7247 = vmatprep.subr.bf16.mxu0 %v7045
        %7248 = vmatpush2.bf16.msra.mxu0 %v7044
        %7249 = vmatprep.subr.bf16.mxu0 %v7041
        %7250 = vmatpush2.bf16.msra.mxu0 %v7040
        %7251 = vmatprep.subr.bf16.mxu0 %v7037
        %7252 = vmatpush2.bf16.msra.mxu0 %v7036
        %7253 = vmatprep.subr.bf16.mxu0 %v7033
        %7254 = vmatpush2.bf16.msra.mxu0 %v7032
        %7255 = vmatprep.subr.bf16.mxu0 %v7029
        %7256 = vmatpush2.bf16.msra.mxu0 %v7028
        %7257 = vmatprep.subr.bf16.mxu0 %v7025
        %7258 = vmatpush2.bf16.msra.mxu0 %v7024
        %7259 = vmatprep.mubr.bf16.mxu0 %v5422
        %7260 = vmatmul.mubr.bf16.gmra.mxu0 %v5419
        %v7261 = vpop.f32.mrf.mxu0
        %v7262 = vadd.f32 %v7219, %v7261
        %v7263 = vpop.f32.mrf.mxu0
        %v7264 = vadd.f32 %v7221, %v7263
        %v7265 = vpop.f32.mrf.mxu0
        %v7266 = vadd.f32 %v7223, %v7265
        %v7267 = vpop.f32.mrf.mxu0
        %v7268 = vadd.f32 %v7225, %v7267
        %7269 = vdwg.mxu0
        %7270 = vmatprep.subr.bf16.mxu0 %v6959
        %7271 = vmatpush1.bf16.msra.mxu0 %v6958
        %7272 = vmatprep.subr.bf16.mxu0 %v6955
        %7273 = vmatpush1.bf16.msra.mxu0 %v6954
        %7274 = vmatprep.subr.bf16.mxu0 %v6951
        %7275 = vmatpush1.bf16.msra.mxu0 %v6950
        %7276 = vmatprep.subr.bf16.mxu0 %v6947
        %7277 = vmatpush1.bf16.msra.mxu0 %v6946
        %7278 = vmatprep.subr.bf16.mxu0 %v6943
        %7279 = vmatpush1.bf16.msra.mxu0 %v6942
        %7280 = vmatprep.subr.bf16.mxu0 %v6939
        %7281 = vmatpush1.bf16.msra.mxu0 %v6938
        %7282 = vmatprep.subr.bf16.mxu0 %v6935
        %7283 = vmatpush1.bf16.msra.mxu0 %v6934
        %7284 = vmatprep.subr.bf16.mxu0 %v6931
        %7285 = vmatpush1.bf16.msra.mxu0 %v6930
        %7286 = vmatprep.subr.bf16.mxu0 %v6991
        %7287 = vmatpush2.bf16.msra.mxu0 %v6990
        %7288 = vmatprep.subr.bf16.mxu0 %v6987
        %7289 = vmatpush2.bf16.msra.mxu0 %v6986
        %7290 = vmatprep.subr.bf16.mxu0 %v6983
        %7291 = vmatpush2.bf16.msra.mxu0 %v6982
        %7292 = vmatprep.subr.bf16.mxu0 %v6979
        %7293 = vmatpush2.bf16.msra.mxu0 %v6978
        %7294 = vmatprep.subr.bf16.mxu0 %v6975
        %7295 = vmatpush2.bf16.msra.mxu0 %v6974
        %7296 = vmatprep.subr.bf16.mxu0 %v6971
        %7297 = vmatpush2.bf16.msra.mxu0 %v6970
        %7298 = vmatprep.subr.bf16.mxu0 %v6967
        %7299 = vmatpush2.bf16.msra.mxu0 %v6966
        %7300 = vmatprep.subr.bf16.mxu0 %v6963
        %7301 = vmatpush2.bf16.msra.mxu0 %v6962
        %7302 = vmatprep.mubr.bf16.mxu0 %v5416
        %7303 = vmatmul.mubr.bf16.gmra.mxu0 %v5413
        %v7304 = vpop.f32.mrf.mxu0
        %v7305 = vadd.f32 %v6535, %v7304
        %v7306 = vpop.f32.mrf.mxu0
        %v7307 = vadd.f32 %v6539, %v7306
        %v7308 = vpop.f32.mrf.mxu0
        %v7309 = vadd.f32 %v6535, %v7308
        %v7310 = vpop.f32.mrf.mxu0
        %v7311 = vadd.f32 %v6539, %v7310
        %7312 = vdwg.mxu0
        %7313 = vmatprep.subr.bf16.mxu0 %v7023
        %7314 = vmatpush1.bf16.msra.mxu0 %v7022
        %7315 = vmatprep.subr.bf16.mxu0 %v7019
        %7316 = vmatpush1.bf16.msra.mxu0 %v7018
        %7317 = vmatprep.subr.bf16.mxu0 %v7015
        %7318 = vmatpush1.bf16.msra.mxu0 %v7014
        %7319 = vmatprep.subr.bf16.mxu0 %v7011
        %7320 = vmatpush1.bf16.msra.mxu0 %v7010
        %7321 = vmatprep.subr.bf16.mxu0 %v7007
        %7322 = vmatpush1.bf16.msra.mxu0 %v7006
        %7323 = vmatprep.subr.bf16.mxu0 %v7003
        %7324 = vmatpush1.bf16.msra.mxu0 %v7002
        %7325 = vmatprep.subr.bf16.mxu0 %v6999
        %7326 = vmatpush1.bf16.msra.mxu0 %v6998
        %7327 = vmatprep.subr.bf16.mxu0 %v6995
        %7328 = vmatpush1.bf16.msra.mxu0 %v6994
        %7329 = vmatprep.subr.bf16.mxu0 %v7055
        %7330 = vmatpush2.bf16.msra.mxu0 %v7054
        %7331 = vmatprep.subr.bf16.mxu0 %v7051
        %7332 = vmatpush2.bf16.msra.mxu0 %v7050
        %7333 = vmatprep.subr.bf16.mxu0 %v7047
        %7334 = vmatpush2.bf16.msra.mxu0 %v7046
        %7335 = vmatprep.subr.bf16.mxu0 %v7043
        %7336 = vmatpush2.bf16.msra.mxu0 %v7042
        %7337 = vmatprep.subr.bf16.mxu0 %v7039
        %7338 = vmatpush2.bf16.msra.mxu0 %v7038
        %7339 = vmatprep.subr.bf16.mxu0 %v7035
        %7340 = vmatpush2.bf16.msra.mxu0 %v7034
        %7341 = vmatprep.subr.bf16.mxu0 %v7031
        %7342 = vmatpush2.bf16.msra.mxu0 %v7030
        %7343 = vmatprep.subr.bf16.mxu0 %v7027
        %7344 = vmatpush2.bf16.msra.mxu0 %v7026
        %7345 = vmatprep.mubr.bf16.mxu0 %v5422
        %7346 = vmatmul.mubr.bf16.gmra.mxu0 %v5419
        %v7347 = vpop.f32.mrf.mxu0
        %v7348 = vadd.f32 %v7305, %v7347
        %v7349 = vpop.f32.mrf.mxu0
        %v7350 = vadd.f32 %v7307, %v7349
        %v7351 = vpop.f32.mrf.mxu0
        %v7352 = vadd.f32 %v7309, %v7351
        %v7353 = vpop.f32.mrf.mxu0
        %v7354 = vadd.f32 %v7311, %v7353
        %7355 = vdwg.mxu0
        %7356 = vst [vmem:[#allocation2 + $0x20] sm:$0xff] %v7262
        %7357 = vst [vmem:[#allocation2 + $0x28] sm:$0xff] %v7264
        %7358 = vst [vmem:[#allocation2 + $0x30] sm:$0xff] %v7348
        %7359 = vst [vmem:[#allocation2 + $0x38] sm:$0xff] %v7350
        %7360 = vst [vmem:[#allocation2 + $0xa0] sm:$0xff] %v7266
        %7361 = vst [vmem:[#allocation2 + $0xa8] sm:$0xff] %v7268
        %7362 = vst [vmem:[#allocation2 + $0xb0] sm:$0xff] %v7352
        %7363 = vst [vmem:[#allocation2 + $0xb8] sm:$0xff] %v7354
        %v7364 = vld [vmem:[#allocation13 + $0x20] sm:$0xff]
        %v7365 = vld [vmem:[#allocation13 + $0x28] sm:$0xff]
        %v7366 = vld [vmem:[#allocation13 + $0x60] sm:$0xff]
        %v7367 = vld [vmem:[#allocation13 + $0x68] sm:$0xff]
        %v7368 = vld [vmem:[#allocation13 + $0xa0] sm:$0xff]
        %v7369 = vld [vmem:[#allocation13 + $0xa8] sm:$0xff]
        %v7370 = vld [vmem:[#allocation13 + $0xe0] sm:$0xff]
        %v7371 = vld [vmem:[#allocation13 + $0xe8] sm:$0xff]
        %v7372 = vld [vmem:[#allocation13 + $0x120] sm:$0xff]
        %v7373 = vld [vmem:[#allocation13 + $0x128] sm:$0xff]
        %v7374 = vld [vmem:[#allocation13 + $0x160] sm:$0xff]
        %v7375 = vld [vmem:[#allocation13 + $0x168] sm:$0xff]
        %v7376 = vld [vmem:[#allocation13 + $0x1a0] sm:$0xff]
        %v7377 = vld [vmem:[#allocation13 + $0x1a8] sm:$0xff]
        %v7378 = vld [vmem:[#allocation13 + $0x1e0] sm:$0xff]
        %v7379 = vld [vmem:[#allocation13 + $0x1e8] sm:$0xff]
        %v7380 = vld [vmem:[#allocation13 + $0x220] sm:$0xff]
        %v7381 = vld [vmem:[#allocation13 + $0x228] sm:$0xff]
        %v7382 = vld [vmem:[#allocation13 + $0x260] sm:$0xff]
        %v7383 = vld [vmem:[#allocation13 + $0x268] sm:$0xff]
        %v7384 = vld [vmem:[#allocation13 + $0x2a0] sm:$0xff]
        %v7385 = vld [vmem:[#allocation13 + $0x2a8] sm:$0xff]
        %v7386 = vld [vmem:[#allocation13 + $0x2e0] sm:$0xff]
        %v7387 = vld [vmem:[#allocation13 + $0x2e8] sm:$0xff]
        %v7388 = vld [vmem:[#allocation13 + $0x320] sm:$0xff]
        %v7389 = vld [vmem:[#allocation13 + $0x328] sm:$0xff]
        %v7390 = vld [vmem:[#allocation13 + $0x360] sm:$0xff]
        %v7391 = vld [vmem:[#allocation13 + $0x368] sm:$0xff]
        %v7392 = vld [vmem:[#allocation13 + $0x3a0] sm:$0xff]
        %v7393 = vld [vmem:[#allocation13 + $0x3a8] sm:$0xff]
        %v7394 = vld [vmem:[#allocation13 + $0x3e0] sm:$0xff]
        %v7395 = vld [vmem:[#allocation13 + $0x3e8] sm:$0xff]
        %v7396 = vld [vmem:[#allocation13 + $0x420] sm:$0xff]
        %v7397 = vld [vmem:[#allocation13 + $0x428] sm:$0xff]
        %v7398 = vld [vmem:[#allocation13 + $0x460] sm:$0xff]
        %v7399 = vld [vmem:[#allocation13 + $0x468] sm:$0xff]
        %v7400 = vld [vmem:[#allocation13 + $0x4a0] sm:$0xff]
        %v7401 = vld [vmem:[#allocation13 + $0x4a8] sm:$0xff]
        %v7402 = vld [vmem:[#allocation13 + $0x4e0] sm:$0xff]
        %v7403 = vld [vmem:[#allocation13 + $0x4e8] sm:$0xff]
        %v7404 = vld [vmem:[#allocation13 + $0x520] sm:$0xff]
        %v7405 = vld [vmem:[#allocation13 + $0x528] sm:$0xff]
        %v7406 = vld [vmem:[#allocation13 + $0x560] sm:$0xff]
        %v7407 = vld [vmem:[#allocation13 + $0x568] sm:$0xff]
        %v7408 = vld [vmem:[#allocation13 + $0x5a0] sm:$0xff]
        %v7409 = vld [vmem:[#allocation13 + $0x5a8] sm:$0xff]
        %v7410 = vld [vmem:[#allocation13 + $0x5e0] sm:$0xff]
        %v7411 = vld [vmem:[#allocation13 + $0x5e8] sm:$0xff]
        %v7412 = vld [vmem:[#allocation13 + $0x620] sm:$0xff]
        %v7413 = vld [vmem:[#allocation13 + $0x628] sm:$0xff]
        %v7414 = vld [vmem:[#allocation13 + $0x660] sm:$0xff]
        %v7415 = vld [vmem:[#allocation13 + $0x668] sm:$0xff]
        %v7416 = vld [vmem:[#allocation13 + $0x6a0] sm:$0xff]
        %v7417 = vld [vmem:[#allocation13 + $0x6a8] sm:$0xff]
        %v7418 = vld [vmem:[#allocation13 + $0x6e0] sm:$0xff]
        %v7419 = vld [vmem:[#allocation13 + $0x6e8] sm:$0xff]
        %v7420 = vld [vmem:[#allocation13 + $0x720] sm:$0xff]
        %v7421 = vld [vmem:[#allocation13 + $0x728] sm:$0xff]
        %v7422 = vld [vmem:[#allocation13 + $0x760] sm:$0xff]
        %v7423 = vld [vmem:[#allocation13 + $0x768] sm:$0xff]
        %v7424 = vld [vmem:[#allocation13 + $0x7a0] sm:$0xff]
        %v7425 = vld [vmem:[#allocation13 + $0x7a8] sm:$0xff]
        %v7426 = vld [vmem:[#allocation13 + $0x7e0] sm:$0xff]
        %v7427 = vld [vmem:[#allocation13 + $0x7e8] sm:$0xff]
        %v7428 = vld [vmem:[#allocation13 + $0x820] sm:$0xff]
        %v7429 = vld [vmem:[#allocation13 + $0x828] sm:$0xff]
        %v7430 = vld [vmem:[#allocation13 + $0x860] sm:$0xff]
        %v7431 = vld [vmem:[#allocation13 + $0x868] sm:$0xff]
        %v7432 = vld [vmem:[#allocation13 + $0x8a0] sm:$0xff]
        %v7433 = vld [vmem:[#allocation13 + $0x8a8] sm:$0xff]
        %v7434 = vld [vmem:[#allocation13 + $0x8e0] sm:$0xff]
        %v7435 = vld [vmem:[#allocation13 + $0x8e8] sm:$0xff]
        %v7436 = vld [vmem:[#allocation13 + $0x920] sm:$0xff]
        %v7437 = vld [vmem:[#allocation13 + $0x928] sm:$0xff]
        %v7438 = vld [vmem:[#allocation13 + $0x960] sm:$0xff]
        %v7439 = vld [vmem:[#allocation13 + $0x968] sm:$0xff]
        %v7440 = vld [vmem:[#allocation13 + $0x9a0] sm:$0xff]
        %v7441 = vld [vmem:[#allocation13 + $0x9a8] sm:$0xff]
        %v7442 = vld [vmem:[#allocation13 + $0x9e0] sm:$0xff]
        %v7443 = vld [vmem:[#allocation13 + $0x9e8] sm:$0xff]
        %v7444 = vld [vmem:[#allocation13 + $0xa20] sm:$0xff]
        %v7445 = vld [vmem:[#allocation13 + $0xa28] sm:$0xff]
        %v7446 = vld [vmem:[#allocation13 + $0xa60] sm:$0xff]
        %v7447 = vld [vmem:[#allocation13 + $0xa68] sm:$0xff]
        %v7448 = vld [vmem:[#allocation13 + $0xaa0] sm:$0xff]
        %v7449 = vld [vmem:[#allocation13 + $0xaa8] sm:$0xff]
        %v7450 = vld [vmem:[#allocation13 + $0xae0] sm:$0xff]
        %v7451 = vld [vmem:[#allocation13 + $0xae8] sm:$0xff]
        %v7452 = vld [vmem:[#allocation13 + $0xb20] sm:$0xff]
        %v7453 = vld [vmem:[#allocation13 + $0xb28] sm:$0xff]
        %v7454 = vld [vmem:[#allocation13 + $0xb60] sm:$0xff]
        %v7455 = vld [vmem:[#allocation13 + $0xb68] sm:$0xff]
        %v7456 = vld [vmem:[#allocation13 + $0xba0] sm:$0xff]
        %v7457 = vld [vmem:[#allocation13 + $0xba8] sm:$0xff]
        %v7458 = vld [vmem:[#allocation13 + $0xbe0] sm:$0xff]
        %v7459 = vld [vmem:[#allocation13 + $0xbe8] sm:$0xff]
        %v7460 = vld [vmem:[#allocation13 + $0xc20] sm:$0xff]
        %v7461 = vld [vmem:[#allocation13 + $0xc28] sm:$0xff]
        %v7462 = vld [vmem:[#allocation13 + $0xc60] sm:$0xff]
        %v7463 = vld [vmem:[#allocation13 + $0xc68] sm:$0xff]
        %v7464 = vld [vmem:[#allocation13 + $0xca0] sm:$0xff]
        %v7465 = vld [vmem:[#allocation13 + $0xca8] sm:$0xff]
        %v7466 = vld [vmem:[#allocation13 + $0xce0] sm:$0xff]
        %v7467 = vld [vmem:[#allocation13 + $0xce8] sm:$0xff]
        %v7468 = vld [vmem:[#allocation13 + $0xd20] sm:$0xff]
        %v7469 = vld [vmem:[#allocation13 + $0xd28] sm:$0xff]
        %v7470 = vld [vmem:[#allocation13 + $0xd60] sm:$0xff]
        %v7471 = vld [vmem:[#allocation13 + $0xd68] sm:$0xff]
        %v7472 = vld [vmem:[#allocation13 + $0xda0] sm:$0xff]
        %v7473 = vld [vmem:[#allocation13 + $0xda8] sm:$0xff]
        %v7474 = vld [vmem:[#allocation13 + $0xde0] sm:$0xff]
        %v7475 = vld [vmem:[#allocation13 + $0xde8] sm:$0xff]
        %v7476 = vld [vmem:[#allocation13 + $0xe20] sm:$0xff]
        %v7477 = vld [vmem:[#allocation13 + $0xe28] sm:$0xff]
        %v7478 = vld [vmem:[#allocation13 + $0xe60] sm:$0xff]
        %v7479 = vld [vmem:[#allocation13 + $0xe68] sm:$0xff]
        %v7480 = vld [vmem:[#allocation13 + $0xea0] sm:$0xff]
        %v7481 = vld [vmem:[#allocation13 + $0xea8] sm:$0xff]
        %v7482 = vld [vmem:[#allocation13 + $0xee0] sm:$0xff]
        %v7483 = vld [vmem:[#allocation13 + $0xee8] sm:$0xff]
        %v7484 = vld [vmem:[#allocation13 + $0xf20] sm:$0xff]
        %v7485 = vld [vmem:[#allocation13 + $0xf28] sm:$0xff]
        %v7486 = vld [vmem:[#allocation13 + $0xf60] sm:$0xff]
        %v7487 = vld [vmem:[#allocation13 + $0xf68] sm:$0xff]
        %v7488 = vld [vmem:[#allocation13 + $0xfa0] sm:$0xff]
        %v7489 = vld [vmem:[#allocation13 + $0xfa8] sm:$0xff]
        %v7490 = vld [vmem:[#allocation13 + $0xfe0] sm:$0xff]
        %v7491 = vld [vmem:[#allocation13 + $0xfe8] sm:$0xff]
        %v7492 = vld [vmem:[#allocation14 + $0x8] sm:$0xf]
        %v7494 = vlaneseq
        %v7495 = vshrl.u32 %v7494, 7
        %v7496 = vsub.s32 0, %v7495
        %v7497 = vrot.slane %v7492, %v7496
        %v7498 = vlaneseq
        %v7499 = vshrl.u32 %v7498, 7
        %v7500 = vsub.s32 1, %v7499
        %v7501 = vrot.slane %v7492, %v7500
        %v7502 = vlaneseq
        %v7503 = vshrl.u32 %v7502, 7
        %v7504 = vsub.s32 2, %v7503
        %v7505 = vrot.slane %v7492, %v7504
        %v7506 = vlaneseq
        %v7507 = vshrl.u32 %v7506, 7
        %v7508 = vsub.s32 3, %v7507
        %v7509 = vrot.slane %v7492, %v7508
        %v7642 = vunpack.c.l.b16 %v7364
        %v7643 = vunpack.c.h.b16 %v7364
        %v7644 = vunpack.c.l.b16 %v7365
        %v7645 = vunpack.c.h.b16 %v7365
        %v7646 = vunpack.c.l.b16 %v7366
        %v7647 = vunpack.c.h.b16 %v7366
        %v7648 = vunpack.c.l.b16 %v7367
        %v7649 = vunpack.c.h.b16 %v7367
        %v7650 = vunpack.c.l.b16 %v7368
        %v7651 = vunpack.c.h.b16 %v7368
        %v7652 = vunpack.c.l.b16 %v7369
        %v7653 = vunpack.c.h.b16 %v7369
        %v7654 = vunpack.c.l.b16 %v7370
        %v7655 = vunpack.c.h.b16 %v7370
        %v7656 = vunpack.c.l.b16 %v7371
        %v7657 = vunpack.c.h.b16 %v7371
        %v7658 = vunpack.c.l.b16 %v7372
        %v7659 = vunpack.c.h.b16 %v7372
        %v7660 = vunpack.c.l.b16 %v7373
        %v7661 = vunpack.c.h.b16 %v7373
        %v7662 = vunpack.c.l.b16 %v7374
        %v7663 = vunpack.c.h.b16 %v7374
        %v7664 = vunpack.c.l.b16 %v7375
        %v7665 = vunpack.c.h.b16 %v7375
        %v7666 = vunpack.c.l.b16 %v7376
        %v7667 = vunpack.c.h.b16 %v7376
        %v7668 = vunpack.c.l.b16 %v7377
        %v7669 = vunpack.c.h.b16 %v7377
        %v7670 = vunpack.c.l.b16 %v7378
        %v7671 = vunpack.c.h.b16 %v7378
        %v7672 = vunpack.c.l.b16 %v7379
        %v7673 = vunpack.c.h.b16 %v7379
        %v7674 = vunpack.c.l.b16 %v7380
        %v7675 = vunpack.c.h.b16 %v7380
        %v7676 = vunpack.c.l.b16 %v7381
        %v7677 = vunpack.c.h.b16 %v7381
        %v7678 = vunpack.c.l.b16 %v7382
        %v7679 = vunpack.c.h.b16 %v7382
        %v7680 = vunpack.c.l.b16 %v7383
        %v7681 = vunpack.c.h.b16 %v7383
        %v7682 = vunpack.c.l.b16 %v7384
        %v7683 = vunpack.c.h.b16 %v7384
        %v7684 = vunpack.c.l.b16 %v7385
        %v7685 = vunpack.c.h.b16 %v7385
        %v7686 = vunpack.c.l.b16 %v7386
        %v7687 = vunpack.c.h.b16 %v7386
        %v7688 = vunpack.c.l.b16 %v7387
        %v7689 = vunpack.c.h.b16 %v7387
        %v7690 = vunpack.c.l.b16 %v7388
        %v7691 = vunpack.c.h.b16 %v7388
        %v7692 = vunpack.c.l.b16 %v7389
        %v7693 = vunpack.c.h.b16 %v7389
        %v7694 = vunpack.c.l.b16 %v7390
        %v7695 = vunpack.c.h.b16 %v7390
        %v7696 = vunpack.c.l.b16 %v7391
        %v7697 = vunpack.c.h.b16 %v7391
        %v7698 = vunpack.c.l.b16 %v7392
        %v7699 = vunpack.c.h.b16 %v7392
        %v7700 = vunpack.c.l.b16 %v7393
        %v7701 = vunpack.c.h.b16 %v7393
        %v7702 = vunpack.c.l.b16 %v7394
        %v7703 = vunpack.c.h.b16 %v7394
        %v7704 = vunpack.c.l.b16 %v7395
        %v7705 = vunpack.c.h.b16 %v7395
        %v7706 = vunpack.c.l.b16 %v7396
        %v7707 = vunpack.c.h.b16 %v7396
        %v7708 = vunpack.c.l.b16 %v7397
        %v7709 = vunpack.c.h.b16 %v7397
        %v7710 = vunpack.c.l.b16 %v7398
        %v7711 = vunpack.c.h.b16 %v7398
        %v7712 = vunpack.c.l.b16 %v7399
        %v7713 = vunpack.c.h.b16 %v7399
        %v7714 = vunpack.c.l.b16 %v7400
        %v7715 = vunpack.c.h.b16 %v7400
        %v7716 = vunpack.c.l.b16 %v7401
        %v7717 = vunpack.c.h.b16 %v7401
        %v7718 = vunpack.c.l.b16 %v7402
        %v7719 = vunpack.c.h.b16 %v7402
        %v7720 = vunpack.c.l.b16 %v7403
        %v7721 = vunpack.c.h.b16 %v7403
        %v7722 = vunpack.c.l.b16 %v7404
        %v7723 = vunpack.c.h.b16 %v7404
        %v7724 = vunpack.c.l.b16 %v7405
        %v7725 = vunpack.c.h.b16 %v7405
        %v7726 = vunpack.c.l.b16 %v7406
        %v7727 = vunpack.c.h.b16 %v7406
        %v7728 = vunpack.c.l.b16 %v7407
        %v7729 = vunpack.c.h.b16 %v7407
        %v7730 = vunpack.c.l.b16 %v7408
        %v7731 = vunpack.c.h.b16 %v7408
        %v7732 = vunpack.c.l.b16 %v7409
        %v7733 = vunpack.c.h.b16 %v7409
        %v7734 = vunpack.c.l.b16 %v7410
        %v7735 = vunpack.c.h.b16 %v7410
        %v7736 = vunpack.c.l.b16 %v7411
        %v7737 = vunpack.c.h.b16 %v7411
        %v7738 = vunpack.c.l.b16 %v7412
        %v7739 = vunpack.c.h.b16 %v7412
        %v7740 = vunpack.c.l.b16 %v7413
        %v7741 = vunpack.c.h.b16 %v7413
        %v7742 = vunpack.c.l.b16 %v7414
        %v7743 = vunpack.c.h.b16 %v7414
        %v7744 = vunpack.c.l.b16 %v7415
        %v7745 = vunpack.c.h.b16 %v7415
        %v7746 = vunpack.c.l.b16 %v7416
        %v7747 = vunpack.c.h.b16 %v7416
        %v7748 = vunpack.c.l.b16 %v7417
        %v7749 = vunpack.c.h.b16 %v7417
        %v7750 = vunpack.c.l.b16 %v7418
        %v7751 = vunpack.c.h.b16 %v7418
        %v7752 = vunpack.c.l.b16 %v7419
        %v7753 = vunpack.c.h.b16 %v7419
        %v7754 = vunpack.c.l.b16 %v7420
        %v7755 = vunpack.c.h.b16 %v7420
        %v7756 = vunpack.c.l.b16 %v7421
        %v7757 = vunpack.c.h.b16 %v7421
        %v7758 = vunpack.c.l.b16 %v7422
        %v7759 = vunpack.c.h.b16 %v7422
        %v7760 = vunpack.c.l.b16 %v7423
        %v7761 = vunpack.c.h.b16 %v7423
        %v7762 = vunpack.c.l.b16 %v7424
        %v7763 = vunpack.c.h.b16 %v7424
        %v7764 = vunpack.c.l.b16 %v7425
        %v7765 = vunpack.c.h.b16 %v7425
        %v7766 = vunpack.c.l.b16 %v7426
        %v7767 = vunpack.c.h.b16 %v7426
        %v7768 = vunpack.c.l.b16 %v7427
        %v7769 = vunpack.c.h.b16 %v7427
        %v7770 = vunpack.c.l.b16 %v7428
        %v7771 = vunpack.c.h.b16 %v7428
        %v7772 = vunpack.c.l.b16 %v7429
        %v7773 = vunpack.c.h.b16 %v7429
        %v7774 = vunpack.c.l.b16 %v7430
        %v7775 = vunpack.c.h.b16 %v7430
        %v7776 = vunpack.c.l.b16 %v7431
        %v7777 = vunpack.c.h.b16 %v7431
        %v7778 = vunpack.c.l.b16 %v7432
        %v7779 = vunpack.c.h.b16 %v7432
        %v7780 = vunpack.c.l.b16 %v7433
        %v7781 = vunpack.c.h.b16 %v7433
        %v7782 = vunpack.c.l.b16 %v7434
        %v7783 = vunpack.c.h.b16 %v7434
        %v7784 = vunpack.c.l.b16 %v7435
        %v7785 = vunpack.c.h.b16 %v7435
        %v7786 = vunpack.c.l.b16 %v7436
        %v7787 = vunpack.c.h.b16 %v7436
        %v7788 = vunpack.c.l.b16 %v7437
        %v7789 = vunpack.c.h.b16 %v7437
        %v7790 = vunpack.c.l.b16 %v7438
        %v7791 = vunpack.c.h.b16 %v7438
        %v7792 = vunpack.c.l.b16 %v7439
        %v7793 = vunpack.c.h.b16 %v7439
        %v7794 = vunpack.c.l.b16 %v7440
        %v7795 = vunpack.c.h.b16 %v7440
        %v7796 = vunpack.c.l.b16 %v7441
        %v7797 = vunpack.c.h.b16 %v7441
        %v7798 = vunpack.c.l.b16 %v7442
        %v7799 = vunpack.c.h.b16 %v7442
        %v7800 = vunpack.c.l.b16 %v7443
        %v7801 = vunpack.c.h.b16 %v7443
        %v7802 = vunpack.c.l.b16 %v7444
        %v7803 = vunpack.c.h.b16 %v7444
        %v7804 = vunpack.c.l.b16 %v7445
        %v7805 = vunpack.c.h.b16 %v7445
        %v7806 = vunpack.c.l.b16 %v7446
        %v7807 = vunpack.c.h.b16 %v7446
        %v7808 = vunpack.c.l.b16 %v7447
        %v7809 = vunpack.c.h.b16 %v7447
        %v7810 = vunpack.c.l.b16 %v7448
        %v7811 = vunpack.c.h.b16 %v7448
        %v7812 = vunpack.c.l.b16 %v7449
        %v7813 = vunpack.c.h.b16 %v7449
        %v7814 = vunpack.c.l.b16 %v7450
        %v7815 = vunpack.c.h.b16 %v7450
        %v7816 = vunpack.c.l.b16 %v7451
        %v7817 = vunpack.c.h.b16 %v7451
        %v7818 = vunpack.c.l.b16 %v7452
        %v7819 = vunpack.c.h.b16 %v7452
        %v7820 = vunpack.c.l.b16 %v7453
        %v7821 = vunpack.c.h.b16 %v7453
        %v7822 = vunpack.c.l.b16 %v7454
        %v7823 = vunpack.c.h.b16 %v7454
        %v7824 = vunpack.c.l.b16 %v7455
        %v7825 = vunpack.c.h.b16 %v7455
        %v7826 = vunpack.c.l.b16 %v7456
        %v7827 = vunpack.c.h.b16 %v7456
        %v7828 = vunpack.c.l.b16 %v7457
        %v7829 = vunpack.c.h.b16 %v7457
        %v7830 = vunpack.c.l.b16 %v7458
        %v7831 = vunpack.c.h.b16 %v7458
        %v7832 = vunpack.c.l.b16 %v7459
        %v7833 = vunpack.c.h.b16 %v7459
        %v7834 = vunpack.c.l.b16 %v7460
        %v7835 = vunpack.c.h.b16 %v7460
        %v7836 = vunpack.c.l.b16 %v7461
        %v7837 = vunpack.c.h.b16 %v7461
        %v7838 = vunpack.c.l.b16 %v7462
        %v7839 = vunpack.c.h.b16 %v7462
        %v7840 = vunpack.c.l.b16 %v7463
        %v7841 = vunpack.c.h.b16 %v7463
        %v7842 = vunpack.c.l.b16 %v7464
        %v7843 = vunpack.c.h.b16 %v7464
        %v7844 = vunpack.c.l.b16 %v7465
        %v7845 = vunpack.c.h.b16 %v7465
        %v7846 = vunpack.c.l.b16 %v7466
        %v7847 = vunpack.c.h.b16 %v7466
        %v7848 = vunpack.c.l.b16 %v7467
        %v7849 = vunpack.c.h.b16 %v7467
        %v7850 = vunpack.c.l.b16 %v7468
        %v7851 = vunpack.c.h.b16 %v7468
        %v7852 = vunpack.c.l.b16 %v7469
        %v7853 = vunpack.c.h.b16 %v7469
        %v7854 = vunpack.c.l.b16 %v7470
        %v7855 = vunpack.c.h.b16 %v7470
        %v7856 = vunpack.c.l.b16 %v7471
        %v7857 = vunpack.c.h.b16 %v7471
        %v7858 = vunpack.c.l.b16 %v7472
        %v7859 = vunpack.c.h.b16 %v7472
        %v7860 = vunpack.c.l.b16 %v7473
        %v7861 = vunpack.c.h.b16 %v7473
        %v7862 = vunpack.c.l.b16 %v7474
        %v7863 = vunpack.c.h.b16 %v7474
        %v7864 = vunpack.c.l.b16 %v7475
        %v7865 = vunpack.c.h.b16 %v7475
        %v7866 = vunpack.c.l.b16 %v7476
        %v7867 = vunpack.c.h.b16 %v7476
        %v7868 = vunpack.c.l.b16 %v7477
        %v7869 = vunpack.c.h.b16 %v7477
        %v7870 = vunpack.c.l.b16 %v7478
        %v7871 = vunpack.c.h.b16 %v7478
        %v7872 = vunpack.c.l.b16 %v7479
        %v7873 = vunpack.c.h.b16 %v7479
        %v7874 = vunpack.c.l.b16 %v7480
        %v7875 = vunpack.c.h.b16 %v7480
        %v7876 = vunpack.c.l.b16 %v7481
        %v7877 = vunpack.c.h.b16 %v7481
        %v7878 = vunpack.c.l.b16 %v7482
        %v7879 = vunpack.c.h.b16 %v7482
        %v7880 = vunpack.c.l.b16 %v7483
        %v7881 = vunpack.c.h.b16 %v7483
        %v7882 = vunpack.c.l.b16 %v7484
        %v7883 = vunpack.c.h.b16 %v7484
        %v7884 = vunpack.c.l.b16 %v7485
        %v7885 = vunpack.c.h.b16 %v7485
        %v7886 = vunpack.c.l.b16 %v7486
        %v7887 = vunpack.c.h.b16 %v7486
        %v7888 = vunpack.c.l.b16 %v7487
        %v7889 = vunpack.c.h.b16 %v7487
        %v7890 = vunpack.c.l.b16 %v7488
        %v7891 = vunpack.c.h.b16 %v7488
        %v7892 = vunpack.c.l.b16 %v7489
        %v7893 = vunpack.c.h.b16 %v7489
        %v7894 = vunpack.c.l.b16 %v7490
        %v7895 = vunpack.c.h.b16 %v7490
        %v7896 = vunpack.c.l.b16 %v7491
        %v7897 = vunpack.c.h.b16 %v7491
        %v7898 = vpack.c.b16 %v7646, %v7642
        %v7899 = vpack.c.b16 %v7647, %v7643
        %v7900 = vpack.c.b16 %v7648, %v7644
        %v7901 = vpack.c.b16 %v7649, %v7645
        %v7902 = vpack.c.b16 %v7654, %v7650
        %v7903 = vpack.c.b16 %v7655, %v7651
        %v7904 = vpack.c.b16 %v7656, %v7652
        %v7905 = vpack.c.b16 %v7657, %v7653
        %v7906 = vpack.c.b16 %v7662, %v7658
        %v7907 = vpack.c.b16 %v7663, %v7659
        %v7908 = vpack.c.b16 %v7664, %v7660
        %v7909 = vpack.c.b16 %v7665, %v7661
        %v7910 = vpack.c.b16 %v7670, %v7666
        %v7911 = vpack.c.b16 %v7671, %v7667
        %v7912 = vpack.c.b16 %v7672, %v7668
        %v7913 = vpack.c.b16 %v7673, %v7669
        %v7914 = vpack.c.b16 %v7678, %v7674
        %v7915 = vpack.c.b16 %v7679, %v7675
        %v7916 = vpack.c.b16 %v7680, %v7676
        %v7917 = vpack.c.b16 %v7681, %v7677
        %v7918 = vpack.c.b16 %v7686, %v7682
        %v7919 = vpack.c.b16 %v7687, %v7683
        %v7920 = vpack.c.b16 %v7688, %v7684
        %v7921 = vpack.c.b16 %v7689, %v7685
        %v7922 = vpack.c.b16 %v7694, %v7690
        %v7923 = vpack.c.b16 %v7695, %v7691
        %v7924 = vpack.c.b16 %v7696, %v7692
        %v7925 = vpack.c.b16 %v7697, %v7693
        %v7926 = vpack.c.b16 %v7702, %v7698
        %v7927 = vpack.c.b16 %v7703, %v7699
        %v7928 = vpack.c.b16 %v7704, %v7700
        %v7929 = vpack.c.b16 %v7705, %v7701
        %v7930 = vpack.c.b16 %v7710, %v7706
        %v7931 = vpack.c.b16 %v7711, %v7707
        %v7932 = vpack.c.b16 %v7712, %v7708
        %v7933 = vpack.c.b16 %v7713, %v7709
        %v7934 = vpack.c.b16 %v7718, %v7714
        %v7935 = vpack.c.b16 %v7719, %v7715
        %v7936 = vpack.c.b16 %v7720, %v7716
        %v7937 = vpack.c.b16 %v7721, %v7717
        %v7938 = vpack.c.b16 %v7726, %v7722
        %v7939 = vpack.c.b16 %v7727, %v7723
        %v7940 = vpack.c.b16 %v7728, %v7724
        %v7941 = vpack.c.b16 %v7729, %v7725
        %v7942 = vpack.c.b16 %v7734, %v7730
        %v7943 = vpack.c.b16 %v7735, %v7731
        %v7944 = vpack.c.b16 %v7736, %v7732
        %v7945 = vpack.c.b16 %v7737, %v7733
        %v7946 = vpack.c.b16 %v7742, %v7738
        %v7947 = vpack.c.b16 %v7743, %v7739
        %v7948 = vpack.c.b16 %v7744, %v7740
        %v7949 = vpack.c.b16 %v7745, %v7741
        %v7950 = vpack.c.b16 %v7750, %v7746
        %v7951 = vpack.c.b16 %v7751, %v7747
        %v7952 = vpack.c.b16 %v7752, %v7748
        %v7953 = vpack.c.b16 %v7753, %v7749
        %v7954 = vpack.c.b16 %v7758, %v7754
        %v7955 = vpack.c.b16 %v7759, %v7755
        %v7956 = vpack.c.b16 %v7760, %v7756
        %v7957 = vpack.c.b16 %v7761, %v7757
        %v7958 = vpack.c.b16 %v7766, %v7762
        %v7959 = vpack.c.b16 %v7767, %v7763
        %v7960 = vpack.c.b16 %v7768, %v7764
        %v7961 = vpack.c.b16 %v7769, %v7765
        %v7962 = vpack.c.b16 %v7774, %v7770
        %v7963 = vpack.c.b16 %v7775, %v7771
        %v7964 = vpack.c.b16 %v7776, %v7772
        %v7965 = vpack.c.b16 %v7777, %v7773
        %v7966 = vpack.c.b16 %v7782, %v7778
        %v7967 = vpack.c.b16 %v7783, %v7779
        %v7968 = vpack.c.b16 %v7784, %v7780
        %v7969 = vpack.c.b16 %v7785, %v7781
        %v7970 = vpack.c.b16 %v7790, %v7786
        %v7971 = vpack.c.b16 %v7791, %v7787
        %v7972 = vpack.c.b16 %v7792, %v7788
        %v7973 = vpack.c.b16 %v7793, %v7789
        %v7974 = vpack.c.b16 %v7798, %v7794
        %v7975 = vpack.c.b16 %v7799, %v7795
        %v7976 = vpack.c.b16 %v7800, %v7796
        %v7977 = vpack.c.b16 %v7801, %v7797
        %v7978 = vpack.c.b16 %v7806, %v7802
        %v7979 = vpack.c.b16 %v7807, %v7803
        %v7980 = vpack.c.b16 %v7808, %v7804
        %v7981 = vpack.c.b16 %v7809, %v7805
        %v7982 = vpack.c.b16 %v7814, %v7810
        %v7983 = vpack.c.b16 %v7815, %v7811
        %v7984 = vpack.c.b16 %v7816, %v7812
        %v7985 = vpack.c.b16 %v7817, %v7813
        %v7986 = vpack.c.b16 %v7822, %v7818
        %v7987 = vpack.c.b16 %v7823, %v7819
        %v7988 = vpack.c.b16 %v7824, %v7820
        %v7989 = vpack.c.b16 %v7825, %v7821
        %v7990 = vpack.c.b16 %v7830, %v7826
        %v7991 = vpack.c.b16 %v7831, %v7827
        %v7992 = vpack.c.b16 %v7832, %v7828
        %v7993 = vpack.c.b16 %v7833, %v7829
        %v7994 = vpack.c.b16 %v7838, %v7834
        %v7995 = vpack.c.b16 %v7839, %v7835
        %v7996 = vpack.c.b16 %v7840, %v7836
        %v7997 = vpack.c.b16 %v7841, %v7837
        %v7998 = vpack.c.b16 %v7846, %v7842
        %v7999 = vpack.c.b16 %v7847, %v7843
        %v8000 = vpack.c.b16 %v7848, %v7844
        %v8001 = vpack.c.b16 %v7849, %v7845
        %v8002 = vpack.c.b16 %v7854, %v7850
        %v8003 = vpack.c.b16 %v7855, %v7851
        %v8004 = vpack.c.b16 %v7856, %v7852
        %v8005 = vpack.c.b16 %v7857, %v7853
        %v8006 = vpack.c.b16 %v7862, %v7858
        %v8007 = vpack.c.b16 %v7863, %v7859
        %v8008 = vpack.c.b16 %v7864, %v7860
        %v8009 = vpack.c.b16 %v7865, %v7861
        %v8010 = vpack.c.b16 %v7870, %v7866
        %v8011 = vpack.c.b16 %v7871, %v7867
        %v8012 = vpack.c.b16 %v7872, %v7868
        %v8013 = vpack.c.b16 %v7873, %v7869
        %v8014 = vpack.c.b16 %v7878, %v7874
        %v8015 = vpack.c.b16 %v7879, %v7875
        %v8016 = vpack.c.b16 %v7880, %v7876
        %v8017 = vpack.c.b16 %v7881, %v7877
        %v8018 = vpack.c.b16 %v7886, %v7882
        %v8019 = vpack.c.b16 %v7887, %v7883
        %v8020 = vpack.c.b16 %v7888, %v7884
        %v8021 = vpack.c.b16 %v7889, %v7885
        %v8022 = vpack.c.b16 %v7894, %v7890
        %v8023 = vpack.c.b16 %v7895, %v7891
        %v8024 = vpack.c.b16 %v7896, %v7892
        %v8025 = vpack.c.b16 %v7897, %v7893
        %8154 = vmatprep.subr.bf16.mxu0 %v7927
        %8155 = vmatpush1.bf16.msra.mxu0 %v7926
        %8156 = vmatprep.subr.bf16.mxu0 %v7923
        %8157 = vmatpush1.bf16.msra.mxu0 %v7922
        %8158 = vmatprep.subr.bf16.mxu0 %v7919
        %8159 = vmatpush1.bf16.msra.mxu0 %v7918
        %8160 = vmatprep.subr.bf16.mxu0 %v7915
        %8161 = vmatpush1.bf16.msra.mxu0 %v7914
        %8162 = vmatprep.subr.bf16.mxu0 %v7911
        %8163 = vmatpush1.bf16.msra.mxu0 %v7910
        %8164 = vmatprep.subr.bf16.mxu0 %v7907
        %8165 = vmatpush1.bf16.msra.mxu0 %v7906
        %8166 = vmatprep.subr.bf16.mxu0 %v7903
        %8167 = vmatpush1.bf16.msra.mxu0 %v7902
        %8168 = vmatprep.subr.bf16.mxu0 %v7899
        %8169 = vmatpush1.bf16.msra.mxu0 %v7898
        %8170 = vmatprep.subr.bf16.mxu0 %v7959
        %8171 = vmatpush2.bf16.msra.mxu0 %v7958
        %8172 = vmatprep.subr.bf16.mxu0 %v7955
        %8173 = vmatpush2.bf16.msra.mxu0 %v7954
        %8174 = vmatprep.subr.bf16.mxu0 %v7951
        %8175 = vmatpush2.bf16.msra.mxu0 %v7950
        %8176 = vmatprep.subr.bf16.mxu0 %v7947
        %8177 = vmatpush2.bf16.msra.mxu0 %v7946
        %8178 = vmatprep.subr.bf16.mxu0 %v7943
        %8179 = vmatpush2.bf16.msra.mxu0 %v7942
        %8180 = vmatprep.subr.bf16.mxu0 %v7939
        %8181 = vmatpush2.bf16.msra.mxu0 %v7938
        %8182 = vmatprep.subr.bf16.mxu0 %v7935
        %8183 = vmatpush2.bf16.msra.mxu0 %v7934
        %8184 = vmatprep.subr.bf16.mxu0 %v7931
        %8185 = vmatpush2.bf16.msra.mxu0 %v7930
        %8186 = vmatprep.mubr.bf16.mxu0 %v5416
        %8187 = vmatmul.mubr.bf16.gmra.mxu0 %v5413
        %v8188 = vpop.f32.mrf.mxu0
        %v8189 = vadd.f32 %v7497, %v8188
        %v8190 = vpop.f32.mrf.mxu0
        %v8191 = vadd.f32 %v7501, %v8190
        %v8192 = vpop.f32.mrf.mxu0
        %v8193 = vadd.f32 %v7497, %v8192
        %v8194 = vpop.f32.mrf.mxu0
        %v8195 = vadd.f32 %v7501, %v8194
        %8196 = vdwg.mxu0
        %8197 = vmatprep.subr.bf16.mxu0 %v7991
        %8198 = vmatpush1.bf16.msra.mxu0 %v7990
        %8199 = vmatprep.subr.bf16.mxu0 %v7987
        %8200 = vmatpush1.bf16.msra.mxu0 %v7986
        %8201 = vmatprep.subr.bf16.mxu0 %v7983
        %8202 = vmatpush1.bf16.msra.mxu0 %v7982
        %8203 = vmatprep.subr.bf16.mxu0 %v7979
        %8204 = vmatpush1.bf16.msra.mxu0 %v7978
        %8205 = vmatprep.subr.bf16.mxu0 %v7975
        %8206 = vmatpush1.bf16.msra.mxu0 %v7974
        %8207 = vmatprep.subr.bf16.mxu0 %v7971
        %8208 = vmatpush1.bf16.msra.mxu0 %v7970
        %8209 = vmatprep.subr.bf16.mxu0 %v7967
        %8210 = vmatpush1.bf16.msra.mxu0 %v7966
        %8211 = vmatprep.subr.bf16.mxu0 %v7963
        %8212 = vmatpush1.bf16.msra.mxu0 %v7962
        %8213 = vmatprep.subr.bf16.mxu0 %v8023
        %8214 = vmatpush2.bf16.msra.mxu0 %v8022
        %8215 = vmatprep.subr.bf16.mxu0 %v8019
        %8216 = vmatpush2.bf16.msra.mxu0 %v8018
        %8217 = vmatprep.subr.bf16.mxu0 %v8015
        %8218 = vmatpush2.bf16.msra.mxu0 %v8014
        %8219 = vmatprep.subr.bf16.mxu0 %v8011
        %8220 = vmatpush2.bf16.msra.mxu0 %v8010
        %8221 = vmatprep.subr.bf16.mxu0 %v8007
        %8222 = vmatpush2.bf16.msra.mxu0 %v8006
        %8223 = vmatprep.subr.bf16.mxu0 %v8003
        %8224 = vmatpush2.bf16.msra.mxu0 %v8002
        %8225 = vmatprep.subr.bf16.mxu0 %v7999
        %8226 = vmatpush2.bf16.msra.mxu0 %v7998
        %8227 = vmatprep.subr.bf16.mxu0 %v7995
        %8228 = vmatpush2.bf16.msra.mxu0 %v7994
        %8229 = vmatprep.mubr.bf16.mxu0 %v5422
        %8230 = vmatmul.mubr.bf16.gmra.mxu0 %v5419
        %v8231 = vpop.f32.mrf.mxu0
        %v8232 = vadd.f32 %v8189, %v8231
        %v8233 = vpop.f32.mrf.mxu0
        %v8234 = vadd.f32 %v8191, %v8233
        %v8235 = vpop.f32.mrf.mxu0
        %v8236 = vadd.f32 %v8193, %v8235
        %v8237 = vpop.f32.mrf.mxu0
        %v8238 = vadd.f32 %v8195, %v8237
        %8239 = vdwg.mxu0
        %8240 = vmatprep.subr.bf16.mxu0 %v7929
        %8241 = vmatpush1.bf16.msra.mxu0 %v7928
        %8242 = vmatprep.subr.bf16.mxu0 %v7925
        %8243 = vmatpush1.bf16.msra.mxu0 %v7924
        %8244 = vmatprep.subr.bf16.mxu0 %v7921
        %8245 = vmatpush1.bf16.msra.mxu0 %v7920
        %8246 = vmatprep.subr.bf16.mxu0 %v7917
        %8247 = vmatpush1.bf16.msra.mxu0 %v7916
        %8248 = vmatprep.subr.bf16.mxu0 %v7913
        %8249 = vmatpush1.bf16.msra.mxu0 %v7912
        %8250 = vmatprep.subr.bf16.mxu0 %v7909
        %8251 = vmatpush1.bf16.msra.mxu0 %v7908
        %8252 = vmatprep.subr.bf16.mxu0 %v7905
        %8253 = vmatpush1.bf16.msra.mxu0 %v7904
        %8254 = vmatprep.subr.bf16.mxu0 %v7901
        %8255 = vmatpush1.bf16.msra.mxu0 %v7900
        %8256 = vmatprep.subr.bf16.mxu0 %v7961
        %8257 = vmatpush2.bf16.msra.mxu0 %v7960
        %8258 = vmatprep.subr.bf16.mxu0 %v7957
        %8259 = vmatpush2.bf16.msra.mxu0 %v7956
        %8260 = vmatprep.subr.bf16.mxu0 %v7953
        %8261 = vmatpush2.bf16.msra.mxu0 %v7952
        %8262 = vmatprep.subr.bf16.mxu0 %v7949
        %8263 = vmatpush2.bf16.msra.mxu0 %v7948
        %8264 = vmatprep.subr.bf16.mxu0 %v7945
        %8265 = vmatpush2.bf16.msra.mxu0 %v7944
        %8266 = vmatprep.subr.bf16.mxu0 %v7941
        %8267 = vmatpush2.bf16.msra.mxu0 %v7940
        %8268 = vmatprep.subr.bf16.mxu0 %v7937
        %8269 = vmatpush2.bf16.msra.mxu0 %v7936
        %8270 = vmatprep.subr.bf16.mxu0 %v7933
        %8271 = vmatpush2.bf16.msra.mxu0 %v7932
        %8272 = vmatprep.mubr.bf16.mxu0 %v5416
        %8273 = vmatmul.mubr.bf16.gmra.mxu0 %v5413
        %v8274 = vpop.f32.mrf.mxu0
        %v8275 = vadd.f32 %v7505, %v8274
        %v8276 = vpop.f32.mrf.mxu0
        %v8277 = vadd.f32 %v7509, %v8276
        %v8278 = vpop.f32.mrf.mxu0
        %v8279 = vadd.f32 %v7505, %v8278
        %v8280 = vpop.f32.mrf.mxu0
        %v8281 = vadd.f32 %v7509, %v8280
        %8282 = vdwg.mxu0
        %8283 = vmatprep.subr.bf16.mxu0 %v7993
        %8284 = vmatpush1.bf16.msra.mxu0 %v7992
        %8285 = vmatprep.subr.bf16.mxu0 %v7989
        %8286 = vmatpush1.bf16.msra.mxu0 %v7988
        %8287 = vmatprep.subr.bf16.mxu0 %v7985
        %8288 = vmatpush1.bf16.msra.mxu0 %v7984
        %8289 = vmatprep.subr.bf16.mxu0 %v7981
        %8290 = vmatpush1.bf16.msra.mxu0 %v7980
        %8291 = vmatprep.subr.bf16.mxu0 %v7977
        %8292 = vmatpush1.bf16.msra.mxu0 %v7976
        %8293 = vmatprep.subr.bf16.mxu0 %v7973
        %8294 = vmatpush1.bf16.msra.mxu0 %v7972
        %8295 = vmatprep.subr.bf16.mxu0 %v7969
        %8296 = vmatpush1.bf16.msra.mxu0 %v7968
        %8297 = vmatprep.subr.bf16.mxu0 %v7965
        %8298 = vmatpush1.bf16.msra.mxu0 %v7964
        %8299 = vmatprep.subr.bf16.mxu0 %v8025
        %8300 = vmatpush2.bf16.msra.mxu0 %v8024
        %8301 = vmatprep.subr.bf16.mxu0 %v8021
        %8302 = vmatpush2.bf16.msra.mxu0 %v8020
        %8303 = vmatprep.subr.bf16.mxu0 %v8017
        %8304 = vmatpush2.bf16.msra.mxu0 %v8016
        %8305 = vmatprep.subr.bf16.mxu0 %v8013
        %8306 = vmatpush2.bf16.msra.mxu0 %v8012
        %8307 = vmatprep.subr.bf16.mxu0 %v8009
        %8308 = vmatpush2.bf16.msra.mxu0 %v8008
        %8309 = vmatprep.subr.bf16.mxu0 %v8005
        %8310 = vmatpush2.bf16.msra.mxu0 %v8004
        %8311 = vmatprep.subr.bf16.mxu0 %v8001
        %8312 = vmatpush2.bf16.msra.mxu0 %v8000
        %8313 = vmatprep.subr.bf16.mxu0 %v7997
        %8314 = vmatpush2.bf16.msra.mxu0 %v7996
        %8315 = vmatprep.mubr.bf16.mxu0 %v5422
        %8316 = vmatmul.mubr.bf16.gmra.mxu0 %v5419
        %v8317 = vpop.f32.mrf.mxu0
        %v8318 = vadd.f32 %v8275, %v8317
        %v8319 = vpop.f32.mrf.mxu0
        %v8320 = vadd.f32 %v8277, %v8319
        %v8321 = vpop.f32.mrf.mxu0
        %v8322 = vadd.f32 %v8279, %v8321
        %v8323 = vpop.f32.mrf.mxu0
        %v8324 = vadd.f32 %v8281, %v8323
        %8325 = vdwg.mxu0
        %8326 = vst [vmem:[#allocation2 + $0x40] sm:$0xff] %v8232
        %8327 = vst [vmem:[#allocation2 + $0x48] sm:$0xff] %v8234
        %8328 = vst [vmem:[#allocation2 + $0x50] sm:$0xff] %v8318
        %8329 = vst [vmem:[#allocation2 + $0x58] sm:$0xff] %v8320
        %8330 = vst [vmem:[#allocation2 + $0xc0] sm:$0xff] %v8236
        %8331 = vst [vmem:[#allocation2 + $0xc8] sm:$0xff] %v8238
        %8332 = vst [vmem:[#allocation2 + $0xd0] sm:$0xff] %v8322
        %8333 = vst [vmem:[#allocation2 + $0xd8] sm:$0xff] %v8324
        %v8334 = vld [vmem:[#allocation13 + $0x30] sm:$0xff]
        %v8335 = vld [vmem:[#allocation13 + $0x38] sm:$0xff]
        %v8336 = vld [vmem:[#allocation13 + $0x70] sm:$0xff]
        %v8337 = vld [vmem:[#allocation13 + $0x78] sm:$0xff]
        %v8338 = vld [vmem:[#allocation13 + $0xb0] sm:$0xff]
        %v8339 = vld [vmem:[#allocation13 + $0xb8] sm:$0xff]
        %v8340 = vld [vmem:[#allocation13 + $0xf0] sm:$0xff]
        %v8341 = vld [vmem:[#allocation13 + $0xf8] sm:$0xff]
        %v8342 = vld [vmem:[#allocation13 + $0x130] sm:$0xff]
        %v8343 = vld [vmem:[#allocation13 + $0x138] sm:$0xff]
        %v8344 = vld [vmem:[#allocation13 + $0x170] sm:$0xff]
        %v8345 = vld [vmem:[#allocation13 + $0x178] sm:$0xff]
        %v8346 = vld [vmem:[#allocation13 + $0x1b0] sm:$0xff]
        %v8347 = vld [vmem:[#allocation13 + $0x1b8] sm:$0xff]
        %v8348 = vld [vmem:[#allocation13 + $0x1f0] sm:$0xff]
        %v8349 = vld [vmem:[#allocation13 + $0x1f8] sm:$0xff]
        %v8350 = vld [vmem:[#allocation13 + $0x230] sm:$0xff]
        %v8351 = vld [vmem:[#allocation13 + $0x238] sm:$0xff]
        %v8352 = vld [vmem:[#allocation13 + $0x270] sm:$0xff]
        %v8353 = vld [vmem:[#allocation13 + $0x278] sm:$0xff]
        %v8354 = vld [vmem:[#allocation13 + $0x2b0] sm:$0xff]
        %v8355 = vld [vmem:[#allocation13 + $0x2b8] sm:$0xff]
        %v8356 = vld [vmem:[#allocation13 + $0x2f0] sm:$0xff]
        %v8357 = vld [vmem:[#allocation13 + $0x2f8] sm:$0xff]
        %v8358 = vld [vmem:[#allocation13 + $0x330] sm:$0xff]
        %v8359 = vld [vmem:[#allocation13 + $0x338] sm:$0xff]
        %v8360 = vld [vmem:[#allocation13 + $0x370] sm:$0xff]
        %v8361 = vld [vmem:[#allocation13 + $0x378] sm:$0xff]
        %v8362 = vld [vmem:[#allocation13 + $0x3b0] sm:$0xff]
        %v8363 = vld [vmem:[#allocation13 + $0x3b8] sm:$0xff]
        %v8364 = vld [vmem:[#allocation13 + $0x3f0] sm:$0xff]
        %v8365 = vld [vmem:[#allocation13 + $0x3f8] sm:$0xff]
        %v8366 = vld [vmem:[#allocation13 + $0x430] sm:$0xff]
        %v8367 = vld [vmem:[#allocation13 + $0x438] sm:$0xff]
        %v8368 = vld [vmem:[#allocation13 + $0x470] sm:$0xff]
        %v8369 = vld [vmem:[#allocation13 + $0x478] sm:$0xff]
        %v8370 = vld [vmem:[#allocation13 + $0x4b0] sm:$0xff]
        %v8371 = vld [vmem:[#allocation13 + $0x4b8] sm:$0xff]
        %v8372 = vld [vmem:[#allocation13 + $0x4f0] sm:$0xff]
        %v8373 = vld [vmem:[#allocation13 + $0x4f8] sm:$0xff]
        %v8374 = vld [vmem:[#allocation13 + $0x530] sm:$0xff]
        %v8375 = vld [vmem:[#allocation13 + $0x538] sm:$0xff]
        %v8376 = vld [vmem:[#allocation13 + $0x570] sm:$0xff]
        %v8377 = vld [vmem:[#allocation13 + $0x578] sm:$0xff]
        %v8378 = vld [vmem:[#allocation13 + $0x5b0] sm:$0xff]
        %v8379 = vld [vmem:[#allocation13 + $0x5b8] sm:$0xff]
        %v8380 = vld [vmem:[#allocation13 + $0x5f0] sm:$0xff]
        %v8381 = vld [vmem:[#allocation13 + $0x5f8] sm:$0xff]
        %v8382 = vld [vmem:[#allocation13 + $0x630] sm:$0xff]
        %v8383 = vld [vmem:[#allocation13 + $0x638] sm:$0xff]
        %v8384 = vld [vmem:[#allocation13 + $0x670] sm:$0xff]
        %v8385 = vld [vmem:[#allocation13 + $0x678] sm:$0xff]
        %v8386 = vld [vmem:[#allocation13 + $0x6b0] sm:$0xff]
        %v8387 = vld [vmem:[#allocation13 + $0x6b8] sm:$0xff]
        %v8388 = vld [vmem:[#allocation13 + $0x6f0] sm:$0xff]
        %v8389 = vld [vmem:[#allocation13 + $0x6f8] sm:$0xff]
        %v8390 = vld [vmem:[#allocation13 + $0x730] sm:$0xff]
        %v8391 = vld [vmem:[#allocation13 + $0x738] sm:$0xff]
        %v8392 = vld [vmem:[#allocation13 + $0x770] sm:$0xff]
        %v8393 = vld [vmem:[#allocation13 + $0x778] sm:$0xff]
        %v8394 = vld [vmem:[#allocation13 + $0x7b0] sm:$0xff]
        %v8395 = vld [vmem:[#allocation13 + $0x7b8] sm:$0xff]
        %v8396 = vld [vmem:[#allocation13 + $0x7f0] sm:$0xff]
        %v8397 = vld [vmem:[#allocation13 + $0x7f8] sm:$0xff]
        %v8398 = vld [vmem:[#allocation13 + $0x830] sm:$0xff]
        %v8399 = vld [vmem:[#allocation13 + $0x838] sm:$0xff]
        %v8400 = vld [vmem:[#allocation13 + $0x870] sm:$0xff]
        %v8401 = vld [vmem:[#allocation13 + $0x878] sm:$0xff]
        %v8402 = vld [vmem:[#allocation13 + $0x8b0] sm:$0xff]
        %v8403 = vld [vmem:[#allocation13 + $0x8b8] sm:$0xff]
        %v8404 = vld [vmem:[#allocation13 + $0x8f0] sm:$0xff]
        %v8405 = vld [vmem:[#allocation13 + $0x8f8] sm:$0xff]
        %v8406 = vld [vmem:[#allocation13 + $0x930] sm:$0xff]
        %v8407 = vld [vmem:[#allocation13 + $0x938] sm:$0xff]
        %v8408 = vld [vmem:[#allocation13 + $0x970] sm:$0xff]
        %v8409 = vld [vmem:[#allocation13 + $0x978] sm:$0xff]
        %v8410 = vld [vmem:[#allocation13 + $0x9b0] sm:$0xff]
        %v8411 = vld [vmem:[#allocation13 + $0x9b8] sm:$0xff]
        %v8412 = vld [vmem:[#allocation13 + $0x9f0] sm:$0xff]
        %v8413 = vld [vmem:[#allocation13 + $0x9f8] sm:$0xff]
        %v8414 = vld [vmem:[#allocation13 + $0xa30] sm:$0xff]
        %v8415 = vld [vmem:[#allocation13 + $0xa38] sm:$0xff]
        %v8416 = vld [vmem:[#allocation13 + $0xa70] sm:$0xff]
        %v8417 = vld [vmem:[#allocation13 + $0xa78] sm:$0xff]
        %v8418 = vld [vmem:[#allocation13 + $0xab0] sm:$0xff]
        %v8419 = vld [vmem:[#allocation13 + $0xab8] sm:$0xff]
        %v8420 = vld [vmem:[#allocation13 + $0xaf0] sm:$0xff]
        %v8421 = vld [vmem:[#allocation13 + $0xaf8] sm:$0xff]
        %v8422 = vld [vmem:[#allocation13 + $0xb30] sm:$0xff]
        %v8423 = vld [vmem:[#allocation13 + $0xb38] sm:$0xff]
        %v8424 = vld [vmem:[#allocation13 + $0xb70] sm:$0xff]
        %v8425 = vld [vmem:[#allocation13 + $0xb78] sm:$0xff]
        %v8426 = vld [vmem:[#allocation13 + $0xbb0] sm:$0xff]
        %v8427 = vld [vmem:[#allocation13 + $0xbb8] sm:$0xff]
        %v8428 = vld [vmem:[#allocation13 + $0xbf0] sm:$0xff]
        %v8429 = vld [vmem:[#allocation13 + $0xbf8] sm:$0xff]
        %v8430 = vld [vmem:[#allocation13 + $0xc30] sm:$0xff]
        %v8431 = vld [vmem:[#allocation13 + $0xc38] sm:$0xff]
        %v8432 = vld [vmem:[#allocation13 + $0xc70] sm:$0xff]
        %v8433 = vld [vmem:[#allocation13 + $0xc78] sm:$0xff]
        %v8434 = vld [vmem:[#allocation13 + $0xcb0] sm:$0xff]
        %v8435 = vld [vmem:[#allocation13 + $0xcb8] sm:$0xff]
        %v8436 = vld [vmem:[#allocation13 + $0xcf0] sm:$0xff]
        %v8437 = vld [vmem:[#allocation13 + $0xcf8] sm:$0xff]
        %v8438 = vld [vmem:[#allocation13 + $0xd30] sm:$0xff]
        %v8439 = vld [vmem:[#allocation13 + $0xd38] sm:$0xff]
        %v8440 = vld [vmem:[#allocation13 + $0xd70] sm:$0xff]
        %v8441 = vld [vmem:[#allocation13 + $0xd78] sm:$0xff]
        %v8442 = vld [vmem:[#allocation13 + $0xdb0] sm:$0xff]
        %v8443 = vld [vmem:[#allocation13 + $0xdb8] sm:$0xff]
        %v8444 = vld [vmem:[#allocation13 + $0xdf0] sm:$0xff]
        %v8445 = vld [vmem:[#allocation13 + $0xdf8] sm:$0xff]
        %v8446 = vld [vmem:[#allocation13 + $0xe30] sm:$0xff]
        %v8447 = vld [vmem:[#allocation13 + $0xe38] sm:$0xff]
        %v8448 = vld [vmem:[#allocation13 + $0xe70] sm:$0xff]
        %v8449 = vld [vmem:[#allocation13 + $0xe78] sm:$0xff]
        %v8450 = vld [vmem:[#allocation13 + $0xeb0] sm:$0xff]
        %v8451 = vld [vmem:[#allocation13 + $0xeb8] sm:$0xff]
        %v8452 = vld [vmem:[#allocation13 + $0xef0] sm:$0xff]
        %v8453 = vld [vmem:[#allocation13 + $0xef8] sm:$0xff]
        %v8454 = vld [vmem:[#allocation13 + $0xf30] sm:$0xff]
        %v8455 = vld [vmem:[#allocation13 + $0xf38] sm:$0xff]
        %v8456 = vld [vmem:[#allocation13 + $0xf70] sm:$0xff]
        %v8457 = vld [vmem:[#allocation13 + $0xf78] sm:$0xff]
        %v8458 = vld [vmem:[#allocation13 + $0xfb0] sm:$0xff]
        %v8459 = vld [vmem:[#allocation13 + $0xfb8] sm:$0xff]
        %v8460 = vld [vmem:[#allocation13 + $0xff0] sm:$0xff]
        %v8461 = vld [vmem:[#allocation13 + $0xff8] sm:$0xff]
        %v8462 = vld [vmem:[#allocation14 + $0xc] sm:$0xf]
        %v8464 = vlaneseq
        %v8465 = vshrl.u32 %v8464, 7
        %v8466 = vsub.s32 0, %v8465
        %v8467 = vrot.slane %v8462, %v8466
        %v8468 = vlaneseq
        %v8469 = vshrl.u32 %v8468, 7
        %v8470 = vsub.s32 1, %v8469
        %v8471 = vrot.slane %v8462, %v8470
        %v8472 = vlaneseq
        %v8473 = vshrl.u32 %v8472, 7
        %v8474 = vsub.s32 2, %v8473
        %v8475 = vrot.slane %v8462, %v8474
        %v8476 = vlaneseq
        %v8477 = vshrl.u32 %v8476, 7
        %v8478 = vsub.s32 3, %v8477
        %v8479 = vrot.slane %v8462, %v8478
        %v8612 = vunpack.c.l.b16 %v8334
        %v8613 = vunpack.c.h.b16 %v8334
        %v8614 = vunpack.c.l.b16 %v8335
        %v8615 = vunpack.c.h.b16 %v8335
        %v8616 = vunpack.c.l.b16 %v8336
        %v8617 = vunpack.c.h.b16 %v8336
        %v8618 = vunpack.c.l.b16 %v8337
        %v8619 = vunpack.c.h.b16 %v8337
        %v8620 = vunpack.c.l.b16 %v8338
        %v8621 = vunpack.c.h.b16 %v8338
        %v8622 = vunpack.c.l.b16 %v8339
        %v8623 = vunpack.c.h.b16 %v8339
        %v8624 = vunpack.c.l.b16 %v8340
        %v8625 = vunpack.c.h.b16 %v8340
        %v8626 = vunpack.c.l.b16 %v8341
        %v8627 = vunpack.c.h.b16 %v8341
        %v8628 = vunpack.c.l.b16 %v8342
        %v8629 = vunpack.c.h.b16 %v8342
        %v8630 = vunpack.c.l.b16 %v8343
        %v8631 = vunpack.c.h.b16 %v8343
        %v8632 = vunpack.c.l.b16 %v8344
        %v8633 = vunpack.c.h.b16 %v8344
        %v8634 = vunpack.c.l.b16 %v8345
        %v8635 = vunpack.c.h.b16 %v8345
        %v8636 = vunpack.c.l.b16 %v8346
        %v8637 = vunpack.c.h.b16 %v8346
        %v8638 = vunpack.c.l.b16 %v8347
        %v8639 = vunpack.c.h.b16 %v8347
        %v8640 = vunpack.c.l.b16 %v8348
        %v8641 = vunpack.c.h.b16 %v8348
        %v8642 = vunpack.c.l.b16 %v8349
        %v8643 = vunpack.c.h.b16 %v8349
        %v8644 = vunpack.c.l.b16 %v8350
        %v8645 = vunpack.c.h.b16 %v8350
        %v8646 = vunpack.c.l.b16 %v8351
        %v8647 = vunpack.c.h.b16 %v8351
        %v8648 = vunpack.c.l.b16 %v8352
        %v8649 = vunpack.c.h.b16 %v8352
        %v8650 = vunpack.c.l.b16 %v8353
        %v8651 = vunpack.c.h.b16 %v8353
        %v8652 = vunpack.c.l.b16 %v8354
        %v8653 = vunpack.c.h.b16 %v8354
        %v8654 = vunpack.c.l.b16 %v8355
        %v8655 = vunpack.c.h.b16 %v8355
        %v8656 = vunpack.c.l.b16 %v8356
        %v8657 = vunpack.c.h.b16 %v8356
        %v8658 = vunpack.c.l.b16 %v8357
        %v8659 = vunpack.c.h.b16 %v8357
        %v8660 = vunpack.c.l.b16 %v8358
        %v8661 = vunpack.c.h.b16 %v8358
        %v8662 = vunpack.c.l.b16 %v8359
        %v8663 = vunpack.c.h.b16 %v8359
        %v8664 = vunpack.c.l.b16 %v8360
        %v8665 = vunpack.c.h.b16 %v8360
        %v8666 = vunpack.c.l.b16 %v8361
        %v8667 = vunpack.c.h.b16 %v8361
        %v8668 = vunpack.c.l.b16 %v8362
        %v8669 = vunpack.c.h.b16 %v8362
        %v8670 = vunpack.c.l.b16 %v8363
        %v8671 = vunpack.c.h.b16 %v8363
        %v8672 = vunpack.c.l.b16 %v8364
        %v8673 = vunpack.c.h.b16 %v8364
        %v8674 = vunpack.c.l.b16 %v8365
        %v8675 = vunpack.c.h.b16 %v8365
        %v8676 = vunpack.c.l.b16 %v8366
        %v8677 = vunpack.c.h.b16 %v8366
        %v8678 = vunpack.c.l.b16 %v8367
        %v8679 = vunpack.c.h.b16 %v8367
        %v8680 = vunpack.c.l.b16 %v8368
        %v8681 = vunpack.c.h.b16 %v8368
        %v8682 = vunpack.c.l.b16 %v8369
        %v8683 = vunpack.c.h.b16 %v8369
        %v8684 = vunpack.c.l.b16 %v8370
        %v8685 = vunpack.c.h.b16 %v8370
        %v8686 = vunpack.c.l.b16 %v8371
        %v8687 = vunpack.c.h.b16 %v8371
        %v8688 = vunpack.c.l.b16 %v8372
        %v8689 = vunpack.c.h.b16 %v8372
        %v8690 = vunpack.c.l.b16 %v8373
        %v8691 = vunpack.c.h.b16 %v8373
        %v8692 = vunpack.c.l.b16 %v8374
        %v8693 = vunpack.c.h.b16 %v8374
        %v8694 = vunpack.c.l.b16 %v8375
        %v8695 = vunpack.c.h.b16 %v8375
        %v8696 = vunpack.c.l.b16 %v8376
        %v8697 = vunpack.c.h.b16 %v8376
        %v8698 = vunpack.c.l.b16 %v8377
        %v8699 = vunpack.c.h.b16 %v8377
        %v8700 = vunpack.c.l.b16 %v8378
        %v8701 = vunpack.c.h.b16 %v8378
        %v8702 = vunpack.c.l.b16 %v8379
        %v8703 = vunpack.c.h.b16 %v8379
        %v8704 = vunpack.c.l.b16 %v8380
        %v8705 = vunpack.c.h.b16 %v8380
        %v8706 = vunpack.c.l.b16 %v8381
        %v8707 = vunpack.c.h.b16 %v8381
        %v8708 = vunpack.c.l.b16 %v8382
        %v8709 = vunpack.c.h.b16 %v8382
        %v8710 = vunpack.c.l.b16 %v8383
        %v8711 = vunpack.c.h.b16 %v8383
        %v8712 = vunpack.c.l.b16 %v8384
        %v8713 = vunpack.c.h.b16 %v8384
        %v8714 = vunpack.c.l.b16 %v8385
        %v8715 = vunpack.c.h.b16 %v8385
        %v8716 = vunpack.c.l.b16 %v8386
        %v8717 = vunpack.c.h.b16 %v8386
        %v8718 = vunpack.c.l.b16 %v8387
        %v8719 = vunpack.c.h.b16 %v8387
        %v8720 = vunpack.c.l.b16 %v8388
        %v8721 = vunpack.c.h.b16 %v8388
        %v8722 = vunpack.c.l.b16 %v8389
        %v8723 = vunpack.c.h.b16 %v8389
        %v8724 = vunpack.c.l.b16 %v8390
        %v8725 = vunpack.c.h.b16 %v8390
        %v8726 = vunpack.c.l.b16 %v8391
        %v8727 = vunpack.c.h.b16 %v8391
        %v8728 = vunpack.c.l.b16 %v8392
        %v8729 = vunpack.c.h.b16 %v8392
        %v8730 = vunpack.c.l.b16 %v8393
        %v8731 = vunpack.c.h.b16 %v8393
        %v8732 = vunpack.c.l.b16 %v8394
        %v8733 = vunpack.c.h.b16 %v8394
        %v8734 = vunpack.c.l.b16 %v8395
        %v8735 = vunpack.c.h.b16 %v8395
        %v8736 = vunpack.c.l.b16 %v8396
        %v8737 = vunpack.c.h.b16 %v8396
        %v8738 = vunpack.c.l.b16 %v8397
        %v8739 = vunpack.c.h.b16 %v8397
        %v8740 = vunpack.c.l.b16 %v8398
        %v8741 = vunpack.c.h.b16 %v8398
        %v8742 = vunpack.c.l.b16 %v8399
        %v8743 = vunpack.c.h.b16 %v8399
        %v8744 = vunpack.c.l.b16 %v8400
        %v8745 = vunpack.c.h.b16 %v8400
        %v8746 = vunpack.c.l.b16 %v8401
        %v8747 = vunpack.c.h.b16 %v8401
        %v8748 = vunpack.c.l.b16 %v8402
        %v8749 = vunpack.c.h.b16 %v8402
        %v8750 = vunpack.c.l.b16 %v8403
        %v8751 = vunpack.c.h.b16 %v8403
        %v8752 = vunpack.c.l.b16 %v8404
        %v8753 = vunpack.c.h.b16 %v8404
        %v8754 = vunpack.c.l.b16 %v8405
        %v8755 = vunpack.c.h.b16 %v8405
        %v8756 = vunpack.c.l.b16 %v8406
        %v8757 = vunpack.c.h.b16 %v8406
        %v8758 = vunpack.c.l.b16 %v8407
        %v8759 = vunpack.c.h.b16 %v8407
        %v8760 = vunpack.c.l.b16 %v8408
        %v8761 = vunpack.c.h.b16 %v8408
        %v8762 = vunpack.c.l.b16 %v8409
        %v8763 = vunpack.c.h.b16 %v8409
        %v8764 = vunpack.c.l.b16 %v8410
        %v8765 = vunpack.c.h.b16 %v8410
        %v8766 = vunpack.c.l.b16 %v8411
        %v8767 = vunpack.c.h.b16 %v8411
        %v8768 = vunpack.c.l.b16 %v8412
        %v8769 = vunpack.c.h.b16 %v8412
        %v8770 = vunpack.c.l.b16 %v8413
        %v8771 = vunpack.c.h.b16 %v8413
        %v8772 = vunpack.c.l.b16 %v8414
        %v8773 = vunpack.c.h.b16 %v8414
        %v8774 = vunpack.c.l.b16 %v8415
        %v8775 = vunpack.c.h.b16 %v8415
        %v8776 = vunpack.c.l.b16 %v8416
        %v8777 = vunpack.c.h.b16 %v8416
        %v8778 = vunpack.c.l.b16 %v8417
        %v8779 = vunpack.c.h.b16 %v8417
        %v8780 = vunpack.c.l.b16 %v8418
        %v8781 = vunpack.c.h.b16 %v8418
        %v8782 = vunpack.c.l.b16 %v8419
        %v8783 = vunpack.c.h.b16 %v8419
        %v8784 = vunpack.c.l.b16 %v8420
        %v8785 = vunpack.c.h.b16 %v8420
        %v8786 = vunpack.c.l.b16 %v8421
        %v8787 = vunpack.c.h.b16 %v8421
        %v8788 = vunpack.c.l.b16 %v8422
        %v8789 = vunpack.c.h.b16 %v8422
        %v8790 = vunpack.c.l.b16 %v8423
        %v8791 = vunpack.c.h.b16 %v8423
        %v8792 = vunpack.c.l.b16 %v8424
        %v8793 = vunpack.c.h.b16 %v8424
        %v8794 = vunpack.c.l.b16 %v8425
        %v8795 = vunpack.c.h.b16 %v8425
        %v8796 = vunpack.c.l.b16 %v8426
        %v8797 = vunpack.c.h.b16 %v8426
        %v8798 = vunpack.c.l.b16 %v8427
        %v8799 = vunpack.c.h.b16 %v8427
        %v8800 = vunpack.c.l.b16 %v8428
        %v8801 = vunpack.c.h.b16 %v8428
        %v8802 = vunpack.c.l.b16 %v8429
        %v8803 = vunpack.c.h.b16 %v8429
        %v8804 = vunpack.c.l.b16 %v8430
        %v8805 = vunpack.c.h.b16 %v8430
        %v8806 = vunpack.c.l.b16 %v8431
        %v8807 = vunpack.c.h.b16 %v8431
        %v8808 = vunpack.c.l.b16 %v8432
        %v8809 = vunpack.c.h.b16 %v8432
        %v8810 = vunpack.c.l.b16 %v8433
        %v8811 = vunpack.c.h.b16 %v8433
        %v8812 = vunpack.c.l.b16 %v8434
        %v8813 = vunpack.c.h.b16 %v8434
        %v8814 = vunpack.c.l.b16 %v8435
        %v8815 = vunpack.c.h.b16 %v8435
        %v8816 = vunpack.c.l.b16 %v8436
        %v8817 = vunpack.c.h.b16 %v8436
        %v8818 = vunpack.c.l.b16 %v8437
        %v8819 = vunpack.c.h.b16 %v8437
        %v8820 = vunpack.c.l.b16 %v8438
        %v8821 = vunpack.c.h.b16 %v8438
        %v8822 = vunpack.c.l.b16 %v8439
        %v8823 = vunpack.c.h.b16 %v8439
        %v8824 = vunpack.c.l.b16 %v8440
        %v8825 = vunpack.c.h.b16 %v8440
        %v8826 = vunpack.c.l.b16 %v8441
        %v8827 = vunpack.c.h.b16 %v8441
        %v8828 = vunpack.c.l.b16 %v8442
        %v8829 = vunpack.c.h.b16 %v8442
        %v8830 = vunpack.c.l.b16 %v8443
        %v8831 = vunpack.c.h.b16 %v8443
        %v8832 = vunpack.c.l.b16 %v8444
        %v8833 = vunpack.c.h.b16 %v8444
        %v8834 = vunpack.c.l.b16 %v8445
        %v8835 = vunpack.c.h.b16 %v8445
        %v8836 = vunpack.c.l.b16 %v8446
        %v8837 = vunpack.c.h.b16 %v8446
        %v8838 = vunpack.c.l.b16 %v8447
        %v8839 = vunpack.c.h.b16 %v8447
        %v8840 = vunpack.c.l.b16 %v8448
        %v8841 = vunpack.c.h.b16 %v8448
        %v8842 = vunpack.c.l.b16 %v8449
        %v8843 = vunpack.c.h.b16 %v8449
        %v8844 = vunpack.c.l.b16 %v8450
        %v8845 = vunpack.c.h.b16 %v8450
        %v8846 = vunpack.c.l.b16 %v8451
        %v8847 = vunpack.c.h.b16 %v8451
        %v8848 = vunpack.c.l.b16 %v8452
        %v8849 = vunpack.c.h.b16 %v8452
        %v8850 = vunpack.c.l.b16 %v8453
        %v8851 = vunpack.c.h.b16 %v8453
        %v8852 = vunpack.c.l.b16 %v8454
        %v8853 = vunpack.c.h.b16 %v8454
        %v8854 = vunpack.c.l.b16 %v8455
        %v8855 = vunpack.c.h.b16 %v8455
        %v8856 = vunpack.c.l.b16 %v8456
        %v8857 = vunpack.c.h.b16 %v8456
        %v8858 = vunpack.c.l.b16 %v8457
        %v8859 = vunpack.c.h.b16 %v8457
        %v8860 = vunpack.c.l.b16 %v8458
        %v8861 = vunpack.c.h.b16 %v8458
        %v8862 = vunpack.c.l.b16 %v8459
        %v8863 = vunpack.c.h.b16 %v8459
        %v8864 = vunpack.c.l.b16 %v8460
        %v8865 = vunpack.c.h.b16 %v8460
        %v8866 = vunpack.c.l.b16 %v8461
        %v8867 = vunpack.c.h.b16 %v8461
        %v8868 = vpack.c.b16 %v8616, %v8612
        %v8869 = vpack.c.b16 %v8617, %v8613
        %v8870 = vpack.c.b16 %v8618, %v8614
        %v8871 = vpack.c.b16 %v8619, %v8615
        %v8872 = vpack.c.b16 %v8624, %v8620
        %v8873 = vpack.c.b16 %v8625, %v8621
        %v8874 = vpack.c.b16 %v8626, %v8622
        %v8875 = vpack.c.b16 %v8627, %v8623
        %v8876 = vpack.c.b16 %v8632, %v8628
        %v8877 = vpack.c.b16 %v8633, %v8629
        %v8878 = vpack.c.b16 %v8634, %v8630
        %v8879 = vpack.c.b16 %v8635, %v8631
        %v8880 = vpack.c.b16 %v8640, %v8636
        %v8881 = vpack.c.b16 %v8641, %v8637
        %v8882 = vpack.c.b16 %v8642, %v8638
        %v8883 = vpack.c.b16 %v8643, %v8639
        %v8884 = vpack.c.b16 %v8648, %v8644
        %v8885 = vpack.c.b16 %v8649, %v8645
        %v8886 = vpack.c.b16 %v8650, %v8646
        %v8887 = vpack.c.b16 %v8651, %v8647
        %v8888 = vpack.c.b16 %v8656, %v8652
        %v8889 = vpack.c.b16 %v8657, %v8653
        %v8890 = vpack.c.b16 %v8658, %v8654
        %v8891 = vpack.c.b16 %v8659, %v8655
        %v8892 = vpack.c.b16 %v8664, %v8660
        %v8893 = vpack.c.b16 %v8665, %v8661
        %v8894 = vpack.c.b16 %v8666, %v8662
        %v8895 = vpack.c.b16 %v8667, %v8663
        %v8896 = vpack.c.b16 %v8672, %v8668
        %v8897 = vpack.c.b16 %v8673, %v8669
        %v8898 = vpack.c.b16 %v8674, %v8670
        %v8899 = vpack.c.b16 %v8675, %v8671
        %v8900 = vpack.c.b16 %v8680, %v8676
        %v8901 = vpack.c.b16 %v8681, %v8677
        %v8902 = vpack.c.b16 %v8682, %v8678
        %v8903 = vpack.c.b16 %v8683, %v8679
        %v8904 = vpack.c.b16 %v8688, %v8684
        %v8905 = vpack.c.b16 %v8689, %v8685
        %v8906 = vpack.c.b16 %v8690, %v8686
        %v8907 = vpack.c.b16 %v8691, %v8687
        %v8908 = vpack.c.b16 %v8696, %v8692
        %v8909 = vpack.c.b16 %v8697, %v8693
        %v8910 = vpack.c.b16 %v8698, %v8694
        %v8911 = vpack.c.b16 %v8699, %v8695
        %v8912 = vpack.c.b16 %v8704, %v8700
        %v8913 = vpack.c.b16 %v8705, %v8701
        %v8914 = vpack.c.b16 %v8706, %v8702
        %v8915 = vpack.c.b16 %v8707, %v8703
        %v8916 = vpack.c.b16 %v8712, %v8708
        %v8917 = vpack.c.b16 %v8713, %v8709
        %v8918 = vpack.c.b16 %v8714, %v8710
        %v8919 = vpack.c.b16 %v8715, %v8711
        %v8920 = vpack.c.b16 %v8720, %v8716
        %v8921 = vpack.c.b16 %v8721, %v8717
        %v8922 = vpack.c.b16 %v8722, %v8718
        %v8923 = vpack.c.b16 %v8723, %v8719
        %v8924 = vpack.c.b16 %v8728, %v8724
        %v8925 = vpack.c.b16 %v8729, %v8725
        %v8926 = vpack.c.b16 %v8730, %v8726
        %v8927 = vpack.c.b16 %v8731, %v8727
        %v8928 = vpack.c.b16 %v8736, %v8732
        %v8929 = vpack.c.b16 %v8737, %v8733
        %v8930 = vpack.c.b16 %v8738, %v8734
        %v8931 = vpack.c.b16 %v8739, %v8735
        %v8932 = vpack.c.b16 %v8744, %v8740
        %v8933 = vpack.c.b16 %v8745, %v8741
        %v8934 = vpack.c.b16 %v8746, %v8742
        %v8935 = vpack.c.b16 %v8747, %v8743
        %v8936 = vpack.c.b16 %v8752, %v8748
        %v8937 = vpack.c.b16 %v8753, %v8749
        %v8938 = vpack.c.b16 %v8754, %v8750
        %v8939 = vpack.c.b16 %v8755, %v8751
        %v8940 = vpack.c.b16 %v8760, %v8756
        %v8941 = vpack.c.b16 %v8761, %v8757
        %v8942 = vpack.c.b16 %v8762, %v8758
        %v8943 = vpack.c.b16 %v8763, %v8759
        %v8944 = vpack.c.b16 %v8768, %v8764
        %v8945 = vpack.c.b16 %v8769, %v8765
        %v8946 = vpack.c.b16 %v8770, %v8766
        %v8947 = vpack.c.b16 %v8771, %v8767
        %v8948 = vpack.c.b16 %v8776, %v8772
        %v8949 = vpack.c.b16 %v8777, %v8773
        %v8950 = vpack.c.b16 %v8778, %v8774
        %v8951 = vpack.c.b16 %v8779, %v8775
        %v8952 = vpack.c.b16 %v8784, %v8780
        %v8953 = vpack.c.b16 %v8785, %v8781
        %v8954 = vpack.c.b16 %v8786, %v8782
        %v8955 = vpack.c.b16 %v8787, %v8783
        %v8956 = vpack.c.b16 %v8792, %v8788
        %v8957 = vpack.c.b16 %v8793, %v8789
        %v8958 = vpack.c.b16 %v8794, %v8790
        %v8959 = vpack.c.b16 %v8795, %v8791
        %v8960 = vpack.c.b16 %v8800, %v8796
        %v8961 = vpack.c.b16 %v8801, %v8797
        %v8962 = vpack.c.b16 %v8802, %v8798
        %v8963 = vpack.c.b16 %v8803, %v8799
        %v8964 = vpack.c.b16 %v8808, %v8804
        %v8965 = vpack.c.b16 %v8809, %v8805
        %v8966 = vpack.c.b16 %v8810, %v8806
        %v8967 = vpack.c.b16 %v8811, %v8807
        %v8968 = vpack.c.b16 %v8816, %v8812
        %v8969 = vpack.c.b16 %v8817, %v8813
        %v8970 = vpack.c.b16 %v8818, %v8814
        %v8971 = vpack.c.b16 %v8819, %v8815
        %v8972 = vpack.c.b16 %v8824, %v8820
        %v8973 = vpack.c.b16 %v8825, %v8821
        %v8974 = vpack.c.b16 %v8826, %v8822
        %v8975 = vpack.c.b16 %v8827, %v8823
        %v8976 = vpack.c.b16 %v8832, %v8828
        %v8977 = vpack.c.b16 %v8833, %v8829
        %v8978 = vpack.c.b16 %v8834, %v8830
        %v8979 = vpack.c.b16 %v8835, %v8831
        %v8980 = vpack.c.b16 %v8840, %v8836
        %v8981 = vpack.c.b16 %v8841, %v8837
        %v8982 = vpack.c.b16 %v8842, %v8838
        %v8983 = vpack.c.b16 %v8843, %v8839
        %v8984 = vpack.c.b16 %v8848, %v8844
        %v8985 = vpack.c.b16 %v8849, %v8845
        %v8986 = vpack.c.b16 %v8850, %v8846
        %v8987 = vpack.c.b16 %v8851, %v8847
        %v8988 = vpack.c.b16 %v8856, %v8852
        %v8989 = vpack.c.b16 %v8857, %v8853
        %v8990 = vpack.c.b16 %v8858, %v8854
        %v8991 = vpack.c.b16 %v8859, %v8855
        %v8992 = vpack.c.b16 %v8864, %v8860
        %v8993 = vpack.c.b16 %v8865, %v8861
        %v8994 = vpack.c.b16 %v8866, %v8862
        %v8995 = vpack.c.b16 %v8867, %v8863
        %9124 = vmatprep.subr.bf16.mxu0 %v8897
        %9125 = vmatpush1.bf16.msra.mxu0 %v8896
        %9126 = vmatprep.subr.bf16.mxu0 %v8893
        %9127 = vmatpush1.bf16.msra.mxu0 %v8892
        %9128 = vmatprep.subr.bf16.mxu0 %v8889
        %9129 = vmatpush1.bf16.msra.mxu0 %v8888
        %9130 = vmatprep.subr.bf16.mxu0 %v8885
        %9131 = vmatpush1.bf16.msra.mxu0 %v8884
        %9132 = vmatprep.subr.bf16.mxu0 %v8881
        %9133 = vmatpush1.bf16.msra.mxu0 %v8880
        %9134 = vmatprep.subr.bf16.mxu0 %v8877
        %9135 = vmatpush1.bf16.msra.mxu0 %v8876
        %9136 = vmatprep.subr.bf16.mxu0 %v8873
        %9137 = vmatpush1.bf16.msra.mxu0 %v8872
        %9138 = vmatprep.subr.bf16.mxu0 %v8869
        %9139 = vmatpush1.bf16.msra.mxu0 %v8868
        %9140 = vmatprep.subr.bf16.mxu0 %v8929
        %9141 = vmatpush2.bf16.msra.mxu0 %v8928
        %9142 = vmatprep.subr.bf16.mxu0 %v8925
        %9143 = vmatpush2.bf16.msra.mxu0 %v8924
        %9144 = vmatprep.subr.bf16.mxu0 %v8921
        %9145 = vmatpush2.bf16.msra.mxu0 %v8920
        %9146 = vmatprep.subr.bf16.mxu0 %v8917
        %9147 = vmatpush2.bf16.msra.mxu0 %v8916
        %9148 = vmatprep.subr.bf16.mxu0 %v8913
        %9149 = vmatpush2.bf16.msra.mxu0 %v8912
        %9150 = vmatprep.subr.bf16.mxu0 %v8909
        %9151 = vmatpush2.bf16.msra.mxu0 %v8908
        %9152 = vmatprep.subr.bf16.mxu0 %v8905
        %9153 = vmatpush2.bf16.msra.mxu0 %v8904
        %9154 = vmatprep.subr.bf16.mxu0 %v8901
        %9155 = vmatpush2.bf16.msra.mxu0 %v8900
        %9156 = vmatprep.mubr.bf16.mxu0 %v5416
        %9157 = vmatmul.mubr.bf16.gmra.mxu0 %v5413
        %v9158 = vpop.f32.mrf.mxu0
        %v9159 = vadd.f32 %v8467, %v9158
        %v9160 = vpop.f32.mrf.mxu0
        %v9161 = vadd.f32 %v8471, %v9160
        %v9162 = vpop.f32.mrf.mxu0
        %v9163 = vadd.f32 %v8467, %v9162
        %v9164 = vpop.f32.mrf.mxu0
        %v9165 = vadd.f32 %v8471, %v9164
        %9166 = vdwg.mxu0
        %9167 = vmatprep.subr.bf16.mxu0 %v8961
        %9168 = vmatpush1.bf16.msra.mxu0 %v8960
        %9169 = vmatprep.subr.bf16.mxu0 %v8957
        %9170 = vmatpush1.bf16.msra.mxu0 %v8956
        %9171 = vmatprep.subr.bf16.mxu0 %v8953
        %9172 = vmatpush1.bf16.msra.mxu0 %v8952
        %9173 = vmatprep.subr.bf16.mxu0 %v8949
        %9174 = vmatpush1.bf16.msra.mxu0 %v8948
        %9175 = vmatprep.subr.bf16.mxu0 %v8945
        %9176 = vmatpush1.bf16.msra.mxu0 %v8944
        %9177 = vmatprep.subr.bf16.mxu0 %v8941
        %9178 = vmatpush1.bf16.msra.mxu0 %v8940
        %9179 = vmatprep.subr.bf16.mxu0 %v8937
        %9180 = vmatpush1.bf16.msra.mxu0 %v8936
        %9181 = vmatprep.subr.bf16.mxu0 %v8933
        %9182 = vmatpush1.bf16.msra.mxu0 %v8932
        %9183 = vmatprep.subr.bf16.mxu0 %v8993
        %9184 = vmatpush2.bf16.msra.mxu0 %v8992
        %9185 = vmatprep.subr.bf16.mxu0 %v8989
        %9186 = vmatpush2.bf16.msra.mxu0 %v8988
        %9187 = vmatprep.subr.bf16.mxu0 %v8985
        %9188 = vmatpush2.bf16.msra.mxu0 %v8984
        %9189 = vmatprep.subr.bf16.mxu0 %v8981
        %9190 = vmatpush2.bf16.msra.mxu0 %v8980
        %9191 = vmatprep.subr.bf16.mxu0 %v8977
        %9192 = vmatpush2.bf16.msra.mxu0 %v8976
        %9193 = vmatprep.subr.bf16.mxu0 %v8973
        %9194 = vmatpush2.bf16.msra.mxu0 %v8972
        %9195 = vmatprep.subr.bf16.mxu0 %v8969
        %9196 = vmatpush2.bf16.msra.mxu0 %v8968
        %9197 = vmatprep.subr.bf16.mxu0 %v8965
        %9198 = vmatpush2.bf16.msra.mxu0 %v8964
        %9199 = vmatprep.mubr.bf16.mxu0 %v5422
        %9200 = vmatmul.mubr.bf16.gmra.mxu0 %v5419
        %v9201 = vpop.f32.mrf.mxu0
        %v9202 = vadd.f32 %v9159, %v9201
        %v9203 = vpop.f32.mrf.mxu0
        %v9204 = vadd.f32 %v9161, %v9203
        %v9205 = vpop.f32.mrf.mxu0
        %v9206 = vadd.f32 %v9163, %v9205
        %v9207 = vpop.f32.mrf.mxu0
        %v9208 = vadd.f32 %v9165, %v9207
        %9209 = vdwg.mxu0
        %9210 = vmatprep.subr.bf16.mxu0 %v8899
        %9211 = vmatpush1.bf16.msra.mxu0 %v8898
        %9212 = vmatprep.subr.bf16.mxu0 %v8895
        %9213 = vmatpush1.bf16.msra.mxu0 %v8894
        %9214 = vmatprep.subr.bf16.mxu0 %v8891
        %9215 = vmatpush1.bf16.msra.mxu0 %v8890
        %9216 = vmatprep.subr.bf16.mxu0 %v8887
        %9217 = vmatpush1.bf16.msra.mxu0 %v8886
        %9218 = vmatprep.subr.bf16.mxu0 %v8883
        %9219 = vmatpush1.bf16.msra.mxu0 %v8882
        %9220 = vmatprep.subr.bf16.mxu0 %v8879
        %9221 = vmatpush1.bf16.msra.mxu0 %v8878
        %9222 = vmatprep.subr.bf16.mxu0 %v8875
        %9223 = vmatpush1.bf16.msra.mxu0 %v8874
        %9224 = vmatprep.subr.bf16.mxu0 %v8871
        %9225 = vmatpush1.bf16.msra.mxu0 %v8870
        %9226 = vmatprep.subr.bf16.mxu0 %v8931
        %9227 = vmatpush2.bf16.msra.mxu0 %v8930
        %9228 = vmatprep.subr.bf16.mxu0 %v8927
        %9229 = vmatpush2.bf16.msra.mxu0 %v8926
        %9230 = vmatprep.subr.bf16.mxu0 %v8923
        %9231 = vmatpush2.bf16.msra.mxu0 %v8922
        %9232 = vmatprep.subr.bf16.mxu0 %v8919
        %9233 = vmatpush2.bf16.msra.mxu0 %v8918
        %9234 = vmatprep.subr.bf16.mxu0 %v8915
        %9235 = vmatpush2.bf16.msra.mxu0 %v8914
        %9236 = vmatprep.subr.bf16.mxu0 %v8911
        %9237 = vmatpush2.bf16.msra.mxu0 %v8910
        %9238 = vmatprep.subr.bf16.mxu0 %v8907
        %9239 = vmatpush2.bf16.msra.mxu0 %v8906
        %9240 = vmatprep.subr.bf16.mxu0 %v8903
        %9241 = vmatpush2.bf16.msra.mxu0 %v8902
        %9242 = vmatprep.mubr.bf16.mxu0 %v5416
        %9243 = vmatmul.mubr.bf16.gmra.mxu0 %v5413
        %v9244 = vpop.f32.mrf.mxu0
        %v9245 = vadd.f32 %v8475, %v9244
        %v9246 = vpop.f32.mrf.mxu0
        %v9247 = vadd.f32 %v8479, %v9246
        %v9248 = vpop.f32.mrf.mxu0
        %v9249 = vadd.f32 %v8475, %v9248
        %v9250 = vpop.f32.mrf.mxu0
        %v9251 = vadd.f32 %v8479, %v9250
        %9252 = vdwg.mxu0
        %9253 = vmatprep.subr.bf16.mxu0 %v8963
        %9254 = vmatpush1.bf16.msra.mxu0 %v8962
        %9255 = vmatprep.subr.bf16.mxu0 %v8959
        %9256 = vmatpush1.bf16.msra.mxu0 %v8958
        %9257 = vmatprep.subr.bf16.mxu0 %v8955
        %9258 = vmatpush1.bf16.msra.mxu0 %v8954
        %9259 = vmatprep.subr.bf16.mxu0 %v8951
        %9260 = vmatpush1.bf16.msra.mxu0 %v8950
        %9261 = vmatprep.subr.bf16.mxu0 %v8947
        %9262 = vmatpush1.bf16.msra.mxu0 %v8946
        %9263 = vmatprep.subr.bf16.mxu0 %v8943
        %9264 = vmatpush1.bf16.msra.mxu0 %v8942
        %9265 = vmatprep.subr.bf16.mxu0 %v8939
        %9266 = vmatpush1.bf16.msra.mxu0 %v8938
        %9267 = vmatprep.subr.bf16.mxu0 %v8935
        %9268 = vmatpush1.bf16.msra.mxu0 %v8934
        %9269 = vmatprep.subr.bf16.mxu0 %v8995
        %9270 = vmatpush2.bf16.msra.mxu0 %v8994
        %9271 = vmatprep.subr.bf16.mxu0 %v8991
        %9272 = vmatpush2.bf16.msra.mxu0 %v8990
        %9273 = vmatprep.subr.bf16.mxu0 %v8987
        %9274 = vmatpush2.bf16.msra.mxu0 %v8986
        %9275 = vmatprep.subr.bf16.mxu0 %v8983
        %9276 = vmatpush2.bf16.msra.mxu0 %v8982
        %9277 = vmatprep.subr.bf16.mxu0 %v8979
        %9278 = vmatpush2.bf16.msra.mxu0 %v8978
        %9279 = vmatprep.subr.bf16.mxu0 %v8975
        %9280 = vmatpush2.bf16.msra.mxu0 %v8974
        %9281 = vmatprep.subr.bf16.mxu0 %v8971
        %9282 = vmatpush2.bf16.msra.mxu0 %v8970
        %9283 = vmatprep.subr.bf16.mxu0 %v8967
        %9284 = vmatpush2.bf16.msra.mxu0 %v8966
        %9285 = vmatprep.mubr.bf16.mxu0 %v5422
        %9286 = vmatmul.mubr.bf16.gmra.mxu0 %v5419
        %v9287 = vpop.f32.mrf.mxu0
        %v9288 = vadd.f32 %v9245, %v9287
        %v9289 = vpop.f32.mrf.mxu0
        %v9290 = vadd.f32 %v9247, %v9289
        %v9291 = vpop.f32.mrf.mxu0
        %v9292 = vadd.f32 %v9249, %v9291
        %v9293 = vpop.f32.mrf.mxu0
        %v9294 = vadd.f32 %v9251, %v9293
        %9295 = vdwg.mxu0
        %9296 = vst [vmem:[#allocation2 + $0x60] sm:$0xff] %v9202
        %9297 = vst [vmem:[#allocation2 + $0x68] sm:$0xff] %v9204
        %9298 = vst [vmem:[#allocation2 + $0x70] sm:$0xff] %v9288
        %9299 = vst [vmem:[#allocation2 + $0x78] sm:$0xff] %v9290
        %9300 = vst [vmem:[#allocation2 + $0xe0] sm:$0xff] %v9206
        %9301 = vst [vmem:[#allocation2 + $0xe8] sm:$0xff] %v9208
        %9302 = vst [vmem:[#allocation2 + $0xf0] sm:$0xff] %v9292
        %9303 = vst [vmem:[#allocation2 + $0xf8] sm:$0xff] %v9294
        %v9304 = vld [vmem:[#allocation16] sm:$0xff]
        %v9305 = vld [vmem:[#allocation16 + $0x8] sm:$0xff]
        %v9306 = vld [vmem:[#allocation16 + $0x10] sm:$0xff]
        %v9307 = vld [vmem:[#allocation16 + $0x18] sm:$0xff]
        %v9308 = vld [vmem:[#allocation16 + $0x20] sm:$0xff]
        %v9309 = vld [vmem:[#allocation16 + $0x28] sm:$0xff]
        %v9310 = vld [vmem:[#allocation16 + $0x30] sm:$0xff]
        %v9311 = vld [vmem:[#allocation16 + $0x38] sm:$0xff]
        %v9320 = vunpack.c.l.b16 %v9304
        %v9321 = vunpack.c.h.b16 %v9304
        %v9322 = vunpack.c.l.b16 %v9305
        %v9323 = vunpack.c.h.b16 %v9305
        %v9324 = vunpack.c.l.b16 %v9306
        %v9325 = vunpack.c.h.b16 %v9306
        %v9326 = vunpack.c.l.b16 %v9307
        %v9327 = vunpack.c.h.b16 %v9307
        %v9328 = vunpack.c.l.b16 %v9308
        %v9329 = vunpack.c.h.b16 %v9308
        %v9330 = vunpack.c.l.b16 %v9309
        %v9331 = vunpack.c.h.b16 %v9309
        %v9332 = vunpack.c.l.b16 %v9310
        %v9333 = vunpack.c.h.b16 %v9310
        %v9334 = vunpack.c.l.b16 %v9311
        %v9335 = vunpack.c.h.b16 %v9311
        %v9336 = vpack.c.b16 %v9322, %v9320
        %v9337 = vpack.c.b16 %v9323, %v9321
        %v9338 = vpack.c.b16 %v9326, %v9324
        %v9339 = vpack.c.b16 %v9327, %v9325
        %v9340 = vpack.c.b16 %v9330, %v9328
        %v9341 = vpack.c.b16 %v9331, %v9329
        %v9342 = vpack.c.b16 %v9334, %v9332
        %v9343 = vpack.c.b16 %v9335, %v9333
        %9352 = vmatprep.subr.bf16.mxu0 0
        %9353 = vmatpush1.bf16.msra.mxu0 0
        %9354 = vmatprep.subr.bf16.mxu0 0
        %9355 = vmatpush1.bf16.msra.mxu0 0
        %9356 = vmatprep.subr.bf16.mxu0 0
        %9357 = vmatpush1.bf16.msra.mxu0 0
        %9358 = vmatprep.subr.bf16.mxu0 0
        %9359 = vmatpush1.bf16.msra.mxu0 0
        %9360 = vmatprep.subr.bf16.mxu0 %v9343
        %9361 = vmatpush1.bf16.msra.mxu0 %v9342
        %9362 = vmatprep.subr.bf16.mxu0 %v9341
        %9363 = vmatpush1.bf16.msra.mxu0 %v9340
        %9364 = vmatprep.subr.bf16.mxu0 %v9339
        %9365 = vmatpush1.bf16.msra.mxu0 %v9338
        %9366 = vmatprep.subr.bf16.mxu0 %v9337
        %9367 = vmatpush1.bf16.msra.mxu0 %v9336
        %9368 = vmatprep.subr.bf16.mxu0 0
        %9369 = vmatpush2.bf16.msra.mxu0 0
        %9370 = vmatprep.subr.bf16.mxu0 0
        %9371 = vmatpush2.bf16.msra.mxu0 0
        %9372 = vmatprep.subr.bf16.mxu0 0
        %9373 = vmatpush2.bf16.msra.mxu0 0
        %9374 = vmatprep.subr.bf16.mxu0 0
        %9375 = vmatpush2.bf16.msra.mxu0 0
        %9376 = vmatprep.subr.bf16.mxu0 0
        %9377 = vmatpush2.bf16.msra.mxu0 0
        %9378 = vmatprep.subr.bf16.mxu0 0
        %9379 = vmatpush2.bf16.msra.mxu0 0
        %9380 = vmatprep.subr.bf16.mxu0 0
        %9381 = vmatpush2.bf16.msra.mxu0 0
        %9382 = vmatprep.subr.bf16.mxu0 0
        %9383 = vmatpush2.bf16.msra.mxu0 0
        %9384 = vmatprep.mubr.bf16.mxu0 0
        %9385 = vmatmul.mubr.bf16.gmra.mxu0 %v4481
        %v9386 = vpop.f32.mrf.mxu0
        %v9387 = vadd.f32 0.0, %v9386
        %v9388 = vpop.f32.mrf.mxu0
        %v9389 = vadd.f32 0.0, %v9388
        %v9390 = vpop.f32.mrf.mxu0
        %v9391 = vadd.f32 0.0, %v9390
        %v9392 = vpop.f32.mrf.mxu0
        %v9393 = vadd.f32 0.0, %v9392
        %9394 = vdwg.mxu0
        %v9395 = vld [vmem:[#allocation2] sm:$0xff]
        %v9396 = vld [vmem:[#allocation2 + $0x8] sm:$0xff]
        %v9397 = vld [vmem:[#allocation2 + $0x80] sm:$0xff]
        %v9398 = vld [vmem:[#allocation2 + $0x88] sm:$0xff]
        %v9399 = vadd.f32 %v9395, %v9387
        %v9400 = vadd.f32 %v9396, %v9389
        %v9401 = vadd.f32 %v9397, %v9391
        %v9402 = vadd.f32 %v9398, %v9393
        %v9403 = vxor.u32 %v9399, 2147483648
        %v9404 = vxor.u32 %v9400, 2147483648
        %v9405 = vxor.u32 %v9401, 2147483648
        %v9406 = vxor.u32 %v9402, 2147483648
        %v9407 = vmul.f32 %v9403, 1.442695
        %v9408 = vpow.pop %v9407
        %v9409 = vmul.f32 %v9404, 1.442695
        %v9410 = vpow.pop %v9409
        %v9411 = vmul.f32 %v9405, 1.442695
        %v9412 = vpow.pop %v9411
        %v9413 = vmul.f32 %v9406, 1.442695
        %v9414 = vpow.pop %v9413
        %v9415 = vadd.f32 %v9408, 1.0
        %v9416 = vadd.f32 %v9410, 1.0
        %v9417 = vadd.f32 %v9412, 1.0
        %v9418 = vadd.f32 %v9414, 1.0
        %v9419 = vrcp.pop %v9415
        %v9420 = vmul.f32 1.0, %v9419
        %v9421 = vrcp.pop %v9416
        %v9422 = vmul.f32 1.0, %v9421
        %v9423 = vrcp.pop %v9417
        %v9424 = vmul.f32 1.0, %v9423
        %v9425 = vrcp.pop %v9418
        %v9426 = vmul.f32 1.0, %v9425
        %v9427 = vtanh.pop %v9400
        %v9428 = vtanh.pop %v9402
        %v9429 = vmul.f32 %v9420, 0.0
        %v9430 = vmul.f32 %v9424, 0.0
        %9433 = vrot.lane.b32.xlu0 %v9427, 64
        %v9434 = vpop.permute.xlu0 %9433
        %9435 = vrot.lane.b32.xlu0 %v9428, 64
        %v9436 = vpop.permute.xlu0 %9435
        %v9439 = vmul.f32 %v9420, %v9434
        %v9440 = vmul.f32 %v9424, %v9436
        %9443 = vrot.lane.b32.xlu0 %v9439, 64
        %v9444 = vpop.permute.xlu0 %9443
        %9445 = vrot.lane.b32.xlu0 %v9440, 64
        %v9446 = vpop.permute.xlu0 %9445
        %v9449 = vadd.f32 %v9429, %v9444
        %v9450 = vadd.f32 %v9430, %v9446
        %v9451 = vtanh.pop %v9449
        %v9452 = vtanh.pop %v9450
        %9455 = vrot.lane.b32.xlu0 %v9451, 64
        %v9456 = vpop.permute.xlu0 %9455
        %9457 = vrot.lane.b32.xlu0 %v9452, 64
        %v9458 = vpop.permute.xlu0 %9457
        %v9461 = vmul.f32 %v9422, %v9456
        %v9462 = vmul.f32 %v9426, %v9458
        %v9463 = vpack.c.bf16 %v9462, %v9461
        %v9465 = vsel %vm1218, %v9463, 0
        %9467 = vmatprep.subr.bf16.mxu0 0
        %9468 = vmatpush1.bf16.msra.mxu0 0
        %9469 = vmatprep.subr.bf16.mxu0 0
        %9470 = vmatpush1.bf16.msra.mxu0 0
        %9471 = vmatprep.subr.bf16.mxu0 0
        %9472 = vmatpush1.bf16.msra.mxu0 0
        %9473 = vmatprep.subr.bf16.mxu0 0
        %9474 = vmatpush1.bf16.msra.mxu0 0
        %9475 = vmatprep.subr.bf16.mxu0 %v9343
        %9476 = vmatpush1.bf16.msra.mxu0 %v9342
        %9477 = vmatprep.subr.bf16.mxu0 %v9341
        %9478 = vmatpush1.bf16.msra.mxu0 %v9340
        %9479 = vmatprep.subr.bf16.mxu0 %v9339
        %9480 = vmatpush1.bf16.msra.mxu0 %v9338
        %9481 = vmatprep.subr.bf16.mxu0 %v9337
        %9482 = vmatpush1.bf16.msra.mxu0 %v9336
        %9483 = vmatprep.subr.bf16.mxu0 0
        %9484 = vmatpush2.bf16.msra.mxu0 0
        %9485 = vmatprep.subr.bf16.mxu0 0
        %9486 = vmatpush2.bf16.msra.mxu0 0
        %9487 = vmatprep.subr.bf16.mxu0 0
        %9488 = vmatpush2.bf16.msra.mxu0 0
        %9489 = vmatprep.subr.bf16.mxu0 0
        %9490 = vmatpush2.bf16.msra.mxu0 0
        %9491 = vmatprep.subr.bf16.mxu0 0
        %9492 = vmatpush2.bf16.msra.mxu0 0
        %9493 = vmatprep.subr.bf16.mxu0 0
        %9494 = vmatpush2.bf16.msra.mxu0 0
        %9495 = vmatprep.subr.bf16.mxu0 0
        %9496 = vmatpush2.bf16.msra.mxu0 0
        %9497 = vmatprep.subr.bf16.mxu0 0
        %9498 = vmatpush2.bf16.msra.mxu0 0
        %9499 = vmatprep.mubr.bf16.mxu0 0
        %9500 = vmatmul.mubr.bf16.gmra.mxu0 %v9465
        %v9501 = vpop.f32.mrf.mxu0
        %v9502 = vadd.f32 0.0, %v9501
        %v9503 = vpop.f32.mrf.mxu0
        %v9504 = vadd.f32 0.0, %v9503
        %v9505 = vpop.f32.mrf.mxu0
        %v9506 = vadd.f32 0.0, %v9505
        %v9507 = vpop.f32.mrf.mxu0
        %v9508 = vadd.f32 0.0, %v9507
        %9509 = vdwg.mxu0
        %v9510 = vld [vmem:[#allocation2 + $0x10] sm:$0xff]
        %v9511 = vld [vmem:[#allocation2 + $0x18] sm:$0xff]
        %v9512 = vld [vmem:[#allocation2 + $0x90] sm:$0xff]
        %v9513 = vld [vmem:[#allocation2 + $0x98] sm:$0xff]
        %v9514 = vadd.f32 %v9510, %v9502
        %v9515 = vadd.f32 %v9511, %v9504
        %v9516 = vadd.f32 %v9512, %v9506
        %v9517 = vadd.f32 %v9513, %v9508
        %v9518 = vxor.u32 %v9514, 2147483648
        %v9519 = vxor.u32 %v9515, 2147483648
        %v9520 = vxor.u32 %v9516, 2147483648
        %v9521 = vxor.u32 %v9517, 2147483648
        %v9522 = vmul.f32 %v9518, 1.442695
        %v9523 = vpow.pop %v9522
        %v9524 = vmul.f32 %v9519, 1.442695
        %v9525 = vpow.pop %v9524
        %v9526 = vmul.f32 %v9520, 1.442695
        %v9527 = vpow.pop %v9526
        %v9528 = vmul.f32 %v9521, 1.442695
        %v9529 = vpow.pop %v9528
        %v9530 = vadd.f32 %v9523, 1.0
        %v9531 = vadd.f32 %v9525, 1.0
        %v9532 = vadd.f32 %v9527, 1.0
        %v9533 = vadd.f32 %v9529, 1.0
        %v9534 = vrcp.pop %v9530
        %v9535 = vmul.f32 1.0, %v9534
        %v9536 = vrcp.pop %v9531
        %v9537 = vmul.f32 1.0, %v9536
        %v9538 = vrcp.pop %v9532
        %v9539 = vmul.f32 1.0, %v9538
        %v9540 = vrcp.pop %v9533
        %v9541 = vmul.f32 1.0, %v9540
        %v9542 = vtanh.pop %v9515
        %v9543 = vtanh.pop %v9517
        %v9544 = vmul.f32 %v9535, %v9449
        %v9545 = vmul.f32 %v9539, %v9450
        %9548 = vrot.lane.b32.xlu0 %v9542, 64
        %v9549 = vpop.permute.xlu0 %9548
        %9550 = vrot.lane.b32.xlu0 %v9543, 64
        %v9551 = vpop.permute.xlu0 %9550
        %v9554 = vmul.f32 %v9535, %v9549
        %v9555 = vmul.f32 %v9539, %v9551
        %9558 = vrot.lane.b32.xlu0 %v9554, 64
        %v9559 = vpop.permute.xlu0 %9558
        %9560 = vrot.lane.b32.xlu0 %v9555, 64
        %v9561 = vpop.permute.xlu0 %9560
        %v9564 = vadd.f32 %v9544, %v9559
        %v9565 = vadd.f32 %v9545, %v9561
        %v9566 = vtanh.pop %v9564
        %v9567 = vtanh.pop %v9565
        %9570 = vrot.lane.b32.xlu0 %v9566, 64
        %v9571 = vpop.permute.xlu0 %9570
        %9572 = vrot.lane.b32.xlu0 %v9567, 64
        %v9573 = vpop.permute.xlu0 %9572
        %v9576 = vmul.f32 %v9537, %v9571
        %v9577 = vmul.f32 %v9541, %v9573
        %v9578 = vpack.c.bf16 %v9577, %v9576
        %v9580 = vsel %vm1218, %v9578, 0
        %9582 = vmatprep.subr.bf16.mxu0 0
        %9583 = vmatpush1.bf16.msra.mxu0 0
        %9584 = vmatprep.subr.bf16.mxu0 0
        %9585 = vmatpush1.bf16.msra.mxu0 0
        %9586 = vmatprep.subr.bf16.mxu0 0
        %9587 = vmatpush1.bf16.msra.mxu0 0
        %9588 = vmatprep.subr.bf16.mxu0 0
        %9589 = vmatpush1.bf16.msra.mxu0 0
        %9590 = vmatprep.subr.bf16.mxu0 %v9343
        %9591 = vmatpush1.bf16.msra.mxu0 %v9342
        %9592 = vmatprep.subr.bf16.mxu0 %v9341
        %9593 = vmatpush1.bf16.msra.mxu0 %v9340
        %9594 = vmatprep.subr.bf16.mxu0 %v9339
        %9595 = vmatpush1.bf16.msra.mxu0 %v9338
        %9596 = vmatprep.subr.bf16.mxu0 %v9337
        %9597 = vmatpush1.bf16.msra.mxu0 %v9336
        %9598 = vmatprep.subr.bf16.mxu0 0
        %9599 = vmatpush2.bf16.msra.mxu0 0
        %9600 = vmatprep.subr.bf16.mxu0 0
        %9601 = vmatpush2.bf16.msra.mxu0 0
        %9602 = vmatprep.subr.bf16.mxu0 0
        %9603 = vmatpush2.bf16.msra.mxu0 0
        %9604 = vmatprep.subr.bf16.mxu0 0
        %9605 = vmatpush2.bf16.msra.mxu0 0
        %9606 = vmatprep.subr.bf16.mxu0 0
        %9607 = vmatpush2.bf16.msra.mxu0 0
        %9608 = vmatprep.subr.bf16.mxu0 0
        %9609 = vmatpush2.bf16.msra.mxu0 0
        %9610 = vmatprep.subr.bf16.mxu0 0
        %9611 = vmatpush2.bf16.msra.mxu0 0
        %9612 = vmatprep.subr.bf16.mxu0 0
        %9613 = vmatpush2.bf16.msra.mxu0 0
        %9614 = vmatprep.mubr.bf16.mxu0 0
        %9615 = vmatmul.mubr.bf16.gmra.mxu0 %v9580
        %v9616 = vpop.f32.mrf.mxu0
        %v9617 = vadd.f32 0.0, %v9616
        %v9618 = vpop.f32.mrf.mxu0
        %v9619 = vadd.f32 0.0, %v9618
        %v9620 = vpop.f32.mrf.mxu0
        %v9621 = vadd.f32 0.0, %v9620
        %v9622 = vpop.f32.mrf.mxu0
        %v9623 = vadd.f32 0.0, %v9622
        %9624 = vdwg.mxu0
        %v9625 = vld [vmem:[#allocation2 + $0x20] sm:$0xff]
        %v9626 = vld [vmem:[#allocation2 + $0x28] sm:$0xff]
        %v9627 = vld [vmem:[#allocation2 + $0xa0] sm:$0xff]
        %v9628 = vld [vmem:[#allocation2 + $0xa8] sm:$0xff]
        %v9629 = vadd.f32 %v9625, %v9617
        %v9630 = vadd.f32 %v9626, %v9619
        %v9631 = vadd.f32 %v9627, %v9621
        %v9632 = vadd.f32 %v9628, %v9623
        %v9633 = vxor.u32 %v9629, 2147483648
        %v9634 = vxor.u32 %v9630, 2147483648
        %v9635 = vxor.u32 %v9631, 2147483648
        %v9636 = vxor.u32 %v9632, 2147483648
        %v9637 = vmul.f32 %v9633, 1.442695
        %v9638 = vpow.pop %v9637
        %v9639 = vmul.f32 %v9634, 1.442695
        %v9640 = vpow.pop %v9639
        %v9641 = vmul.f32 %v9635, 1.442695
        %v9642 = vpow.pop %v9641
        %v9643 = vmul.f32 %v9636, 1.442695
        %v9644 = vpow.pop %v9643
        %v9645 = vadd.f32 %v9638, 1.0
        %v9646 = vadd.f32 %v9640, 1.0
        %v9647 = vadd.f32 %v9642, 1.0
        %v9648 = vadd.f32 %v9644, 1.0
        %v9649 = vrcp.pop %v9645
        %v9650 = vmul.f32 1.0, %v9649
        %v9651 = vrcp.pop %v9646
        %v9652 = vmul.f32 1.0, %v9651
        %v9653 = vrcp.pop %v9647
        %v9654 = vmul.f32 1.0, %v9653
        %v9655 = vrcp.pop %v9648
        %v9656 = vmul.f32 1.0, %v9655
        %v9657 = vtanh.pop %v9630
        %v9658 = vtanh.pop %v9632
        %v9659 = vmul.f32 %v9650, %v9564
        %v9660 = vmul.f32 %v9654, %v9565
        %9663 = vrot.lane.b32.xlu0 %v9657, 64
        %v9664 = vpop.permute.xlu0 %9663
        %9665 = vrot.lane.b32.xlu0 %v9658, 64
        %v9666 = vpop.permute.xlu0 %9665
        %v9669 = vmul.f32 %v9650, %v9664
        %v9670 = vmul.f32 %v9654, %v9666
        %9673 = vrot.lane.b32.xlu0 %v9669, 64
        %v9674 = vpop.permute.xlu0 %9673
        %9675 = vrot.lane.b32.xlu0 %v9670, 64
        %v9676 = vpop.permute.xlu0 %9675
        %v9679 = vadd.f32 %v9659, %v9674
        %v9680 = vadd.f32 %v9660, %v9676
        %v9681 = vtanh.pop %v9679
        %v9682 = vtanh.pop %v9680
        %9685 = vrot.lane.b32.xlu0 %v9681, 64
        %v9686 = vpop.permute.xlu0 %9685
        %9687 = vrot.lane.b32.xlu0 %v9682, 64
        %v9688 = vpop.permute.xlu0 %9687
        %v9691 = vmul.f32 %v9652, %v9686
        %v9692 = vmul.f32 %v9656, %v9688
        %v9693 = vpack.c.bf16 %v9692, %v9691
        %v9695 = vsel %vm1218, %v9693, 0
        %9697 = vmatprep.subr.bf16.mxu0 0
        %9698 = vmatpush1.bf16.msra.mxu0 0
        %9699 = vmatprep.subr.bf16.mxu0 0
        %9700 = vmatpush1.bf16.msra.mxu0 0
        %9701 = vmatprep.subr.bf16.mxu0 0
        %9702 = vmatpush1.bf16.msra.mxu0 0
        %9703 = vmatprep.subr.bf16.mxu0 0
        %9704 = vmatpush1.bf16.msra.mxu0 0
        %9705 = vmatprep.subr.bf16.mxu0 %v9343
        %9706 = vmatpush1.bf16.msra.mxu0 %v9342
        %9707 = vmatprep.subr.bf16.mxu0 %v9341
        %9708 = vmatpush1.bf16.msra.mxu0 %v9340
        %9709 = vmatprep.subr.bf16.mxu0 %v9339
        %9710 = vmatpush1.bf16.msra.mxu0 %v9338
        %9711 = vmatprep.subr.bf16.mxu0 %v9337
        %9712 = vmatpush1.bf16.msra.mxu0 %v9336
        %9713 = vmatprep.subr.bf16.mxu0 0
        %9714 = vmatpush2.bf16.msra.mxu0 0
        %9715 = vmatprep.subr.bf16.mxu0 0
        %9716 = vmatpush2.bf16.msra.mxu0 0
        %9717 = vmatprep.subr.bf16.mxu0 0
        %9718 = vmatpush2.bf16.msra.mxu0 0
        %9719 = vmatprep.subr.bf16.mxu0 0
        %9720 = vmatpush2.bf16.msra.mxu0 0
        %9721 = vmatprep.subr.bf16.mxu0 0
        %9722 = vmatpush2.bf16.msra.mxu0 0
        %9723 = vmatprep.subr.bf16.mxu0 0
        %9724 = vmatpush2.bf16.msra.mxu0 0
        %9725 = vmatprep.subr.bf16.mxu0 0
        %9726 = vmatpush2.bf16.msra.mxu0 0
        %9727 = vmatprep.subr.bf16.mxu0 0
        %9728 = vmatpush2.bf16.msra.mxu0 0
        %9729 = vmatprep.mubr.bf16.mxu0 0
        %9730 = vmatmul.mubr.bf16.gmra.mxu0 %v9695
        %v9731 = vpop.f32.mrf.mxu0
        %v9732 = vadd.f32 0.0, %v9731
        %v9733 = vpop.f32.mrf.mxu0
        %v9734 = vadd.f32 0.0, %v9733
        %v9735 = vpop.f32.mrf.mxu0
        %v9736 = vadd.f32 0.0, %v9735
        %v9737 = vpop.f32.mrf.mxu0
        %v9738 = vadd.f32 0.0, %v9737
        %9739 = vdwg.mxu0
        %v9740 = vld [vmem:[#allocation2 + $0x30] sm:$0xff]
        %v9741 = vld [vmem:[#allocation2 + $0x38] sm:$0xff]
        %v9742 = vld [vmem:[#allocation2 + $0xb0] sm:$0xff]
        %v9743 = vld [vmem:[#allocation2 + $0xb8] sm:$0xff]
        %v9744 = vadd.f32 %v9740, %v9732
        %v9745 = vadd.f32 %v9741, %v9734
        %v9746 = vadd.f32 %v9742, %v9736
        %v9747 = vadd.f32 %v9743, %v9738
        %v9748 = vxor.u32 %v9744, 2147483648
        %v9749 = vxor.u32 %v9745, 2147483648
        %v9750 = vxor.u32 %v9746, 2147483648
        %v9751 = vxor.u32 %v9747, 2147483648
        %v9752 = vmul.f32 %v9748, 1.442695
        %v9753 = vpow.pop %v9752
        %v9754 = vmul.f32 %v9749, 1.442695
        %v9755 = vpow.pop %v9754
        %v9756 = vmul.f32 %v9750, 1.442695
        %v9757 = vpow.pop %v9756
        %v9758 = vmul.f32 %v9751, 1.442695
        %v9759 = vpow.pop %v9758
        %v9760 = vadd.f32 %v9753, 1.0
        %v9761 = vadd.f32 %v9755, 1.0
        %v9762 = vadd.f32 %v9757, 1.0
        %v9763 = vadd.f32 %v9759, 1.0
        %v9764 = vrcp.pop %v9760
        %v9765 = vmul.f32 1.0, %v9764
        %v9766 = vrcp.pop %v9761
        %v9767 = vmul.f32 1.0, %v9766
        %v9768 = vrcp.pop %v9762
        %v9769 = vmul.f32 1.0, %v9768
        %v9770 = vrcp.pop %v9763
        %v9771 = vmul.f32 1.0, %v9770
        %v9772 = vtanh.pop %v9745
        %v9773 = vtanh.pop %v9747
        %v9774 = vmul.f32 %v9765, %v9679
        %v9775 = vmul.f32 %v9769, %v9680
        %9778 = vrot.lane.b32.xlu0 %v9772, 64
        %v9779 = vpop.permute.xlu0 %9778
        %9780 = vrot.lane.b32.xlu0 %v9773, 64
        %v9781 = vpop.permute.xlu0 %9780
        %v9784 = vmul.f32 %v9765, %v9779
        %v9785 = vmul.f32 %v9769, %v9781
        %9788 = vrot.lane.b32.xlu0 %v9784, 64
        %v9789 = vpop.permute.xlu0 %9788
        %9790 = vrot.lane.b32.xlu0 %v9785, 64
        %v9791 = vpop.permute.xlu0 %9790
        %v9794 = vadd.f32 %v9774, %v9789
        %v9795 = vadd.f32 %v9775, %v9791
        %v9796 = vtanh.pop %v9794
        %v9797 = vtanh.pop %v9795
        %9800 = vrot.lane.b32.xlu0 %v9796, 64
        %v9801 = vpop.permute.xlu0 %9800
        %9802 = vrot.lane.b32.xlu0 %v9797, 64
        %v9803 = vpop.permute.xlu0 %9802
        %v9806 = vmul.f32 %v9767, %v9801
        %v9807 = vmul.f32 %v9771, %v9803
        %v9808 = vpack.c.bf16 %v9807, %v9806
        %v9810 = vsel %vm1218, %v9808, 0
        %9812 = vmatprep.subr.bf16.mxu0 0
        %9813 = vmatpush1.bf16.msra.mxu0 0
        %9814 = vmatprep.subr.bf16.mxu0 0
        %9815 = vmatpush1.bf16.msra.mxu0 0
        %9816 = vmatprep.subr.bf16.mxu0 0
        %9817 = vmatpush1.bf16.msra.mxu0 0
        %9818 = vmatprep.subr.bf16.mxu0 0
        %9819 = vmatpush1.bf16.msra.mxu0 0
        %9820 = vmatprep.subr.bf16.mxu0 %v9343
        %9821 = vmatpush1.bf16.msra.mxu0 %v9342
        %9822 = vmatprep.subr.bf16.mxu0 %v9341
        %9823 = vmatpush1.bf16.msra.mxu0 %v9340
        %9824 = vmatprep.subr.bf16.mxu0 %v9339
        %9825 = vmatpush1.bf16.msra.mxu0 %v9338
        %9826 = vmatprep.subr.bf16.mxu0 %v9337
        %9827 = vmatpush1.bf16.msra.mxu0 %v9336
        %9828 = vmatprep.subr.bf16.mxu0 0
        %9829 = vmatpush2.bf16.msra.mxu0 0
        %9830 = vmatprep.subr.bf16.mxu0 0
        %9831 = vmatpush2.bf16.msra.mxu0 0
        %9832 = vmatprep.subr.bf16.mxu0 0
        %9833 = vmatpush2.bf16.msra.mxu0 0
        %9834 = vmatprep.subr.bf16.mxu0 0
        %9835 = vmatpush2.bf16.msra.mxu0 0
        %9836 = vmatprep.subr.bf16.mxu0 0
        %9837 = vmatpush2.bf16.msra.mxu0 0
        %9838 = vmatprep.subr.bf16.mxu0 0
        %9839 = vmatpush2.bf16.msra.mxu0 0
        %9840 = vmatprep.subr.bf16.mxu0 0
        %9841 = vmatpush2.bf16.msra.mxu0 0
        %9842 = vmatprep.subr.bf16.mxu0 0
        %9843 = vmatpush2.bf16.msra.mxu0 0
        %9844 = vmatprep.mubr.bf16.mxu0 0
        %9845 = vmatmul.mubr.bf16.gmra.mxu0 %v9810
        %v9846 = vpop.f32.mrf.mxu0
        %v9847 = vadd.f32 0.0, %v9846
        %v9848 = vpop.f32.mrf.mxu0
        %v9849 = vadd.f32 0.0, %v9848
        %v9850 = vpop.f32.mrf.mxu0
        %v9851 = vadd.f32 0.0, %v9850
        %v9852 = vpop.f32.mrf.mxu0
        %v9853 = vadd.f32 0.0, %v9852
        %9854 = vdwg.mxu0
        %v9855 = vld [vmem:[#allocation2 + $0x40] sm:$0xff]
        %v9856 = vld [vmem:[#allocation2 + $0x48] sm:$0xff]
        %v9857 = vld [vmem:[#allocation2 + $0xc0] sm:$0xff]
        %v9858 = vld [vmem:[#allocation2 + $0xc8] sm:$0xff]
        %v9859 = vadd.f32 %v9855, %v9847
        %v9860 = vadd.f32 %v9856, %v9849
        %v9861 = vadd.f32 %v9857, %v9851
        %v9862 = vadd.f32 %v9858, %v9853
        %v9863 = vxor.u32 %v9859, 2147483648
        %v9864 = vxor.u32 %v9860, 2147483648
        %v9865 = vxor.u32 %v9861, 2147483648
        %v9866 = vxor.u32 %v9862, 2147483648
        %v9867 = vmul.f32 %v9863, 1.442695
        %v9868 = vpow.pop %v9867
        %v9869 = vmul.f32 %v9864, 1.442695
        %v9870 = vpow.pop %v9869
        %v9871 = vmul.f32 %v9865, 1.442695
        %v9872 = vpow.pop %v9871
        %v9873 = vmul.f32 %v9866, 1.442695
        %v9874 = vpow.pop %v9873
        %v9875 = vadd.f32 %v9868, 1.0
        %v9876 = vadd.f32 %v9870, 1.0
        %v9877 = vadd.f32 %v9872, 1.0
        %v9878 = vadd.f32 %v9874, 1.0
        %v9879 = vrcp.pop %v9875
        %v9880 = vmul.f32 1.0, %v9879
        %v9881 = vrcp.pop %v9876
        %v9882 = vmul.f32 1.0, %v9881
        %v9883 = vrcp.pop %v9877
        %v9884 = vmul.f32 1.0, %v9883
        %v9885 = vrcp.pop %v9878
        %v9886 = vmul.f32 1.0, %v9885
        %v9887 = vtanh.pop %v9860
        %v9888 = vtanh.pop %v9862
        %v9889 = vmul.f32 %v9880, %v9794
        %v9890 = vmul.f32 %v9884, %v9795
        %9893 = vrot.lane.b32.xlu0 %v9887, 64
        %v9894 = vpop.permute.xlu0 %9893
        %9895 = vrot.lane.b32.xlu0 %v9888, 64
        %v9896 = vpop.permute.xlu0 %9895
        %v9899 = vmul.f32 %v9880, %v9894
        %v9900 = vmul.f32 %v9884, %v9896
        %9903 = vrot.lane.b32.xlu0 %v9899, 64
        %v9904 = vpop.permute.xlu0 %9903
        %9905 = vrot.lane.b32.xlu0 %v9900, 64
        %v9906 = vpop.permute.xlu0 %9905
        %v9909 = vadd.f32 %v9889, %v9904
        %v9910 = vadd.f32 %v9890, %v9906
        %v9911 = vtanh.pop %v9909
        %v9912 = vtanh.pop %v9910
        %9915 = vrot.lane.b32.xlu0 %v9911, 64
        %v9916 = vpop.permute.xlu0 %9915
        %9917 = vrot.lane.b32.xlu0 %v9912, 64
        %v9918 = vpop.permute.xlu0 %9917
        %v9921 = vmul.f32 %v9882, %v9916
        %v9922 = vmul.f32 %v9886, %v9918
        %v9923 = vpack.c.bf16 %v9922, %v9921
        %v9925 = vsel %vm1218, %v9923, 0
        %9927 = vmatprep.subr.bf16.mxu0 0
        %9928 = vmatpush1.bf16.msra.mxu0 0
        %9929 = vmatprep.subr.bf16.mxu0 0
        %9930 = vmatpush1.bf16.msra.mxu0 0
        %9931 = vmatprep.subr.bf16.mxu0 0
        %9932 = vmatpush1.bf16.msra.mxu0 0
        %9933 = vmatprep.subr.bf16.mxu0 0
        %9934 = vmatpush1.bf16.msra.mxu0 0
        %9935 = vmatprep.subr.bf16.mxu0 %v9343
        %9936 = vmatpush1.bf16.msra.mxu0 %v9342
        %9937 = vmatprep.subr.bf16.mxu0 %v9341
        %9938 = vmatpush1.bf16.msra.mxu0 %v9340
        %9939 = vmatprep.subr.bf16.mxu0 %v9339
        %9940 = vmatpush1.bf16.msra.mxu0 %v9338
        %9941 = vmatprep.subr.bf16.mxu0 %v9337
        %9942 = vmatpush1.bf16.msra.mxu0 %v9336
        %9943 = vmatprep.subr.bf16.mxu0 0
        %9944 = vmatpush2.bf16.msra.mxu0 0
        %9945 = vmatprep.subr.bf16.mxu0 0
        %9946 = vmatpush2.bf16.msra.mxu0 0
        %9947 = vmatprep.subr.bf16.mxu0 0
        %9948 = vmatpush2.bf16.msra.mxu0 0
        %9949 = vmatprep.subr.bf16.mxu0 0
        %9950 = vmatpush2.bf16.msra.mxu0 0
        %9951 = vmatprep.subr.bf16.mxu0 0
        %9952 = vmatpush2.bf16.msra.mxu0 0
        %9953 = vmatprep.subr.bf16.mxu0 0
        %9954 = vmatpush2.bf16.msra.mxu0 0
        %9955 = vmatprep.subr.bf16.mxu0 0
        %9956 = vmatpush2.bf16.msra.mxu0 0
        %9957 = vmatprep.subr.bf16.mxu0 0
        %9958 = vmatpush2.bf16.msra.mxu0 0
        %9959 = vmatprep.mubr.bf16.mxu0 0
        %9960 = vmatmul.mubr.bf16.gmra.mxu0 %v9925
        %v9961 = vpop.f32.mrf.mxu0
        %v9962 = vadd.f32 0.0, %v9961
        %v9963 = vpop.f32.mrf.mxu0
        %v9964 = vadd.f32 0.0, %v9963
        %v9965 = vpop.f32.mrf.mxu0
        %v9966 = vadd.f32 0.0, %v9965
        %v9967 = vpop.f32.mrf.mxu0
        %v9968 = vadd.f32 0.0, %v9967
        %9969 = vdwg.mxu0
        %v9970 = vld [vmem:[#allocation2 + $0x50] sm:$0xff]
        %v9971 = vld [vmem:[#allocation2 + $0x58] sm:$0xff]
        %v9972 = vld [vmem:[#allocation2 + $0xd0] sm:$0xff]
        %v9973 = vld [vmem:[#allocation2 + $0xd8] sm:$0xff]
        %v9974 = vadd.f32 %v9970, %v9962
        %v9975 = vadd.f32 %v9971, %v9964
        %v9976 = vadd.f32 %v9972, %v9966
        %v9977 = vadd.f32 %v9973, %v9968
        %v9978 = vxor.u32 %v9974, 2147483648
        %v9979 = vxor.u32 %v9975, 2147483648
        %v9980 = vxor.u32 %v9976, 2147483648
        %v9981 = vxor.u32 %v9977, 2147483648
        %v9982 = vmul.f32 %v9978, 1.442695
        %v9983 = vpow.pop %v9982
        %v9984 = vmul.f32 %v9979, 1.442695
        %v9985 = vpow.pop %v9984
        %v9986 = vmul.f32 %v9980, 1.442695
        %v9987 = vpow.pop %v9986
        %v9988 = vmul.f32 %v9981, 1.442695
        %v9989 = vpow.pop %v9988
        %v9990 = vadd.f32 %v9983, 1.0
        %v9991 = vadd.f32 %v9985, 1.0
        %v9992 = vadd.f32 %v9987, 1.0
        %v9993 = vadd.f32 %v9989, 1.0
        %v9994 = vrcp.pop %v9990
        %v9995 = vmul.f32 1.0, %v9994
        %v9996 = vrcp.pop %v9991
        %v9997 = vmul.f32 1.0, %v9996
        %v9998 = vrcp.pop %v9992
        %v9999 = vmul.f32 1.0, %v9998
        %v10000 = vrcp.pop %v9993
        %v10001 = vmul.f32 1.0, %v10000
        %v10002 = vtanh.pop %v9975
        %v10003 = vtanh.pop %v9977
        %v10004 = vmul.f32 %v9995, %v9909
        %v10005 = vmul.f32 %v9999, %v9910
        %10008 = vrot.lane.b32.xlu0 %v10002, 64
        %v10009 = vpop.permute.xlu0 %10008
        %10010 = vrot.lane.b32.xlu0 %v10003, 64
        %v10011 = vpop.permute.xlu0 %10010
        %v10014 = vmul.f32 %v9995, %v10009
        %v10015 = vmul.f32 %v9999, %v10011
        %10018 = vrot.lane.b32.xlu0 %v10014, 64
        %v10019 = vpop.permute.xlu0 %10018
        %10020 = vrot.lane.b32.xlu0 %v10015, 64
        %v10021 = vpop.permute.xlu0 %10020
        %v10024 = vadd.f32 %v10004, %v10019
        %v10025 = vadd.f32 %v10005, %v10021
        %v10026 = vtanh.pop %v10024
        %v10027 = vtanh.pop %v10025
        %10030 = vrot.lane.b32.xlu0 %v10026, 64
        %v10031 = vpop.permute.xlu0 %10030
        %10032 = vrot.lane.b32.xlu0 %v10027, 64
        %v10033 = vpop.permute.xlu0 %10032
        %v10036 = vmul.f32 %v9997, %v10031
        %v10037 = vmul.f32 %v10001, %v10033
        %v10038 = vpack.c.bf16 %v10037, %v10036
        %v10040 = vsel %vm1218, %v10038, 0
        %10042 = vmatprep.subr.bf16.mxu0 0
        %10043 = vmatpush1.bf16.msra.mxu0 0
        %10044 = vmatprep.subr.bf16.mxu0 0
        %10045 = vmatpush1.bf16.msra.mxu0 0
        %10046 = vmatprep.subr.bf16.mxu0 0
        %10047 = vmatpush1.bf16.msra.mxu0 0
        %10048 = vmatprep.subr.bf16.mxu0 0
        %10049 = vmatpush1.bf16.msra.mxu0 0
        %10050 = vmatprep.subr.bf16.mxu0 %v9343
        %10051 = vmatpush1.bf16.msra.mxu0 %v9342
        %10052 = vmatprep.subr.bf16.mxu0 %v9341
        %10053 = vmatpush1.bf16.msra.mxu0 %v9340
        %10054 = vmatprep.subr.bf16.mxu0 %v9339
        %10055 = vmatpush1.bf16.msra.mxu0 %v9338
        %10056 = vmatprep.subr.bf16.mxu0 %v9337
        %10057 = vmatpush1.bf16.msra.mxu0 %v9336
        %10058 = vmatprep.subr.bf16.mxu0 0
        %10059 = vmatpush2.bf16.msra.mxu0 0
        %10060 = vmatprep.subr.bf16.mxu0 0
        %10061 = vmatpush2.bf16.msra.mxu0 0
        %10062 = vmatprep.subr.bf16.mxu0 0
        %10063 = vmatpush2.bf16.msra.mxu0 0
        %10064 = vmatprep.subr.bf16.mxu0 0
        %10065 = vmatpush2.bf16.msra.mxu0 0
        %10066 = vmatprep.subr.bf16.mxu0 0
        %10067 = vmatpush2.bf16.msra.mxu0 0
        %10068 = vmatprep.subr.bf16.mxu0 0
        %10069 = vmatpush2.bf16.msra.mxu0 0
        %10070 = vmatprep.subr.bf16.mxu0 0
        %10071 = vmatpush2.bf16.msra.mxu0 0
        %10072 = vmatprep.subr.bf16.mxu0 0
        %10073 = vmatpush2.bf16.msra.mxu0 0
        %10074 = vmatprep.mubr.bf16.mxu0 0
        %10075 = vmatmul.mubr.bf16.gmra.mxu0 %v10040
        %v10076 = vpop.f32.mrf.mxu0
        %v10077 = vadd.f32 0.0, %v10076
        %v10078 = vpop.f32.mrf.mxu0
        %v10079 = vadd.f32 0.0, %v10078
        %v10080 = vpop.f32.mrf.mxu0
        %v10081 = vadd.f32 0.0, %v10080
        %v10082 = vpop.f32.mrf.mxu0
        %v10083 = vadd.f32 0.0, %v10082
        %10084 = vdwg.mxu0
        %v10085 = vld [vmem:[#allocation2 + $0x60] sm:$0xff]
        %v10086 = vld [vmem:[#allocation2 + $0x68] sm:$0xff]
        %v10087 = vld [vmem:[#allocation2 + $0xe0] sm:$0xff]
        %v10088 = vld [vmem:[#allocation2 + $0xe8] sm:$0xff]
        %v10089 = vadd.f32 %v10085, %v10077
        %v10090 = vadd.f32 %v10086, %v10079
        %v10091 = vadd.f32 %v10087, %v10081
        %v10092 = vadd.f32 %v10088, %v10083
        %v10093 = vxor.u32 %v10089, 2147483648
        %v10094 = vxor.u32 %v10090, 2147483648
        %v10095 = vxor.u32 %v10091, 2147483648
        %v10096 = vxor.u32 %v10092, 2147483648
        %v10097 = vmul.f32 %v10093, 1.442695
        %v10098 = vpow.pop %v10097
        %v10099 = vmul.f32 %v10094, 1.442695
        %v10100 = vpow.pop %v10099
        %v10101 = vmul.f32 %v10095, 1.442695
        %v10102 = vpow.pop %v10101
        %v10103 = vmul.f32 %v10096, 1.442695
        %v10104 = vpow.pop %v10103
        %v10105 = vadd.f32 %v10098, 1.0
        %v10106 = vadd.f32 %v10100, 1.0
        %v10107 = vadd.f32 %v10102, 1.0
        %v10108 = vadd.f32 %v10104, 1.0
        %v10109 = vrcp.pop %v10105
        %v10110 = vmul.f32 1.0, %v10109
        %v10111 = vrcp.pop %v10106
        %v10112 = vmul.f32 1.0, %v10111
        %v10113 = vrcp.pop %v10107
        %v10114 = vmul.f32 1.0, %v10113
        %v10115 = vrcp.pop %v10108
        %v10116 = vmul.f32 1.0, %v10115
        %v10117 = vtanh.pop %v10090
        %v10118 = vtanh.pop %v10092
        %v10119 = vmul.f32 %v10110, %v10024
        %v10120 = vmul.f32 %v10114, %v10025
        %10123 = vrot.lane.b32.xlu0 %v10117, 64
        %v10124 = vpop.permute.xlu0 %10123
        %10125 = vrot.lane.b32.xlu0 %v10118, 64
        %v10126 = vpop.permute.xlu0 %10125
        %v10129 = vmul.f32 %v10110, %v10124
        %v10130 = vmul.f32 %v10114, %v10126
        %10133 = vrot.lane.b32.xlu0 %v10129, 64
        %v10134 = vpop.permute.xlu0 %10133
        %10135 = vrot.lane.b32.xlu0 %v10130, 64
        %v10136 = vpop.permute.xlu0 %10135
        %v10139 = vadd.f32 %v10119, %v10134
        %v10140 = vadd.f32 %v10120, %v10136
        %v10141 = vtanh.pop %v10139
        %v10142 = vtanh.pop %v10140
        %10145 = vrot.lane.b32.xlu0 %v10141, 64
        %v10146 = vpop.permute.xlu0 %10145
        %10147 = vrot.lane.b32.xlu0 %v10142, 64
        %v10148 = vpop.permute.xlu0 %10147
        %v10151 = vmul.f32 %v10112, %v10146
        %v10152 = vmul.f32 %v10116, %v10148
        %v10153 = vpack.c.bf16 %v10152, %v10151
        %v10155 = vsel %vm1218, %v10153, 0
        %10157 = vmatprep.subr.bf16.mxu0 0
        %10158 = vmatpush1.bf16.msra.mxu0 0
        %10159 = vmatprep.subr.bf16.mxu0 0
        %10160 = vmatpush1.bf16.msra.mxu0 0
        %10161 = vmatprep.subr.bf16.mxu0 0
        %10162 = vmatpush1.bf16.msra.mxu0 0
        %10163 = vmatprep.subr.bf16.mxu0 0
        %10164 = vmatpush1.bf16.msra.mxu0 0
        %10165 = vmatprep.subr.bf16.mxu0 %v9343
        %10166 = vmatpush1.bf16.msra.mxu0 %v9342
        %10167 = vmatprep.subr.bf16.mxu0 %v9341
        %10168 = vmatpush1.bf16.msra.mxu0 %v9340
        %10169 = vmatprep.subr.bf16.mxu0 %v9339
        %10170 = vmatpush1.bf16.msra.mxu0 %v9338
        %10171 = vmatprep.subr.bf16.mxu0 %v9337
        %10172 = vmatpush1.bf16.msra.mxu0 %v9336
        %10173 = vmatprep.subr.bf16.mxu0 0
        %10174 = vmatpush2.bf16.msra.mxu0 0
        %10175 = vmatprep.subr.bf16.mxu0 0
        %10176 = vmatpush2.bf16.msra.mxu0 0
        %10177 = vmatprep.subr.bf16.mxu0 0
        %10178 = vmatpush2.bf16.msra.mxu0 0
        %10179 = vmatprep.subr.bf16.mxu0 0
        %10180 = vmatpush2.bf16.msra.mxu0 0
        %10181 = vmatprep.subr.bf16.mxu0 0
        %10182 = vmatpush2.bf16.msra.mxu0 0
        %10183 = vmatprep.subr.bf16.mxu0 0
        %10184 = vmatpush2.bf16.msra.mxu0 0
        %10185 = vmatprep.subr.bf16.mxu0 0
        %10186 = vmatpush2.bf16.msra.mxu0 0
        %10187 = vmatprep.subr.bf16.mxu0 0
        %10188 = vmatpush2.bf16.msra.mxu0 0
        %10189 = vmatprep.mubr.bf16.mxu0 0
        %10190 = vmatmul.mubr.bf16.gmra.mxu0 %v10155
        %v10191 = vpop.f32.mrf.mxu0
        %v10192 = vadd.f32 0.0, %v10191
        %v10193 = vpop.f32.mrf.mxu0
        %v10194 = vadd.f32 0.0, %v10193
        %v10195 = vpop.f32.mrf.mxu0
        %v10196 = vadd.f32 0.0, %v10195
        %v10197 = vpop.f32.mrf.mxu0
        %v10198 = vadd.f32 0.0, %v10197
        %10199 = vdwg.mxu0
        %v10200 = vld [vmem:[#allocation2 + $0x70] sm:$0xff]
        %v10201 = vld [vmem:[#allocation2 + $0x78] sm:$0xff]
        %v10202 = vld [vmem:[#allocation2 + $0xf0] sm:$0xff]
        %v10203 = vld [vmem:[#allocation2 + $0xf8] sm:$0xff]
        %v10204 = vadd.f32 %v10200, %v10192
        %v10205 = vadd.f32 %v10201, %v10194
        %v10206 = vadd.f32 %v10202, %v10196
        %v10207 = vadd.f32 %v10203, %v10198
        %v10208 = vxor.u32 %v10204, 2147483648
        %v10209 = vxor.u32 %v10205, 2147483648
        %v10210 = vxor.u32 %v10206, 2147483648
        %v10211 = vxor.u32 %v10207, 2147483648
        %v10212 = vmul.f32 %v10208, 1.442695
        %v10213 = vpow.pop %v10212
        %v10214 = vmul.f32 %v10209, 1.442695
        %v10215 = vpow.pop %v10214
        %v10216 = vmul.f32 %v10210, 1.442695
        %v10217 = vpow.pop %v10216
        %v10218 = vmul.f32 %v10211, 1.442695
        %v10219 = vpow.pop %v10218
        %v10220 = vadd.f32 %v10213, 1.0
        %v10221 = vadd.f32 %v10215, 1.0
        %v10222 = vadd.f32 %v10217, 1.0
        %v10223 = vadd.f32 %v10219, 1.0
        %v10224 = vrcp.pop %v10220
        %v10225 = vmul.f32 1.0, %v10224
        %v10226 = vrcp.pop %v10221
        %v10227 = vmul.f32 1.0, %v10226
        %v10228 = vrcp.pop %v10222
        %v10229 = vmul.f32 1.0, %v10228
        %v10230 = vrcp.pop %v10223
        %v10231 = vmul.f32 1.0, %v10230
        %v10232 = vtanh.pop %v10205
        %v10233 = vtanh.pop %v10207
        %v10234 = vmul.f32 %v10225, %v10139
        %v10235 = vmul.f32 %v10229, %v10140
        %10238 = vrot.lane.b32.xlu0 %v10232, 64
        %v10239 = vpop.permute.xlu0 %10238
        %10240 = vrot.lane.b32.xlu0 %v10233, 64
        %v10241 = vpop.permute.xlu0 %10240
        %v10244 = vmul.f32 %v10225, %v10239
        %v10245 = vmul.f32 %v10229, %v10241
        %10248 = vrot.lane.b32.xlu0 %v10244, 64
        %v10249 = vpop.permute.xlu0 %10248
        %10250 = vrot.lane.b32.xlu0 %v10245, 64
        %v10251 = vpop.permute.xlu0 %10250
        %v10254 = vadd.f32 %v10234, %v10249
        %v10255 = vadd.f32 %v10235, %v10251
        %v10256 = vtanh.pop %v10254
        %v10257 = vtanh.pop %v10255
        %10260 = vrot.lane.b32.xlu0 %v10256, 64
        %v10261 = vpop.permute.xlu0 %10260
        %10262 = vrot.lane.b32.xlu0 %v10257, 64
        %v10263 = vpop.permute.xlu0 %10262
        %v10266 = vmul.f32 %v10227, %v10261
        %v10267 = vmul.f32 %v10231, %v10263
        %10270 = vrot.lane.b32.xlu0 %v10266, 64
        %v10271 = vpop.permute.xlu0 %10270
        %10272 = vrot.lane.b32.xlu0 %v10267, 64
        %v10273 = vpop.permute.xlu0 %10272
        %v10276 = vsel %vm1218, %v5397, %v10271
        %v10277 = vsel %vm1218, %v5398, %v10273
        %v10278 = vpack.c.bf16 %v10277, %v10276
        %v10279 = vld [vmem:[%s12] sm:$0xf]
        %v10280 = vld [vmem:[%s12 + $0x4] sm:$0xf]
        %v10281 = vld [vmem:[%s12 + $0x8] sm:$0xf]
        %v10282 = vld [vmem:[%s12 + $0xc] sm:$0xf]
        %v10283 = vld [vmem:[%s12 + $0x10] sm:$0xf]
        %v10284 = vld [vmem:[%s12 + $0x14] sm:$0xf]
        %v10285 = vld [vmem:[%s12 + $0x18] sm:$0xf]
        %v10286 = vld [vmem:[%s12 + $0x1c] sm:$0xf]
        %v10287 = vld [vmem:[%s12 + $0x20] sm:$0xf]
        %v10288 = vld [vmem:[%s12 + $0x24] sm:$0xf]
        %v10289 = vld [vmem:[%s12 + $0x28] sm:$0xf]
        %v10290 = vld [vmem:[%s12 + $0x2c] sm:$0xf]
        %v10291 = vld [vmem:[%s12 + $0x30] sm:$0xf]
        %v10292 = vld [vmem:[%s12 + $0x34] sm:$0xf]
        %v10293 = vld [vmem:[%s12 + $0x38] sm:$0xf]
        %v10294 = vld [vmem:[%s12 + $0x3c] sm:$0xf]
        %v10295 = vld [vmem:[#allocation17] sm:$0x1]
        %v10297 = vlaneseq
        %v10298 = vshrl.u32 %v10297, 7
        %v10299 = vsub.s32 0, %v10298
        %v10300 = vrot.slane %v10295, %v10299
        %v10318 = vunpack.c.l.b16 %v10279
        %v10319 = vunpack.c.l.b16 %v10280
        %v10320 = vunpack.c.l.b16 %v10281
        %v10321 = vunpack.c.l.b16 %v10282
        %v10322 = vunpack.c.l.b16 %v10283
        %v10323 = vunpack.c.l.b16 %v10284
        %v10324 = vunpack.c.l.b16 %v10285
        %v10325 = vunpack.c.l.b16 %v10286
        %v10326 = vunpack.c.l.b16 %v10287
        %v10327 = vunpack.c.l.b16 %v10288
        %v10328 = vunpack.c.l.b16 %v10289
        %v10329 = vunpack.c.l.b16 %v10290
        %v10330 = vunpack.c.l.b16 %v10291
        %v10331 = vunpack.c.l.b16 %v10292
        %v10332 = vunpack.c.l.b16 %v10293
        %v10333 = vunpack.c.l.b16 %v10294
        %v10334 = vpack.c.b16 %v10319, %v10318
        %v10335 = vpack.c.b16 %v10321, %v10320
        %v10336 = vpack.c.b16 %v10323, %v10322
        %v10337 = vpack.c.b16 %v10325, %v10324
        %v10338 = vpack.c.b16 %v10327, %v10326
        %v10339 = vpack.c.b16 %v10329, %v10328
        %v10340 = vpack.c.b16 %v10331, %v10330
        %v10341 = vpack.c.b16 %v10333, %v10332
        %10350 = vmatprep.subr.bf16.mxu0 0
        %10351 = vmatpush1.bf16.msra.mxu0 %v10341
        %10352 = vmatprep.subr.bf16.mxu0 0
        %10353 = vmatpush1.bf16.msra.mxu0 %v10340
        %10354 = vmatprep.subr.bf16.mxu0 0
        %10355 = vmatpush1.bf16.msra.mxu0 %v10339
        %10356 = vmatprep.subr.bf16.mxu0 0
        %10357 = vmatpush1.bf16.msra.mxu0 %v10338
        %10358 = vmatprep.subr.bf16.mxu0 0
        %10359 = vmatpush1.bf16.msra.mxu0 %v10337
        %10360 = vmatprep.subr.bf16.mxu0 0
        %10361 = vmatpush1.bf16.msra.mxu0 %v10336
        %10362 = vmatprep.subr.bf16.mxu0 0
        %10363 = vmatpush1.bf16.msra.mxu0 %v10335
        %10364 = vmatprep.subr.bf16.mxu0 0
        %10365 = vmatpush1.bf16.msra.mxu0 %v10334
        %10366 = vmatprep.subr.bf16.mxu0 0
        %10367 = vmatpush2.bf16.msra.mxu0 0
        %10368 = vmatprep.subr.bf16.mxu0 0
        %10369 = vmatpush2.bf16.msra.mxu0 0
        %10370 = vmatprep.subr.bf16.mxu0 0
        %10371 = vmatpush2.bf16.msra.mxu0 0
        %10372 = vmatprep.subr.bf16.mxu0 0
        %10373 = vmatpush2.bf16.msra.mxu0 0
        %10374 = vmatprep.subr.bf16.mxu0 0
        %10375 = vmatpush2.bf16.msra.mxu0 0
        %10376 = vmatprep.subr.bf16.mxu0 0
        %10377 = vmatpush2.bf16.msra.mxu0 0
        %10378 = vmatprep.subr.bf16.mxu0 0
        %10379 = vmatpush2.bf16.msra.mxu0 0
        %10380 = vmatprep.subr.bf16.mxu0 0
        %10381 = vmatpush2.bf16.msra.mxu0 0
        %10382 = vmatprep.mubr.bf16.mxu0 0
        %10383 = vmatmul.mubr.bf16.gmra.mxu0 %v10278
        %v10384 = vpop.f32.mrf.mxu0
        %v10385 = vadd.f32 %v10300, %v10384
        %v10386 = vpop.f32.mrf.mxu0
        %v10387 = vpop.f32.mrf.mxu0
        %v10388 = vadd.f32 %v10300, %v10387
        %v10389 = vpop.f32.mrf.mxu0
        %10390 = vdwg.mxu0
        %vm10391 = vcmask 130048
        %10392 = vst.msk [vmem:[%s630] sm:$0xff] %vm10391, %v10385
        %10393 = vst.msk [vmem:[%s630 + $0x8] sm:$0xff] %vm10391, %v10388
        %s10394 = smul.u32 2, %s31
        %p10395 = scmp.lt.s32.totalorder %s10394, 3
        %s10396 = scalar_select %p10395, %s10394, 3
        %s10397 = smul.addr %s10396, 8
        %s10398 = scalar_lea.vmem %s14, %s10397
        // Predicated region
        $region117: #{encoder_forward.1} parent=75 // pred_check
          %p10399 = pneg %p353
        $region118: #{encoder_forward.1} parent=75 // pred_check_branch
          %10401 = sbr.rel (%p10399) target = $region120
        $region119: #{encoder_forward.1} parent=75 // pred_region
          %s10402 = smul.u32 2, %s31
        $region120: #{encoder_forward.1} parent=75 // pred_fallthru
          _
      $region76: #{encoder_forward.1} parent=5 // pred_fallthru
        _
      %p10403 = scmp.le.s32.totalorder 2, %s26
      // Predicated region
      $region121: #{encoder_forward.1} parent=5 // pred_check
        %p10404 = pneg %p10403
      $region122: #{encoder_forward.1} parent=5 // pred_check_branch
        %10406 = sbr.rel (%p10404) target = $region124
      $region123: #{encoder_forward.1} parent=5 // pred_region
        %s10407 = ssub.s32 %s26, 2
        // Predicated region
        $region125: #{encoder_forward.1} parent=123 // pred_check
          %p10408 = pneg %p359
        $region126: #{encoder_forward.1} parent=123 // pred_check_branch
          %10410 = sbr.rel (%p10408) target = $region128
        $region127: #{encoder_forward.1} parent=123 // pred_region
          %s10411 = smul.u32 2, %s32
          %p10412 = scmp.lt.s32.totalorder %s10411, 3
          %s10413 = scalar_select %p10412, %s10411, 3
          %s10414 = smul.addr %s10413, 8
          %s10415 = scalar_lea.vmem %s14, %s10414
        $region128: #{encoder_forward.1} parent=123 // pred_fallthru
          _
      $region124: #{encoder_forward.1} parent=5 // pred_fallthru
        _
    $region6: #{encoder_forward.1} parent=1 // loop_footer
      %s30 = sadd.s32 1, %s26
    $region7: #{encoder_forward.1} parent=1 // loop_footer_branch
      %25 = sbr.rel target = $region3
    $region8: #{encoder_forward.1} parent=1 // loop_exit
      _
    %10416 = vsyncpa [#allocation4], 1
    %s10417 = scalar_lea.sflag [#allocation4], 1
    %10418 = vsyncpa %s10417, 1
    %10419 = vsyncpa [#allocation6], 1
    %10420 = vsyncpa [#allocation9], 1
    %10421 = vsyncpa [#allocation12], 1
    %10422 = vsyncpa [#allocation15], 1
    %10423 = vsyncpa [#allocation18], 1

</llo_original>
